<compile_context>
chip_gen: v5e
topology: v5e:2x2
jax: 0.10.0
libtpu: 0.0.40
codegen_flags: <defaults>
</compile_context>

<pallas_src>
import functools

import jax
import jax.numpy as jnp
import numpy as np
from jax.experimental import pallas as pl
from jax.experimental.pallas import tpu as pltpu

NUM_INPUTS = 784
IN_PAD = 896            # 7 * 128: lane-aligned K for the first (largest) matmul
NUM_OUTPUTS = 36
OUT_PAD = 128           # lane-dense output block; sliced back to 36 in wrapper
HIDDEN = (1024, 1024, 512, 256, 128)
DROPOUT_PS = (0.4, 0.4, 0.4, 0.2, 0.2)   # dropout1 (p=.4) x3, dropout2 (p=.2) x2


def _round_up(x, m):
    return (x + m - 1) // m * m


# ----------------------------------------------------------------------------
# Kernel: one batch tile of the fused 6-layer MLP.
# refs = (x, w1,b1, ..., w6,b6, [m1..m5,] out)
# x / w* are bf16; biases, masks and the output are f32.
# ----------------------------------------------------------------------------
def _mlp_kernel(*refs, is_training: bool):
    if is_training:
        (x_ref, w1, b1, w2, b2, w3, b3, w4, b4, w5, b5, w6, b6,
         m1, m2, m3, m4, m5, out_ref) = refs
        masks = (m1, m2, m3, m4, m5)
    else:
        (x_ref, w1, b1, w2, b2, w3, b3, w4, b4, w5, b5, w6, b6,
         out_ref) = refs
        masks = (None,) * 5

    def hidden_layer(h, w_ref, b_ref, m_ref):
        # bf16 x bf16 matmul with f32 accumulation on the MXU.
        y = jnp.dot(h, w_ref[...], preferred_element_type=jnp.float32)
        y = jnp.maximum(y + b_ref[...], 0.0)           # bias + ReLU
        if m_ref is not None:                          # inverted dropout
            y = y * m_ref[...]
        return y.astype(jnp.bfloat16)                  # bf16 back onto the MXU

    h = x_ref[...]
    for w_ref, b_ref, m_ref in zip((w1, w2, w3, w4, w5),
                                   (b1, b2, b3, b4, b5), masks):
        h = hidden_layer(h, w_ref, b_ref, m_ref)

    logits = jnp.dot(h, w6[...], preferred_element_type=jnp.float32) + b6[...]
    out_ref[...] = logits


# ----------------------------------------------------------------------------
# Parameter / mask prep (plain JAX glue)
# ----------------------------------------------------------------------------
def _prepare_params(params):
    """Weights stored (in_features, out_features) (transpose of nn.Linear).

    Pads W1's K dim 784->896 and W6/b6's N dim 36->128 with zeros, casts
    weights to bf16, keeps biases f32 as (1, N) rows.
    """
    ws, bs = [], []
    n = len(params)
    for i, (w, b) in enumerate(params):
        w = w.astype(jnp.float32)
        b = b.astype(jnp.float32)
        if i == 0:
            w = jnp.pad(w, ((0, IN_PAD - NUM_INPUTS), (0, 0)))
        if i == n - 1:
            w = jnp.pad(w, ((0, 0), (0, OUT_PAD - NUM_OUTPUTS)))
            b = jnp.pad(b, (0, OUT_PAD - NUM_OUTPUTS))
        ws.append(w.astype(jnp.bfloat16))
        bs.append(b.reshape(1, -1))
    return ws, bs


def _dropout_masks(key, batch):
    """PyTorch inverted dropout: keep w.p. (1-p), scale kept values by 1/(1-p)."""
    keys = jax.random.split(key, len(HIDDEN))
    masks = []
    for k, width, p in zip(keys, HIDDEN, DROPOUT_PS):
        keep = jax.random.bernoulli(k, 1.0 - p, (batch, width))
        masks.append(keep.astype(jnp.float32) * (1.0 / (1.0 - p)))
    return masks


# ----------------------------------------------------------------------------
# Wrapper
# ----------------------------------------------------------------------------
@functools.partial(jax.jit, static_argnames=("is_training", "block_b"))
def net_forward(x, params, dropout_key, *, is_training=True, block_b=128):
    """x: (B, 1, 28, 28) NCHW.  Returns logits (B, 36) float32.

    block_b: batch rows per grid step.  128 fills the v5e MXU (4x128x128);
    use 256 on v6e/v7x (256x256 MXU) when the batch is large enough.
    """
    B = x.shape[0]
    x2d = x.reshape(B, NUM_INPUTS).astype(jnp.float32)

    tb = min(block_b, _round_up(B, 8))          # small demo batch -> one tile
    b_pad = _round_up(B, tb)
    x2d = jnp.pad(x2d, ((0, b_pad - B), (0, IN_PAD - NUM_INPUTS)))
    x2d = x2d.astype(jnp.bfloat16)

    ws, bs = _prepare_params(params)
    flat_wb, wb_specs = [], []
    for w, b in zip(ws, bs):
        flat_wb += [w, b]
        # Constant index_map: weights/biases stay VMEM-resident across all
        # batch tiles (DMA'd once, amortized over the whole batch).
        # NOTE: pipeline_mode=pl.Buffered(1) here would halve their VMEM
        # footprint; omitted since the bf16 weights already fit comfortably.
        wb_specs += [pl.BlockSpec(w.shape, lambda i: (0, 0)),
                     pl.BlockSpec(b.shape, lambda i: (0, 0))]

    masks, mask_specs = [], []
    if is_training:
        masks = _dropout_masks(dropout_key, b_pad)
        mask_specs = [pl.BlockSpec((tb, width), lambda i: (i, 0))
                      for width in HIDDEN]

    grid = (b_pad // tb,)
    kernel = functools.partial(_mlp_kernel, is_training=is_training)

    out = pl.pallas_call(
        kernel,
        grid=grid,
        out_shape=jax.ShapeDtypeStruct((b_pad, OUT_PAD), jnp.float32),
        in_specs=[pl.BlockSpec((tb, IN_PAD), lambda i: (i, 0))]
                 + wb_specs + mask_specs,
        out_specs=pl.BlockSpec((tb, OUT_PAD), lambda i: (i, 0)),
        compiler_params=pltpu.CompilerParams(
            dimension_semantics=("parallel",),     # v7x: 2 TCs share the batch
            vmem_limit_bytes=40 * 1024 * 1024,     # fits v7x's 64 MiB VMEM
        ),
    )(x2d, *flat_wb, *masks)

    return out[:B, :NUM_OUTPUTS]


# ----------------------------------------------------------------------------
# Deterministic init (nn.Linear default: U(-1/sqrt(fan_in), +1/sqrt(fan_in)))
# Weights stored (in_features, out_features).
# ----------------------------------------------------------------------------
def init_params(key):
    dims = (NUM_INPUTS,) + HIDDEN + (NUM_OUTPUTS,)
    params = []
    for i in range(len(dims) - 1):
        fan_in, fan_out = dims[i], dims[i + 1]
        key, kw, kb = jax.random.split(key, 3)
        bound = 1.0 / np.sqrt(fan_in)
        w = jax.random.uniform(kw, (fan_in, fan_out), jnp.float32, -bound, bound)
        b = jax.random.uniform(kb, (fan_out,), jnp.float32, -bound, bound)
        params.append((w, b))
    return params


def ref_forward(x, params, masks=None):
    """Pure-JAX reference using the same bf16-weight / f32-accumulate recipe."""
    h = x.reshape(x.shape[0], NUM_INPUTS).astype(jnp.float32).astype(jnp.bfloat16)
    for i, (w, b) in enumerate(params):
        y = jnp.dot(h, w.astype(jnp.bfloat16),
                    preferred_element_type=jnp.float32) + b
        if i == len(params) - 1:
            return y
        y = jnp.maximum(y, 0.0)
        if masks is not None:
            y = y * masks[i][: x.shape[0]]
        h = y.astype(jnp.bfloat16)


if __name__ == "__main__":
    key = jax.random.PRNGKey(0)
    pkey, xkey, dkey = jax.random.split(key, 3)

    params = init_params(pkey)
    B = 8
    x = jax.random.normal(xkey, (B, 1, 28, 28), jnp.float32)   # NCHW input

    # 1) Eval mode (deterministic, no dropout) vs pure-JAX reference.
    logits_eval = jax.block_until_ready(net_forward(x, params, dkey,
                                                    is_training=False))
    ref_eval = jax.block_until_ready(ref_forward(x, params))
    np.testing.assert_allclose(np.asarray(logits_eval), np.asarray(ref_eval),
                               rtol=5e-2, atol=5e-2)

    # 2) Training mode (PyTorch default): same wrapper-generated dropout masks
    #    drive both kernel and reference.
    logits_train = jax.block_until_ready(net_forward(x, params, dkey,
                                                     is_training=True))
    assert logits_train.shape == (B, NUM_OUTPUTS)
    assert bool(jnp.all(jnp.isfinite(logits_train)))
    masks = _dropout_masks(dkey, B)          # B == padded batch for this demo
    ref_train = jax.block_until_ready(ref_forward(x, params, masks))
    np.testing.assert_allclose(np.asarray(logits_train), np.asarray(ref_train),
                               rtol=5e-2, atol=5e-2)

    print("KERNEL_OK")
</pallas_src>

<mosaic_0001>
module attributes {stable_mosaic.version = 11 : i64} {
  func.func @_mlp_kernel(%arg0: i32, %arg1: memref<8x896xbf16, #tpu.memory_space<vmem>>, %arg2: memref<896x1024xbf16, #tpu.memory_space<vmem>>, %arg3: memref<1x1024xf32, #tpu.memory_space<vmem>>, %arg4: memref<1024x1024xbf16, #tpu.memory_space<vmem>>, %arg5: memref<1x1024xf32, #tpu.memory_space<vmem>>, %arg6: memref<1024x512xbf16, #tpu.memory_space<vmem>>, %arg7: memref<1x512xf32, #tpu.memory_space<vmem>>, %arg8: memref<512x256xbf16, #tpu.memory_space<vmem>>, %arg9: memref<1x256xf32, #tpu.memory_space<vmem>>, %arg10: memref<256x128xbf16, #tpu.memory_space<vmem>>, %arg11: memref<1x128xf32, #tpu.memory_space<vmem>>, %arg12: memref<128x128xbf16, #tpu.memory_space<vmem>>, %arg13: memref<1x128xf32, #tpu.memory_space<vmem>>, %arg14: memref<8x128xf32, #tpu.memory_space<vmem>>) attributes {dimension_semantics = [#tpu.dimension_semantics<parallel>], iteration_bounds = array<i64: 1>, scalar_prefetch = 0 : i64, scratch_operands = 0 : i64, tpu.core_type = #tpu.core_type<tc>, window_params = [{transform_indices = @transform_0, window_bounds = array<i64: 8, 896>}, {pipeline_mode = #tpu.pipeline_mode<synchronous>, transform_indices = @transform_1, window_bounds = array<i64: 896, 1024>}, {pipeline_mode = #tpu.pipeline_mode<synchronous>, transform_indices = @transform_2, window_bounds = array<i64: 1, 1024>}, {pipeline_mode = #tpu.pipeline_mode<synchronous>, transform_indices = @transform_3, window_bounds = array<i64: 1024, 1024>}, {pipeline_mode = #tpu.pipeline_mode<synchronous>, transform_indices = @transform_4, window_bounds = array<i64: 1, 1024>}, {pipeline_mode = #tpu.pipeline_mode<synchronous>, transform_indices = @transform_5, window_bounds = array<i64: 1024, 512>}, {pipeline_mode = #tpu.pipeline_mode<synchronous>, transform_indices = @transform_6, window_bounds = array<i64: 1, 512>}, {pipeline_mode = #tpu.pipeline_mode<synchronous>, transform_indices = @transform_7, window_bounds = array<i64: 512, 256>}, {pipeline_mode = #tpu.pipeline_mode<synchronous>, transform_indices = @transform_8, window_bounds = array<i64: 1, 256>}, {pipeline_mode = #tpu.pipeline_mode<synchronous>, transform_indices = @transform_9, window_bounds = array<i64: 256, 128>}, {pipeline_mode = #tpu.pipeline_mode<synchronous>, transform_indices = @transform_10, window_bounds = array<i64: 1, 128>}, {pipeline_mode = #tpu.pipeline_mode<synchronous>, transform_indices = @transform_11, window_bounds = array<i64: 128, 128>}, {pipeline_mode = #tpu.pipeline_mode<synchronous>, transform_indices = @transform_12, window_bounds = array<i64: 1, 128>}, {transform_indices = @transform_13, window_bounds = array<i64: 8, 128>}]} {
    %c0 = arith.constant 0 : index
    %c0_0 = arith.constant 0 : index
    %0 = vector.load %arg1[%c0, %c0_0] : memref<8x896xbf16, #tpu.memory_space<vmem>>, vector<8x896xbf16>
    %c0_1 = arith.constant 0 : index
    %c0_2 = arith.constant 0 : index
    %1 = vector.load %arg2[%c0_1, %c0_2] : memref<896x1024xbf16, #tpu.memory_space<vmem>>, vector<896x1024xbf16>
    %cst = arith.constant dense<0.000000e+00> : vector<8x1024xf32>
    %2 = tpu.matmul %0, %1, %cst {dimension_numbers = #tpu.dot_dimension_numbers<[1], [0], [0], [1], [0, 0, 1, 1], [], []>} : vector<8x896xbf16>, vector<896x1024xbf16>, vector<8x1024xf32> -> vector<8x1024xf32>
    %c0_3 = arith.constant 0 : index
    %c0_4 = arith.constant 0 : index
    %3 = vector.load %arg3[%c0_3, %c0_4] : memref<1x1024xf32, #tpu.memory_space<vmem>>, vector<1x1024xf32>
    %4 = vector.broadcast %3 : vector<1x1024xf32> to vector<8x1024xf32>
    %5 = arith.addf %2, %4 : vector<8x1024xf32>
    %cst_5 = arith.constant 0.000000e+00 : f32
    %6 = vector.broadcast %cst_5 : f32 to vector<8x1024xf32>
    %7 = arith.maximumf %5, %6 : vector<8x1024xf32>
    %8 = arith.truncf %7 : vector<8x1024xf32> to vector<8x1024xbf16>
    %c0_6 = arith.constant 0 : index
    %c0_7 = arith.constant 0 : index
    %9 = vector.load %arg4[%c0_6, %c0_7] : memref<1024x1024xbf16, #tpu.memory_space<vmem>>, vector<1024x1024xbf16>
    %cst_8 = arith.constant dense<0.000000e+00> : vector<8x1024xf32>
    %10 = tpu.matmul %8, %9, %cst_8 {dimension_numbers = #tpu.dot_dimension_numbers<[1], [0], [0], [1], [0, 0, 1, 1], [], []>} : vector<8x1024xbf16>, vector<1024x1024xbf16>, vector<8x1024xf32> -> vector<8x1024xf32>
    %c0_9 = arith.constant 0 : index
    %c0_10 = arith.constant 0 : index
    %11 = vector.load %arg5[%c0_9, %c0_10] : memref<1x1024xf32, #tpu.memory_space<vmem>>, vector<1x1024xf32>
    %12 = vector.broadcast %11 : vector<1x1024xf32> to vector<8x1024xf32>
    %13 = arith.addf %10, %12 : vector<8x1024xf32>
    %cst_11 = arith.constant 0.000000e+00 : f32
    %14 = vector.broadcast %cst_11 : f32 to vector<8x1024xf32>
    %15 = arith.maximumf %13, %14 : vector<8x1024xf32>
    %16 = arith.truncf %15 : vector<8x1024xf32> to vector<8x1024xbf16>
    %c0_12 = arith.constant 0 : index
    %c0_13 = arith.constant 0 : index
    %17 = vector.load %arg6[%c0_12, %c0_13] : memref<1024x512xbf16, #tpu.memory_space<vmem>>, vector<1024x512xbf16>
    %cst_14 = arith.constant dense<0.000000e+00> : vector<8x512xf32>
    %18 = tpu.matmul %16, %17, %cst_14 {dimension_numbers = #tpu.dot_dimension_numbers<[1], [0], [0], [1], [0, 0, 1, 1], [], []>} : vector<8x1024xbf16>, vector<1024x512xbf16>, vector<8x512xf32> -> vector<8x512xf32>
    %c0_15 = arith.constant 0 : index
    %c0_16 = arith.constant 0 : index
    %19 = vector.load %arg7[%c0_15, %c0_16] : memref<1x512xf32, #tpu.memory_space<vmem>>, vector<1x512xf32>
    %20 = vector.broadcast %19 : vector<1x512xf32> to vector<8x512xf32>
    %21 = arith.addf %18, %20 : vector<8x512xf32>
    %cst_17 = arith.constant 0.000000e+00 : f32
    %22 = vector.broadcast %cst_17 : f32 to vector<8x512xf32>
    %23 = arith.maximumf %21, %22 : vector<8x512xf32>
    %24 = arith.truncf %23 : vector<8x512xf32> to vector<8x512xbf16>
    %c0_18 = arith.constant 0 : index
    %c0_19 = arith.constant 0 : index
    %25 = vector.load %arg8[%c0_18, %c0_19] : memref<512x256xbf16, #tpu.memory_space<vmem>>, vector<512x256xbf16>
    %cst_20 = arith.constant dense<0.000000e+00> : vector<8x256xf32>
    %26 = tpu.matmul %24, %25, %cst_20 {dimension_numbers = #tpu.dot_dimension_numbers<[1], [0], [0], [1], [0, 0, 1, 1], [], []>} : vector<8x512xbf16>, vector<512x256xbf16>, vector<8x256xf32> -> vector<8x256xf32>
    %c0_21 = arith.constant 0 : index
    %c0_22 = arith.constant 0 : index
    %27 = vector.load %arg9[%c0_21, %c0_22] : memref<1x256xf32, #tpu.memory_space<vmem>>, vector<1x256xf32>
    %28 = vector.broadcast %27 : vector<1x256xf32> to vector<8x256xf32>
    %29 = arith.addf %26, %28 : vector<8x256xf32>
    %cst_23 = arith.constant 0.000000e+00 : f32
    %30 = vector.broadcast %cst_23 : f32 to vector<8x256xf32>
    %31 = arith.maximumf %29, %30 : vector<8x256xf32>
    %32 = arith.truncf %31 : vector<8x256xf32> to vector<8x256xbf16>
    %c0_24 = arith.constant 0 : index
    %c0_25 = arith.constant 0 : index
    %33 = vector.load %arg10[%c0_24, %c0_25] : memref<256x128xbf16, #tpu.memory_space<vmem>>, vector<256x128xbf16>
    %cst_26 = arith.constant dense<0.000000e+00> : vector<8x128xf32>
    %34 = tpu.matmul %32, %33, %cst_26 {dimension_numbers = #tpu.dot_dimension_numbers<[1], [0], [0], [1], [0, 0, 1, 1], [], []>} : vector<8x256xbf16>, vector<256x128xbf16>, vector<8x128xf32> -> vector<8x128xf32>
    %c0_27 = arith.constant 0 : index
    %c0_28 = arith.constant 0 : index
    %35 = vector.load %arg11[%c0_27, %c0_28] : memref<1x128xf32, #tpu.memory_space<vmem>>, vector<1x128xf32>
    %36 = vector.broadcast %35 : vector<1x128xf32> to vector<8x128xf32>
    %37 = arith.addf %34, %36 : vector<8x128xf32>
    %cst_29 = arith.constant 0.000000e+00 : f32
    %38 = vector.broadcast %cst_29 : f32 to vector<8x128xf32>
    %39 = arith.maximumf %37, %38 : vector<8x128xf32>
    %40 = arith.truncf %39 : vector<8x128xf32> to vector<8x128xbf16>
    %c0_30 = arith.constant 0 : index
    %c0_31 = arith.constant 0 : index
    %41 = vector.load %arg12[%c0_30, %c0_31] : memref<128x128xbf16, #tpu.memory_space<vmem>>, vector<128x128xbf16>
    %cst_32 = arith.constant dense<0.000000e+00> : vector<8x128xf32>
    %42 = tpu.matmul %40, %41, %cst_32 {dimension_numbers = #tpu.dot_dimension_numbers<[1], [0], [0], [1], [0, 0, 1, 1], [], []>} : vector<8x128xbf16>, vector<128x128xbf16>, vector<8x128xf32> -> vector<8x128xf32>
    %c0_33 = arith.constant 0 : index
    %c0_34 = arith.constant 0 : index
    %43 = vector.load %arg13[%c0_33, %c0_34] : memref<1x128xf32, #tpu.memory_space<vmem>>, vector<1x128xf32>
    %44 = vector.broadcast %43 : vector<1x128xf32> to vector<8x128xf32>
    %45 = arith.addf %42, %44 : vector<8x128xf32>
    %c0_35 = arith.constant 0 : index
    %c0_36 = arith.constant 0 : index
    %46 = vector.load %arg14[%c0_35, %c0_36] : memref<8x128xf32, #tpu.memory_space<vmem>>, vector<8x128xf32>
    tpu.vector_store %arg14[%c0_35, %c0_36], %45 {strides = array<i32>} : memref<8x128xf32, #tpu.memory_space<vmem>>, vector<8x128xf32>,
    return
  }
  func.func @transform_0(%arg0: i32) -> (i32, i32) {
    %c0_i32 = arith.constant 0 : i32
    %c0_i32_0 = arith.constant 0 : i32
    return %arg0, %c0_i32 : i32, i32
  }
  func.func @transform_1(%arg0: i32) -> (i32, i32) {
    %c0_i32 = arith.constant 0 : i32
    %c0_i32_0 = arith.constant 0 : i32
    %c0_i32_1 = arith.constant 0 : i32
    return %c0_i32, %c0_i32_0 : i32, i32
  }
  func.func @transform_2(%arg0: i32) -> (i32, i32) {
    %c0_i32 = arith.constant 0 : i32
    %c0_i32_0 = arith.constant 0 : i32
    %c0_i32_1 = arith.constant 0 : i32
    return %c0_i32, %c0_i32_0 : i32, i32
  }
  func.func @transform_3(%arg0: i32) -> (i32, i32) {
    %c0_i32 = arith.constant 0 : i32
    %c0_i32_0 = arith.constant 0 : i32
    %c0_i32_1 = arith.constant 0 : i32
    return %c0_i32, %c0_i32_0 : i32, i32
  }
  func.func @transform_4(%arg0: i32) -> (i32, i32) {
    %c0_i32 = arith.constant 0 : i32
    %c0_i32_0 = arith.constant 0 : i32
    %c0_i32_1 = arith.constant 0 : i32
    return %c0_i32, %c0_i32_0 : i32, i32
  }
  func.func @transform_5(%arg0: i32) -> (i32, i32) {
    %c0_i32 = arith.constant 0 : i32
    %c0_i32_0 = arith.constant 0 : i32
    %c0_i32_1 = arith.constant 0 : i32
    return %c0_i32, %c0_i32_0 : i32, i32
  }
  func.func @transform_6(%arg0: i32) -> (i32, i32) {
    %c0_i32 = arith.constant 0 : i32
    %c0_i32_0 = arith.constant 0 : i32
    %c0_i32_1 = arith.constant 0 : i32
    return %c0_i32, %c0_i32_0 : i32, i32
  }
  func.func @transform_7(%arg0: i32) -> (i32, i32) {
    %c0_i32 = arith.constant 0 : i32
    %c0_i32_0 = arith.constant 0 : i32
    %c0_i32_1 = arith.constant 0 : i32
    return %c0_i32, %c0_i32_0 : i32, i32
  }
  func.func @transform_8(%arg0: i32) -> (i32, i32) {
    %c0_i32 = arith.constant 0 : i32
    %c0_i32_0 = arith.constant 0 : i32
    %c0_i32_1 = arith.constant 0 : i32
    return %c0_i32, %c0_i32_0 : i32, i32
  }
  func.func @transform_9(%arg0: i32) -> (i32, i32) {
    %c0_i32 = arith.constant 0 : i32
    %c0_i32_0 = arith.constant 0 : i32
    %c0_i32_1 = arith.constant 0 : i32
    return %c0_i32, %c0_i32_0 : i32, i32
  }
  func.func @transform_10(%arg0: i32) -> (i32, i32) {
    %c0_i32 = arith.constant 0 : i32
    %c0_i32_0 = arith.constant 0 : i32
    %c0_i32_1 = arith.constant 0 : i32
    return %c0_i32, %c0_i32_0 : i32, i32
  }
  func.func @transform_11(%arg0: i32) -> (i32, i32) {
    %c0_i32 = arith.constant 0 : i32
    %c0_i32_0 = arith.constant 0 : i32
    %c0_i32_1 = arith.constant 0 : i32
    return %c0_i32, %c0_i32_0 : i32, i32
  }
  func.func @transform_12(%arg0: i32) -> (i32, i32) {
    %c0_i32 = arith.constant 0 : i32
    %c0_i32_0 = arith.constant 0 : i32
    %c0_i32_1 = arith.constant 0 : i32
    return %c0_i32, %c0_i32_0 : i32, i32
  }
  func.func @transform_13(%arg0: i32) -> (i32, i32) {
    %c0_i32 = arith.constant 0 : i32
    %c0_i32_0 = arith.constant 0 : i32
    return %arg0, %c0_i32 : i32, i32
  }
}

</mosaic_0001>

<llo_original>
// kernel: net_forward.1
$region0: #{net_forward.1}
  #allocation0 [shape = 'u32[]', space=smem, size = 0x4, offset = 0x4, fixed_abs, tag = 'smem constant byte address 0x4 - core index']
  #allocation1 [shape = 'u32[72,128]{1,0:T(1,128)}', space=vmem, size = 0x9000, scoped, tag = 'internal scratch']
  %s0 = inlined_call_operand.vmem [shape: bf16[8,896], index: 0, kind: input, shape index: {}]
  %s1 = inlined_call_operand.vmem [shape: bf16[896,1024], index: 1, kind: input, shape index: {}]
  %s2 = inlined_call_operand.vmem [shape: f32[1,1024], index: 2, kind: input, shape index: {}]
  %s3 = inlined_call_operand.vmem [shape: bf16[1024,1024], index: 3, kind: input, shape index: {}]
  %s4 = inlined_call_operand.vmem [shape: f32[1,1024], index: 4, kind: input, shape index: {}]
  %s5 = inlined_call_operand.vmem [shape: bf16[1024,512], index: 5, kind: input, shape index: {}]
  %s6 = inlined_call_operand.vmem [shape: f32[1,512], index: 6, kind: input, shape index: {}]
  %s7 = inlined_call_operand.vmem [shape: bf16[512,256], index: 7, kind: input, shape index: {}]
  %s8 = inlined_call_operand.vmem [shape: f32[1,256], index: 8, kind: input, shape index: {}]
  %s9 = inlined_call_operand.vmem [shape: bf16[256,128], index: 9, kind: input, shape index: {}]
  %s10 = inlined_call_operand.vmem [shape: f32[1,128], index: 10, kind: input, shape index: {}]
  %s11 = inlined_call_operand.vmem [shape: bf16[128,128], index: 11, kind: input, shape index: {}]
  %s12 = inlined_call_operand.vmem [shape: f32[1,128], index: 12, kind: input, shape index: {}]
  %s13 = inlined_call_operand.hbm [shape: f32[8,128], index: 13, kind: output, shape index: {}]
  %s14 = sld [smem:[#allocation0]]
  $region62: #{net_forward.1} parent=0
    _
  %s16 = ssub.s32 1, %s14
  %s17 = scalar_select 0, %s16, %s14
  $region1: #{net_forward.1} parent=0
    #allocation2 [shape = 'u8[4096]{0}', space=vmem, size = 0x1000, scoped, tag = 'output window, operand 0, single buffered']
    #allocation3 [shape = 's32[1]{0}', space=sflag, size = 0x4, scoped, tag = 'scoped memory for net_forward.1']
    %18 = vsyncpa [#allocation3], 0
    // Predicated region
    $region2: #{net_forward.1} parent=1 // pred_check
      _
    $region3: #{net_forward.1} parent=1 // pred_check_branch
      %20 = sbr.rel (0) target = $region5
    $region4: #{net_forward.1} parent=1 // pred_region
      _
    $region5: #{net_forward.1} parent=1 // pred_fallthru
      _
    // Predicated region
    $region6: #{net_forward.1} parent=1 // pred_check
      _
    $region7: #{net_forward.1} parent=1 // pred_check_branch
      %22 = sbr.rel (0) target = $region9
    $region8: #{net_forward.1} parent=1 // pred_region
      _
    $region9: #{net_forward.1} parent=1 // pred_fallthru
      _
    // Predicated region
    $region10: #{net_forward.1} parent=1 // pred_check
      _
    $region11: #{net_forward.1} parent=1 // pred_check_branch
      %24 = sbr.rel (0) target = $region13
    $region12: #{net_forward.1} parent=1 // pred_region
      _
    $region13: #{net_forward.1} parent=1 // pred_fallthru
      _
    // Predicated region
    $region14: #{net_forward.1} parent=1 // pred_check
      _
    $region15: #{net_forward.1} parent=1 // pred_check_branch
      %26 = sbr.rel (0) target = $region17
    $region16: #{net_forward.1} parent=1 // pred_region
      _
    $region17: #{net_forward.1} parent=1 // pred_fallthru
      _
    // Predicated region
    $region18: #{net_forward.1} parent=1 // pred_check
      _
    $region19: #{net_forward.1} parent=1 // pred_check_branch
      %28 = sbr.rel (0) target = $region21
    $region20: #{net_forward.1} parent=1 // pred_region
      _
    $region21: #{net_forward.1} parent=1 // pred_fallthru
      _
    // Predicated region
    $region22: #{net_forward.1} parent=1 // pred_check
      _
    $region23: #{net_forward.1} parent=1 // pred_check_branch
      %30 = sbr.rel (0) target = $region25
    $region24: #{net_forward.1} parent=1 // pred_region
      _
    $region25: #{net_forward.1} parent=1 // pred_fallthru
      _
    // Predicated region
    $region26: #{net_forward.1} parent=1 // pred_check
      _
    $region27: #{net_forward.1} parent=1 // pred_check_branch
      %32 = sbr.rel (0) target = $region29
    $region28: #{net_forward.1} parent=1 // pred_region
      _
    $region29: #{net_forward.1} parent=1 // pred_fallthru
      _
    // Predicated region
    $region30: #{net_forward.1} parent=1 // pred_check
      _
    $region31: #{net_forward.1} parent=1 // pred_check_branch
      %34 = sbr.rel (0) target = $region33
    $region32: #{net_forward.1} parent=1 // pred_region
      _
    $region33: #{net_forward.1} parent=1 // pred_fallthru
      _
    // Predicated region
    $region34: #{net_forward.1} parent=1 // pred_check
      _
    $region35: #{net_forward.1} parent=1 // pred_check_branch
      %36 = sbr.rel (0) target = $region37
    $region36: #{net_forward.1} parent=1 // pred_region
      _
    $region37: #{net_forward.1} parent=1 // pred_fallthru
      _
    // Predicated region
    $region38: #{net_forward.1} parent=1 // pred_check
      _
    $region39: #{net_forward.1} parent=1 // pred_check_branch
      %38 = sbr.rel (0) target = $region41
    $region40: #{net_forward.1} parent=1 // pred_region
      _
    $region41: #{net_forward.1} parent=1 // pred_fallthru
      _
    // Predicated region
    $region42: #{net_forward.1} parent=1 // pred_check
      _
    $region43: #{net_forward.1} parent=1 // pred_check_branch
      %40 = sbr.rel (0) target = $region45
    $region44: #{net_forward.1} parent=1 // pred_region
      _
    $region45: #{net_forward.1} parent=1 // pred_fallthru
      _
    // Predicated region
    $region46: #{net_forward.1} parent=1 // pred_check
      _
    $region47: #{net_forward.1} parent=1 // pred_check_branch
      %42 = sbr.rel (0) target = $region49
    $region48: #{net_forward.1} parent=1 // pred_region
      _
    $region49: #{net_forward.1} parent=1 // pred_fallthru
      _
    // Predicated region
    $region50: #{net_forward.1} parent=1 // pred_check
      _
    $region51: #{net_forward.1} parent=1 // pred_check_branch
      %44 = sbr.rel (0) target = $region53
    $region52: #{net_forward.1} parent=1 // pred_region
      _
    $region53: #{net_forward.1} parent=1 // pred_fallthru
      _
    %v45 = vld [vmem:[%s0] sm:$0xff]
    %v46 = vld [vmem:[%s0 + $0x8] sm:$0xff]
    %v47 = vld [vmem:[%s0 + $0x10] sm:$0xff]
    %v48 = vld [vmem:[%s0 + $0x18] sm:$0xf]
    %v49 = vld [vmem:[%s1] sm:$0xff]
    %v50 = vld [vmem:[%s1 + $0x8] sm:$0xff]
    %v51 = vld [vmem:[%s1 + $0x10] sm:$0xff]
    %v52 = vld [vmem:[%s1 + $0x18] sm:$0xff]
    %v53 = vld [vmem:[%s1 + $0x20] sm:$0xff]
    %v54 = vld [vmem:[%s1 + $0x28] sm:$0xff]
    %v55 = vld [vmem:[%s1 + $0x30] sm:$0xff]
    %v56 = vld [vmem:[%s1 + $0x38] sm:$0xff]
    %v57 = vld [vmem:[%s1 + $0x40] sm:$0xff]
    %v58 = vld [vmem:[%s1 + $0x48] sm:$0xff]
    %v59 = vld [vmem:[%s1 + $0x50] sm:$0xff]
    %v60 = vld [vmem:[%s1 + $0x58] sm:$0xff]
    %v61 = vld [vmem:[%s1 + $0x60] sm:$0xff]
    %v62 = vld [vmem:[%s1 + $0x68] sm:$0xff]
    %v63 = vld [vmem:[%s1 + $0x70] sm:$0xff]
    %v64 = vld [vmem:[%s1 + $0x78] sm:$0xff]
    %v65 = vld [vmem:[%s1 + $0x80] sm:$0xff]
    %v66 = vld [vmem:[%s1 + $0x88] sm:$0xff]
    %v67 = vld [vmem:[%s1 + $0x90] sm:$0xff]
    %v68 = vld [vmem:[%s1 + $0x98] sm:$0xff]
    %v69 = vld [vmem:[%s1 + $0xa0] sm:$0xff]
    %v70 = vld [vmem:[%s1 + $0xa8] sm:$0xff]
    %v71 = vld [vmem:[%s1 + $0xb0] sm:$0xff]
    %v72 = vld [vmem:[%s1 + $0xb8] sm:$0xff]
    %v73 = vld [vmem:[%s1 + $0xc0] sm:$0xff]
    %v74 = vld [vmem:[%s1 + $0xc8] sm:$0xff]
    %v75 = vld [vmem:[%s1 + $0xd0] sm:$0xff]
    %v76 = vld [vmem:[%s1 + $0xd8] sm:$0xff]
    %v77 = vld [vmem:[%s1 + $0xe0] sm:$0xff]
    %v78 = vld [vmem:[%s1 + $0xe8] sm:$0xff]
    %v79 = vld [vmem:[%s1 + $0xf0] sm:$0xff]
    %v80 = vld [vmem:[%s1 + $0xf8] sm:$0xff]
    %v81 = vld [vmem:[%s1 + $0x100] sm:$0xff]
    %v82 = vld [vmem:[%s1 + $0x108] sm:$0xff]
    %v83 = vld [vmem:[%s1 + $0x110] sm:$0xff]
    %v84 = vld [vmem:[%s1 + $0x118] sm:$0xff]
    %v85 = vld [vmem:[%s1 + $0x120] sm:$0xff]
    %v86 = vld [vmem:[%s1 + $0x128] sm:$0xff]
    %v87 = vld [vmem:[%s1 + $0x130] sm:$0xff]
    %v88 = vld [vmem:[%s1 + $0x138] sm:$0xff]
    %v89 = vld [vmem:[%s1 + $0x140] sm:$0xff]
    %v90 = vld [vmem:[%s1 + $0x148] sm:$0xff]
    %v91 = vld [vmem:[%s1 + $0x150] sm:$0xff]
    %v92 = vld [vmem:[%s1 + $0x158] sm:$0xff]
    %v93 = vld [vmem:[%s1 + $0x160] sm:$0xff]
    %v94 = vld [vmem:[%s1 + $0x168] sm:$0xff]
    %v95 = vld [vmem:[%s1 + $0x170] sm:$0xff]
    %v96 = vld [vmem:[%s1 + $0x178] sm:$0xff]
    %v97 = vld [vmem:[%s1 + $0x180] sm:$0xff]
    %v98 = vld [vmem:[%s1 + $0x188] sm:$0xff]
    %v99 = vld [vmem:[%s1 + $0x190] sm:$0xff]
    %v100 = vld [vmem:[%s1 + $0x198] sm:$0xff]
    %v101 = vld [vmem:[%s1 + $0x1a0] sm:$0xff]
    %v102 = vld [vmem:[%s1 + $0x1a8] sm:$0xff]
    %v103 = vld [vmem:[%s1 + $0x1b0] sm:$0xff]
    %v104 = vld [vmem:[%s1 + $0x1b8] sm:$0xff]
    %v105 = vld [vmem:[%s1 + $0x1c0] sm:$0xff]
    %v106 = vld [vmem:[%s1 + $0x1c8] sm:$0xff]
    %v107 = vld [vmem:[%s1 + $0x1d0] sm:$0xff]
    %v108 = vld [vmem:[%s1 + $0x1d8] sm:$0xff]
    %v109 = vld [vmem:[%s1 + $0x1e0] sm:$0xff]
    %v110 = vld [vmem:[%s1 + $0x1e8] sm:$0xff]
    %v111 = vld [vmem:[%s1 + $0x1f0] sm:$0xff]
    %v112 = vld [vmem:[%s1 + $0x1f8] sm:$0xff]
    %v113 = vld [vmem:[%s1 + $0x200] sm:$0xff]
    %v114 = vld [vmem:[%s1 + $0x208] sm:$0xff]
    %v115 = vld [vmem:[%s1 + $0x210] sm:$0xff]
    %v116 = vld [vmem:[%s1 + $0x218] sm:$0xff]
    %v117 = vld [vmem:[%s1 + $0x220] sm:$0xff]
    %v118 = vld [vmem:[%s1 + $0x228] sm:$0xff]
    %v119 = vld [vmem:[%s1 + $0x230] sm:$0xff]
    %v120 = vld [vmem:[%s1 + $0x238] sm:$0xff]
    %v121 = vld [vmem:[%s1 + $0x240] sm:$0xff]
    %v122 = vld [vmem:[%s1 + $0x248] sm:$0xff]
    %v123 = vld [vmem:[%s1 + $0x250] sm:$0xff]
    %v124 = vld [vmem:[%s1 + $0x258] sm:$0xff]
    %v125 = vld [vmem:[%s1 + $0x260] sm:$0xff]
    %v126 = vld [vmem:[%s1 + $0x268] sm:$0xff]
    %v127 = vld [vmem:[%s1 + $0x270] sm:$0xff]
    %v128 = vld [vmem:[%s1 + $0x278] sm:$0xff]
    %v129 = vld [vmem:[%s1 + $0x280] sm:$0xff]
    %v130 = vld [vmem:[%s1 + $0x288] sm:$0xff]
    %v131 = vld [vmem:[%s1 + $0x290] sm:$0xff]
    %v132 = vld [vmem:[%s1 + $0x298] sm:$0xff]
    %v133 = vld [vmem:[%s1 + $0x2a0] sm:$0xff]
    %v134 = vld [vmem:[%s1 + $0x2a8] sm:$0xff]
    %v135 = vld [vmem:[%s1 + $0x2b0] sm:$0xff]
    %v136 = vld [vmem:[%s1 + $0x2b8] sm:$0xff]
    %v137 = vld [vmem:[%s1 + $0x2c0] sm:$0xff]
    %v138 = vld [vmem:[%s1 + $0x2c8] sm:$0xff]
    %v139 = vld [vmem:[%s1 + $0x2d0] sm:$0xff]
    %v140 = vld [vmem:[%s1 + $0x2d8] sm:$0xff]
    %v141 = vld [vmem:[%s1 + $0x2e0] sm:$0xff]
    %v142 = vld [vmem:[%s1 + $0x2e8] sm:$0xff]
    %v143 = vld [vmem:[%s1 + $0x2f0] sm:$0xff]
    %v144 = vld [vmem:[%s1 + $0x2f8] sm:$0xff]
    %v145 = vld [vmem:[%s1 + $0x300] sm:$0xff]
    %v146 = vld [vmem:[%s1 + $0x308] sm:$0xff]
    %v147 = vld [vmem:[%s1 + $0x310] sm:$0xff]
    %v148 = vld [vmem:[%s1 + $0x318] sm:$0xff]
    %v149 = vld [vmem:[%s1 + $0x320] sm:$0xff]
    %v150 = vld [vmem:[%s1 + $0x328] sm:$0xff]
    %v151 = vld [vmem:[%s1 + $0x330] sm:$0xff]
    %v152 = vld [vmem:[%s1 + $0x338] sm:$0xff]
    %v153 = vld [vmem:[%s1 + $0x340] sm:$0xff]
    %v154 = vld [vmem:[%s1 + $0x348] sm:$0xff]
    %v155 = vld [vmem:[%s1 + $0x350] sm:$0xff]
    %v156 = vld [vmem:[%s1 + $0x358] sm:$0xff]
    %v157 = vld [vmem:[%s1 + $0x360] sm:$0xff]
    %v158 = vld [vmem:[%s1 + $0x368] sm:$0xff]
    %v159 = vld [vmem:[%s1 + $0x370] sm:$0xff]
    %v160 = vld [vmem:[%s1 + $0x378] sm:$0xff]
    %v161 = vld [vmem:[%s1 + $0x380] sm:$0xff]
    %v162 = vld [vmem:[%s1 + $0x388] sm:$0xff]
    %v163 = vld [vmem:[%s1 + $0x390] sm:$0xff]
    %v164 = vld [vmem:[%s1 + $0x398] sm:$0xff]
    %v165 = vld [vmem:[%s1 + $0x3a0] sm:$0xff]
    %v166 = vld [vmem:[%s1 + $0x3a8] sm:$0xff]
    %v167 = vld [vmem:[%s1 + $0x3b0] sm:$0xff]
    %v168 = vld [vmem:[%s1 + $0x3b8] sm:$0xff]
    %v169 = vld [vmem:[%s1 + $0x3c0] sm:$0xff]
    %v170 = vld [vmem:[%s1 + $0x3c8] sm:$0xff]
    %v171 = vld [vmem:[%s1 + $0x3d0] sm:$0xff]
    %v172 = vld [vmem:[%s1 + $0x3d8] sm:$0xff]
    %v173 = vld [vmem:[%s1 + $0x3e0] sm:$0xff]
    %v174 = vld [vmem:[%s1 + $0x3e8] sm:$0xff]
    %v175 = vld [vmem:[%s1 + $0x3f0] sm:$0xff]
    %v176 = vld [vmem:[%s1 + $0x3f8] sm:$0xff]
    %v177 = vld [vmem:[%s1 + $0x400] sm:$0xff]
    %v178 = vld [vmem:[%s1 + $0x408] sm:$0xff]
    %v179 = vld [vmem:[%s1 + $0x410] sm:$0xff]
    %v180 = vld [vmem:[%s1 + $0x418] sm:$0xff]
    %v181 = vld [vmem:[%s1 + $0x420] sm:$0xff]
    %v182 = vld [vmem:[%s1 + $0x428] sm:$0xff]
    %v183 = vld [vmem:[%s1 + $0x430] sm:$0xff]
    %v184 = vld [vmem:[%s1 + $0x438] sm:$0xff]
    %v185 = vld [vmem:[%s1 + $0x440] sm:$0xff]
    %v186 = vld [vmem:[%s1 + $0x448] sm:$0xff]
    %v187 = vld [vmem:[%s1 + $0x450] sm:$0xff]
    %v188 = vld [vmem:[%s1 + $0x458] sm:$0xff]
    %v189 = vld [vmem:[%s1 + $0x460] sm:$0xff]
    %v190 = vld [vmem:[%s1 + $0x468] sm:$0xff]
    %v191 = vld [vmem:[%s1 + $0x470] sm:$0xff]
    %v192 = vld [vmem:[%s1 + $0x478] sm:$0xff]
    %v193 = vld [vmem:[%s1 + $0x480] sm:$0xff]
    %v194 = vld [vmem:[%s1 + $0x488] sm:$0xff]
    %v195 = vld [vmem:[%s1 + $0x490] sm:$0xff]
    %v196 = vld [vmem:[%s1 + $0x498] sm:$0xff]
    %v197 = vld [vmem:[%s1 + $0x4a0] sm:$0xff]
    %v198 = vld [vmem:[%s1 + $0x4a8] sm:$0xff]
    %v199 = vld [vmem:[%s1 + $0x4b0] sm:$0xff]
    %v200 = vld [vmem:[%s1 + $0x4b8] sm:$0xff]
    %v201 = vld [vmem:[%s1 + $0x4c0] sm:$0xff]
    %v202 = vld [vmem:[%s1 + $0x4c8] sm:$0xff]
    %v203 = vld [vmem:[%s1 + $0x4d0] sm:$0xff]
    %v204 = vld [vmem:[%s1 + $0x4d8] sm:$0xff]
    %v205 = vld [vmem:[%s1 + $0x4e0] sm:$0xff]
    %v206 = vld [vmem:[%s1 + $0x4e8] sm:$0xff]
    %v207 = vld [vmem:[%s1 + $0x4f0] sm:$0xff]
    %v208 = vld [vmem:[%s1 + $0x4f8] sm:$0xff]
    %v209 = vld [vmem:[%s1 + $0x500] sm:$0xff]
    %v210 = vld [vmem:[%s1 + $0x508] sm:$0xff]
    %v211 = vld [vmem:[%s1 + $0x510] sm:$0xff]
    %v212 = vld [vmem:[%s1 + $0x518] sm:$0xff]
    %v213 = vld [vmem:[%s1 + $0x520] sm:$0xff]
    %v214 = vld [vmem:[%s1 + $0x528] sm:$0xff]
    %v215 = vld [vmem:[%s1 + $0x530] sm:$0xff]
    %v216 = vld [vmem:[%s1 + $0x538] sm:$0xff]
    %v217 = vld [vmem:[%s1 + $0x540] sm:$0xff]
    %v218 = vld [vmem:[%s1 + $0x548] sm:$0xff]
    %v219 = vld [vmem:[%s1 + $0x550] sm:$0xff]
    %v220 = vld [vmem:[%s1 + $0x558] sm:$0xff]
    %v221 = vld [vmem:[%s1 + $0x560] sm:$0xff]
    %v222 = vld [vmem:[%s1 + $0x568] sm:$0xff]
    %v223 = vld [vmem:[%s1 + $0x570] sm:$0xff]
    %v224 = vld [vmem:[%s1 + $0x578] sm:$0xff]
    %v225 = vld [vmem:[%s1 + $0x580] sm:$0xff]
    %v226 = vld [vmem:[%s1 + $0x588] sm:$0xff]
    %v227 = vld [vmem:[%s1 + $0x590] sm:$0xff]
    %v228 = vld [vmem:[%s1 + $0x598] sm:$0xff]
    %v229 = vld [vmem:[%s1 + $0x5a0] sm:$0xff]
    %v230 = vld [vmem:[%s1 + $0x5a8] sm:$0xff]
    %v231 = vld [vmem:[%s1 + $0x5b0] sm:$0xff]
    %v232 = vld [vmem:[%s1 + $0x5b8] sm:$0xff]
    %v233 = vld [vmem:[%s1 + $0x5c0] sm:$0xff]
    %v234 = vld [vmem:[%s1 + $0x5c8] sm:$0xff]
    %v235 = vld [vmem:[%s1 + $0x5d0] sm:$0xff]
    %v236 = vld [vmem:[%s1 + $0x5d8] sm:$0xff]
    %v237 = vld [vmem:[%s1 + $0x5e0] sm:$0xff]
    %v238 = vld [vmem:[%s1 + $0x5e8] sm:$0xff]
    %v239 = vld [vmem:[%s1 + $0x5f0] sm:$0xff]
    %v240 = vld [vmem:[%s1 + $0x5f8] sm:$0xff]
    %v241 = vld [vmem:[%s1 + $0x600] sm:$0xff]
    %v242 = vld [vmem:[%s1 + $0x608] sm:$0xff]
    %v243 = vld [vmem:[%s1 + $0x610] sm:$0xff]
    %v244 = vld [vmem:[%s1 + $0x618] sm:$0xff]
    %v245 = vld [vmem:[%s1 + $0x620] sm:$0xff]
    %v246 = vld [vmem:[%s1 + $0x628] sm:$0xff]
    %v247 = vld [vmem:[%s1 + $0x630] sm:$0xff]
    %v248 = vld [vmem:[%s1 + $0x638] sm:$0xff]
    %v249 = vld [vmem:[%s1 + $0x640] sm:$0xff]
    %v250 = vld [vmem:[%s1 + $0x648] sm:$0xff]
    %v251 = vld [vmem:[%s1 + $0x650] sm:$0xff]
    %v252 = vld [vmem:[%s1 + $0x658] sm:$0xff]
    %v253 = vld [vmem:[%s1 + $0x660] sm:$0xff]
    %v254 = vld [vmem:[%s1 + $0x668] sm:$0xff]
    %v255 = vld [vmem:[%s1 + $0x670] sm:$0xff]
    %v256 = vld [vmem:[%s1 + $0x678] sm:$0xff]
    %v257 = vld [vmem:[%s1 + $0x680] sm:$0xff]
    %v258 = vld [vmem:[%s1 + $0x688] sm:$0xff]
    %v259 = vld [vmem:[%s1 + $0x690] sm:$0xff]
    %v260 = vld [vmem:[%s1 + $0x698] sm:$0xff]
    %v261 = vld [vmem:[%s1 + $0x6a0] sm:$0xff]
    %v262 = vld [vmem:[%s1 + $0x6a8] sm:$0xff]
    %v263 = vld [vmem:[%s1 + $0x6b0] sm:$0xff]
    %v264 = vld [vmem:[%s1 + $0x6b8] sm:$0xff]
    %v265 = vld [vmem:[%s1 + $0x6c0] sm:$0xff]
    %v266 = vld [vmem:[%s1 + $0x6c8] sm:$0xff]
    %v267 = vld [vmem:[%s1 + $0x6d0] sm:$0xff]
    %v268 = vld [vmem:[%s1 + $0x6d8] sm:$0xff]
    %v269 = vld [vmem:[%s1 + $0x6e0] sm:$0xff]
    %v270 = vld [vmem:[%s1 + $0x6e8] sm:$0xff]
    %v271 = vld [vmem:[%s1 + $0x6f0] sm:$0xff]
    %v272 = vld [vmem:[%s1 + $0x6f8] sm:$0xff]
    %v273 = vld [vmem:[%s1 + $0x700] sm:$0xff]
    %v274 = vld [vmem:[%s1 + $0x708] sm:$0xff]
    %v275 = vld [vmem:[%s1 + $0x710] sm:$0xff]
    %v276 = vld [vmem:[%s1 + $0x718] sm:$0xff]
    %v277 = vld [vmem:[%s1 + $0x720] sm:$0xff]
    %v278 = vld [vmem:[%s1 + $0x728] sm:$0xff]
    %v279 = vld [vmem:[%s1 + $0x730] sm:$0xff]
    %v280 = vld [vmem:[%s1 + $0x738] sm:$0xff]
    %v281 = vld [vmem:[%s1 + $0x740] sm:$0xff]
    %v282 = vld [vmem:[%s1 + $0x748] sm:$0xff]
    %v283 = vld [vmem:[%s1 + $0x750] sm:$0xff]
    %v284 = vld [vmem:[%s1 + $0x758] sm:$0xff]
    %v285 = vld [vmem:[%s1 + $0x760] sm:$0xff]
    %v286 = vld [vmem:[%s1 + $0x768] sm:$0xff]
    %v287 = vld [vmem:[%s1 + $0x770] sm:$0xff]
    %v288 = vld [vmem:[%s1 + $0x778] sm:$0xff]
    %v289 = vld [vmem:[%s1 + $0x780] sm:$0xff]
    %v290 = vld [vmem:[%s1 + $0x788] sm:$0xff]
    %v291 = vld [vmem:[%s1 + $0x790] sm:$0xff]
    %v292 = vld [vmem:[%s1 + $0x798] sm:$0xff]
    %v293 = vld [vmem:[%s1 + $0x7a0] sm:$0xff]
    %v294 = vld [vmem:[%s1 + $0x7a8] sm:$0xff]
    %v295 = vld [vmem:[%s1 + $0x7b0] sm:$0xff]
    %v296 = vld [vmem:[%s1 + $0x7b8] sm:$0xff]
    %v297 = vld [vmem:[%s1 + $0x7c0] sm:$0xff]
    %v298 = vld [vmem:[%s1 + $0x7c8] sm:$0xff]
    %v299 = vld [vmem:[%s1 + $0x7d0] sm:$0xff]
    %v300 = vld [vmem:[%s1 + $0x7d8] sm:$0xff]
    %v301 = vld [vmem:[%s1 + $0x7e0] sm:$0xff]
    %v302 = vld [vmem:[%s1 + $0x7e8] sm:$0xff]
    %v303 = vld [vmem:[%s1 + $0x7f0] sm:$0xff]
    %v304 = vld [vmem:[%s1 + $0x7f8] sm:$0xff]
    %v305 = vld [vmem:[%s1 + $0x800] sm:$0xff]
    %v306 = vld [vmem:[%s1 + $0x808] sm:$0xff]
    %v307 = vld [vmem:[%s1 + $0x810] sm:$0xff]
    %v308 = vld [vmem:[%s1 + $0x818] sm:$0xff]
    %v309 = vld [vmem:[%s1 + $0x820] sm:$0xff]
    %v310 = vld [vmem:[%s1 + $0x828] sm:$0xff]
    %v311 = vld [vmem:[%s1 + $0x830] sm:$0xff]
    %v312 = vld [vmem:[%s1 + $0x838] sm:$0xff]
    %v313 = vld [vmem:[%s1 + $0x840] sm:$0xff]
    %v314 = vld [vmem:[%s1 + $0x848] sm:$0xff]
    %v315 = vld [vmem:[%s1 + $0x850] sm:$0xff]
    %v316 = vld [vmem:[%s1 + $0x858] sm:$0xff]
    %v317 = vld [vmem:[%s1 + $0x860] sm:$0xff]
    %v318 = vld [vmem:[%s1 + $0x868] sm:$0xff]
    %v319 = vld [vmem:[%s1 + $0x870] sm:$0xff]
    %v320 = vld [vmem:[%s1 + $0x878] sm:$0xff]
    %v321 = vld [vmem:[%s1 + $0x880] sm:$0xff]
    %v322 = vld [vmem:[%s1 + $0x888] sm:$0xff]
    %v323 = vld [vmem:[%s1 + $0x890] sm:$0xff]
    %v324 = vld [vmem:[%s1 + $0x898] sm:$0xff]
    %v325 = vld [vmem:[%s1 + $0x8a0] sm:$0xff]
    %v326 = vld [vmem:[%s1 + $0x8a8] sm:$0xff]
    %v327 = vld [vmem:[%s1 + $0x8b0] sm:$0xff]
    %v328 = vld [vmem:[%s1 + $0x8b8] sm:$0xff]
    %v329 = vld [vmem:[%s1 + $0x8c0] sm:$0xff]
    %v330 = vld [vmem:[%s1 + $0x8c8] sm:$0xff]
    %v331 = vld [vmem:[%s1 + $0x8d0] sm:$0xff]
    %v332 = vld [vmem:[%s1 + $0x8d8] sm:$0xff]
    %v333 = vld [vmem:[%s1 + $0x8e0] sm:$0xff]
    %v334 = vld [vmem:[%s1 + $0x8e8] sm:$0xff]
    %v335 = vld [vmem:[%s1 + $0x8f0] sm:$0xff]
    %v336 = vld [vmem:[%s1 + $0x8f8] sm:$0xff]
    %v337 = vld [vmem:[%s1 + $0x900] sm:$0xff]
    %v338 = vld [vmem:[%s1 + $0x908] sm:$0xff]
    %v339 = vld [vmem:[%s1 + $0x910] sm:$0xff]
    %v340 = vld [vmem:[%s1 + $0x918] sm:$0xff]
    %v341 = vld [vmem:[%s1 + $0x920] sm:$0xff]
    %v342 = vld [vmem:[%s1 + $0x928] sm:$0xff]
    %v343 = vld [vmem:[%s1 + $0x930] sm:$0xff]
    %v344 = vld [vmem:[%s1 + $0x938] sm:$0xff]
    %v345 = vld [vmem:[%s1 + $0x940] sm:$0xff]
    %v346 = vld [vmem:[%s1 + $0x948] sm:$0xff]
    %v347 = vld [vmem:[%s1 + $0x950] sm:$0xff]
    %v348 = vld [vmem:[%s1 + $0x958] sm:$0xff]
    %v349 = vld [vmem:[%s1 + $0x960] sm:$0xff]
    %v350 = vld [vmem:[%s1 + $0x968] sm:$0xff]
    %v351 = vld [vmem:[%s1 + $0x970] sm:$0xff]
    %v352 = vld [vmem:[%s1 + $0x978] sm:$0xff]
    %v353 = vld [vmem:[%s1 + $0x980] sm:$0xff]
    %v354 = vld [vmem:[%s1 + $0x988] sm:$0xff]
    %v355 = vld [vmem:[%s1 + $0x990] sm:$0xff]
    %v356 = vld [vmem:[%s1 + $0x998] sm:$0xff]
    %v357 = vld [vmem:[%s1 + $0x9a0] sm:$0xff]
    %v358 = vld [vmem:[%s1 + $0x9a8] sm:$0xff]
    %v359 = vld [vmem:[%s1 + $0x9b0] sm:$0xff]
    %v360 = vld [vmem:[%s1 + $0x9b8] sm:$0xff]
    %v361 = vld [vmem:[%s1 + $0x9c0] sm:$0xff]
    %v362 = vld [vmem:[%s1 + $0x9c8] sm:$0xff]
    %v363 = vld [vmem:[%s1 + $0x9d0] sm:$0xff]
    %v364 = vld [vmem:[%s1 + $0x9d8] sm:$0xff]
    %v365 = vld [vmem:[%s1 + $0x9e0] sm:$0xff]
    %v366 = vld [vmem:[%s1 + $0x9e8] sm:$0xff]
    %v367 = vld [vmem:[%s1 + $0x9f0] sm:$0xff]
    %v368 = vld [vmem:[%s1 + $0x9f8] sm:$0xff]
    %v369 = vld [vmem:[%s1 + $0xa00] sm:$0xff]
    %v370 = vld [vmem:[%s1 + $0xa08] sm:$0xff]
    %v371 = vld [vmem:[%s1 + $0xa10] sm:$0xff]
    %v372 = vld [vmem:[%s1 + $0xa18] sm:$0xff]
    %v373 = vld [vmem:[%s1 + $0xa20] sm:$0xff]
    %v374 = vld [vmem:[%s1 + $0xa28] sm:$0xff]
    %v375 = vld [vmem:[%s1 + $0xa30] sm:$0xff]
    %v376 = vld [vmem:[%s1 + $0xa38] sm:$0xff]
    %v377 = vld [vmem:[%s1 + $0xa40] sm:$0xff]
    %v378 = vld [vmem:[%s1 + $0xa48] sm:$0xff]
    %v379 = vld [vmem:[%s1 + $0xa50] sm:$0xff]
    %v380 = vld [vmem:[%s1 + $0xa58] sm:$0xff]
    %v381 = vld [vmem:[%s1 + $0xa60] sm:$0xff]
    %v382 = vld [vmem:[%s1 + $0xa68] sm:$0xff]
    %v383 = vld [vmem:[%s1 + $0xa70] sm:$0xff]
    %v384 = vld [vmem:[%s1 + $0xa78] sm:$0xff]
    %v385 = vld [vmem:[%s1 + $0xa80] sm:$0xff]
    %v386 = vld [vmem:[%s1 + $0xa88] sm:$0xff]
    %v387 = vld [vmem:[%s1 + $0xa90] sm:$0xff]
    %v388 = vld [vmem:[%s1 + $0xa98] sm:$0xff]
    %v389 = vld [vmem:[%s1 + $0xaa0] sm:$0xff]
    %v390 = vld [vmem:[%s1 + $0xaa8] sm:$0xff]
    %v391 = vld [vmem:[%s1 + $0xab0] sm:$0xff]
    %v392 = vld [vmem:[%s1 + $0xab8] sm:$0xff]
    %v393 = vld [vmem:[%s1 + $0xac0] sm:$0xff]
    %v394 = vld [vmem:[%s1 + $0xac8] sm:$0xff]
    %v395 = vld [vmem:[%s1 + $0xad0] sm:$0xff]
    %v396 = vld [vmem:[%s1 + $0xad8] sm:$0xff]
    %v397 = vld [vmem:[%s1 + $0xae0] sm:$0xff]
    %v398 = vld [vmem:[%s1 + $0xae8] sm:$0xff]
    %v399 = vld [vmem:[%s1 + $0xaf0] sm:$0xff]
    %v400 = vld [vmem:[%s1 + $0xaf8] sm:$0xff]
    %v401 = vld [vmem:[%s1 + $0xb00] sm:$0xff]
    %v402 = vld [vmem:[%s1 + $0xb08] sm:$0xff]
    %v403 = vld [vmem:[%s1 + $0xb10] sm:$0xff]
    %v404 = vld [vmem:[%s1 + $0xb18] sm:$0xff]
    %v405 = vld [vmem:[%s1 + $0xb20] sm:$0xff]
    %v406 = vld [vmem:[%s1 + $0xb28] sm:$0xff]
    %v407 = vld [vmem:[%s1 + $0xb30] sm:$0xff]
    %v408 = vld [vmem:[%s1 + $0xb38] sm:$0xff]
    %v409 = vld [vmem:[%s1 + $0xb40] sm:$0xff]
    %v410 = vld [vmem:[%s1 + $0xb48] sm:$0xff]
    %v411 = vld [vmem:[%s1 + $0xb50] sm:$0xff]
    %v412 = vld [vmem:[%s1 + $0xb58] sm:$0xff]
    %v413 = vld [vmem:[%s1 + $0xb60] sm:$0xff]
    %v414 = vld [vmem:[%s1 + $0xb68] sm:$0xff]
    %v415 = vld [vmem:[%s1 + $0xb70] sm:$0xff]
    %v416 = vld [vmem:[%s1 + $0xb78] sm:$0xff]
    %v417 = vld [vmem:[%s1 + $0xb80] sm:$0xff]
    %v418 = vld [vmem:[%s1 + $0xb88] sm:$0xff]
    %v419 = vld [vmem:[%s1 + $0xb90] sm:$0xff]
    %v420 = vld [vmem:[%s1 + $0xb98] sm:$0xff]
    %v421 = vld [vmem:[%s1 + $0xba0] sm:$0xff]
    %v422 = vld [vmem:[%s1 + $0xba8] sm:$0xff]
    %v423 = vld [vmem:[%s1 + $0xbb0] sm:$0xff]
    %v424 = vld [vmem:[%s1 + $0xbb8] sm:$0xff]
    %v425 = vld [vmem:[%s1 + $0xbc0] sm:$0xff]
    %v426 = vld [vmem:[%s1 + $0xbc8] sm:$0xff]
    %v427 = vld [vmem:[%s1 + $0xbd0] sm:$0xff]
    %v428 = vld [vmem:[%s1 + $0xbd8] sm:$0xff]
    %v429 = vld [vmem:[%s1 + $0xbe0] sm:$0xff]
    %v430 = vld [vmem:[%s1 + $0xbe8] sm:$0xff]
    %v431 = vld [vmem:[%s1 + $0xbf0] sm:$0xff]
    %v432 = vld [vmem:[%s1 + $0xbf8] sm:$0xff]
    %v433 = vld [vmem:[%s1 + $0xc00] sm:$0xff]
    %v434 = vld [vmem:[%s1 + $0xc08] sm:$0xff]
    %v435 = vld [vmem:[%s1 + $0xc10] sm:$0xff]
    %v436 = vld [vmem:[%s1 + $0xc18] sm:$0xff]
    %v437 = vld [vmem:[%s1 + $0xc20] sm:$0xff]
    %v438 = vld [vmem:[%s1 + $0xc28] sm:$0xff]
    %v439 = vld [vmem:[%s1 + $0xc30] sm:$0xff]
    %v440 = vld [vmem:[%s1 + $0xc38] sm:$0xff]
    %v441 = vld [vmem:[%s1 + $0xc40] sm:$0xff]
    %v442 = vld [vmem:[%s1 + $0xc48] sm:$0xff]
    %v443 = vld [vmem:[%s1 + $0xc50] sm:$0xff]
    %v444 = vld [vmem:[%s1 + $0xc58] sm:$0xff]
    %v445 = vld [vmem:[%s1 + $0xc60] sm:$0xff]
    %v446 = vld [vmem:[%s1 + $0xc68] sm:$0xff]
    %v447 = vld [vmem:[%s1 + $0xc70] sm:$0xff]
    %v448 = vld [vmem:[%s1 + $0xc78] sm:$0xff]
    %v449 = vld [vmem:[%s1 + $0xc80] sm:$0xff]
    %v450 = vld [vmem:[%s1 + $0xc88] sm:$0xff]
    %v451 = vld [vmem:[%s1 + $0xc90] sm:$0xff]
    %v452 = vld [vmem:[%s1 + $0xc98] sm:$0xff]
    %v453 = vld [vmem:[%s1 + $0xca0] sm:$0xff]
    %v454 = vld [vmem:[%s1 + $0xca8] sm:$0xff]
    %v455 = vld [vmem:[%s1 + $0xcb0] sm:$0xff]
    %v456 = vld [vmem:[%s1 + $0xcb8] sm:$0xff]
    %v457 = vld [vmem:[%s1 + $0xcc0] sm:$0xff]
    %v458 = vld [vmem:[%s1 + $0xcc8] sm:$0xff]
    %v459 = vld [vmem:[%s1 + $0xcd0] sm:$0xff]
    %v460 = vld [vmem:[%s1 + $0xcd8] sm:$0xff]
    %v461 = vld [vmem:[%s1 + $0xce0] sm:$0xff]
    %v462 = vld [vmem:[%s1 + $0xce8] sm:$0xff]
    %v463 = vld [vmem:[%s1 + $0xcf0] sm:$0xff]
    %v464 = vld [vmem:[%s1 + $0xcf8] sm:$0xff]
    %v465 = vld [vmem:[%s1 + $0xd00] sm:$0xff]
    %v466 = vld [vmem:[%s1 + $0xd08] sm:$0xff]
    %v467 = vld [vmem:[%s1 + $0xd10] sm:$0xff]
    %v468 = vld [vmem:[%s1 + $0xd18] sm:$0xff]
    %v469 = vld [vmem:[%s1 + $0xd20] sm:$0xff]
    %v470 = vld [vmem:[%s1 + $0xd28] sm:$0xff]
    %v471 = vld [vmem:[%s1 + $0xd30] sm:$0xff]
    %v472 = vld [vmem:[%s1 + $0xd38] sm:$0xff]
    %v473 = vld [vmem:[%s1 + $0xd40] sm:$0xff]
    %v474 = vld [vmem:[%s1 + $0xd48] sm:$0xff]
    %v475 = vld [vmem:[%s1 + $0xd50] sm:$0xff]
    %v476 = vld [vmem:[%s1 + $0xd58] sm:$0xff]
    %v477 = vld [vmem:[%s1 + $0xd60] sm:$0xff]
    %v478 = vld [vmem:[%s1 + $0xd68] sm:$0xff]
    %v479 = vld [vmem:[%s1 + $0xd70] sm:$0xff]
    %v480 = vld [vmem:[%s1 + $0xd78] sm:$0xff]
    %v481 = vld [vmem:[%s1 + $0xd80] sm:$0xff]
    %v482 = vld [vmem:[%s1 + $0xd88] sm:$0xff]
    %v483 = vld [vmem:[%s1 + $0xd90] sm:$0xff]
    %v484 = vld [vmem:[%s1 + $0xd98] sm:$0xff]
    %v485 = vld [vmem:[%s1 + $0xda0] sm:$0xff]
    %v486 = vld [vmem:[%s1 + $0xda8] sm:$0xff]
    %v487 = vld [vmem:[%s1 + $0xdb0] sm:$0xff]
    %v488 = vld [vmem:[%s1 + $0xdb8] sm:$0xff]
    %v489 = vld [vmem:[%s1 + $0xdc0] sm:$0xff]
    %v490 = vld [vmem:[%s1 + $0xdc8] sm:$0xff]
    %v491 = vld [vmem:[%s1 + $0xdd0] sm:$0xff]
    %v492 = vld [vmem:[%s1 + $0xdd8] sm:$0xff]
    %v493 = vld [vmem:[%s1 + $0xde0] sm:$0xff]
    %v494 = vld [vmem:[%s1 + $0xde8] sm:$0xff]
    %v495 = vld [vmem:[%s1 + $0xdf0] sm:$0xff]
    %v496 = vld [vmem:[%s1 + $0xdf8] sm:$0xff]
    %v497 = vld [vmem:[%s2] sm:$0xff]
    %v499 = vperm.slane %v497, 0
    %v500 = vperm.slane %v497, 1
    %v501 = vperm.slane %v497, 2
    %v502 = vperm.slane %v497, 3
    %v503 = vperm.slane %v497, 4
    %v504 = vperm.slane %v497, 5
    %v505 = vperm.slane %v497, 6
    %v506 = vperm.slane %v497, 7
    %v519 = vunpack.c.l.b16 %v45
    %v520 = vunpack.c.h.b16 %v45
    %v521 = vunpack.c.l.b16 %v46
    %v522 = vunpack.c.h.b16 %v46
    %v523 = vunpack.c.l.b16 %v47
    %v524 = vunpack.c.h.b16 %v47
    %v525 = vunpack.c.l.b16 %v48
    %v526 = vpack.c.b16 %v519, %v519
    %v527 = vpack.c.b16 %v520, %v520
    %v528 = vpack.c.b16 %v521, %v521
    %v529 = vpack.c.b16 %v522, %v522
    %v530 = vpack.c.b16 %v523, %v523
    %v531 = vpack.c.b16 %v524, %v524
    %v532 = vpack.c.b16 %v525, %v525
    %v988 = vunpack.c.l.b16 %v49
    %v989 = vunpack.c.h.b16 %v49
    %v990 = vunpack.c.l.b16 %v50
    %v991 = vunpack.c.h.b16 %v50
    %v992 = vunpack.c.l.b16 %v51
    %v993 = vunpack.c.h.b16 %v51
    %v994 = vunpack.c.l.b16 %v52
    %v995 = vunpack.c.h.b16 %v52
    %v996 = vunpack.c.l.b16 %v53
    %v997 = vunpack.c.h.b16 %v53
    %v998 = vunpack.c.l.b16 %v54
    %v999 = vunpack.c.h.b16 %v54
    %v1000 = vunpack.c.l.b16 %v55
    %v1001 = vunpack.c.h.b16 %v55
    %v1002 = vunpack.c.l.b16 %v56
    %v1003 = vunpack.c.h.b16 %v56
    %v1004 = vunpack.c.l.b16 %v57
    %v1005 = vunpack.c.h.b16 %v57
    %v1006 = vunpack.c.l.b16 %v58
    %v1007 = vunpack.c.h.b16 %v58
    %v1008 = vunpack.c.l.b16 %v59
    %v1009 = vunpack.c.h.b16 %v59
    %v1010 = vunpack.c.l.b16 %v60
    %v1011 = vunpack.c.h.b16 %v60
    %v1012 = vunpack.c.l.b16 %v61
    %v1013 = vunpack.c.h.b16 %v61
    %v1014 = vunpack.c.l.b16 %v62
    %v1015 = vunpack.c.h.b16 %v62
    %v1016 = vunpack.c.l.b16 %v63
    %v1017 = vunpack.c.h.b16 %v63
    %v1018 = vunpack.c.l.b16 %v64
    %v1019 = vunpack.c.h.b16 %v64
    %v1020 = vunpack.c.l.b16 %v65
    %v1021 = vunpack.c.h.b16 %v65
    %v1022 = vunpack.c.l.b16 %v66
    %v1023 = vunpack.c.h.b16 %v66
    %v1024 = vunpack.c.l.b16 %v67
    %v1025 = vunpack.c.h.b16 %v67
    %v1026 = vunpack.c.l.b16 %v68
    %v1027 = vunpack.c.h.b16 %v68
    %v1028 = vunpack.c.l.b16 %v69
    %v1029 = vunpack.c.h.b16 %v69
    %v1030 = vunpack.c.l.b16 %v70
    %v1031 = vunpack.c.h.b16 %v70
    %v1032 = vunpack.c.l.b16 %v71
    %v1033 = vunpack.c.h.b16 %v71
    %v1034 = vunpack.c.l.b16 %v72
    %v1035 = vunpack.c.h.b16 %v72
    %v1036 = vunpack.c.l.b16 %v73
    %v1037 = vunpack.c.h.b16 %v73
    %v1038 = vunpack.c.l.b16 %v74
    %v1039 = vunpack.c.h.b16 %v74
    %v1040 = vunpack.c.l.b16 %v75
    %v1041 = vunpack.c.h.b16 %v75
    %v1042 = vunpack.c.l.b16 %v76
    %v1043 = vunpack.c.h.b16 %v76
    %v1044 = vunpack.c.l.b16 %v77
    %v1045 = vunpack.c.h.b16 %v77
    %v1046 = vunpack.c.l.b16 %v78
    %v1047 = vunpack.c.h.b16 %v78
    %v1048 = vunpack.c.l.b16 %v79
    %v1049 = vunpack.c.h.b16 %v79
    %v1050 = vunpack.c.l.b16 %v80
    %v1051 = vunpack.c.h.b16 %v80
    %v1052 = vunpack.c.l.b16 %v81
    %v1053 = vunpack.c.h.b16 %v81
    %v1054 = vunpack.c.l.b16 %v82
    %v1055 = vunpack.c.h.b16 %v82
    %v1056 = vunpack.c.l.b16 %v83
    %v1057 = vunpack.c.h.b16 %v83
    %v1058 = vunpack.c.l.b16 %v84
    %v1059 = vunpack.c.h.b16 %v84
    %v1060 = vunpack.c.l.b16 %v85
    %v1061 = vunpack.c.h.b16 %v85
    %v1062 = vunpack.c.l.b16 %v86
    %v1063 = vunpack.c.h.b16 %v86
    %v1064 = vunpack.c.l.b16 %v87
    %v1065 = vunpack.c.h.b16 %v87
    %v1066 = vunpack.c.l.b16 %v88
    %v1067 = vunpack.c.h.b16 %v88
    %v1068 = vunpack.c.l.b16 %v89
    %v1069 = vunpack.c.h.b16 %v89
    %v1070 = vunpack.c.l.b16 %v90
    %v1071 = vunpack.c.h.b16 %v90
    %v1072 = vunpack.c.l.b16 %v91
    %v1073 = vunpack.c.h.b16 %v91
    %v1074 = vunpack.c.l.b16 %v92
    %v1075 = vunpack.c.h.b16 %v92
    %v1076 = vunpack.c.l.b16 %v93
    %v1077 = vunpack.c.h.b16 %v93
    %v1078 = vunpack.c.l.b16 %v94
    %v1079 = vunpack.c.h.b16 %v94
    %v1080 = vunpack.c.l.b16 %v95
    %v1081 = vunpack.c.h.b16 %v95
    %v1082 = vunpack.c.l.b16 %v96
    %v1083 = vunpack.c.h.b16 %v96
    %v1084 = vunpack.c.l.b16 %v97
    %v1085 = vunpack.c.h.b16 %v97
    %v1086 = vunpack.c.l.b16 %v98
    %v1087 = vunpack.c.h.b16 %v98
    %v1088 = vunpack.c.l.b16 %v99
    %v1089 = vunpack.c.h.b16 %v99
    %v1090 = vunpack.c.l.b16 %v100
    %v1091 = vunpack.c.h.b16 %v100
    %v1092 = vunpack.c.l.b16 %v101
    %v1093 = vunpack.c.h.b16 %v101
    %v1094 = vunpack.c.l.b16 %v102
    %v1095 = vunpack.c.h.b16 %v102
    %v1096 = vunpack.c.l.b16 %v103
    %v1097 = vunpack.c.h.b16 %v103
    %v1098 = vunpack.c.l.b16 %v104
    %v1099 = vunpack.c.h.b16 %v104
    %v1100 = vunpack.c.l.b16 %v105
    %v1101 = vunpack.c.h.b16 %v105
    %v1102 = vunpack.c.l.b16 %v106
    %v1103 = vunpack.c.h.b16 %v106
    %v1104 = vunpack.c.l.b16 %v107
    %v1105 = vunpack.c.h.b16 %v107
    %v1106 = vunpack.c.l.b16 %v108
    %v1107 = vunpack.c.h.b16 %v108
    %v1108 = vunpack.c.l.b16 %v109
    %v1109 = vunpack.c.h.b16 %v109
    %v1110 = vunpack.c.l.b16 %v110
    %v1111 = vunpack.c.h.b16 %v110
    %v1112 = vunpack.c.l.b16 %v111
    %v1113 = vunpack.c.h.b16 %v111
    %v1114 = vunpack.c.l.b16 %v112
    %v1115 = vunpack.c.h.b16 %v112
    %v1116 = vunpack.c.l.b16 %v113
    %v1117 = vunpack.c.h.b16 %v113
    %v1118 = vunpack.c.l.b16 %v114
    %v1119 = vunpack.c.h.b16 %v114
    %v1120 = vunpack.c.l.b16 %v115
    %v1121 = vunpack.c.h.b16 %v115
    %v1122 = vunpack.c.l.b16 %v116
    %v1123 = vunpack.c.h.b16 %v116
    %v1124 = vunpack.c.l.b16 %v117
    %v1125 = vunpack.c.h.b16 %v117
    %v1126 = vunpack.c.l.b16 %v118
    %v1127 = vunpack.c.h.b16 %v118
    %v1128 = vunpack.c.l.b16 %v119
    %v1129 = vunpack.c.h.b16 %v119
    %v1130 = vunpack.c.l.b16 %v120
    %v1131 = vunpack.c.h.b16 %v120
    %v1132 = vunpack.c.l.b16 %v121
    %v1133 = vunpack.c.h.b16 %v121
    %v1134 = vunpack.c.l.b16 %v122
    %v1135 = vunpack.c.h.b16 %v122
    %v1136 = vunpack.c.l.b16 %v123
    %v1137 = vunpack.c.h.b16 %v123
    %v1138 = vunpack.c.l.b16 %v124
    %v1139 = vunpack.c.h.b16 %v124
    %v1140 = vunpack.c.l.b16 %v125
    %v1141 = vunpack.c.h.b16 %v125
    %v1142 = vunpack.c.l.b16 %v126
    %v1143 = vunpack.c.h.b16 %v126
    %v1144 = vunpack.c.l.b16 %v127
    %v1145 = vunpack.c.h.b16 %v127
    %v1146 = vunpack.c.l.b16 %v128
    %v1147 = vunpack.c.h.b16 %v128
    %v1148 = vunpack.c.l.b16 %v129
    %v1149 = vunpack.c.h.b16 %v129
    %v1150 = vunpack.c.l.b16 %v130
    %v1151 = vunpack.c.h.b16 %v130
    %v1152 = vunpack.c.l.b16 %v131
    %v1153 = vunpack.c.h.b16 %v131
    %v1154 = vunpack.c.l.b16 %v132
    %v1155 = vunpack.c.h.b16 %v132
    %v1156 = vunpack.c.l.b16 %v133
    %v1157 = vunpack.c.h.b16 %v133
    %v1158 = vunpack.c.l.b16 %v134
    %v1159 = vunpack.c.h.b16 %v134
    %v1160 = vunpack.c.l.b16 %v135
    %v1161 = vunpack.c.h.b16 %v135
    %v1162 = vunpack.c.l.b16 %v136
    %v1163 = vunpack.c.h.b16 %v136
    %v1164 = vunpack.c.l.b16 %v137
    %v1165 = vunpack.c.h.b16 %v137
    %v1166 = vunpack.c.l.b16 %v138
    %v1167 = vunpack.c.h.b16 %v138
    %v1168 = vunpack.c.l.b16 %v139
    %v1169 = vunpack.c.h.b16 %v139
    %v1170 = vunpack.c.l.b16 %v140
    %v1171 = vunpack.c.h.b16 %v140
    %v1172 = vunpack.c.l.b16 %v141
    %v1173 = vunpack.c.h.b16 %v141
    %v1174 = vunpack.c.l.b16 %v142
    %v1175 = vunpack.c.h.b16 %v142
    %v1176 = vunpack.c.l.b16 %v143
    %v1177 = vunpack.c.h.b16 %v143
    %v1178 = vunpack.c.l.b16 %v144
    %v1179 = vunpack.c.h.b16 %v144
    %v1180 = vunpack.c.l.b16 %v145
    %v1181 = vunpack.c.h.b16 %v145
    %v1182 = vunpack.c.l.b16 %v146
    %v1183 = vunpack.c.h.b16 %v146
    %v1184 = vunpack.c.l.b16 %v147
    %v1185 = vunpack.c.h.b16 %v147
    %v1186 = vunpack.c.l.b16 %v148
    %v1187 = vunpack.c.h.b16 %v148
    %v1188 = vunpack.c.l.b16 %v149
    %v1189 = vunpack.c.h.b16 %v149
    %v1190 = vunpack.c.l.b16 %v150
    %v1191 = vunpack.c.h.b16 %v150
    %v1192 = vunpack.c.l.b16 %v151
    %v1193 = vunpack.c.h.b16 %v151
    %v1194 = vunpack.c.l.b16 %v152
    %v1195 = vunpack.c.h.b16 %v152
    %v1196 = vunpack.c.l.b16 %v153
    %v1197 = vunpack.c.h.b16 %v153
    %v1198 = vunpack.c.l.b16 %v154
    %v1199 = vunpack.c.h.b16 %v154
    %v1200 = vunpack.c.l.b16 %v155
    %v1201 = vunpack.c.h.b16 %v155
    %v1202 = vunpack.c.l.b16 %v156
    %v1203 = vunpack.c.h.b16 %v156
    %v1204 = vunpack.c.l.b16 %v157
    %v1205 = vunpack.c.h.b16 %v157
    %v1206 = vunpack.c.l.b16 %v158
    %v1207 = vunpack.c.h.b16 %v158
    %v1208 = vunpack.c.l.b16 %v159
    %v1209 = vunpack.c.h.b16 %v159
    %v1210 = vunpack.c.l.b16 %v160
    %v1211 = vunpack.c.h.b16 %v160
    %v1212 = vunpack.c.l.b16 %v161
    %v1213 = vunpack.c.h.b16 %v161
    %v1214 = vunpack.c.l.b16 %v162
    %v1215 = vunpack.c.h.b16 %v162
    %v1216 = vunpack.c.l.b16 %v163
    %v1217 = vunpack.c.h.b16 %v163
    %v1218 = vunpack.c.l.b16 %v164
    %v1219 = vunpack.c.h.b16 %v164
    %v1220 = vunpack.c.l.b16 %v165
    %v1221 = vunpack.c.h.b16 %v165
    %v1222 = vunpack.c.l.b16 %v166
    %v1223 = vunpack.c.h.b16 %v166
    %v1224 = vunpack.c.l.b16 %v167
    %v1225 = vunpack.c.h.b16 %v167
    %v1226 = vunpack.c.l.b16 %v168
    %v1227 = vunpack.c.h.b16 %v168
    %v1228 = vunpack.c.l.b16 %v169
    %v1229 = vunpack.c.h.b16 %v169
    %v1230 = vunpack.c.l.b16 %v170
    %v1231 = vunpack.c.h.b16 %v170
    %v1232 = vunpack.c.l.b16 %v171
    %v1233 = vunpack.c.h.b16 %v171
    %v1234 = vunpack.c.l.b16 %v172
    %v1235 = vunpack.c.h.b16 %v172
    %v1236 = vunpack.c.l.b16 %v173
    %v1237 = vunpack.c.h.b16 %v173
    %v1238 = vunpack.c.l.b16 %v174
    %v1239 = vunpack.c.h.b16 %v174
    %v1240 = vunpack.c.l.b16 %v175
    %v1241 = vunpack.c.h.b16 %v175
    %v1242 = vunpack.c.l.b16 %v176
    %v1243 = vunpack.c.h.b16 %v176
    %v1244 = vunpack.c.l.b16 %v177
    %v1245 = vunpack.c.h.b16 %v177
    %v1246 = vunpack.c.l.b16 %v178
    %v1247 = vunpack.c.h.b16 %v178
    %v1248 = vunpack.c.l.b16 %v179
    %v1249 = vunpack.c.h.b16 %v179
    %v1250 = vunpack.c.l.b16 %v180
    %v1251 = vunpack.c.h.b16 %v180
    %v1252 = vunpack.c.l.b16 %v181
    %v1253 = vunpack.c.h.b16 %v181
    %v1254 = vunpack.c.l.b16 %v182
    %v1255 = vunpack.c.h.b16 %v182
    %v1256 = vunpack.c.l.b16 %v183
    %v1257 = vunpack.c.h.b16 %v183
    %v1258 = vunpack.c.l.b16 %v184
    %v1259 = vunpack.c.h.b16 %v184
    %v1260 = vunpack.c.l.b16 %v185
    %v1261 = vunpack.c.h.b16 %v185
    %v1262 = vunpack.c.l.b16 %v186
    %v1263 = vunpack.c.h.b16 %v186
    %v1264 = vunpack.c.l.b16 %v187
    %v1265 = vunpack.c.h.b16 %v187
    %v1266 = vunpack.c.l.b16 %v188
    %v1267 = vunpack.c.h.b16 %v188
    %v1268 = vunpack.c.l.b16 %v189
    %v1269 = vunpack.c.h.b16 %v189
    %v1270 = vunpack.c.l.b16 %v190
    %v1271 = vunpack.c.h.b16 %v190
    %v1272 = vunpack.c.l.b16 %v191
    %v1273 = vunpack.c.h.b16 %v191
    %v1274 = vunpack.c.l.b16 %v192
    %v1275 = vunpack.c.h.b16 %v192
    %v1276 = vunpack.c.l.b16 %v193
    %v1277 = vunpack.c.h.b16 %v193
    %v1278 = vunpack.c.l.b16 %v194
    %v1279 = vunpack.c.h.b16 %v194
    %v1280 = vunpack.c.l.b16 %v195
    %v1281 = vunpack.c.h.b16 %v195
    %v1282 = vunpack.c.l.b16 %v196
    %v1283 = vunpack.c.h.b16 %v196
    %v1284 = vunpack.c.l.b16 %v197
    %v1285 = vunpack.c.h.b16 %v197
    %v1286 = vunpack.c.l.b16 %v198
    %v1287 = vunpack.c.h.b16 %v198
    %v1288 = vunpack.c.l.b16 %v199
    %v1289 = vunpack.c.h.b16 %v199
    %v1290 = vunpack.c.l.b16 %v200
    %v1291 = vunpack.c.h.b16 %v200
    %v1292 = vunpack.c.l.b16 %v201
    %v1293 = vunpack.c.h.b16 %v201
    %v1294 = vunpack.c.l.b16 %v202
    %v1295 = vunpack.c.h.b16 %v202
    %v1296 = vunpack.c.l.b16 %v203
    %v1297 = vunpack.c.h.b16 %v203
    %v1298 = vunpack.c.l.b16 %v204
    %v1299 = vunpack.c.h.b16 %v204
    %v1300 = vunpack.c.l.b16 %v205
    %v1301 = vunpack.c.h.b16 %v205
    %v1302 = vunpack.c.l.b16 %v206
    %v1303 = vunpack.c.h.b16 %v206
    %v1304 = vunpack.c.l.b16 %v207
    %v1305 = vunpack.c.h.b16 %v207
    %v1306 = vunpack.c.l.b16 %v208
    %v1307 = vunpack.c.h.b16 %v208
    %v1308 = vunpack.c.l.b16 %v209
    %v1309 = vunpack.c.h.b16 %v209
    %v1310 = vunpack.c.l.b16 %v210
    %v1311 = vunpack.c.h.b16 %v210
    %v1312 = vunpack.c.l.b16 %v211
    %v1313 = vunpack.c.h.b16 %v211
    %v1314 = vunpack.c.l.b16 %v212
    %v1315 = vunpack.c.h.b16 %v212
    %v1316 = vunpack.c.l.b16 %v213
    %v1317 = vunpack.c.h.b16 %v213
    %v1318 = vunpack.c.l.b16 %v214
    %v1319 = vunpack.c.h.b16 %v214
    %v1320 = vunpack.c.l.b16 %v215
    %v1321 = vunpack.c.h.b16 %v215
    %v1322 = vunpack.c.l.b16 %v216
    %v1323 = vunpack.c.h.b16 %v216
    %v1324 = vunpack.c.l.b16 %v217
    %v1325 = vunpack.c.h.b16 %v217
    %v1326 = vunpack.c.l.b16 %v218
    %v1327 = vunpack.c.h.b16 %v218
    %v1328 = vunpack.c.l.b16 %v219
    %v1329 = vunpack.c.h.b16 %v219
    %v1330 = vunpack.c.l.b16 %v220
    %v1331 = vunpack.c.h.b16 %v220
    %v1332 = vunpack.c.l.b16 %v221
    %v1333 = vunpack.c.h.b16 %v221
    %v1334 = vunpack.c.l.b16 %v222
    %v1335 = vunpack.c.h.b16 %v222
    %v1336 = vunpack.c.l.b16 %v223
    %v1337 = vunpack.c.h.b16 %v223
    %v1338 = vunpack.c.l.b16 %v224
    %v1339 = vunpack.c.h.b16 %v224
    %v1340 = vunpack.c.l.b16 %v225
    %v1341 = vunpack.c.h.b16 %v225
    %v1342 = vunpack.c.l.b16 %v226
    %v1343 = vunpack.c.h.b16 %v226
    %v1344 = vunpack.c.l.b16 %v227
    %v1345 = vunpack.c.h.b16 %v227
    %v1346 = vunpack.c.l.b16 %v228
    %v1347 = vunpack.c.h.b16 %v228
    %v1348 = vunpack.c.l.b16 %v229
    %v1349 = vunpack.c.h.b16 %v229
    %v1350 = vunpack.c.l.b16 %v230
    %v1351 = vunpack.c.h.b16 %v230
    %v1352 = vunpack.c.l.b16 %v231
    %v1353 = vunpack.c.h.b16 %v231
    %v1354 = vunpack.c.l.b16 %v232
    %v1355 = vunpack.c.h.b16 %v232
    %v1356 = vunpack.c.l.b16 %v233
    %v1357 = vunpack.c.h.b16 %v233
    %v1358 = vunpack.c.l.b16 %v234
    %v1359 = vunpack.c.h.b16 %v234
    %v1360 = vunpack.c.l.b16 %v235
    %v1361 = vunpack.c.h.b16 %v235
    %v1362 = vunpack.c.l.b16 %v236
    %v1363 = vunpack.c.h.b16 %v236
    %v1364 = vunpack.c.l.b16 %v237
    %v1365 = vunpack.c.h.b16 %v237
    %v1366 = vunpack.c.l.b16 %v238
    %v1367 = vunpack.c.h.b16 %v238
    %v1368 = vunpack.c.l.b16 %v239
    %v1369 = vunpack.c.h.b16 %v239
    %v1370 = vunpack.c.l.b16 %v240
    %v1371 = vunpack.c.h.b16 %v240
    %v1372 = vunpack.c.l.b16 %v241
    %v1373 = vunpack.c.h.b16 %v241
    %v1374 = vunpack.c.l.b16 %v242
    %v1375 = vunpack.c.h.b16 %v242
    %v1376 = vunpack.c.l.b16 %v243
    %v1377 = vunpack.c.h.b16 %v243
    %v1378 = vunpack.c.l.b16 %v244
    %v1379 = vunpack.c.h.b16 %v244
    %v1380 = vunpack.c.l.b16 %v245
    %v1381 = vunpack.c.h.b16 %v245
    %v1382 = vunpack.c.l.b16 %v246
    %v1383 = vunpack.c.h.b16 %v246
    %v1384 = vunpack.c.l.b16 %v247
    %v1385 = vunpack.c.h.b16 %v247
    %v1386 = vunpack.c.l.b16 %v248
    %v1387 = vunpack.c.h.b16 %v248
    %v1388 = vunpack.c.l.b16 %v249
    %v1389 = vunpack.c.h.b16 %v249
    %v1390 = vunpack.c.l.b16 %v250
    %v1391 = vunpack.c.h.b16 %v250
    %v1392 = vunpack.c.l.b16 %v251
    %v1393 = vunpack.c.h.b16 %v251
    %v1394 = vunpack.c.l.b16 %v252
    %v1395 = vunpack.c.h.b16 %v252
    %v1396 = vunpack.c.l.b16 %v253
    %v1397 = vunpack.c.h.b16 %v253
    %v1398 = vunpack.c.l.b16 %v254
    %v1399 = vunpack.c.h.b16 %v254
    %v1400 = vunpack.c.l.b16 %v255
    %v1401 = vunpack.c.h.b16 %v255
    %v1402 = vunpack.c.l.b16 %v256
    %v1403 = vunpack.c.h.b16 %v256
    %v1404 = vunpack.c.l.b16 %v257
    %v1405 = vunpack.c.h.b16 %v257
    %v1406 = vunpack.c.l.b16 %v258
    %v1407 = vunpack.c.h.b16 %v258
    %v1408 = vunpack.c.l.b16 %v259
    %v1409 = vunpack.c.h.b16 %v259
    %v1410 = vunpack.c.l.b16 %v260
    %v1411 = vunpack.c.h.b16 %v260
    %v1412 = vunpack.c.l.b16 %v261
    %v1413 = vunpack.c.h.b16 %v261
    %v1414 = vunpack.c.l.b16 %v262
    %v1415 = vunpack.c.h.b16 %v262
    %v1416 = vunpack.c.l.b16 %v263
    %v1417 = vunpack.c.h.b16 %v263
    %v1418 = vunpack.c.l.b16 %v264
    %v1419 = vunpack.c.h.b16 %v264
    %v1420 = vunpack.c.l.b16 %v265
    %v1421 = vunpack.c.h.b16 %v265
    %v1422 = vunpack.c.l.b16 %v266
    %v1423 = vunpack.c.h.b16 %v266
    %v1424 = vunpack.c.l.b16 %v267
    %v1425 = vunpack.c.h.b16 %v267
    %v1426 = vunpack.c.l.b16 %v268
    %v1427 = vunpack.c.h.b16 %v268
    %v1428 = vunpack.c.l.b16 %v269
    %v1429 = vunpack.c.h.b16 %v269
    %v1430 = vunpack.c.l.b16 %v270
    %v1431 = vunpack.c.h.b16 %v270
    %v1432 = vunpack.c.l.b16 %v271
    %v1433 = vunpack.c.h.b16 %v271
    %v1434 = vunpack.c.l.b16 %v272
    %v1435 = vunpack.c.h.b16 %v272
    %v1436 = vunpack.c.l.b16 %v273
    %v1437 = vunpack.c.h.b16 %v273
    %v1438 = vunpack.c.l.b16 %v274
    %v1439 = vunpack.c.h.b16 %v274
    %v1440 = vunpack.c.l.b16 %v275
    %v1441 = vunpack.c.h.b16 %v275
    %v1442 = vunpack.c.l.b16 %v276
    %v1443 = vunpack.c.h.b16 %v276
    %v1444 = vunpack.c.l.b16 %v277
    %v1445 = vunpack.c.h.b16 %v277
    %v1446 = vunpack.c.l.b16 %v278
    %v1447 = vunpack.c.h.b16 %v278
    %v1448 = vunpack.c.l.b16 %v279
    %v1449 = vunpack.c.h.b16 %v279
    %v1450 = vunpack.c.l.b16 %v280
    %v1451 = vunpack.c.h.b16 %v280
    %v1452 = vunpack.c.l.b16 %v281
    %v1453 = vunpack.c.h.b16 %v281
    %v1454 = vunpack.c.l.b16 %v282
    %v1455 = vunpack.c.h.b16 %v282
    %v1456 = vunpack.c.l.b16 %v283
    %v1457 = vunpack.c.h.b16 %v283
    %v1458 = vunpack.c.l.b16 %v284
    %v1459 = vunpack.c.h.b16 %v284
    %v1460 = vunpack.c.l.b16 %v285
    %v1461 = vunpack.c.h.b16 %v285
    %v1462 = vunpack.c.l.b16 %v286
    %v1463 = vunpack.c.h.b16 %v286
    %v1464 = vunpack.c.l.b16 %v287
    %v1465 = vunpack.c.h.b16 %v287
    %v1466 = vunpack.c.l.b16 %v288
    %v1467 = vunpack.c.h.b16 %v288
    %v1468 = vunpack.c.l.b16 %v289
    %v1469 = vunpack.c.h.b16 %v289
    %v1470 = vunpack.c.l.b16 %v290
    %v1471 = vunpack.c.h.b16 %v290
    %v1472 = vunpack.c.l.b16 %v291
    %v1473 = vunpack.c.h.b16 %v291
    %v1474 = vunpack.c.l.b16 %v292
    %v1475 = vunpack.c.h.b16 %v292
    %v1476 = vunpack.c.l.b16 %v293
    %v1477 = vunpack.c.h.b16 %v293
    %v1478 = vunpack.c.l.b16 %v294
    %v1479 = vunpack.c.h.b16 %v294
    %v1480 = vunpack.c.l.b16 %v295
    %v1481 = vunpack.c.h.b16 %v295
    %v1482 = vunpack.c.l.b16 %v296
    %v1483 = vunpack.c.h.b16 %v296
    %v1484 = vunpack.c.l.b16 %v297
    %v1485 = vunpack.c.h.b16 %v297
    %v1486 = vunpack.c.l.b16 %v298
    %v1487 = vunpack.c.h.b16 %v298
    %v1488 = vunpack.c.l.b16 %v299
    %v1489 = vunpack.c.h.b16 %v299
    %v1490 = vunpack.c.l.b16 %v300
    %v1491 = vunpack.c.h.b16 %v300
    %v1492 = vunpack.c.l.b16 %v301
    %v1493 = vunpack.c.h.b16 %v301
    %v1494 = vunpack.c.l.b16 %v302
    %v1495 = vunpack.c.h.b16 %v302
    %v1496 = vunpack.c.l.b16 %v303
    %v1497 = vunpack.c.h.b16 %v303
    %v1498 = vunpack.c.l.b16 %v304
    %v1499 = vunpack.c.h.b16 %v304
    %v1500 = vunpack.c.l.b16 %v305
    %v1501 = vunpack.c.h.b16 %v305
    %v1502 = vunpack.c.l.b16 %v306
    %v1503 = vunpack.c.h.b16 %v306
    %v1504 = vunpack.c.l.b16 %v307
    %v1505 = vunpack.c.h.b16 %v307
    %v1506 = vunpack.c.l.b16 %v308
    %v1507 = vunpack.c.h.b16 %v308
    %v1508 = vunpack.c.l.b16 %v309
    %v1509 = vunpack.c.h.b16 %v309
    %v1510 = vunpack.c.l.b16 %v310
    %v1511 = vunpack.c.h.b16 %v310
    %v1512 = vunpack.c.l.b16 %v311
    %v1513 = vunpack.c.h.b16 %v311
    %v1514 = vunpack.c.l.b16 %v312
    %v1515 = vunpack.c.h.b16 %v312
    %v1516 = vunpack.c.l.b16 %v313
    %v1517 = vunpack.c.h.b16 %v313
    %v1518 = vunpack.c.l.b16 %v314
    %v1519 = vunpack.c.h.b16 %v314
    %v1520 = vunpack.c.l.b16 %v315
    %v1521 = vunpack.c.h.b16 %v315
    %v1522 = vunpack.c.l.b16 %v316
    %v1523 = vunpack.c.h.b16 %v316
    %v1524 = vunpack.c.l.b16 %v317
    %v1525 = vunpack.c.h.b16 %v317
    %v1526 = vunpack.c.l.b16 %v318
    %v1527 = vunpack.c.h.b16 %v318
    %v1528 = vunpack.c.l.b16 %v319
    %v1529 = vunpack.c.h.b16 %v319
    %v1530 = vunpack.c.l.b16 %v320
    %v1531 = vunpack.c.h.b16 %v320
    %v1532 = vunpack.c.l.b16 %v321
    %v1533 = vunpack.c.h.b16 %v321
    %v1534 = vunpack.c.l.b16 %v322
    %v1535 = vunpack.c.h.b16 %v322
    %v1536 = vunpack.c.l.b16 %v323
    %v1537 = vunpack.c.h.b16 %v323
    %v1538 = vunpack.c.l.b16 %v324
    %v1539 = vunpack.c.h.b16 %v324
    %v1540 = vunpack.c.l.b16 %v325
    %v1541 = vunpack.c.h.b16 %v325
    %v1542 = vunpack.c.l.b16 %v326
    %v1543 = vunpack.c.h.b16 %v326
    %v1544 = vunpack.c.l.b16 %v327
    %v1545 = vunpack.c.h.b16 %v327
    %v1546 = vunpack.c.l.b16 %v328
    %v1547 = vunpack.c.h.b16 %v328
    %v1548 = vunpack.c.l.b16 %v329
    %v1549 = vunpack.c.h.b16 %v329
    %v1550 = vunpack.c.l.b16 %v330
    %v1551 = vunpack.c.h.b16 %v330
    %v1552 = vunpack.c.l.b16 %v331
    %v1553 = vunpack.c.h.b16 %v331
    %v1554 = vunpack.c.l.b16 %v332
    %v1555 = vunpack.c.h.b16 %v332
    %v1556 = vunpack.c.l.b16 %v333
    %v1557 = vunpack.c.h.b16 %v333
    %v1558 = vunpack.c.l.b16 %v334
    %v1559 = vunpack.c.h.b16 %v334
    %v1560 = vunpack.c.l.b16 %v335
    %v1561 = vunpack.c.h.b16 %v335
    %v1562 = vunpack.c.l.b16 %v336
    %v1563 = vunpack.c.h.b16 %v336
    %v1564 = vunpack.c.l.b16 %v337
    %v1565 = vunpack.c.h.b16 %v337
    %v1566 = vunpack.c.l.b16 %v338
    %v1567 = vunpack.c.h.b16 %v338
    %v1568 = vunpack.c.l.b16 %v339
    %v1569 = vunpack.c.h.b16 %v339
    %v1570 = vunpack.c.l.b16 %v340
    %v1571 = vunpack.c.h.b16 %v340
    %v1572 = vunpack.c.l.b16 %v341
    %v1573 = vunpack.c.h.b16 %v341
    %v1574 = vunpack.c.l.b16 %v342
    %v1575 = vunpack.c.h.b16 %v342
    %v1576 = vunpack.c.l.b16 %v343
    %v1577 = vunpack.c.h.b16 %v343
    %v1578 = vunpack.c.l.b16 %v344
    %v1579 = vunpack.c.h.b16 %v344
    %v1580 = vunpack.c.l.b16 %v345
    %v1581 = vunpack.c.h.b16 %v345
    %v1582 = vunpack.c.l.b16 %v346
    %v1583 = vunpack.c.h.b16 %v346
    %v1584 = vunpack.c.l.b16 %v347
    %v1585 = vunpack.c.h.b16 %v347
    %v1586 = vunpack.c.l.b16 %v348
    %v1587 = vunpack.c.h.b16 %v348
    %v1588 = vunpack.c.l.b16 %v349
    %v1589 = vunpack.c.h.b16 %v349
    %v1590 = vunpack.c.l.b16 %v350
    %v1591 = vunpack.c.h.b16 %v350
    %v1592 = vunpack.c.l.b16 %v351
    %v1593 = vunpack.c.h.b16 %v351
    %v1594 = vunpack.c.l.b16 %v352
    %v1595 = vunpack.c.h.b16 %v352
    %v1596 = vunpack.c.l.b16 %v353
    %v1597 = vunpack.c.h.b16 %v353
    %v1598 = vunpack.c.l.b16 %v354
    %v1599 = vunpack.c.h.b16 %v354
    %v1600 = vunpack.c.l.b16 %v355
    %v1601 = vunpack.c.h.b16 %v355
    %v1602 = vunpack.c.l.b16 %v356
    %v1603 = vunpack.c.h.b16 %v356
    %v1604 = vunpack.c.l.b16 %v357
    %v1605 = vunpack.c.h.b16 %v357
    %v1606 = vunpack.c.l.b16 %v358
    %v1607 = vunpack.c.h.b16 %v358
    %v1608 = vunpack.c.l.b16 %v359
    %v1609 = vunpack.c.h.b16 %v359
    %v1610 = vunpack.c.l.b16 %v360
    %v1611 = vunpack.c.h.b16 %v360
    %v1612 = vunpack.c.l.b16 %v361
    %v1613 = vunpack.c.h.b16 %v361
    %v1614 = vunpack.c.l.b16 %v362
    %v1615 = vunpack.c.h.b16 %v362
    %v1616 = vunpack.c.l.b16 %v363
    %v1617 = vunpack.c.h.b16 %v363
    %v1618 = vunpack.c.l.b16 %v364
    %v1619 = vunpack.c.h.b16 %v364
    %v1620 = vunpack.c.l.b16 %v365
    %v1621 = vunpack.c.h.b16 %v365
    %v1622 = vunpack.c.l.b16 %v366
    %v1623 = vunpack.c.h.b16 %v366
    %v1624 = vunpack.c.l.b16 %v367
    %v1625 = vunpack.c.h.b16 %v367
    %v1626 = vunpack.c.l.b16 %v368
    %v1627 = vunpack.c.h.b16 %v368
    %v1628 = vunpack.c.l.b16 %v369
    %v1629 = vunpack.c.h.b16 %v369
    %v1630 = vunpack.c.l.b16 %v370
    %v1631 = vunpack.c.h.b16 %v370
    %v1632 = vunpack.c.l.b16 %v371
    %v1633 = vunpack.c.h.b16 %v371
    %v1634 = vunpack.c.l.b16 %v372
    %v1635 = vunpack.c.h.b16 %v372
    %v1636 = vunpack.c.l.b16 %v373
    %v1637 = vunpack.c.h.b16 %v373
    %v1638 = vunpack.c.l.b16 %v374
    %v1639 = vunpack.c.h.b16 %v374
    %v1640 = vunpack.c.l.b16 %v375
    %v1641 = vunpack.c.h.b16 %v375
    %v1642 = vunpack.c.l.b16 %v376
    %v1643 = vunpack.c.h.b16 %v376
    %v1644 = vunpack.c.l.b16 %v377
    %v1645 = vunpack.c.h.b16 %v377
    %v1646 = vunpack.c.l.b16 %v378
    %v1647 = vunpack.c.h.b16 %v378
    %v1648 = vunpack.c.l.b16 %v379
    %v1649 = vunpack.c.h.b16 %v379
    %v1650 = vunpack.c.l.b16 %v380
    %v1651 = vunpack.c.h.b16 %v380
    %v1652 = vunpack.c.l.b16 %v381
    %v1653 = vunpack.c.h.b16 %v381
    %v1654 = vunpack.c.l.b16 %v382
    %v1655 = vunpack.c.h.b16 %v382
    %v1656 = vunpack.c.l.b16 %v383
    %v1657 = vunpack.c.h.b16 %v383
    %v1658 = vunpack.c.l.b16 %v384
    %v1659 = vunpack.c.h.b16 %v384
    %v1660 = vunpack.c.l.b16 %v385
    %v1661 = vunpack.c.h.b16 %v385
    %v1662 = vunpack.c.l.b16 %v386
    %v1663 = vunpack.c.h.b16 %v386
    %v1664 = vunpack.c.l.b16 %v387
    %v1665 = vunpack.c.h.b16 %v387
    %v1666 = vunpack.c.l.b16 %v388
    %v1667 = vunpack.c.h.b16 %v388
    %v1668 = vunpack.c.l.b16 %v389
    %v1669 = vunpack.c.h.b16 %v389
    %v1670 = vunpack.c.l.b16 %v390
    %v1671 = vunpack.c.h.b16 %v390
    %v1672 = vunpack.c.l.b16 %v391
    %v1673 = vunpack.c.h.b16 %v391
    %v1674 = vunpack.c.l.b16 %v392
    %v1675 = vunpack.c.h.b16 %v392
    %v1676 = vunpack.c.l.b16 %v393
    %v1677 = vunpack.c.h.b16 %v393
    %v1678 = vunpack.c.l.b16 %v394
    %v1679 = vunpack.c.h.b16 %v394
    %v1680 = vunpack.c.l.b16 %v395
    %v1681 = vunpack.c.h.b16 %v395
    %v1682 = vunpack.c.l.b16 %v396
    %v1683 = vunpack.c.h.b16 %v396
    %v1684 = vunpack.c.l.b16 %v397
    %v1685 = vunpack.c.h.b16 %v397
    %v1686 = vunpack.c.l.b16 %v398
    %v1687 = vunpack.c.h.b16 %v398
    %v1688 = vunpack.c.l.b16 %v399
    %v1689 = vunpack.c.h.b16 %v399
    %v1690 = vunpack.c.l.b16 %v400
    %v1691 = vunpack.c.h.b16 %v400
    %v1692 = vunpack.c.l.b16 %v401
    %v1693 = vunpack.c.h.b16 %v401
    %v1694 = vunpack.c.l.b16 %v402
    %v1695 = vunpack.c.h.b16 %v402
    %v1696 = vunpack.c.l.b16 %v403
    %v1697 = vunpack.c.h.b16 %v403
    %v1698 = vunpack.c.l.b16 %v404
    %v1699 = vunpack.c.h.b16 %v404
    %v1700 = vunpack.c.l.b16 %v405
    %v1701 = vunpack.c.h.b16 %v405
    %v1702 = vunpack.c.l.b16 %v406
    %v1703 = vunpack.c.h.b16 %v406
    %v1704 = vunpack.c.l.b16 %v407
    %v1705 = vunpack.c.h.b16 %v407
    %v1706 = vunpack.c.l.b16 %v408
    %v1707 = vunpack.c.h.b16 %v408
    %v1708 = vunpack.c.l.b16 %v409
    %v1709 = vunpack.c.h.b16 %v409
    %v1710 = vunpack.c.l.b16 %v410
    %v1711 = vunpack.c.h.b16 %v410
    %v1712 = vunpack.c.l.b16 %v411
    %v1713 = vunpack.c.h.b16 %v411
    %v1714 = vunpack.c.l.b16 %v412
    %v1715 = vunpack.c.h.b16 %v412
    %v1716 = vunpack.c.l.b16 %v413
    %v1717 = vunpack.c.h.b16 %v413
    %v1718 = vunpack.c.l.b16 %v414
    %v1719 = vunpack.c.h.b16 %v414
    %v1720 = vunpack.c.l.b16 %v415
    %v1721 = vunpack.c.h.b16 %v415
    %v1722 = vunpack.c.l.b16 %v416
    %v1723 = vunpack.c.h.b16 %v416
    %v1724 = vunpack.c.l.b16 %v417
    %v1725 = vunpack.c.h.b16 %v417
    %v1726 = vunpack.c.l.b16 %v418
    %v1727 = vunpack.c.h.b16 %v418
    %v1728 = vunpack.c.l.b16 %v419
    %v1729 = vunpack.c.h.b16 %v419
    %v1730 = vunpack.c.l.b16 %v420
    %v1731 = vunpack.c.h.b16 %v420
    %v1732 = vunpack.c.l.b16 %v421
    %v1733 = vunpack.c.h.b16 %v421
    %v1734 = vunpack.c.l.b16 %v422
    %v1735 = vunpack.c.h.b16 %v422
    %v1736 = vunpack.c.l.b16 %v423
    %v1737 = vunpack.c.h.b16 %v423
    %v1738 = vunpack.c.l.b16 %v424
    %v1739 = vunpack.c.h.b16 %v424
    %v1740 = vunpack.c.l.b16 %v425
    %v1741 = vunpack.c.h.b16 %v425
    %v1742 = vunpack.c.l.b16 %v426
    %v1743 = vunpack.c.h.b16 %v426
    %v1744 = vunpack.c.l.b16 %v427
    %v1745 = vunpack.c.h.b16 %v427
    %v1746 = vunpack.c.l.b16 %v428
    %v1747 = vunpack.c.h.b16 %v428
    %v1748 = vunpack.c.l.b16 %v429
    %v1749 = vunpack.c.h.b16 %v429
    %v1750 = vunpack.c.l.b16 %v430
    %v1751 = vunpack.c.h.b16 %v430
    %v1752 = vunpack.c.l.b16 %v431
    %v1753 = vunpack.c.h.b16 %v431
    %v1754 = vunpack.c.l.b16 %v432
    %v1755 = vunpack.c.h.b16 %v432
    %v1756 = vunpack.c.l.b16 %v433
    %v1757 = vunpack.c.h.b16 %v433
    %v1758 = vunpack.c.l.b16 %v434
    %v1759 = vunpack.c.h.b16 %v434
    %v1760 = vunpack.c.l.b16 %v435
    %v1761 = vunpack.c.h.b16 %v435
    %v1762 = vunpack.c.l.b16 %v436
    %v1763 = vunpack.c.h.b16 %v436
    %v1764 = vunpack.c.l.b16 %v437
    %v1765 = vunpack.c.h.b16 %v437
    %v1766 = vunpack.c.l.b16 %v438
    %v1767 = vunpack.c.h.b16 %v438
    %v1768 = vunpack.c.l.b16 %v439
    %v1769 = vunpack.c.h.b16 %v439
    %v1770 = vunpack.c.l.b16 %v440
    %v1771 = vunpack.c.h.b16 %v440
    %v1772 = vunpack.c.l.b16 %v441
    %v1773 = vunpack.c.h.b16 %v441
    %v1774 = vunpack.c.l.b16 %v442
    %v1775 = vunpack.c.h.b16 %v442
    %v1776 = vunpack.c.l.b16 %v443
    %v1777 = vunpack.c.h.b16 %v443
    %v1778 = vunpack.c.l.b16 %v444
    %v1779 = vunpack.c.h.b16 %v444
    %v1780 = vunpack.c.l.b16 %v445
    %v1781 = vunpack.c.h.b16 %v445
    %v1782 = vunpack.c.l.b16 %v446
    %v1783 = vunpack.c.h.b16 %v446
    %v1784 = vunpack.c.l.b16 %v447
    %v1785 = vunpack.c.h.b16 %v447
    %v1786 = vunpack.c.l.b16 %v448
    %v1787 = vunpack.c.h.b16 %v448
    %v1788 = vunpack.c.l.b16 %v449
    %v1789 = vunpack.c.h.b16 %v449
    %v1790 = vunpack.c.l.b16 %v450
    %v1791 = vunpack.c.h.b16 %v450
    %v1792 = vunpack.c.l.b16 %v451
    %v1793 = vunpack.c.h.b16 %v451
    %v1794 = vunpack.c.l.b16 %v452
    %v1795 = vunpack.c.h.b16 %v452
    %v1796 = vunpack.c.l.b16 %v453
    %v1797 = vunpack.c.h.b16 %v453
    %v1798 = vunpack.c.l.b16 %v454
    %v1799 = vunpack.c.h.b16 %v454
    %v1800 = vunpack.c.l.b16 %v455
    %v1801 = vunpack.c.h.b16 %v455
    %v1802 = vunpack.c.l.b16 %v456
    %v1803 = vunpack.c.h.b16 %v456
    %v1804 = vunpack.c.l.b16 %v457
    %v1805 = vunpack.c.h.b16 %v457
    %v1806 = vunpack.c.l.b16 %v458
    %v1807 = vunpack.c.h.b16 %v458
    %v1808 = vunpack.c.l.b16 %v459
    %v1809 = vunpack.c.h.b16 %v459
    %v1810 = vunpack.c.l.b16 %v460
    %v1811 = vunpack.c.h.b16 %v460
    %v1812 = vunpack.c.l.b16 %v461
    %v1813 = vunpack.c.h.b16 %v461
    %v1814 = vunpack.c.l.b16 %v462
    %v1815 = vunpack.c.h.b16 %v462
    %v1816 = vunpack.c.l.b16 %v463
    %v1817 = vunpack.c.h.b16 %v463
    %v1818 = vunpack.c.l.b16 %v464
    %v1819 = vunpack.c.h.b16 %v464
    %v1820 = vunpack.c.l.b16 %v465
    %v1821 = vunpack.c.h.b16 %v465
    %v1822 = vunpack.c.l.b16 %v466
    %v1823 = vunpack.c.h.b16 %v466
    %v1824 = vunpack.c.l.b16 %v467
    %v1825 = vunpack.c.h.b16 %v467
    %v1826 = vunpack.c.l.b16 %v468
    %v1827 = vunpack.c.h.b16 %v468
    %v1828 = vunpack.c.l.b16 %v469
    %v1829 = vunpack.c.h.b16 %v469
    %v1830 = vunpack.c.l.b16 %v470
    %v1831 = vunpack.c.h.b16 %v470
    %v1832 = vunpack.c.l.b16 %v471
    %v1833 = vunpack.c.h.b16 %v471
    %v1834 = vunpack.c.l.b16 %v472
    %v1835 = vunpack.c.h.b16 %v472
    %v1836 = vunpack.c.l.b16 %v473
    %v1837 = vunpack.c.h.b16 %v473
    %v1838 = vunpack.c.l.b16 %v474
    %v1839 = vunpack.c.h.b16 %v474
    %v1840 = vunpack.c.l.b16 %v475
    %v1841 = vunpack.c.h.b16 %v475
    %v1842 = vunpack.c.l.b16 %v476
    %v1843 = vunpack.c.h.b16 %v476
    %v1844 = vunpack.c.l.b16 %v477
    %v1845 = vunpack.c.h.b16 %v477
    %v1846 = vunpack.c.l.b16 %v478
    %v1847 = vunpack.c.h.b16 %v478
    %v1848 = vunpack.c.l.b16 %v479
    %v1849 = vunpack.c.h.b16 %v479
    %v1850 = vunpack.c.l.b16 %v480
    %v1851 = vunpack.c.h.b16 %v480
    %v1852 = vunpack.c.l.b16 %v481
    %v1853 = vunpack.c.h.b16 %v481
    %v1854 = vunpack.c.l.b16 %v482
    %v1855 = vunpack.c.h.b16 %v482
    %v1856 = vunpack.c.l.b16 %v483
    %v1857 = vunpack.c.h.b16 %v483
    %v1858 = vunpack.c.l.b16 %v484
    %v1859 = vunpack.c.h.b16 %v484
    %v1860 = vunpack.c.l.b16 %v485
    %v1861 = vunpack.c.h.b16 %v485
    %v1862 = vunpack.c.l.b16 %v486
    %v1863 = vunpack.c.h.b16 %v486
    %v1864 = vunpack.c.l.b16 %v487
    %v1865 = vunpack.c.h.b16 %v487
    %v1866 = vunpack.c.l.b16 %v488
    %v1867 = vunpack.c.h.b16 %v488
    %v1868 = vunpack.c.l.b16 %v489
    %v1869 = vunpack.c.h.b16 %v489
    %v1870 = vunpack.c.l.b16 %v490
    %v1871 = vunpack.c.h.b16 %v490
    %v1872 = vunpack.c.l.b16 %v491
    %v1873 = vunpack.c.h.b16 %v491
    %v1874 = vunpack.c.l.b16 %v492
    %v1875 = vunpack.c.h.b16 %v492
    %v1876 = vunpack.c.l.b16 %v493
    %v1877 = vunpack.c.h.b16 %v493
    %v1878 = vunpack.c.l.b16 %v494
    %v1879 = vunpack.c.h.b16 %v494
    %v1880 = vunpack.c.l.b16 %v495
    %v1881 = vunpack.c.h.b16 %v495
    %v1882 = vunpack.c.l.b16 %v496
    %v1883 = vunpack.c.h.b16 %v496
    %v1884 = vpack.c.b16 %v996, %v988
    %v1885 = vpack.c.b16 %v997, %v989
    %v1886 = vpack.c.b16 %v998, %v990
    %v1887 = vpack.c.b16 %v999, %v991
    %v1888 = vpack.c.b16 %v1000, %v992
    %v1889 = vpack.c.b16 %v1001, %v993
    %v1890 = vpack.c.b16 %v1002, %v994
    %v1891 = vpack.c.b16 %v1003, %v995
    %v1892 = vpack.c.b16 %v1012, %v1004
    %v1893 = vpack.c.b16 %v1013, %v1005
    %v1894 = vpack.c.b16 %v1014, %v1006
    %v1895 = vpack.c.b16 %v1015, %v1007
    %v1896 = vpack.c.b16 %v1016, %v1008
    %v1897 = vpack.c.b16 %v1017, %v1009
    %v1898 = vpack.c.b16 %v1018, %v1010
    %v1899 = vpack.c.b16 %v1019, %v1011
    %v1900 = vpack.c.b16 %v1028, %v1020
    %v1901 = vpack.c.b16 %v1029, %v1021
    %v1902 = vpack.c.b16 %v1030, %v1022
    %v1903 = vpack.c.b16 %v1031, %v1023
    %v1904 = vpack.c.b16 %v1032, %v1024
    %v1905 = vpack.c.b16 %v1033, %v1025
    %v1906 = vpack.c.b16 %v1034, %v1026
    %v1907 = vpack.c.b16 %v1035, %v1027
    %v1908 = vpack.c.b16 %v1044, %v1036
    %v1909 = vpack.c.b16 %v1045, %v1037
    %v1910 = vpack.c.b16 %v1046, %v1038
    %v1911 = vpack.c.b16 %v1047, %v1039
    %v1912 = vpack.c.b16 %v1048, %v1040
    %v1913 = vpack.c.b16 %v1049, %v1041
    %v1914 = vpack.c.b16 %v1050, %v1042
    %v1915 = vpack.c.b16 %v1051, %v1043
    %v1916 = vpack.c.b16 %v1060, %v1052
    %v1917 = vpack.c.b16 %v1061, %v1053
    %v1918 = vpack.c.b16 %v1062, %v1054
    %v1919 = vpack.c.b16 %v1063, %v1055
    %v1920 = vpack.c.b16 %v1064, %v1056
    %v1921 = vpack.c.b16 %v1065, %v1057
    %v1922 = vpack.c.b16 %v1066, %v1058
    %v1923 = vpack.c.b16 %v1067, %v1059
    %v1924 = vpack.c.b16 %v1076, %v1068
    %v1925 = vpack.c.b16 %v1077, %v1069
    %v1926 = vpack.c.b16 %v1078, %v1070
    %v1927 = vpack.c.b16 %v1079, %v1071
    %v1928 = vpack.c.b16 %v1080, %v1072
    %v1929 = vpack.c.b16 %v1081, %v1073
    %v1930 = vpack.c.b16 %v1082, %v1074
    %v1931 = vpack.c.b16 %v1083, %v1075
    %v1932 = vpack.c.b16 %v1092, %v1084
    %v1933 = vpack.c.b16 %v1093, %v1085
    %v1934 = vpack.c.b16 %v1094, %v1086
    %v1935 = vpack.c.b16 %v1095, %v1087
    %v1936 = vpack.c.b16 %v1096, %v1088
    %v1937 = vpack.c.b16 %v1097, %v1089
    %v1938 = vpack.c.b16 %v1098, %v1090
    %v1939 = vpack.c.b16 %v1099, %v1091
    %v1940 = vpack.c.b16 %v1108, %v1100
    %v1941 = vpack.c.b16 %v1109, %v1101
    %v1942 = vpack.c.b16 %v1110, %v1102
    %v1943 = vpack.c.b16 %v1111, %v1103
    %v1944 = vpack.c.b16 %v1112, %v1104
    %v1945 = vpack.c.b16 %v1113, %v1105
    %v1946 = vpack.c.b16 %v1114, %v1106
    %v1947 = vpack.c.b16 %v1115, %v1107
    %v1948 = vpack.c.b16 %v1124, %v1116
    %v1949 = vpack.c.b16 %v1125, %v1117
    %v1950 = vpack.c.b16 %v1126, %v1118
    %v1951 = vpack.c.b16 %v1127, %v1119
    %v1952 = vpack.c.b16 %v1128, %v1120
    %v1953 = vpack.c.b16 %v1129, %v1121
    %v1954 = vpack.c.b16 %v1130, %v1122
    %v1955 = vpack.c.b16 %v1131, %v1123
    %v1956 = vpack.c.b16 %v1140, %v1132
    %v1957 = vpack.c.b16 %v1141, %v1133
    %v1958 = vpack.c.b16 %v1142, %v1134
    %v1959 = vpack.c.b16 %v1143, %v1135
    %v1960 = vpack.c.b16 %v1144, %v1136
    %v1961 = vpack.c.b16 %v1145, %v1137
    %v1962 = vpack.c.b16 %v1146, %v1138
    %v1963 = vpack.c.b16 %v1147, %v1139
    %v1964 = vpack.c.b16 %v1156, %v1148
    %v1965 = vpack.c.b16 %v1157, %v1149
    %v1966 = vpack.c.b16 %v1158, %v1150
    %v1967 = vpack.c.b16 %v1159, %v1151
    %v1968 = vpack.c.b16 %v1160, %v1152
    %v1969 = vpack.c.b16 %v1161, %v1153
    %v1970 = vpack.c.b16 %v1162, %v1154
    %v1971 = vpack.c.b16 %v1163, %v1155
    %v1972 = vpack.c.b16 %v1172, %v1164
    %v1973 = vpack.c.b16 %v1173, %v1165
    %v1974 = vpack.c.b16 %v1174, %v1166
    %v1975 = vpack.c.b16 %v1175, %v1167
    %v1976 = vpack.c.b16 %v1176, %v1168
    %v1977 = vpack.c.b16 %v1177, %v1169
    %v1978 = vpack.c.b16 %v1178, %v1170
    %v1979 = vpack.c.b16 %v1179, %v1171
    %v1980 = vpack.c.b16 %v1188, %v1180
    %v1981 = vpack.c.b16 %v1189, %v1181
    %v1982 = vpack.c.b16 %v1190, %v1182
    %v1983 = vpack.c.b16 %v1191, %v1183
    %v1984 = vpack.c.b16 %v1192, %v1184
    %v1985 = vpack.c.b16 %v1193, %v1185
    %v1986 = vpack.c.b16 %v1194, %v1186
    %v1987 = vpack.c.b16 %v1195, %v1187
    %v1988 = vpack.c.b16 %v1204, %v1196
    %v1989 = vpack.c.b16 %v1205, %v1197
    %v1990 = vpack.c.b16 %v1206, %v1198
    %v1991 = vpack.c.b16 %v1207, %v1199
    %v1992 = vpack.c.b16 %v1208, %v1200
    %v1993 = vpack.c.b16 %v1209, %v1201
    %v1994 = vpack.c.b16 %v1210, %v1202
    %v1995 = vpack.c.b16 %v1211, %v1203
    %v1996 = vpack.c.b16 %v1220, %v1212
    %v1997 = vpack.c.b16 %v1221, %v1213
    %v1998 = vpack.c.b16 %v1222, %v1214
    %v1999 = vpack.c.b16 %v1223, %v1215
    %v2000 = vpack.c.b16 %v1224, %v1216
    %v2001 = vpack.c.b16 %v1225, %v1217
    %v2002 = vpack.c.b16 %v1226, %v1218
    %v2003 = vpack.c.b16 %v1227, %v1219
    %v2004 = vpack.c.b16 %v1236, %v1228
    %v2005 = vpack.c.b16 %v1237, %v1229
    %v2006 = vpack.c.b16 %v1238, %v1230
    %v2007 = vpack.c.b16 %v1239, %v1231
    %v2008 = vpack.c.b16 %v1240, %v1232
    %v2009 = vpack.c.b16 %v1241, %v1233
    %v2010 = vpack.c.b16 %v1242, %v1234
    %v2011 = vpack.c.b16 %v1243, %v1235
    %v2012 = vpack.c.b16 %v1252, %v1244
    %v2013 = vpack.c.b16 %v1253, %v1245
    %v2014 = vpack.c.b16 %v1254, %v1246
    %v2015 = vpack.c.b16 %v1255, %v1247
    %v2016 = vpack.c.b16 %v1256, %v1248
    %v2017 = vpack.c.b16 %v1257, %v1249
    %v2018 = vpack.c.b16 %v1258, %v1250
    %v2019 = vpack.c.b16 %v1259, %v1251
    %v2020 = vpack.c.b16 %v1268, %v1260
    %v2021 = vpack.c.b16 %v1269, %v1261
    %v2022 = vpack.c.b16 %v1270, %v1262
    %v2023 = vpack.c.b16 %v1271, %v1263
    %v2024 = vpack.c.b16 %v1272, %v1264
    %v2025 = vpack.c.b16 %v1273, %v1265
    %v2026 = vpack.c.b16 %v1274, %v1266
    %v2027 = vpack.c.b16 %v1275, %v1267
    %v2028 = vpack.c.b16 %v1284, %v1276
    %v2029 = vpack.c.b16 %v1285, %v1277
    %v2030 = vpack.c.b16 %v1286, %v1278
    %v2031 = vpack.c.b16 %v1287, %v1279
    %v2032 = vpack.c.b16 %v1288, %v1280
    %v2033 = vpack.c.b16 %v1289, %v1281
    %v2034 = vpack.c.b16 %v1290, %v1282
    %v2035 = vpack.c.b16 %v1291, %v1283
    %v2036 = vpack.c.b16 %v1300, %v1292
    %v2037 = vpack.c.b16 %v1301, %v1293
    %v2038 = vpack.c.b16 %v1302, %v1294
    %v2039 = vpack.c.b16 %v1303, %v1295
    %v2040 = vpack.c.b16 %v1304, %v1296
    %v2041 = vpack.c.b16 %v1305, %v1297
    %v2042 = vpack.c.b16 %v1306, %v1298
    %v2043 = vpack.c.b16 %v1307, %v1299
    %v2044 = vpack.c.b16 %v1316, %v1308
    %v2045 = vpack.c.b16 %v1317, %v1309
    %v2046 = vpack.c.b16 %v1318, %v1310
    %v2047 = vpack.c.b16 %v1319, %v1311
    %v2048 = vpack.c.b16 %v1320, %v1312
    %v2049 = vpack.c.b16 %v1321, %v1313
    %v2050 = vpack.c.b16 %v1322, %v1314
    %v2051 = vpack.c.b16 %v1323, %v1315
    %v2052 = vpack.c.b16 %v1332, %v1324
    %v2053 = vpack.c.b16 %v1333, %v1325
    %v2054 = vpack.c.b16 %v1334, %v1326
    %v2055 = vpack.c.b16 %v1335, %v1327
    %v2056 = vpack.c.b16 %v1336, %v1328
    %v2057 = vpack.c.b16 %v1337, %v1329
    %v2058 = vpack.c.b16 %v1338, %v1330
    %v2059 = vpack.c.b16 %v1339, %v1331
    %v2060 = vpack.c.b16 %v1348, %v1340
    %v2061 = vpack.c.b16 %v1349, %v1341
    %v2062 = vpack.c.b16 %v1350, %v1342
    %v2063 = vpack.c.b16 %v1351, %v1343
    %v2064 = vpack.c.b16 %v1352, %v1344
    %v2065 = vpack.c.b16 %v1353, %v1345
    %v2066 = vpack.c.b16 %v1354, %v1346
    %v2067 = vpack.c.b16 %v1355, %v1347
    %v2068 = vpack.c.b16 %v1364, %v1356
    %v2069 = vpack.c.b16 %v1365, %v1357
    %v2070 = vpack.c.b16 %v1366, %v1358
    %v2071 = vpack.c.b16 %v1367, %v1359
    %v2072 = vpack.c.b16 %v1368, %v1360
    %v2073 = vpack.c.b16 %v1369, %v1361
    %v2074 = vpack.c.b16 %v1370, %v1362
    %v2075 = vpack.c.b16 %v1371, %v1363
    %v2076 = vpack.c.b16 %v1380, %v1372
    %v2077 = vpack.c.b16 %v1381, %v1373
    %v2078 = vpack.c.b16 %v1382, %v1374
    %v2079 = vpack.c.b16 %v1383, %v1375
    %v2080 = vpack.c.b16 %v1384, %v1376
    %v2081 = vpack.c.b16 %v1385, %v1377
    %v2082 = vpack.c.b16 %v1386, %v1378
    %v2083 = vpack.c.b16 %v1387, %v1379
    %v2084 = vpack.c.b16 %v1396, %v1388
    %v2085 = vpack.c.b16 %v1397, %v1389
    %v2086 = vpack.c.b16 %v1398, %v1390
    %v2087 = vpack.c.b16 %v1399, %v1391
    %v2088 = vpack.c.b16 %v1400, %v1392
    %v2089 = vpack.c.b16 %v1401, %v1393
    %v2090 = vpack.c.b16 %v1402, %v1394
    %v2091 = vpack.c.b16 %v1403, %v1395
    %v2092 = vpack.c.b16 %v1412, %v1404
    %v2093 = vpack.c.b16 %v1413, %v1405
    %v2094 = vpack.c.b16 %v1414, %v1406
    %v2095 = vpack.c.b16 %v1415, %v1407
    %v2096 = vpack.c.b16 %v1416, %v1408
    %v2097 = vpack.c.b16 %v1417, %v1409
    %v2098 = vpack.c.b16 %v1418, %v1410
    %v2099 = vpack.c.b16 %v1419, %v1411
    %v2100 = vpack.c.b16 %v1428, %v1420
    %v2101 = vpack.c.b16 %v1429, %v1421
    %v2102 = vpack.c.b16 %v1430, %v1422
    %v2103 = vpack.c.b16 %v1431, %v1423
    %v2104 = vpack.c.b16 %v1432, %v1424
    %v2105 = vpack.c.b16 %v1433, %v1425
    %v2106 = vpack.c.b16 %v1434, %v1426
    %v2107 = vpack.c.b16 %v1435, %v1427
    %v2108 = vpack.c.b16 %v1444, %v1436
    %v2109 = vpack.c.b16 %v1445, %v1437
    %v2110 = vpack.c.b16 %v1446, %v1438
    %v2111 = vpack.c.b16 %v1447, %v1439
    %v2112 = vpack.c.b16 %v1448, %v1440
    %v2113 = vpack.c.b16 %v1449, %v1441
    %v2114 = vpack.c.b16 %v1450, %v1442
    %v2115 = vpack.c.b16 %v1451, %v1443
    %v2116 = vpack.c.b16 %v1460, %v1452
    %v2117 = vpack.c.b16 %v1461, %v1453
    %v2118 = vpack.c.b16 %v1462, %v1454
    %v2119 = vpack.c.b16 %v1463, %v1455
    %v2120 = vpack.c.b16 %v1464, %v1456
    %v2121 = vpack.c.b16 %v1465, %v1457
    %v2122 = vpack.c.b16 %v1466, %v1458
    %v2123 = vpack.c.b16 %v1467, %v1459
    %v2124 = vpack.c.b16 %v1476, %v1468
    %v2125 = vpack.c.b16 %v1477, %v1469
    %v2126 = vpack.c.b16 %v1478, %v1470
    %v2127 = vpack.c.b16 %v1479, %v1471
    %v2128 = vpack.c.b16 %v1480, %v1472
    %v2129 = vpack.c.b16 %v1481, %v1473
    %v2130 = vpack.c.b16 %v1482, %v1474
    %v2131 = vpack.c.b16 %v1483, %v1475
    %v2132 = vpack.c.b16 %v1492, %v1484
    %v2133 = vpack.c.b16 %v1493, %v1485
    %v2134 = vpack.c.b16 %v1494, %v1486
    %v2135 = vpack.c.b16 %v1495, %v1487
    %v2136 = vpack.c.b16 %v1496, %v1488
    %v2137 = vpack.c.b16 %v1497, %v1489
    %v2138 = vpack.c.b16 %v1498, %v1490
    %v2139 = vpack.c.b16 %v1499, %v1491
    %v2140 = vpack.c.b16 %v1508, %v1500
    %v2141 = vpack.c.b16 %v1509, %v1501
    %v2142 = vpack.c.b16 %v1510, %v1502
    %v2143 = vpack.c.b16 %v1511, %v1503
    %v2144 = vpack.c.b16 %v1512, %v1504
    %v2145 = vpack.c.b16 %v1513, %v1505
    %v2146 = vpack.c.b16 %v1514, %v1506
    %v2147 = vpack.c.b16 %v1515, %v1507
    %v2148 = vpack.c.b16 %v1524, %v1516
    %v2149 = vpack.c.b16 %v1525, %v1517
    %v2150 = vpack.c.b16 %v1526, %v1518
    %v2151 = vpack.c.b16 %v1527, %v1519
    %v2152 = vpack.c.b16 %v1528, %v1520
    %v2153 = vpack.c.b16 %v1529, %v1521
    %v2154 = vpack.c.b16 %v1530, %v1522
    %v2155 = vpack.c.b16 %v1531, %v1523
    %v2156 = vpack.c.b16 %v1540, %v1532
    %v2157 = vpack.c.b16 %v1541, %v1533
    %v2158 = vpack.c.b16 %v1542, %v1534
    %v2159 = vpack.c.b16 %v1543, %v1535
    %v2160 = vpack.c.b16 %v1544, %v1536
    %v2161 = vpack.c.b16 %v1545, %v1537
    %v2162 = vpack.c.b16 %v1546, %v1538
    %v2163 = vpack.c.b16 %v1547, %v1539
    %v2164 = vpack.c.b16 %v1556, %v1548
    %v2165 = vpack.c.b16 %v1557, %v1549
    %v2166 = vpack.c.b16 %v1558, %v1550
    %v2167 = vpack.c.b16 %v1559, %v1551
    %v2168 = vpack.c.b16 %v1560, %v1552
    %v2169 = vpack.c.b16 %v1561, %v1553
    %v2170 = vpack.c.b16 %v1562, %v1554
    %v2171 = vpack.c.b16 %v1563, %v1555
    %v2172 = vpack.c.b16 %v1572, %v1564
    %v2173 = vpack.c.b16 %v1573, %v1565
    %v2174 = vpack.c.b16 %v1574, %v1566
    %v2175 = vpack.c.b16 %v1575, %v1567
    %v2176 = vpack.c.b16 %v1576, %v1568
    %v2177 = vpack.c.b16 %v1577, %v1569
    %v2178 = vpack.c.b16 %v1578, %v1570
    %v2179 = vpack.c.b16 %v1579, %v1571
    %v2180 = vpack.c.b16 %v1588, %v1580
    %v2181 = vpack.c.b16 %v1589, %v1581
    %v2182 = vpack.c.b16 %v1590, %v1582
    %v2183 = vpack.c.b16 %v1591, %v1583
    %v2184 = vpack.c.b16 %v1592, %v1584
    %v2185 = vpack.c.b16 %v1593, %v1585
    %v2186 = vpack.c.b16 %v1594, %v1586
    %v2187 = vpack.c.b16 %v1595, %v1587
    %v2188 = vpack.c.b16 %v1604, %v1596
    %v2189 = vpack.c.b16 %v1605, %v1597
    %v2190 = vpack.c.b16 %v1606, %v1598
    %v2191 = vpack.c.b16 %v1607, %v1599
    %v2192 = vpack.c.b16 %v1608, %v1600
    %v2193 = vpack.c.b16 %v1609, %v1601
    %v2194 = vpack.c.b16 %v1610, %v1602
    %v2195 = vpack.c.b16 %v1611, %v1603
    %v2196 = vpack.c.b16 %v1620, %v1612
    %v2197 = vpack.c.b16 %v1621, %v1613
    %v2198 = vpack.c.b16 %v1622, %v1614
    %v2199 = vpack.c.b16 %v1623, %v1615
    %v2200 = vpack.c.b16 %v1624, %v1616
    %v2201 = vpack.c.b16 %v1625, %v1617
    %v2202 = vpack.c.b16 %v1626, %v1618
    %v2203 = vpack.c.b16 %v1627, %v1619
    %v2204 = vpack.c.b16 %v1636, %v1628
    %v2205 = vpack.c.b16 %v1637, %v1629
    %v2206 = vpack.c.b16 %v1638, %v1630
    %v2207 = vpack.c.b16 %v1639, %v1631
    %v2208 = vpack.c.b16 %v1640, %v1632
    %v2209 = vpack.c.b16 %v1641, %v1633
    %v2210 = vpack.c.b16 %v1642, %v1634
    %v2211 = vpack.c.b16 %v1643, %v1635
    %v2212 = vpack.c.b16 %v1652, %v1644
    %v2213 = vpack.c.b16 %v1653, %v1645
    %v2214 = vpack.c.b16 %v1654, %v1646
    %v2215 = vpack.c.b16 %v1655, %v1647
    %v2216 = vpack.c.b16 %v1656, %v1648
    %v2217 = vpack.c.b16 %v1657, %v1649
    %v2218 = vpack.c.b16 %v1658, %v1650
    %v2219 = vpack.c.b16 %v1659, %v1651
    %v2220 = vpack.c.b16 %v1668, %v1660
    %v2221 = vpack.c.b16 %v1669, %v1661
    %v2222 = vpack.c.b16 %v1670, %v1662
    %v2223 = vpack.c.b16 %v1671, %v1663
    %v2224 = vpack.c.b16 %v1672, %v1664
    %v2225 = vpack.c.b16 %v1673, %v1665
    %v2226 = vpack.c.b16 %v1674, %v1666
    %v2227 = vpack.c.b16 %v1675, %v1667
    %v2228 = vpack.c.b16 %v1684, %v1676
    %v2229 = vpack.c.b16 %v1685, %v1677
    %v2230 = vpack.c.b16 %v1686, %v1678
    %v2231 = vpack.c.b16 %v1687, %v1679
    %v2232 = vpack.c.b16 %v1688, %v1680
    %v2233 = vpack.c.b16 %v1689, %v1681
    %v2234 = vpack.c.b16 %v1690, %v1682
    %v2235 = vpack.c.b16 %v1691, %v1683
    %v2236 = vpack.c.b16 %v1700, %v1692
    %v2237 = vpack.c.b16 %v1701, %v1693
    %v2238 = vpack.c.b16 %v1702, %v1694
    %v2239 = vpack.c.b16 %v1703, %v1695
    %v2240 = vpack.c.b16 %v1704, %v1696
    %v2241 = vpack.c.b16 %v1705, %v1697
    %v2242 = vpack.c.b16 %v1706, %v1698
    %v2243 = vpack.c.b16 %v1707, %v1699
    %v2244 = vpack.c.b16 %v1716, %v1708
    %v2245 = vpack.c.b16 %v1717, %v1709
    %v2246 = vpack.c.b16 %v1718, %v1710
    %v2247 = vpack.c.b16 %v1719, %v1711
    %v2248 = vpack.c.b16 %v1720, %v1712
    %v2249 = vpack.c.b16 %v1721, %v1713
    %v2250 = vpack.c.b16 %v1722, %v1714
    %v2251 = vpack.c.b16 %v1723, %v1715
    %v2252 = vpack.c.b16 %v1732, %v1724
    %v2253 = vpack.c.b16 %v1733, %v1725
    %v2254 = vpack.c.b16 %v1734, %v1726
    %v2255 = vpack.c.b16 %v1735, %v1727
    %v2256 = vpack.c.b16 %v1736, %v1728
    %v2257 = vpack.c.b16 %v1737, %v1729
    %v2258 = vpack.c.b16 %v1738, %v1730
    %v2259 = vpack.c.b16 %v1739, %v1731
    %v2260 = vpack.c.b16 %v1748, %v1740
    %v2261 = vpack.c.b16 %v1749, %v1741
    %v2262 = vpack.c.b16 %v1750, %v1742
    %v2263 = vpack.c.b16 %v1751, %v1743
    %v2264 = vpack.c.b16 %v1752, %v1744
    %v2265 = vpack.c.b16 %v1753, %v1745
    %v2266 = vpack.c.b16 %v1754, %v1746
    %v2267 = vpack.c.b16 %v1755, %v1747
    %v2268 = vpack.c.b16 %v1764, %v1756
    %v2269 = vpack.c.b16 %v1765, %v1757
    %v2270 = vpack.c.b16 %v1766, %v1758
    %v2271 = vpack.c.b16 %v1767, %v1759
    %v2272 = vpack.c.b16 %v1768, %v1760
    %v2273 = vpack.c.b16 %v1769, %v1761
    %v2274 = vpack.c.b16 %v1770, %v1762
    %v2275 = vpack.c.b16 %v1771, %v1763
    %v2276 = vpack.c.b16 %v1780, %v1772
    %v2277 = vpack.c.b16 %v1781, %v1773
    %v2278 = vpack.c.b16 %v1782, %v1774
    %v2279 = vpack.c.b16 %v1783, %v1775
    %v2280 = vpack.c.b16 %v1784, %v1776
    %v2281 = vpack.c.b16 %v1785, %v1777
    %v2282 = vpack.c.b16 %v1786, %v1778
    %v2283 = vpack.c.b16 %v1787, %v1779
    %v2284 = vpack.c.b16 %v1796, %v1788
    %v2285 = vpack.c.b16 %v1797, %v1789
    %v2286 = vpack.c.b16 %v1798, %v1790
    %v2287 = vpack.c.b16 %v1799, %v1791
    %v2288 = vpack.c.b16 %v1800, %v1792
    %v2289 = vpack.c.b16 %v1801, %v1793
    %v2290 = vpack.c.b16 %v1802, %v1794
    %v2291 = vpack.c.b16 %v1803, %v1795
    %v2292 = vpack.c.b16 %v1812, %v1804
    %v2293 = vpack.c.b16 %v1813, %v1805
    %v2294 = vpack.c.b16 %v1814, %v1806
    %v2295 = vpack.c.b16 %v1815, %v1807
    %v2296 = vpack.c.b16 %v1816, %v1808
    %v2297 = vpack.c.b16 %v1817, %v1809
    %v2298 = vpack.c.b16 %v1818, %v1810
    %v2299 = vpack.c.b16 %v1819, %v1811
    %v2300 = vpack.c.b16 %v1828, %v1820
    %v2301 = vpack.c.b16 %v1829, %v1821
    %v2302 = vpack.c.b16 %v1830, %v1822
    %v2303 = vpack.c.b16 %v1831, %v1823
    %v2304 = vpack.c.b16 %v1832, %v1824
    %v2305 = vpack.c.b16 %v1833, %v1825
    %v2306 = vpack.c.b16 %v1834, %v1826
    %v2307 = vpack.c.b16 %v1835, %v1827
    %v2308 = vpack.c.b16 %v1844, %v1836
    %v2309 = vpack.c.b16 %v1845, %v1837
    %v2310 = vpack.c.b16 %v1846, %v1838
    %v2311 = vpack.c.b16 %v1847, %v1839
    %v2312 = vpack.c.b16 %v1848, %v1840
    %v2313 = vpack.c.b16 %v1849, %v1841
    %v2314 = vpack.c.b16 %v1850, %v1842
    %v2315 = vpack.c.b16 %v1851, %v1843
    %v2316 = vpack.c.b16 %v1860, %v1852
    %v2317 = vpack.c.b16 %v1861, %v1853
    %v2318 = vpack.c.b16 %v1862, %v1854
    %v2319 = vpack.c.b16 %v1863, %v1855
    %v2320 = vpack.c.b16 %v1864, %v1856
    %v2321 = vpack.c.b16 %v1865, %v1857
    %v2322 = vpack.c.b16 %v1866, %v1858
    %v2323 = vpack.c.b16 %v1867, %v1859
    %v2324 = vpack.c.b16 %v1876, %v1868
    %v2325 = vpack.c.b16 %v1877, %v1869
    %v2326 = vpack.c.b16 %v1878, %v1870
    %v2327 = vpack.c.b16 %v1879, %v1871
    %v2328 = vpack.c.b16 %v1880, %v1872
    %v2329 = vpack.c.b16 %v1881, %v1873
    %v2330 = vpack.c.b16 %v1882, %v1874
    %v2331 = vpack.c.b16 %v1883, %v1875
    %2780 = vmatpush.bf16.msra.mxu0 %v1940
    %2781 = vmatpush.bf16.msra.mxu0 %v1932
    %2782 = vmatpush.bf16.msra.mxu0 %v1924
    %2783 = vmatpush.bf16.msra.mxu0 %v1916
    %2784 = vmatpush.bf16.msra.mxu0 %v1908
    %2785 = vmatpush.bf16.msra.mxu0 %v1900
    %2786 = vmatpush.bf16.msra.mxu0 %v1892
    %2787 = vmatpush.bf16.msra.mxu0 %v1884
    %2788 = vmatmul.bf16.gmra.mxu0 %v526
    %v2789 = vpop.f32.mrf.mxu0
    %v2790 = vadd.f32 %v499, %v2789
    %v2791 = vpop.f32.mrf.mxu0
    %2792 = vdwg.mxu0
    %2793 = vmatpush.bf16.msra.mxu0 %v2004
    %2794 = vmatpush.bf16.msra.mxu0 %v1996
    %2795 = vmatpush.bf16.msra.mxu0 %v1988
    %2796 = vmatpush.bf16.msra.mxu0 %v1980
    %2797 = vmatpush.bf16.msra.mxu0 %v1972
    %2798 = vmatpush.bf16.msra.mxu0 %v1964
    %2799 = vmatpush.bf16.msra.mxu0 %v1956
    %2800 = vmatpush.bf16.msra.mxu0 %v1948
    %2801 = vmatmul.bf16.gmra.mxu0 %v527
    %v2802 = vpop.f32.mrf.mxu0
    %v2803 = vadd.f32 %v2790, %v2802
    %v2804 = vpop.f32.mrf.mxu0
    %2805 = vdwg.mxu0
    %2806 = vmatpush.bf16.msra.mxu0 %v2068
    %2807 = vmatpush.bf16.msra.mxu0 %v2060
    %2808 = vmatpush.bf16.msra.mxu0 %v2052
    %2809 = vmatpush.bf16.msra.mxu0 %v2044
    %2810 = vmatpush.bf16.msra.mxu0 %v2036
    %2811 = vmatpush.bf16.msra.mxu0 %v2028
    %2812 = vmatpush.bf16.msra.mxu0 %v2020
    %2813 = vmatpush.bf16.msra.mxu0 %v2012
    %2814 = vmatmul.bf16.gmra.mxu0 %v528
    %v2815 = vpop.f32.mrf.mxu0
    %v2816 = vadd.f32 %v2803, %v2815
    %v2817 = vpop.f32.mrf.mxu0
    %2818 = vdwg.mxu0
    %2819 = vmatpush.bf16.msra.mxu0 %v2132
    %2820 = vmatpush.bf16.msra.mxu0 %v2124
    %2821 = vmatpush.bf16.msra.mxu0 %v2116
    %2822 = vmatpush.bf16.msra.mxu0 %v2108
    %2823 = vmatpush.bf16.msra.mxu0 %v2100
    %2824 = vmatpush.bf16.msra.mxu0 %v2092
    %2825 = vmatpush.bf16.msra.mxu0 %v2084
    %2826 = vmatpush.bf16.msra.mxu0 %v2076
    %2827 = vmatmul.bf16.gmra.mxu0 %v529
    %v2828 = vpop.f32.mrf.mxu0
    %v2829 = vadd.f32 %v2816, %v2828
    %v2830 = vpop.f32.mrf.mxu0
    %2831 = vdwg.mxu0
    %2832 = vmatpush.bf16.msra.mxu0 %v2196
    %2833 = vmatpush.bf16.msra.mxu0 %v2188
    %2834 = vmatpush.bf16.msra.mxu0 %v2180
    %2835 = vmatpush.bf16.msra.mxu0 %v2172
    %2836 = vmatpush.bf16.msra.mxu0 %v2164
    %2837 = vmatpush.bf16.msra.mxu0 %v2156
    %2838 = vmatpush.bf16.msra.mxu0 %v2148
    %2839 = vmatpush.bf16.msra.mxu0 %v2140
    %2840 = vmatmul.bf16.gmra.mxu0 %v530
    %v2841 = vpop.f32.mrf.mxu0
    %v2842 = vadd.f32 %v2829, %v2841
    %v2843 = vpop.f32.mrf.mxu0
    %2844 = vdwg.mxu0
    %2845 = vmatpush.bf16.msra.mxu0 %v2260
    %2846 = vmatpush.bf16.msra.mxu0 %v2252
    %2847 = vmatpush.bf16.msra.mxu0 %v2244
    %2848 = vmatpush.bf16.msra.mxu0 %v2236
    %2849 = vmatpush.bf16.msra.mxu0 %v2228
    %2850 = vmatpush.bf16.msra.mxu0 %v2220
    %2851 = vmatpush.bf16.msra.mxu0 %v2212
    %2852 = vmatpush.bf16.msra.mxu0 %v2204
    %2853 = vmatmul.bf16.gmra.mxu0 %v531
    %v2854 = vpop.f32.mrf.mxu0
    %v2855 = vadd.f32 %v2842, %v2854
    %v2856 = vpop.f32.mrf.mxu0
    %2857 = vdwg.mxu0
    %2858 = vmatpush.bf16.msra.mxu0 %v2324
    %2859 = vmatpush.bf16.msra.mxu0 %v2316
    %2860 = vmatpush.bf16.msra.mxu0 %v2308
    %2861 = vmatpush.bf16.msra.mxu0 %v2300
    %2862 = vmatpush.bf16.msra.mxu0 %v2292
    %2863 = vmatpush.bf16.msra.mxu0 %v2284
    %2864 = vmatpush.bf16.msra.mxu0 %v2276
    %2865 = vmatpush.bf16.msra.mxu0 %v2268
    %2866 = vmatmul.bf16.gmra.mxu0 %v532
    %v2867 = vpop.f32.mrf.mxu0
    %v2868 = vadd.f32 %v2855, %v2867
    %v2869 = vpop.f32.mrf.mxu0
    %2870 = vdwg.mxu0
    %2871 = vmatpush.bf16.msra.mxu0 %v1941
    %2872 = vmatpush.bf16.msra.mxu0 %v1933
    %2873 = vmatpush.bf16.msra.mxu0 %v1925
    %2874 = vmatpush.bf16.msra.mxu0 %v1917
    %2875 = vmatpush.bf16.msra.mxu0 %v1909
    %2876 = vmatpush.bf16.msra.mxu0 %v1901
    %2877 = vmatpush.bf16.msra.mxu0 %v1893
    %2878 = vmatpush.bf16.msra.mxu0 %v1885
    %2879 = vmatmul.bf16.gmra.mxu0 %v526
    %v2880 = vpop.f32.mrf.mxu0
    %v2881 = vadd.f32 %v500, %v2880
    %v2882 = vpop.f32.mrf.mxu0
    %2883 = vdwg.mxu0
    %2884 = vmatpush.bf16.msra.mxu0 %v2005
    %2885 = vmatpush.bf16.msra.mxu0 %v1997
    %2886 = vmatpush.bf16.msra.mxu0 %v1989
    %2887 = vmatpush.bf16.msra.mxu0 %v1981
    %2888 = vmatpush.bf16.msra.mxu0 %v1973
    %2889 = vmatpush.bf16.msra.mxu0 %v1965
    %2890 = vmatpush.bf16.msra.mxu0 %v1957
    %2891 = vmatpush.bf16.msra.mxu0 %v1949
    %2892 = vmatmul.bf16.gmra.mxu0 %v527
    %v2893 = vpop.f32.mrf.mxu0
    %v2894 = vadd.f32 %v2881, %v2893
    %v2895 = vpop.f32.mrf.mxu0
    %2896 = vdwg.mxu0
    %2897 = vmatpush.bf16.msra.mxu0 %v2069
    %2898 = vmatpush.bf16.msra.mxu0 %v2061
    %2899 = vmatpush.bf16.msra.mxu0 %v2053
    %2900 = vmatpush.bf16.msra.mxu0 %v2045
    %2901 = vmatpush.bf16.msra.mxu0 %v2037
    %2902 = vmatpush.bf16.msra.mxu0 %v2029
    %2903 = vmatpush.bf16.msra.mxu0 %v2021
    %2904 = vmatpush.bf16.msra.mxu0 %v2013
    %2905 = vmatmul.bf16.gmra.mxu0 %v528
    %v2906 = vpop.f32.mrf.mxu0
    %v2907 = vadd.f32 %v2894, %v2906
    %v2908 = vpop.f32.mrf.mxu0
    %2909 = vdwg.mxu0
    %2910 = vmatpush.bf16.msra.mxu0 %v2133
    %2911 = vmatpush.bf16.msra.mxu0 %v2125
    %2912 = vmatpush.bf16.msra.mxu0 %v2117
    %2913 = vmatpush.bf16.msra.mxu0 %v2109
    %2914 = vmatpush.bf16.msra.mxu0 %v2101
    %2915 = vmatpush.bf16.msra.mxu0 %v2093
    %2916 = vmatpush.bf16.msra.mxu0 %v2085
    %2917 = vmatpush.bf16.msra.mxu0 %v2077
    %2918 = vmatmul.bf16.gmra.mxu0 %v529
    %v2919 = vpop.f32.mrf.mxu0
    %v2920 = vadd.f32 %v2907, %v2919
    %v2921 = vpop.f32.mrf.mxu0
    %2922 = vdwg.mxu0
    %2923 = vmatpush.bf16.msra.mxu0 %v2197
    %2924 = vmatpush.bf16.msra.mxu0 %v2189
    %2925 = vmatpush.bf16.msra.mxu0 %v2181
    %2926 = vmatpush.bf16.msra.mxu0 %v2173
    %2927 = vmatpush.bf16.msra.mxu0 %v2165
    %2928 = vmatpush.bf16.msra.mxu0 %v2157
    %2929 = vmatpush.bf16.msra.mxu0 %v2149
    %2930 = vmatpush.bf16.msra.mxu0 %v2141
    %2931 = vmatmul.bf16.gmra.mxu0 %v530
    %v2932 = vpop.f32.mrf.mxu0
    %v2933 = vadd.f32 %v2920, %v2932
    %v2934 = vpop.f32.mrf.mxu0
    %2935 = vdwg.mxu0
    %2936 = vmatpush.bf16.msra.mxu0 %v2261
    %2937 = vmatpush.bf16.msra.mxu0 %v2253
    %2938 = vmatpush.bf16.msra.mxu0 %v2245
    %2939 = vmatpush.bf16.msra.mxu0 %v2237
    %2940 = vmatpush.bf16.msra.mxu0 %v2229
    %2941 = vmatpush.bf16.msra.mxu0 %v2221
    %2942 = vmatpush.bf16.msra.mxu0 %v2213
    %2943 = vmatpush.bf16.msra.mxu0 %v2205
    %2944 = vmatmul.bf16.gmra.mxu0 %v531
    %v2945 = vpop.f32.mrf.mxu0
    %v2946 = vadd.f32 %v2933, %v2945
    %v2947 = vpop.f32.mrf.mxu0
    %2948 = vdwg.mxu0
    %2949 = vmatpush.bf16.msra.mxu0 %v2325
    %2950 = vmatpush.bf16.msra.mxu0 %v2317
    %2951 = vmatpush.bf16.msra.mxu0 %v2309
    %2952 = vmatpush.bf16.msra.mxu0 %v2301
    %2953 = vmatpush.bf16.msra.mxu0 %v2293
    %2954 = vmatpush.bf16.msra.mxu0 %v2285
    %2955 = vmatpush.bf16.msra.mxu0 %v2277
    %2956 = vmatpush.bf16.msra.mxu0 %v2269
    %2957 = vmatmul.bf16.gmra.mxu0 %v532
    %v2958 = vpop.f32.mrf.mxu0
    %v2959 = vadd.f32 %v2946, %v2958
    %v2960 = vpop.f32.mrf.mxu0
    %2961 = vdwg.mxu0
    %2962 = vmatpush.bf16.msra.mxu0 %v1942
    %2963 = vmatpush.bf16.msra.mxu0 %v1934
    %2964 = vmatpush.bf16.msra.mxu0 %v1926
    %2965 = vmatpush.bf16.msra.mxu0 %v1918
    %2966 = vmatpush.bf16.msra.mxu0 %v1910
    %2967 = vmatpush.bf16.msra.mxu0 %v1902
    %2968 = vmatpush.bf16.msra.mxu0 %v1894
    %2969 = vmatpush.bf16.msra.mxu0 %v1886
    %2970 = vmatmul.bf16.gmra.mxu0 %v526
    %v2971 = vpop.f32.mrf.mxu0
    %v2972 = vadd.f32 %v501, %v2971
    %v2973 = vpop.f32.mrf.mxu0
    %2974 = vdwg.mxu0
    %2975 = vmatpush.bf16.msra.mxu0 %v2006
    %2976 = vmatpush.bf16.msra.mxu0 %v1998
    %2977 = vmatpush.bf16.msra.mxu0 %v1990
    %2978 = vmatpush.bf16.msra.mxu0 %v1982
    %2979 = vmatpush.bf16.msra.mxu0 %v1974
    %2980 = vmatpush.bf16.msra.mxu0 %v1966
    %2981 = vmatpush.bf16.msra.mxu0 %v1958
    %2982 = vmatpush.bf16.msra.mxu0 %v1950
    %2983 = vmatmul.bf16.gmra.mxu0 %v527
    %v2984 = vpop.f32.mrf.mxu0
    %v2985 = vadd.f32 %v2972, %v2984
    %v2986 = vpop.f32.mrf.mxu0
    %2987 = vdwg.mxu0
    %2988 = vmatpush.bf16.msra.mxu0 %v2070
    %2989 = vmatpush.bf16.msra.mxu0 %v2062
    %2990 = vmatpush.bf16.msra.mxu0 %v2054
    %2991 = vmatpush.bf16.msra.mxu0 %v2046
    %2992 = vmatpush.bf16.msra.mxu0 %v2038
    %2993 = vmatpush.bf16.msra.mxu0 %v2030
    %2994 = vmatpush.bf16.msra.mxu0 %v2022
    %2995 = vmatpush.bf16.msra.mxu0 %v2014
    %2996 = vmatmul.bf16.gmra.mxu0 %v528
    %v2997 = vpop.f32.mrf.mxu0
    %v2998 = vadd.f32 %v2985, %v2997
    %v2999 = vpop.f32.mrf.mxu0
    %3000 = vdwg.mxu0
    %3001 = vmatpush.bf16.msra.mxu0 %v2134
    %3002 = vmatpush.bf16.msra.mxu0 %v2126
    %3003 = vmatpush.bf16.msra.mxu0 %v2118
    %3004 = vmatpush.bf16.msra.mxu0 %v2110
    %3005 = vmatpush.bf16.msra.mxu0 %v2102
    %3006 = vmatpush.bf16.msra.mxu0 %v2094
    %3007 = vmatpush.bf16.msra.mxu0 %v2086
    %3008 = vmatpush.bf16.msra.mxu0 %v2078
    %3009 = vmatmul.bf16.gmra.mxu0 %v529
    %v3010 = vpop.f32.mrf.mxu0
    %v3011 = vadd.f32 %v2998, %v3010
    %v3012 = vpop.f32.mrf.mxu0
    %3013 = vdwg.mxu0
    %3014 = vmatpush.bf16.msra.mxu0 %v2198
    %3015 = vmatpush.bf16.msra.mxu0 %v2190
    %3016 = vmatpush.bf16.msra.mxu0 %v2182
    %3017 = vmatpush.bf16.msra.mxu0 %v2174
    %3018 = vmatpush.bf16.msra.mxu0 %v2166
    %3019 = vmatpush.bf16.msra.mxu0 %v2158
    %3020 = vmatpush.bf16.msra.mxu0 %v2150
    %3021 = vmatpush.bf16.msra.mxu0 %v2142
    %3022 = vmatmul.bf16.gmra.mxu0 %v530
    %v3023 = vpop.f32.mrf.mxu0
    %v3024 = vadd.f32 %v3011, %v3023
    %v3025 = vpop.f32.mrf.mxu0
    %3026 = vdwg.mxu0
    %3027 = vmatpush.bf16.msra.mxu0 %v2262
    %3028 = vmatpush.bf16.msra.mxu0 %v2254
    %3029 = vmatpush.bf16.msra.mxu0 %v2246
    %3030 = vmatpush.bf16.msra.mxu0 %v2238
    %3031 = vmatpush.bf16.msra.mxu0 %v2230
    %3032 = vmatpush.bf16.msra.mxu0 %v2222
    %3033 = vmatpush.bf16.msra.mxu0 %v2214
    %3034 = vmatpush.bf16.msra.mxu0 %v2206
    %3035 = vmatmul.bf16.gmra.mxu0 %v531
    %v3036 = vpop.f32.mrf.mxu0
    %v3037 = vadd.f32 %v3024, %v3036
    %v3038 = vpop.f32.mrf.mxu0
    %3039 = vdwg.mxu0
    %3040 = vmatpush.bf16.msra.mxu0 %v2326
    %3041 = vmatpush.bf16.msra.mxu0 %v2318
    %3042 = vmatpush.bf16.msra.mxu0 %v2310
    %3043 = vmatpush.bf16.msra.mxu0 %v2302
    %3044 = vmatpush.bf16.msra.mxu0 %v2294
    %3045 = vmatpush.bf16.msra.mxu0 %v2286
    %3046 = vmatpush.bf16.msra.mxu0 %v2278
    %3047 = vmatpush.bf16.msra.mxu0 %v2270
    %3048 = vmatmul.bf16.gmra.mxu0 %v532
    %v3049 = vpop.f32.mrf.mxu0
    %v3050 = vadd.f32 %v3037, %v3049
    %v3051 = vpop.f32.mrf.mxu0
    %3052 = vdwg.mxu0
    %3053 = vmatpush.bf16.msra.mxu0 %v1943
    %3054 = vmatpush.bf16.msra.mxu0 %v1935
    %3055 = vmatpush.bf16.msra.mxu0 %v1927
    %3056 = vmatpush.bf16.msra.mxu0 %v1919
    %3057 = vmatpush.bf16.msra.mxu0 %v1911
    %3058 = vmatpush.bf16.msra.mxu0 %v1903
    %3059 = vmatpush.bf16.msra.mxu0 %v1895
    %3060 = vmatpush.bf16.msra.mxu0 %v1887
    %3061 = vmatmul.bf16.gmra.mxu0 %v526
    %v3062 = vpop.f32.mrf.mxu0
    %v3063 = vadd.f32 %v502, %v3062
    %v3064 = vpop.f32.mrf.mxu0
    %3065 = vdwg.mxu0
    %3066 = vmatpush.bf16.msra.mxu0 %v2007
    %3067 = vmatpush.bf16.msra.mxu0 %v1999
    %3068 = vmatpush.bf16.msra.mxu0 %v1991
    %3069 = vmatpush.bf16.msra.mxu0 %v1983
    %3070 = vmatpush.bf16.msra.mxu0 %v1975
    %3071 = vmatpush.bf16.msra.mxu0 %v1967
    %3072 = vmatpush.bf16.msra.mxu0 %v1959
    %3073 = vmatpush.bf16.msra.mxu0 %v1951
    %3074 = vmatmul.bf16.gmra.mxu0 %v527
    %v3075 = vpop.f32.mrf.mxu0
    %v3076 = vadd.f32 %v3063, %v3075
    %v3077 = vpop.f32.mrf.mxu0
    %3078 = vdwg.mxu0
    %3079 = vmatpush.bf16.msra.mxu0 %v2071
    %3080 = vmatpush.bf16.msra.mxu0 %v2063
    %3081 = vmatpush.bf16.msra.mxu0 %v2055
    %3082 = vmatpush.bf16.msra.mxu0 %v2047
    %3083 = vmatpush.bf16.msra.mxu0 %v2039
    %3084 = vmatpush.bf16.msra.mxu0 %v2031
    %3085 = vmatpush.bf16.msra.mxu0 %v2023
    %3086 = vmatpush.bf16.msra.mxu0 %v2015
    %3087 = vmatmul.bf16.gmra.mxu0 %v528
    %v3088 = vpop.f32.mrf.mxu0
    %v3089 = vadd.f32 %v3076, %v3088
    %v3090 = vpop.f32.mrf.mxu0
    %3091 = vdwg.mxu0
    %3092 = vmatpush.bf16.msra.mxu0 %v2135
    %3093 = vmatpush.bf16.msra.mxu0 %v2127
    %3094 = vmatpush.bf16.msra.mxu0 %v2119
    %3095 = vmatpush.bf16.msra.mxu0 %v2111
    %3096 = vmatpush.bf16.msra.mxu0 %v2103
    %3097 = vmatpush.bf16.msra.mxu0 %v2095
    %3098 = vmatpush.bf16.msra.mxu0 %v2087
    %3099 = vmatpush.bf16.msra.mxu0 %v2079
    %3100 = vmatmul.bf16.gmra.mxu0 %v529
    %v3101 = vpop.f32.mrf.mxu0
    %v3102 = vadd.f32 %v3089, %v3101
    %v3103 = vpop.f32.mrf.mxu0
    %3104 = vdwg.mxu0
    %3105 = vmatpush.bf16.msra.mxu0 %v2199
    %3106 = vmatpush.bf16.msra.mxu0 %v2191
    %3107 = vmatpush.bf16.msra.mxu0 %v2183
    %3108 = vmatpush.bf16.msra.mxu0 %v2175
    %3109 = vmatpush.bf16.msra.mxu0 %v2167
    %3110 = vmatpush.bf16.msra.mxu0 %v2159
    %3111 = vmatpush.bf16.msra.mxu0 %v2151
    %3112 = vmatpush.bf16.msra.mxu0 %v2143
    %3113 = vmatmul.bf16.gmra.mxu0 %v530
    %v3114 = vpop.f32.mrf.mxu0
    %v3115 = vadd.f32 %v3102, %v3114
    %v3116 = vpop.f32.mrf.mxu0
    %3117 = vdwg.mxu0
    %3118 = vmatpush.bf16.msra.mxu0 %v2263
    %3119 = vmatpush.bf16.msra.mxu0 %v2255
    %3120 = vmatpush.bf16.msra.mxu0 %v2247
    %3121 = vmatpush.bf16.msra.mxu0 %v2239
    %3122 = vmatpush.bf16.msra.mxu0 %v2231
    %3123 = vmatpush.bf16.msra.mxu0 %v2223
    %3124 = vmatpush.bf16.msra.mxu0 %v2215
    %3125 = vmatpush.bf16.msra.mxu0 %v2207
    %3126 = vmatmul.bf16.gmra.mxu0 %v531
    %v3127 = vpop.f32.mrf.mxu0
    %v3128 = vadd.f32 %v3115, %v3127
    %v3129 = vpop.f32.mrf.mxu0
    %3130 = vdwg.mxu0
    %3131 = vmatpush.bf16.msra.mxu0 %v2327
    %3132 = vmatpush.bf16.msra.mxu0 %v2319
    %3133 = vmatpush.bf16.msra.mxu0 %v2311
    %3134 = vmatpush.bf16.msra.mxu0 %v2303
    %3135 = vmatpush.bf16.msra.mxu0 %v2295
    %3136 = vmatpush.bf16.msra.mxu0 %v2287
    %3137 = vmatpush.bf16.msra.mxu0 %v2279
    %3138 = vmatpush.bf16.msra.mxu0 %v2271
    %3139 = vmatmul.bf16.gmra.mxu0 %v532
    %v3140 = vpop.f32.mrf.mxu0
    %v3141 = vadd.f32 %v3128, %v3140
    %v3142 = vpop.f32.mrf.mxu0
    %3143 = vdwg.mxu0
    %3144 = vmatpush.bf16.msra.mxu0 %v1944
    %3145 = vmatpush.bf16.msra.mxu0 %v1936
    %3146 = vmatpush.bf16.msra.mxu0 %v1928
    %3147 = vmatpush.bf16.msra.mxu0 %v1920
    %3148 = vmatpush.bf16.msra.mxu0 %v1912
    %3149 = vmatpush.bf16.msra.mxu0 %v1904
    %3150 = vmatpush.bf16.msra.mxu0 %v1896
    %3151 = vmatpush.bf16.msra.mxu0 %v1888
    %3152 = vmatmul.bf16.gmra.mxu0 %v526
    %v3153 = vpop.f32.mrf.mxu0
    %v3154 = vadd.f32 %v503, %v3153
    %v3155 = vpop.f32.mrf.mxu0
    %3156 = vdwg.mxu0
    %3157 = vmatpush.bf16.msra.mxu0 %v2008
    %3158 = vmatpush.bf16.msra.mxu0 %v2000
    %3159 = vmatpush.bf16.msra.mxu0 %v1992
    %3160 = vmatpush.bf16.msra.mxu0 %v1984
    %3161 = vmatpush.bf16.msra.mxu0 %v1976
    %3162 = vmatpush.bf16.msra.mxu0 %v1968
    %3163 = vmatpush.bf16.msra.mxu0 %v1960
    %3164 = vmatpush.bf16.msra.mxu0 %v1952
    %3165 = vmatmul.bf16.gmra.mxu0 %v527
    %v3166 = vpop.f32.mrf.mxu0
    %v3167 = vadd.f32 %v3154, %v3166
    %v3168 = vpop.f32.mrf.mxu0
    %3169 = vdwg.mxu0
    %3170 = vmatpush.bf16.msra.mxu0 %v2072
    %3171 = vmatpush.bf16.msra.mxu0 %v2064
    %3172 = vmatpush.bf16.msra.mxu0 %v2056
    %3173 = vmatpush.bf16.msra.mxu0 %v2048
    %3174 = vmatpush.bf16.msra.mxu0 %v2040
    %3175 = vmatpush.bf16.msra.mxu0 %v2032
    %3176 = vmatpush.bf16.msra.mxu0 %v2024
    %3177 = vmatpush.bf16.msra.mxu0 %v2016
    %3178 = vmatmul.bf16.gmra.mxu0 %v528
    %v3179 = vpop.f32.mrf.mxu0
    %v3180 = vadd.f32 %v3167, %v3179
    %v3181 = vpop.f32.mrf.mxu0
    %3182 = vdwg.mxu0
    %3183 = vmatpush.bf16.msra.mxu0 %v2136
    %3184 = vmatpush.bf16.msra.mxu0 %v2128
    %3185 = vmatpush.bf16.msra.mxu0 %v2120
    %3186 = vmatpush.bf16.msra.mxu0 %v2112
    %3187 = vmatpush.bf16.msra.mxu0 %v2104
    %3188 = vmatpush.bf16.msra.mxu0 %v2096
    %3189 = vmatpush.bf16.msra.mxu0 %v2088
    %3190 = vmatpush.bf16.msra.mxu0 %v2080
    %3191 = vmatmul.bf16.gmra.mxu0 %v529
    %v3192 = vpop.f32.mrf.mxu0
    %v3193 = vadd.f32 %v3180, %v3192
    %v3194 = vpop.f32.mrf.mxu0
    %3195 = vdwg.mxu0
    %3196 = vmatpush.bf16.msra.mxu0 %v2200
    %3197 = vmatpush.bf16.msra.mxu0 %v2192
    %3198 = vmatpush.bf16.msra.mxu0 %v2184
    %3199 = vmatpush.bf16.msra.mxu0 %v2176
    %3200 = vmatpush.bf16.msra.mxu0 %v2168
    %3201 = vmatpush.bf16.msra.mxu0 %v2160
    %3202 = vmatpush.bf16.msra.mxu0 %v2152
    %3203 = vmatpush.bf16.msra.mxu0 %v2144
    %3204 = vmatmul.bf16.gmra.mxu0 %v530
    %v3205 = vpop.f32.mrf.mxu0
    %v3206 = vadd.f32 %v3193, %v3205
    %v3207 = vpop.f32.mrf.mxu0
    %3208 = vdwg.mxu0
    %3209 = vmatpush.bf16.msra.mxu0 %v2264
    %3210 = vmatpush.bf16.msra.mxu0 %v2256
    %3211 = vmatpush.bf16.msra.mxu0 %v2248
    %3212 = vmatpush.bf16.msra.mxu0 %v2240
    %3213 = vmatpush.bf16.msra.mxu0 %v2232
    %3214 = vmatpush.bf16.msra.mxu0 %v2224
    %3215 = vmatpush.bf16.msra.mxu0 %v2216
    %3216 = vmatpush.bf16.msra.mxu0 %v2208
    %3217 = vmatmul.bf16.gmra.mxu0 %v531
    %v3218 = vpop.f32.mrf.mxu0
    %v3219 = vadd.f32 %v3206, %v3218
    %v3220 = vpop.f32.mrf.mxu0
    %3221 = vdwg.mxu0
    %3222 = vmatpush.bf16.msra.mxu0 %v2328
    %3223 = vmatpush.bf16.msra.mxu0 %v2320
    %3224 = vmatpush.bf16.msra.mxu0 %v2312
    %3225 = vmatpush.bf16.msra.mxu0 %v2304
    %3226 = vmatpush.bf16.msra.mxu0 %v2296
    %3227 = vmatpush.bf16.msra.mxu0 %v2288
    %3228 = vmatpush.bf16.msra.mxu0 %v2280
    %3229 = vmatpush.bf16.msra.mxu0 %v2272
    %3230 = vmatmul.bf16.gmra.mxu0 %v532
    %v3231 = vpop.f32.mrf.mxu0
    %v3232 = vadd.f32 %v3219, %v3231
    %v3233 = vpop.f32.mrf.mxu0
    %3234 = vdwg.mxu0
    %3235 = vmatpush.bf16.msra.mxu0 %v1945
    %3236 = vmatpush.bf16.msra.mxu0 %v1937
    %3237 = vmatpush.bf16.msra.mxu0 %v1929
    %3238 = vmatpush.bf16.msra.mxu0 %v1921
    %3239 = vmatpush.bf16.msra.mxu0 %v1913
    %3240 = vmatpush.bf16.msra.mxu0 %v1905
    %3241 = vmatpush.bf16.msra.mxu0 %v1897
    %3242 = vmatpush.bf16.msra.mxu0 %v1889
    %3243 = vmatmul.bf16.gmra.mxu0 %v526
    %v3244 = vpop.f32.mrf.mxu0
    %v3245 = vadd.f32 %v504, %v3244
    %v3246 = vpop.f32.mrf.mxu0
    %3247 = vdwg.mxu0
    %3248 = vmatpush.bf16.msra.mxu0 %v2009
    %3249 = vmatpush.bf16.msra.mxu0 %v2001
    %3250 = vmatpush.bf16.msra.mxu0 %v1993
    %3251 = vmatpush.bf16.msra.mxu0 %v1985
    %3252 = vmatpush.bf16.msra.mxu0 %v1977
    %3253 = vmatpush.bf16.msra.mxu0 %v1969
    %3254 = vmatpush.bf16.msra.mxu0 %v1961
    %3255 = vmatpush.bf16.msra.mxu0 %v1953
    %3256 = vmatmul.bf16.gmra.mxu0 %v527
    %v3257 = vpop.f32.mrf.mxu0
    %v3258 = vadd.f32 %v3245, %v3257
    %v3259 = vpop.f32.mrf.mxu0
    %3260 = vdwg.mxu0
    %3261 = vmatpush.bf16.msra.mxu0 %v2073
    %3262 = vmatpush.bf16.msra.mxu0 %v2065
    %3263 = vmatpush.bf16.msra.mxu0 %v2057
    %3264 = vmatpush.bf16.msra.mxu0 %v2049
    %3265 = vmatpush.bf16.msra.mxu0 %v2041
    %3266 = vmatpush.bf16.msra.mxu0 %v2033
    %3267 = vmatpush.bf16.msra.mxu0 %v2025
    %3268 = vmatpush.bf16.msra.mxu0 %v2017
    %3269 = vmatmul.bf16.gmra.mxu0 %v528
    %v3270 = vpop.f32.mrf.mxu0
    %v3271 = vadd.f32 %v3258, %v3270
    %v3272 = vpop.f32.mrf.mxu0
    %3273 = vdwg.mxu0
    %3274 = vmatpush.bf16.msra.mxu0 %v2137
    %3275 = vmatpush.bf16.msra.mxu0 %v2129
    %3276 = vmatpush.bf16.msra.mxu0 %v2121
    %3277 = vmatpush.bf16.msra.mxu0 %v2113
    %3278 = vmatpush.bf16.msra.mxu0 %v2105
    %3279 = vmatpush.bf16.msra.mxu0 %v2097
    %3280 = vmatpush.bf16.msra.mxu0 %v2089
    %3281 = vmatpush.bf16.msra.mxu0 %v2081
    %3282 = vmatmul.bf16.gmra.mxu0 %v529
    %v3283 = vpop.f32.mrf.mxu0
    %v3284 = vadd.f32 %v3271, %v3283
    %v3285 = vpop.f32.mrf.mxu0
    %3286 = vdwg.mxu0
    %3287 = vmatpush.bf16.msra.mxu0 %v2201
    %3288 = vmatpush.bf16.msra.mxu0 %v2193
    %3289 = vmatpush.bf16.msra.mxu0 %v2185
    %3290 = vmatpush.bf16.msra.mxu0 %v2177
    %3291 = vmatpush.bf16.msra.mxu0 %v2169
    %3292 = vmatpush.bf16.msra.mxu0 %v2161
    %3293 = vmatpush.bf16.msra.mxu0 %v2153
    %3294 = vmatpush.bf16.msra.mxu0 %v2145
    %3295 = vmatmul.bf16.gmra.mxu0 %v530
    %v3296 = vpop.f32.mrf.mxu0
    %v3297 = vadd.f32 %v3284, %v3296
    %v3298 = vpop.f32.mrf.mxu0
    %3299 = vdwg.mxu0
    %3300 = vmatpush.bf16.msra.mxu0 %v2265
    %3301 = vmatpush.bf16.msra.mxu0 %v2257
    %3302 = vmatpush.bf16.msra.mxu0 %v2249
    %3303 = vmatpush.bf16.msra.mxu0 %v2241
    %3304 = vmatpush.bf16.msra.mxu0 %v2233
    %3305 = vmatpush.bf16.msra.mxu0 %v2225
    %3306 = vmatpush.bf16.msra.mxu0 %v2217
    %3307 = vmatpush.bf16.msra.mxu0 %v2209
    %3308 = vmatmul.bf16.gmra.mxu0 %v531
    %v3309 = vpop.f32.mrf.mxu0
    %v3310 = vadd.f32 %v3297, %v3309
    %v3311 = vpop.f32.mrf.mxu0
    %3312 = vdwg.mxu0
    %3313 = vmatpush.bf16.msra.mxu0 %v2329
    %3314 = vmatpush.bf16.msra.mxu0 %v2321
    %3315 = vmatpush.bf16.msra.mxu0 %v2313
    %3316 = vmatpush.bf16.msra.mxu0 %v2305
    %3317 = vmatpush.bf16.msra.mxu0 %v2297
    %3318 = vmatpush.bf16.msra.mxu0 %v2289
    %3319 = vmatpush.bf16.msra.mxu0 %v2281
    %3320 = vmatpush.bf16.msra.mxu0 %v2273
    %3321 = vmatmul.bf16.gmra.mxu0 %v532
    %v3322 = vpop.f32.mrf.mxu0
    %v3323 = vadd.f32 %v3310, %v3322
    %v3324 = vpop.f32.mrf.mxu0
    %3325 = vdwg.mxu0
    %3326 = vmatpush.bf16.msra.mxu0 %v1946
    %3327 = vmatpush.bf16.msra.mxu0 %v1938
    %3328 = vmatpush.bf16.msra.mxu0 %v1930
    %3329 = vmatpush.bf16.msra.mxu0 %v1922
    %3330 = vmatpush.bf16.msra.mxu0 %v1914
    %3331 = vmatpush.bf16.msra.mxu0 %v1906
    %3332 = vmatpush.bf16.msra.mxu0 %v1898
    %3333 = vmatpush.bf16.msra.mxu0 %v1890
    %3334 = vmatmul.bf16.gmra.mxu0 %v526
    %v3335 = vpop.f32.mrf.mxu0
    %v3336 = vadd.f32 %v505, %v3335
    %v3337 = vpop.f32.mrf.mxu0
    %3338 = vdwg.mxu0
    %3339 = vmatpush.bf16.msra.mxu0 %v2010
    %3340 = vmatpush.bf16.msra.mxu0 %v2002
    %3341 = vmatpush.bf16.msra.mxu0 %v1994
    %3342 = vmatpush.bf16.msra.mxu0 %v1986
    %3343 = vmatpush.bf16.msra.mxu0 %v1978
    %3344 = vmatpush.bf16.msra.mxu0 %v1970
    %3345 = vmatpush.bf16.msra.mxu0 %v1962
    %3346 = vmatpush.bf16.msra.mxu0 %v1954
    %3347 = vmatmul.bf16.gmra.mxu0 %v527
    %v3348 = vpop.f32.mrf.mxu0
    %v3349 = vadd.f32 %v3336, %v3348
    %v3350 = vpop.f32.mrf.mxu0
    %3351 = vdwg.mxu0
    %3352 = vmatpush.bf16.msra.mxu0 %v2074
    %3353 = vmatpush.bf16.msra.mxu0 %v2066
    %3354 = vmatpush.bf16.msra.mxu0 %v2058
    %3355 = vmatpush.bf16.msra.mxu0 %v2050
    %3356 = vmatpush.bf16.msra.mxu0 %v2042
    %3357 = vmatpush.bf16.msra.mxu0 %v2034
    %3358 = vmatpush.bf16.msra.mxu0 %v2026
    %3359 = vmatpush.bf16.msra.mxu0 %v2018
    %3360 = vmatmul.bf16.gmra.mxu0 %v528
    %v3361 = vpop.f32.mrf.mxu0
    %v3362 = vadd.f32 %v3349, %v3361
    %v3363 = vpop.f32.mrf.mxu0
    %3364 = vdwg.mxu0
    %3365 = vmatpush.bf16.msra.mxu0 %v2138
    %3366 = vmatpush.bf16.msra.mxu0 %v2130
    %3367 = vmatpush.bf16.msra.mxu0 %v2122
    %3368 = vmatpush.bf16.msra.mxu0 %v2114
    %3369 = vmatpush.bf16.msra.mxu0 %v2106
    %3370 = vmatpush.bf16.msra.mxu0 %v2098
    %3371 = vmatpush.bf16.msra.mxu0 %v2090
    %3372 = vmatpush.bf16.msra.mxu0 %v2082
    %3373 = vmatmul.bf16.gmra.mxu0 %v529
    %v3374 = vpop.f32.mrf.mxu0
    %v3375 = vadd.f32 %v3362, %v3374
    %v3376 = vpop.f32.mrf.mxu0
    %3377 = vdwg.mxu0
    %3378 = vmatpush.bf16.msra.mxu0 %v2202
    %3379 = vmatpush.bf16.msra.mxu0 %v2194
    %3380 = vmatpush.bf16.msra.mxu0 %v2186
    %3381 = vmatpush.bf16.msra.mxu0 %v2178
    %3382 = vmatpush.bf16.msra.mxu0 %v2170
    %3383 = vmatpush.bf16.msra.mxu0 %v2162
    %3384 = vmatpush.bf16.msra.mxu0 %v2154
    %3385 = vmatpush.bf16.msra.mxu0 %v2146
    %3386 = vmatmul.bf16.gmra.mxu0 %v530
    %v3387 = vpop.f32.mrf.mxu0
    %v3388 = vadd.f32 %v3375, %v3387
    %v3389 = vpop.f32.mrf.mxu0
    %3390 = vdwg.mxu0
    %3391 = vmatpush.bf16.msra.mxu0 %v2266
    %3392 = vmatpush.bf16.msra.mxu0 %v2258
    %3393 = vmatpush.bf16.msra.mxu0 %v2250
    %3394 = vmatpush.bf16.msra.mxu0 %v2242
    %3395 = vmatpush.bf16.msra.mxu0 %v2234
    %3396 = vmatpush.bf16.msra.mxu0 %v2226
    %3397 = vmatpush.bf16.msra.mxu0 %v2218
    %3398 = vmatpush.bf16.msra.mxu0 %v2210
    %3399 = vmatmul.bf16.gmra.mxu0 %v531
    %v3400 = vpop.f32.mrf.mxu0
    %v3401 = vadd.f32 %v3388, %v3400
    %v3402 = vpop.f32.mrf.mxu0
    %3403 = vdwg.mxu0
    %3404 = vmatpush.bf16.msra.mxu0 %v2330
    %3405 = vmatpush.bf16.msra.mxu0 %v2322
    %3406 = vmatpush.bf16.msra.mxu0 %v2314
    %3407 = vmatpush.bf16.msra.mxu0 %v2306
    %3408 = vmatpush.bf16.msra.mxu0 %v2298
    %3409 = vmatpush.bf16.msra.mxu0 %v2290
    %3410 = vmatpush.bf16.msra.mxu0 %v2282
    %3411 = vmatpush.bf16.msra.mxu0 %v2274
    %3412 = vmatmul.bf16.gmra.mxu0 %v532
    %v3413 = vpop.f32.mrf.mxu0
    %v3414 = vadd.f32 %v3401, %v3413
    %v3415 = vpop.f32.mrf.mxu0
    %3416 = vdwg.mxu0
    %3417 = vmatpush.bf16.msra.mxu0 %v1947
    %3418 = vmatpush.bf16.msra.mxu0 %v1939
    %3419 = vmatpush.bf16.msra.mxu0 %v1931
    %3420 = vmatpush.bf16.msra.mxu0 %v1923
    %3421 = vmatpush.bf16.msra.mxu0 %v1915
    %3422 = vmatpush.bf16.msra.mxu0 %v1907
    %3423 = vmatpush.bf16.msra.mxu0 %v1899
    %3424 = vmatpush.bf16.msra.mxu0 %v1891
    %3425 = vmatmul.bf16.gmra.mxu0 %v526
    %v3426 = vpop.f32.mrf.mxu0
    %v3427 = vadd.f32 %v506, %v3426
    %v3428 = vpop.f32.mrf.mxu0
    %3429 = vdwg.mxu0
    %3430 = vmatpush.bf16.msra.mxu0 %v2011
    %3431 = vmatpush.bf16.msra.mxu0 %v2003
    %3432 = vmatpush.bf16.msra.mxu0 %v1995
    %3433 = vmatpush.bf16.msra.mxu0 %v1987
    %3434 = vmatpush.bf16.msra.mxu0 %v1979
    %3435 = vmatpush.bf16.msra.mxu0 %v1971
    %3436 = vmatpush.bf16.msra.mxu0 %v1963
    %3437 = vmatpush.bf16.msra.mxu0 %v1955
    %3438 = vmatmul.bf16.gmra.mxu0 %v527
    %v3439 = vpop.f32.mrf.mxu0
    %v3440 = vadd.f32 %v3427, %v3439
    %v3441 = vpop.f32.mrf.mxu0
    %3442 = vdwg.mxu0
    %3443 = vmatpush.bf16.msra.mxu0 %v2075
    %3444 = vmatpush.bf16.msra.mxu0 %v2067
    %3445 = vmatpush.bf16.msra.mxu0 %v2059
    %3446 = vmatpush.bf16.msra.mxu0 %v2051
    %3447 = vmatpush.bf16.msra.mxu0 %v2043
    %3448 = vmatpush.bf16.msra.mxu0 %v2035
    %3449 = vmatpush.bf16.msra.mxu0 %v2027
    %3450 = vmatpush.bf16.msra.mxu0 %v2019
    %3451 = vmatmul.bf16.gmra.mxu0 %v528
    %v3452 = vpop.f32.mrf.mxu0
    %v3453 = vadd.f32 %v3440, %v3452
    %v3454 = vpop.f32.mrf.mxu0
    %3455 = vdwg.mxu0
    %3456 = vmatpush.bf16.msra.mxu0 %v2139
    %3457 = vmatpush.bf16.msra.mxu0 %v2131
    %3458 = vmatpush.bf16.msra.mxu0 %v2123
    %3459 = vmatpush.bf16.msra.mxu0 %v2115
    %3460 = vmatpush.bf16.msra.mxu0 %v2107
    %3461 = vmatpush.bf16.msra.mxu0 %v2099
    %3462 = vmatpush.bf16.msra.mxu0 %v2091
    %3463 = vmatpush.bf16.msra.mxu0 %v2083
    %3464 = vmatmul.bf16.gmra.mxu0 %v529
    %v3465 = vpop.f32.mrf.mxu0
    %v3466 = vadd.f32 %v3453, %v3465
    %v3467 = vpop.f32.mrf.mxu0
    %3468 = vdwg.mxu0
    %3469 = vmatpush.bf16.msra.mxu0 %v2203
    %3470 = vmatpush.bf16.msra.mxu0 %v2195
    %3471 = vmatpush.bf16.msra.mxu0 %v2187
    %3472 = vmatpush.bf16.msra.mxu0 %v2179
    %3473 = vmatpush.bf16.msra.mxu0 %v2171
    %3474 = vmatpush.bf16.msra.mxu0 %v2163
    %3475 = vmatpush.bf16.msra.mxu0 %v2155
    %3476 = vmatpush.bf16.msra.mxu0 %v2147
    %3477 = vmatmul.bf16.gmra.mxu0 %v530
    %v3478 = vpop.f32.mrf.mxu0
    %v3479 = vadd.f32 %v3466, %v3478
    %v3480 = vpop.f32.mrf.mxu0
    %3481 = vdwg.mxu0
    %3482 = vmatpush.bf16.msra.mxu0 %v2267
    %3483 = vmatpush.bf16.msra.mxu0 %v2259
    %3484 = vmatpush.bf16.msra.mxu0 %v2251
    %3485 = vmatpush.bf16.msra.mxu0 %v2243
    %3486 = vmatpush.bf16.msra.mxu0 %v2235
    %3487 = vmatpush.bf16.msra.mxu0 %v2227
    %3488 = vmatpush.bf16.msra.mxu0 %v2219
    %3489 = vmatpush.bf16.msra.mxu0 %v2211
    %3490 = vmatmul.bf16.gmra.mxu0 %v531
    %v3491 = vpop.f32.mrf.mxu0
    %v3492 = vadd.f32 %v3479, %v3491
    %v3493 = vpop.f32.mrf.mxu0
    %3494 = vdwg.mxu0
    %3495 = vmatpush.bf16.msra.mxu0 %v2331
    %3496 = vmatpush.bf16.msra.mxu0 %v2323
    %3497 = vmatpush.bf16.msra.mxu0 %v2315
    %3498 = vmatpush.bf16.msra.mxu0 %v2307
    %3499 = vmatpush.bf16.msra.mxu0 %v2299
    %3500 = vmatpush.bf16.msra.mxu0 %v2291
    %3501 = vmatpush.bf16.msra.mxu0 %v2283
    %3502 = vmatpush.bf16.msra.mxu0 %v2275
    %3503 = vmatmul.bf16.gmra.mxu0 %v532
    %v3504 = vpop.f32.mrf.mxu0
    %v3505 = vadd.f32 %v3492, %v3504
    %v3506 = vpop.f32.mrf.mxu0
    %3507 = vdwg.mxu0
    %v3508 = vmax.f32 %v2868, 0.0
    %v3509 = vmax.f32 %v2959, 0.0
    %v3510 = vmax.f32 %v3050, 0.0
    %v3511 = vmax.f32 %v3141, 0.0
    %v3512 = vmax.f32 %v3232, 0.0
    %v3513 = vmax.f32 %v3323, 0.0
    %v3514 = vmax.f32 %v3414, 0.0
    %v3515 = vmax.f32 %v3505, 0.0
    %v3516 = vpack.c.bf16 %v3508, %v3508
    %v3517 = vpack.c.bf16 %v3509, %v3509
    %v3518 = vpack.c.bf16 %v3510, %v3510
    %v3519 = vpack.c.bf16 %v3511, %v3511
    %v3520 = vpack.c.bf16 %v3512, %v3512
    %v3521 = vpack.c.bf16 %v3513, %v3513
    %v3522 = vpack.c.bf16 %v3514, %v3514
    %v3523 = vpack.c.bf16 %v3515, %v3515
    %v3524 = vld [vmem:[%s3] sm:$0xff]
    %v3525 = vld [vmem:[%s3 + $0x8] sm:$0xff]
    %v3526 = vld [vmem:[%s3 + $0x10] sm:$0xff]
    %v3527 = vld [vmem:[%s3 + $0x18] sm:$0xff]
    %v3528 = vld [vmem:[%s3 + $0x20] sm:$0xff]
    %v3529 = vld [vmem:[%s3 + $0x28] sm:$0xff]
    %v3530 = vld [vmem:[%s3 + $0x30] sm:$0xff]
    %v3531 = vld [vmem:[%s3 + $0x38] sm:$0xff]
    %v3532 = vld [vmem:[%s3 + $0x40] sm:$0xff]
    %v3533 = vld [vmem:[%s3 + $0x48] sm:$0xff]
    %v3534 = vld [vmem:[%s3 + $0x50] sm:$0xff]
    %v3535 = vld [vmem:[%s3 + $0x58] sm:$0xff]
    %v3536 = vld [vmem:[%s3 + $0x60] sm:$0xff]
    %v3537 = vld [vmem:[%s3 + $0x68] sm:$0xff]
    %v3538 = vld [vmem:[%s3 + $0x70] sm:$0xff]
    %v3539 = vld [vmem:[%s3 + $0x78] sm:$0xff]
    %v3540 = vld [vmem:[%s3 + $0x80] sm:$0xff]
    %v3541 = vld [vmem:[%s3 + $0x88] sm:$0xff]
    %v3542 = vld [vmem:[%s3 + $0x90] sm:$0xff]
    %v3543 = vld [vmem:[%s3 + $0x98] sm:$0xff]
    %v3544 = vld [vmem:[%s3 + $0xa0] sm:$0xff]
    %v3545 = vld [vmem:[%s3 + $0xa8] sm:$0xff]
    %v3546 = vld [vmem:[%s3 + $0xb0] sm:$0xff]
    %v3547 = vld [vmem:[%s3 + $0xb8] sm:$0xff]
    %v3548 = vld [vmem:[%s3 + $0xc0] sm:$0xff]
    %v3549 = vld [vmem:[%s3 + $0xc8] sm:$0xff]
    %v3550 = vld [vmem:[%s3 + $0xd0] sm:$0xff]
    %v3551 = vld [vmem:[%s3 + $0xd8] sm:$0xff]
    %v3552 = vld [vmem:[%s3 + $0xe0] sm:$0xff]
    %v3553 = vld [vmem:[%s3 + $0xe8] sm:$0xff]
    %v3554 = vld [vmem:[%s3 + $0xf0] sm:$0xff]
    %v3555 = vld [vmem:[%s3 + $0xf8] sm:$0xff]
    %v3556 = vld [vmem:[%s3 + $0x100] sm:$0xff]
    %v3557 = vld [vmem:[%s3 + $0x108] sm:$0xff]
    %v3558 = vld [vmem:[%s3 + $0x110] sm:$0xff]
    %v3559 = vld [vmem:[%s3 + $0x118] sm:$0xff]
    %v3560 = vld [vmem:[%s3 + $0x120] sm:$0xff]
    %v3561 = vld [vmem:[%s3 + $0x128] sm:$0xff]
    %v3562 = vld [vmem:[%s3 + $0x130] sm:$0xff]
    %v3563 = vld [vmem:[%s3 + $0x138] sm:$0xff]
    %v3564 = vld [vmem:[%s3 + $0x140] sm:$0xff]
    %v3565 = vld [vmem:[%s3 + $0x148] sm:$0xff]
    %v3566 = vld [vmem:[%s3 + $0x150] sm:$0xff]
    %v3567 = vld [vmem:[%s3 + $0x158] sm:$0xff]
    %v3568 = vld [vmem:[%s3 + $0x160] sm:$0xff]
    %v3569 = vld [vmem:[%s3 + $0x168] sm:$0xff]
    %v3570 = vld [vmem:[%s3 + $0x170] sm:$0xff]
    %v3571 = vld [vmem:[%s3 + $0x178] sm:$0xff]
    %v3572 = vld [vmem:[%s3 + $0x180] sm:$0xff]
    %v3573 = vld [vmem:[%s3 + $0x188] sm:$0xff]
    %v3574 = vld [vmem:[%s3 + $0x190] sm:$0xff]
    %v3575 = vld [vmem:[%s3 + $0x198] sm:$0xff]
    %v3576 = vld [vmem:[%s3 + $0x1a0] sm:$0xff]
    %v3577 = vld [vmem:[%s3 + $0x1a8] sm:$0xff]
    %v3578 = vld [vmem:[%s3 + $0x1b0] sm:$0xff]
    %v3579 = vld [vmem:[%s3 + $0x1b8] sm:$0xff]
    %v3580 = vld [vmem:[%s3 + $0x1c0] sm:$0xff]
    %v3581 = vld [vmem:[%s3 + $0x1c8] sm:$0xff]
    %v3582 = vld [vmem:[%s3 + $0x1d0] sm:$0xff]
    %v3583 = vld [vmem:[%s3 + $0x1d8] sm:$0xff]
    %v3584 = vld [vmem:[%s3 + $0x1e0] sm:$0xff]
    %v3585 = vld [vmem:[%s3 + $0x1e8] sm:$0xff]
    %v3586 = vld [vmem:[%s3 + $0x1f0] sm:$0xff]
    %v3587 = vld [vmem:[%s3 + $0x1f8] sm:$0xff]
    %v3588 = vld [vmem:[%s3 + $0x200] sm:$0xff]
    %v3589 = vld [vmem:[%s3 + $0x208] sm:$0xff]
    %v3590 = vld [vmem:[%s3 + $0x210] sm:$0xff]
    %v3591 = vld [vmem:[%s3 + $0x218] sm:$0xff]
    %v3592 = vld [vmem:[%s3 + $0x220] sm:$0xff]
    %v3593 = vld [vmem:[%s3 + $0x228] sm:$0xff]
    %v3594 = vld [vmem:[%s3 + $0x230] sm:$0xff]
    %v3595 = vld [vmem:[%s3 + $0x238] sm:$0xff]
    %v3596 = vld [vmem:[%s3 + $0x240] sm:$0xff]
    %v3597 = vld [vmem:[%s3 + $0x248] sm:$0xff]
    %v3598 = vld [vmem:[%s3 + $0x250] sm:$0xff]
    %v3599 = vld [vmem:[%s3 + $0x258] sm:$0xff]
    %v3600 = vld [vmem:[%s3 + $0x260] sm:$0xff]
    %v3601 = vld [vmem:[%s3 + $0x268] sm:$0xff]
    %v3602 = vld [vmem:[%s3 + $0x270] sm:$0xff]
    %v3603 = vld [vmem:[%s3 + $0x278] sm:$0xff]
    %v3604 = vld [vmem:[%s3 + $0x280] sm:$0xff]
    %v3605 = vld [vmem:[%s3 + $0x288] sm:$0xff]
    %v3606 = vld [vmem:[%s3 + $0x290] sm:$0xff]
    %v3607 = vld [vmem:[%s3 + $0x298] sm:$0xff]
    %v3608 = vld [vmem:[%s3 + $0x2a0] sm:$0xff]
    %v3609 = vld [vmem:[%s3 + $0x2a8] sm:$0xff]
    %v3610 = vld [vmem:[%s3 + $0x2b0] sm:$0xff]
    %v3611 = vld [vmem:[%s3 + $0x2b8] sm:$0xff]
    %v3612 = vld [vmem:[%s3 + $0x2c0] sm:$0xff]
    %v3613 = vld [vmem:[%s3 + $0x2c8] sm:$0xff]
    %v3614 = vld [vmem:[%s3 + $0x2d0] sm:$0xff]
    %v3615 = vld [vmem:[%s3 + $0x2d8] sm:$0xff]
    %v3616 = vld [vmem:[%s3 + $0x2e0] sm:$0xff]
    %v3617 = vld [vmem:[%s3 + $0x2e8] sm:$0xff]
    %v3618 = vld [vmem:[%s3 + $0x2f0] sm:$0xff]
    %v3619 = vld [vmem:[%s3 + $0x2f8] sm:$0xff]
    %v3620 = vld [vmem:[%s3 + $0x300] sm:$0xff]
    %v3621 = vld [vmem:[%s3 + $0x308] sm:$0xff]
    %v3622 = vld [vmem:[%s3 + $0x310] sm:$0xff]
    %v3623 = vld [vmem:[%s3 + $0x318] sm:$0xff]
    %v3624 = vld [vmem:[%s3 + $0x320] sm:$0xff]
    %v3625 = vld [vmem:[%s3 + $0x328] sm:$0xff]
    %v3626 = vld [vmem:[%s3 + $0x330] sm:$0xff]
    %v3627 = vld [vmem:[%s3 + $0x338] sm:$0xff]
    %v3628 = vld [vmem:[%s3 + $0x340] sm:$0xff]
    %v3629 = vld [vmem:[%s3 + $0x348] sm:$0xff]
    %v3630 = vld [vmem:[%s3 + $0x350] sm:$0xff]
    %v3631 = vld [vmem:[%s3 + $0x358] sm:$0xff]
    %v3632 = vld [vmem:[%s3 + $0x360] sm:$0xff]
    %v3633 = vld [vmem:[%s3 + $0x368] sm:$0xff]
    %v3634 = vld [vmem:[%s3 + $0x370] sm:$0xff]
    %v3635 = vld [vmem:[%s3 + $0x378] sm:$0xff]
    %v3636 = vld [vmem:[%s3 + $0x380] sm:$0xff]
    %v3637 = vld [vmem:[%s3 + $0x388] sm:$0xff]
    %v3638 = vld [vmem:[%s3 + $0x390] sm:$0xff]
    %v3639 = vld [vmem:[%s3 + $0x398] sm:$0xff]
    %v3640 = vld [vmem:[%s3 + $0x3a0] sm:$0xff]
    %v3641 = vld [vmem:[%s3 + $0x3a8] sm:$0xff]
    %v3642 = vld [vmem:[%s3 + $0x3b0] sm:$0xff]
    %v3643 = vld [vmem:[%s3 + $0x3b8] sm:$0xff]
    %v3644 = vld [vmem:[%s3 + $0x3c0] sm:$0xff]
    %v3645 = vld [vmem:[%s3 + $0x3c8] sm:$0xff]
    %v3646 = vld [vmem:[%s3 + $0x3d0] sm:$0xff]
    %v3647 = vld [vmem:[%s3 + $0x3d8] sm:$0xff]
    %v3648 = vld [vmem:[%s3 + $0x3e0] sm:$0xff]
    %v3649 = vld [vmem:[%s3 + $0x3e8] sm:$0xff]
    %v3650 = vld [vmem:[%s3 + $0x3f0] sm:$0xff]
    %v3651 = vld [vmem:[%s3 + $0x3f8] sm:$0xff]
    %v3652 = vld [vmem:[%s3 + $0x400] sm:$0xff]
    %v3653 = vld [vmem:[%s3 + $0x408] sm:$0xff]
    %v3654 = vld [vmem:[%s3 + $0x410] sm:$0xff]
    %v3655 = vld [vmem:[%s3 + $0x418] sm:$0xff]
    %v3656 = vld [vmem:[%s3 + $0x420] sm:$0xff]
    %v3657 = vld [vmem:[%s3 + $0x428] sm:$0xff]
    %v3658 = vld [vmem:[%s3 + $0x430] sm:$0xff]
    %v3659 = vld [vmem:[%s3 + $0x438] sm:$0xff]
    %v3660 = vld [vmem:[%s3 + $0x440] sm:$0xff]
    %v3661 = vld [vmem:[%s3 + $0x448] sm:$0xff]
    %v3662 = vld [vmem:[%s3 + $0x450] sm:$0xff]
    %v3663 = vld [vmem:[%s3 + $0x458] sm:$0xff]
    %v3664 = vld [vmem:[%s3 + $0x460] sm:$0xff]
    %v3665 = vld [vmem:[%s3 + $0x468] sm:$0xff]
    %v3666 = vld [vmem:[%s3 + $0x470] sm:$0xff]
    %v3667 = vld [vmem:[%s3 + $0x478] sm:$0xff]
    %v3668 = vld [vmem:[%s3 + $0x480] sm:$0xff]
    %v3669 = vld [vmem:[%s3 + $0x488] sm:$0xff]
    %v3670 = vld [vmem:[%s3 + $0x490] sm:$0xff]
    %v3671 = vld [vmem:[%s3 + $0x498] sm:$0xff]
    %v3672 = vld [vmem:[%s3 + $0x4a0] sm:$0xff]
    %v3673 = vld [vmem:[%s3 + $0x4a8] sm:$0xff]
    %v3674 = vld [vmem:[%s3 + $0x4b0] sm:$0xff]
    %v3675 = vld [vmem:[%s3 + $0x4b8] sm:$0xff]
    %v3676 = vld [vmem:[%s3 + $0x4c0] sm:$0xff]
    %v3677 = vld [vmem:[%s3 + $0x4c8] sm:$0xff]
    %v3678 = vld [vmem:[%s3 + $0x4d0] sm:$0xff]
    %v3679 = vld [vmem:[%s3 + $0x4d8] sm:$0xff]
    %v3680 = vld [vmem:[%s3 + $0x4e0] sm:$0xff]
    %v3681 = vld [vmem:[%s3 + $0x4e8] sm:$0xff]
    %v3682 = vld [vmem:[%s3 + $0x4f0] sm:$0xff]
    %v3683 = vld [vmem:[%s3 + $0x4f8] sm:$0xff]
    %v3684 = vld [vmem:[%s3 + $0x500] sm:$0xff]
    %v3685 = vld [vmem:[%s3 + $0x508] sm:$0xff]
    %v3686 = vld [vmem:[%s3 + $0x510] sm:$0xff]
    %v3687 = vld [vmem:[%s3 + $0x518] sm:$0xff]
    %v3688 = vld [vmem:[%s3 + $0x520] sm:$0xff]
    %v3689 = vld [vmem:[%s3 + $0x528] sm:$0xff]
    %v3690 = vld [vmem:[%s3 + $0x530] sm:$0xff]
    %v3691 = vld [vmem:[%s3 + $0x538] sm:$0xff]
    %v3692 = vld [vmem:[%s3 + $0x540] sm:$0xff]
    %v3693 = vld [vmem:[%s3 + $0x548] sm:$0xff]
    %v3694 = vld [vmem:[%s3 + $0x550] sm:$0xff]
    %v3695 = vld [vmem:[%s3 + $0x558] sm:$0xff]
    %v3696 = vld [vmem:[%s3 + $0x560] sm:$0xff]
    %v3697 = vld [vmem:[%s3 + $0x568] sm:$0xff]
    %v3698 = vld [vmem:[%s3 + $0x570] sm:$0xff]
    %v3699 = vld [vmem:[%s3 + $0x578] sm:$0xff]
    %v3700 = vld [vmem:[%s3 + $0x580] sm:$0xff]
    %v3701 = vld [vmem:[%s3 + $0x588] sm:$0xff]
    %v3702 = vld [vmem:[%s3 + $0x590] sm:$0xff]
    %v3703 = vld [vmem:[%s3 + $0x598] sm:$0xff]
    %v3704 = vld [vmem:[%s3 + $0x5a0] sm:$0xff]
    %v3705 = vld [vmem:[%s3 + $0x5a8] sm:$0xff]
    %v3706 = vld [vmem:[%s3 + $0x5b0] sm:$0xff]
    %v3707 = vld [vmem:[%s3 + $0x5b8] sm:$0xff]
    %v3708 = vld [vmem:[%s3 + $0x5c0] sm:$0xff]
    %v3709 = vld [vmem:[%s3 + $0x5c8] sm:$0xff]
    %v3710 = vld [vmem:[%s3 + $0x5d0] sm:$0xff]
    %v3711 = vld [vmem:[%s3 + $0x5d8] sm:$0xff]
    %v3712 = vld [vmem:[%s3 + $0x5e0] sm:$0xff]
    %v3713 = vld [vmem:[%s3 + $0x5e8] sm:$0xff]
    %v3714 = vld [vmem:[%s3 + $0x5f0] sm:$0xff]
    %v3715 = vld [vmem:[%s3 + $0x5f8] sm:$0xff]
    %v3716 = vld [vmem:[%s3 + $0x600] sm:$0xff]
    %v3717 = vld [vmem:[%s3 + $0x608] sm:$0xff]
    %v3718 = vld [vmem:[%s3 + $0x610] sm:$0xff]
    %v3719 = vld [vmem:[%s3 + $0x618] sm:$0xff]
    %v3720 = vld [vmem:[%s3 + $0x620] sm:$0xff]
    %v3721 = vld [vmem:[%s3 + $0x628] sm:$0xff]
    %v3722 = vld [vmem:[%s3 + $0x630] sm:$0xff]
    %v3723 = vld [vmem:[%s3 + $0x638] sm:$0xff]
    %v3724 = vld [vmem:[%s3 + $0x640] sm:$0xff]
    %v3725 = vld [vmem:[%s3 + $0x648] sm:$0xff]
    %v3726 = vld [vmem:[%s3 + $0x650] sm:$0xff]
    %v3727 = vld [vmem:[%s3 + $0x658] sm:$0xff]
    %v3728 = vld [vmem:[%s3 + $0x660] sm:$0xff]
    %v3729 = vld [vmem:[%s3 + $0x668] sm:$0xff]
    %v3730 = vld [vmem:[%s3 + $0x670] sm:$0xff]
    %v3731 = vld [vmem:[%s3 + $0x678] sm:$0xff]
    %v3732 = vld [vmem:[%s3 + $0x680] sm:$0xff]
    %v3733 = vld [vmem:[%s3 + $0x688] sm:$0xff]
    %v3734 = vld [vmem:[%s3 + $0x690] sm:$0xff]
    %v3735 = vld [vmem:[%s3 + $0x698] sm:$0xff]
    %v3736 = vld [vmem:[%s3 + $0x6a0] sm:$0xff]
    %v3737 = vld [vmem:[%s3 + $0x6a8] sm:$0xff]
    %v3738 = vld [vmem:[%s3 + $0x6b0] sm:$0xff]
    %v3739 = vld [vmem:[%s3 + $0x6b8] sm:$0xff]
    %v3740 = vld [vmem:[%s3 + $0x6c0] sm:$0xff]
    %v3741 = vld [vmem:[%s3 + $0x6c8] sm:$0xff]
    %v3742 = vld [vmem:[%s3 + $0x6d0] sm:$0xff]
    %v3743 = vld [vmem:[%s3 + $0x6d8] sm:$0xff]
    %v3744 = vld [vmem:[%s3 + $0x6e0] sm:$0xff]
    %v3745 = vld [vmem:[%s3 + $0x6e8] sm:$0xff]
    %v3746 = vld [vmem:[%s3 + $0x6f0] sm:$0xff]
    %v3747 = vld [vmem:[%s3 + $0x6f8] sm:$0xff]
    %v3748 = vld [vmem:[%s3 + $0x700] sm:$0xff]
    %v3749 = vld [vmem:[%s3 + $0x708] sm:$0xff]
    %v3750 = vld [vmem:[%s3 + $0x710] sm:$0xff]
    %v3751 = vld [vmem:[%s3 + $0x718] sm:$0xff]
    %v3752 = vld [vmem:[%s3 + $0x720] sm:$0xff]
    %v3753 = vld [vmem:[%s3 + $0x728] sm:$0xff]
    %v3754 = vld [vmem:[%s3 + $0x730] sm:$0xff]
    %v3755 = vld [vmem:[%s3 + $0x738] sm:$0xff]
    %v3756 = vld [vmem:[%s3 + $0x740] sm:$0xff]
    %v3757 = vld [vmem:[%s3 + $0x748] sm:$0xff]
    %v3758 = vld [vmem:[%s3 + $0x750] sm:$0xff]
    %v3759 = vld [vmem:[%s3 + $0x758] sm:$0xff]
    %v3760 = vld [vmem:[%s3 + $0x760] sm:$0xff]
    %v3761 = vld [vmem:[%s3 + $0x768] sm:$0xff]
    %v3762 = vld [vmem:[%s3 + $0x770] sm:$0xff]
    %v3763 = vld [vmem:[%s3 + $0x778] sm:$0xff]
    %v3764 = vld [vmem:[%s3 + $0x780] sm:$0xff]
    %v3765 = vld [vmem:[%s3 + $0x788] sm:$0xff]
    %v3766 = vld [vmem:[%s3 + $0x790] sm:$0xff]
    %v3767 = vld [vmem:[%s3 + $0x798] sm:$0xff]
    %v3768 = vld [vmem:[%s3 + $0x7a0] sm:$0xff]
    %v3769 = vld [vmem:[%s3 + $0x7a8] sm:$0xff]
    %v3770 = vld [vmem:[%s3 + $0x7b0] sm:$0xff]
    %v3771 = vld [vmem:[%s3 + $0x7b8] sm:$0xff]
    %v3772 = vld [vmem:[%s3 + $0x7c0] sm:$0xff]
    %v3773 = vld [vmem:[%s3 + $0x7c8] sm:$0xff]
    %v3774 = vld [vmem:[%s3 + $0x7d0] sm:$0xff]
    %v3775 = vld [vmem:[%s3 + $0x7d8] sm:$0xff]
    %v3776 = vld [vmem:[%s3 + $0x7e0] sm:$0xff]
    %v3777 = vld [vmem:[%s3 + $0x7e8] sm:$0xff]
    %v3778 = vld [vmem:[%s3 + $0x7f0] sm:$0xff]
    %v3779 = vld [vmem:[%s3 + $0x7f8] sm:$0xff]
    %v3780 = vld [vmem:[%s3 + $0x800] sm:$0xff]
    %v3781 = vld [vmem:[%s3 + $0x808] sm:$0xff]
    %v3782 = vld [vmem:[%s3 + $0x810] sm:$0xff]
    %v3783 = vld [vmem:[%s3 + $0x818] sm:$0xff]
    %v3784 = vld [vmem:[%s3 + $0x820] sm:$0xff]
    %v3785 = vld [vmem:[%s3 + $0x828] sm:$0xff]
    %v3786 = vld [vmem:[%s3 + $0x830] sm:$0xff]
    %v3787 = vld [vmem:[%s3 + $0x838] sm:$0xff]
    %v3788 = vld [vmem:[%s3 + $0x840] sm:$0xff]
    %v3789 = vld [vmem:[%s3 + $0x848] sm:$0xff]
    %v3790 = vld [vmem:[%s3 + $0x850] sm:$0xff]
    %v3791 = vld [vmem:[%s3 + $0x858] sm:$0xff]
    %v3792 = vld [vmem:[%s3 + $0x860] sm:$0xff]
    %v3793 = vld [vmem:[%s3 + $0x868] sm:$0xff]
    %v3794 = vld [vmem:[%s3 + $0x870] sm:$0xff]
    %v3795 = vld [vmem:[%s3 + $0x878] sm:$0xff]
    %v3796 = vld [vmem:[%s3 + $0x880] sm:$0xff]
    %v3797 = vld [vmem:[%s3 + $0x888] sm:$0xff]
    %v3798 = vld [vmem:[%s3 + $0x890] sm:$0xff]
    %v3799 = vld [vmem:[%s3 + $0x898] sm:$0xff]
    %v3800 = vld [vmem:[%s3 + $0x8a0] sm:$0xff]
    %v3801 = vld [vmem:[%s3 + $0x8a8] sm:$0xff]
    %v3802 = vld [vmem:[%s3 + $0x8b0] sm:$0xff]
    %v3803 = vld [vmem:[%s3 + $0x8b8] sm:$0xff]
    %v3804 = vld [vmem:[%s3 + $0x8c0] sm:$0xff]
    %v3805 = vld [vmem:[%s3 + $0x8c8] sm:$0xff]
    %v3806 = vld [vmem:[%s3 + $0x8d0] sm:$0xff]
    %v3807 = vld [vmem:[%s3 + $0x8d8] sm:$0xff]
    %v3808 = vld [vmem:[%s3 + $0x8e0] sm:$0xff]
    %v3809 = vld [vmem:[%s3 + $0x8e8] sm:$0xff]
    %v3810 = vld [vmem:[%s3 + $0x8f0] sm:$0xff]
    %v3811 = vld [vmem:[%s3 + $0x8f8] sm:$0xff]
    %v3812 = vld [vmem:[%s3 + $0x900] sm:$0xff]
    %v3813 = vld [vmem:[%s3 + $0x908] sm:$0xff]
    %v3814 = vld [vmem:[%s3 + $0x910] sm:$0xff]
    %v3815 = vld [vmem:[%s3 + $0x918] sm:$0xff]
    %v3816 = vld [vmem:[%s3 + $0x920] sm:$0xff]
    %v3817 = vld [vmem:[%s3 + $0x928] sm:$0xff]
    %v3818 = vld [vmem:[%s3 + $0x930] sm:$0xff]
    %v3819 = vld [vmem:[%s3 + $0x938] sm:$0xff]
    %v3820 = vld [vmem:[%s3 + $0x940] sm:$0xff]
    %v3821 = vld [vmem:[%s3 + $0x948] sm:$0xff]
    %v3822 = vld [vmem:[%s3 + $0x950] sm:$0xff]
    %v3823 = vld [vmem:[%s3 + $0x958] sm:$0xff]
    %v3824 = vld [vmem:[%s3 + $0x960] sm:$0xff]
    %v3825 = vld [vmem:[%s3 + $0x968] sm:$0xff]
    %v3826 = vld [vmem:[%s3 + $0x970] sm:$0xff]
    %v3827 = vld [vmem:[%s3 + $0x978] sm:$0xff]
    %v3828 = vld [vmem:[%s3 + $0x980] sm:$0xff]
    %v3829 = vld [vmem:[%s3 + $0x988] sm:$0xff]
    %v3830 = vld [vmem:[%s3 + $0x990] sm:$0xff]
    %v3831 = vld [vmem:[%s3 + $0x998] sm:$0xff]
    %v3832 = vld [vmem:[%s3 + $0x9a0] sm:$0xff]
    %v3833 = vld [vmem:[%s3 + $0x9a8] sm:$0xff]
    %v3834 = vld [vmem:[%s3 + $0x9b0] sm:$0xff]
    %v3835 = vld [vmem:[%s3 + $0x9b8] sm:$0xff]
    %v3836 = vld [vmem:[%s3 + $0x9c0] sm:$0xff]
    %v3837 = vld [vmem:[%s3 + $0x9c8] sm:$0xff]
    %v3838 = vld [vmem:[%s3 + $0x9d0] sm:$0xff]
    %v3839 = vld [vmem:[%s3 + $0x9d8] sm:$0xff]
    %v3840 = vld [vmem:[%s3 + $0x9e0] sm:$0xff]
    %v3841 = vld [vmem:[%s3 + $0x9e8] sm:$0xff]
    %v3842 = vld [vmem:[%s3 + $0x9f0] sm:$0xff]
    %v3843 = vld [vmem:[%s3 + $0x9f8] sm:$0xff]
    %v3844 = vld [vmem:[%s3 + $0xa00] sm:$0xff]
    %v3845 = vld [vmem:[%s3 + $0xa08] sm:$0xff]
    %v3846 = vld [vmem:[%s3 + $0xa10] sm:$0xff]
    %v3847 = vld [vmem:[%s3 + $0xa18] sm:$0xff]
    %v3848 = vld [vmem:[%s3 + $0xa20] sm:$0xff]
    %v3849 = vld [vmem:[%s3 + $0xa28] sm:$0xff]
    %v3850 = vld [vmem:[%s3 + $0xa30] sm:$0xff]
    %v3851 = vld [vmem:[%s3 + $0xa38] sm:$0xff]
    %v3852 = vld [vmem:[%s3 + $0xa40] sm:$0xff]
    %v3853 = vld [vmem:[%s3 + $0xa48] sm:$0xff]
    %v3854 = vld [vmem:[%s3 + $0xa50] sm:$0xff]
    %v3855 = vld [vmem:[%s3 + $0xa58] sm:$0xff]
    %v3856 = vld [vmem:[%s3 + $0xa60] sm:$0xff]
    %v3857 = vld [vmem:[%s3 + $0xa68] sm:$0xff]
    %v3858 = vld [vmem:[%s3 + $0xa70] sm:$0xff]
    %v3859 = vld [vmem:[%s3 + $0xa78] sm:$0xff]
    %v3860 = vld [vmem:[%s3 + $0xa80] sm:$0xff]
    %v3861 = vld [vmem:[%s3 + $0xa88] sm:$0xff]
    %v3862 = vld [vmem:[%s3 + $0xa90] sm:$0xff]
    %v3863 = vld [vmem:[%s3 + $0xa98] sm:$0xff]
    %v3864 = vld [vmem:[%s3 + $0xaa0] sm:$0xff]
    %v3865 = vld [vmem:[%s3 + $0xaa8] sm:$0xff]
    %v3866 = vld [vmem:[%s3 + $0xab0] sm:$0xff]
    %v3867 = vld [vmem:[%s3 + $0xab8] sm:$0xff]
    %v3868 = vld [vmem:[%s3 + $0xac0] sm:$0xff]
    %v3869 = vld [vmem:[%s3 + $0xac8] sm:$0xff]
    %v3870 = vld [vmem:[%s3 + $0xad0] sm:$0xff]
    %v3871 = vld [vmem:[%s3 + $0xad8] sm:$0xff]
    %v3872 = vld [vmem:[%s3 + $0xae0] sm:$0xff]
    %v3873 = vld [vmem:[%s3 + $0xae8] sm:$0xff]
    %v3874 = vld [vmem:[%s3 + $0xaf0] sm:$0xff]
    %v3875 = vld [vmem:[%s3 + $0xaf8] sm:$0xff]
    %v3876 = vld [vmem:[%s3 + $0xb00] sm:$0xff]
    %v3877 = vld [vmem:[%s3 + $0xb08] sm:$0xff]
    %v3878 = vld [vmem:[%s3 + $0xb10] sm:$0xff]
    %v3879 = vld [vmem:[%s3 + $0xb18] sm:$0xff]
    %v3880 = vld [vmem:[%s3 + $0xb20] sm:$0xff]
    %v3881 = vld [vmem:[%s3 + $0xb28] sm:$0xff]
    %v3882 = vld [vmem:[%s3 + $0xb30] sm:$0xff]
    %v3883 = vld [vmem:[%s3 + $0xb38] sm:$0xff]
    %v3884 = vld [vmem:[%s3 + $0xb40] sm:$0xff]
    %v3885 = vld [vmem:[%s3 + $0xb48] sm:$0xff]
    %v3886 = vld [vmem:[%s3 + $0xb50] sm:$0xff]
    %v3887 = vld [vmem:[%s3 + $0xb58] sm:$0xff]
    %v3888 = vld [vmem:[%s3 + $0xb60] sm:$0xff]
    %v3889 = vld [vmem:[%s3 + $0xb68] sm:$0xff]
    %v3890 = vld [vmem:[%s3 + $0xb70] sm:$0xff]
    %v3891 = vld [vmem:[%s3 + $0xb78] sm:$0xff]
    %v3892 = vld [vmem:[%s3 + $0xb80] sm:$0xff]
    %v3893 = vld [vmem:[%s3 + $0xb88] sm:$0xff]
    %v3894 = vld [vmem:[%s3 + $0xb90] sm:$0xff]
    %v3895 = vld [vmem:[%s3 + $0xb98] sm:$0xff]
    %v3896 = vld [vmem:[%s3 + $0xba0] sm:$0xff]
    %v3897 = vld [vmem:[%s3 + $0xba8] sm:$0xff]
    %v3898 = vld [vmem:[%s3 + $0xbb0] sm:$0xff]
    %v3899 = vld [vmem:[%s3 + $0xbb8] sm:$0xff]
    %v3900 = vld [vmem:[%s3 + $0xbc0] sm:$0xff]
    %v3901 = vld [vmem:[%s3 + $0xbc8] sm:$0xff]
    %v3902 = vld [vmem:[%s3 + $0xbd0] sm:$0xff]
    %v3903 = vld [vmem:[%s3 + $0xbd8] sm:$0xff]
    %v3904 = vld [vmem:[%s3 + $0xbe0] sm:$0xff]
    %v3905 = vld [vmem:[%s3 + $0xbe8] sm:$0xff]
    %v3906 = vld [vmem:[%s3 + $0xbf0] sm:$0xff]
    %v3907 = vld [vmem:[%s3 + $0xbf8] sm:$0xff]
    %v3908 = vld [vmem:[%s3 + $0xc00] sm:$0xff]
    %v3909 = vld [vmem:[%s3 + $0xc08] sm:$0xff]
    %v3910 = vld [vmem:[%s3 + $0xc10] sm:$0xff]
    %v3911 = vld [vmem:[%s3 + $0xc18] sm:$0xff]
    %v3912 = vld [vmem:[%s3 + $0xc20] sm:$0xff]
    %v3913 = vld [vmem:[%s3 + $0xc28] sm:$0xff]
    %v3914 = vld [vmem:[%s3 + $0xc30] sm:$0xff]
    %v3915 = vld [vmem:[%s3 + $0xc38] sm:$0xff]
    %v3916 = vld [vmem:[%s3 + $0xc40] sm:$0xff]
    %v3917 = vld [vmem:[%s3 + $0xc48] sm:$0xff]
    %v3918 = vld [vmem:[%s3 + $0xc50] sm:$0xff]
    %v3919 = vld [vmem:[%s3 + $0xc58] sm:$0xff]
    %v3920 = vld [vmem:[%s3 + $0xc60] sm:$0xff]
    %v3921 = vld [vmem:[%s3 + $0xc68] sm:$0xff]
    %v3922 = vld [vmem:[%s3 + $0xc70] sm:$0xff]
    %v3923 = vld [vmem:[%s3 + $0xc78] sm:$0xff]
    %v3924 = vld [vmem:[%s3 + $0xc80] sm:$0xff]
    %v3925 = vld [vmem:[%s3 + $0xc88] sm:$0xff]
    %v3926 = vld [vmem:[%s3 + $0xc90] sm:$0xff]
    %v3927 = vld [vmem:[%s3 + $0xc98] sm:$0xff]
    %v3928 = vld [vmem:[%s3 + $0xca0] sm:$0xff]
    %v3929 = vld [vmem:[%s3 + $0xca8] sm:$0xff]
    %v3930 = vld [vmem:[%s3 + $0xcb0] sm:$0xff]
    %v3931 = vld [vmem:[%s3 + $0xcb8] sm:$0xff]
    %v3932 = vld [vmem:[%s3 + $0xcc0] sm:$0xff]
    %v3933 = vld [vmem:[%s3 + $0xcc8] sm:$0xff]
    %v3934 = vld [vmem:[%s3 + $0xcd0] sm:$0xff]
    %v3935 = vld [vmem:[%s3 + $0xcd8] sm:$0xff]
    %v3936 = vld [vmem:[%s3 + $0xce0] sm:$0xff]
    %v3937 = vld [vmem:[%s3 + $0xce8] sm:$0xff]
    %v3938 = vld [vmem:[%s3 + $0xcf0] sm:$0xff]
    %v3939 = vld [vmem:[%s3 + $0xcf8] sm:$0xff]
    %v3940 = vld [vmem:[%s3 + $0xd00] sm:$0xff]
    %v3941 = vld [vmem:[%s3 + $0xd08] sm:$0xff]
    %v3942 = vld [vmem:[%s3 + $0xd10] sm:$0xff]
    %v3943 = vld [vmem:[%s3 + $0xd18] sm:$0xff]
    %v3944 = vld [vmem:[%s3 + $0xd20] sm:$0xff]
    %v3945 = vld [vmem:[%s3 + $0xd28] sm:$0xff]
    %v3946 = vld [vmem:[%s3 + $0xd30] sm:$0xff]
    %v3947 = vld [vmem:[%s3 + $0xd38] sm:$0xff]
    %v3948 = vld [vmem:[%s3 + $0xd40] sm:$0xff]
    %v3949 = vld [vmem:[%s3 + $0xd48] sm:$0xff]
    %v3950 = vld [vmem:[%s3 + $0xd50] sm:$0xff]
    %v3951 = vld [vmem:[%s3 + $0xd58] sm:$0xff]
    %v3952 = vld [vmem:[%s3 + $0xd60] sm:$0xff]
    %v3953 = vld [vmem:[%s3 + $0xd68] sm:$0xff]
    %v3954 = vld [vmem:[%s3 + $0xd70] sm:$0xff]
    %v3955 = vld [vmem:[%s3 + $0xd78] sm:$0xff]
    %v3956 = vld [vmem:[%s3 + $0xd80] sm:$0xff]
    %v3957 = vld [vmem:[%s3 + $0xd88] sm:$0xff]
    %v3958 = vld [vmem:[%s3 + $0xd90] sm:$0xff]
    %v3959 = vld [vmem:[%s3 + $0xd98] sm:$0xff]
    %v3960 = vld [vmem:[%s3 + $0xda0] sm:$0xff]
    %v3961 = vld [vmem:[%s3 + $0xda8] sm:$0xff]
    %v3962 = vld [vmem:[%s3 + $0xdb0] sm:$0xff]
    %v3963 = vld [vmem:[%s3 + $0xdb8] sm:$0xff]
    %v3964 = vld [vmem:[%s3 + $0xdc0] sm:$0xff]
    %v3965 = vld [vmem:[%s3 + $0xdc8] sm:$0xff]
    %v3966 = vld [vmem:[%s3 + $0xdd0] sm:$0xff]
    %v3967 = vld [vmem:[%s3 + $0xdd8] sm:$0xff]
    %v3968 = vld [vmem:[%s3 + $0xde0] sm:$0xff]
    %v3969 = vld [vmem:[%s3 + $0xde8] sm:$0xff]
    %v3970 = vld [vmem:[%s3 + $0xdf0] sm:$0xff]
    %v3971 = vld [vmem:[%s3 + $0xdf8] sm:$0xff]
    %v3972 = vld [vmem:[%s3 + $0xe00] sm:$0xff]
    %v3973 = vld [vmem:[%s3 + $0xe08] sm:$0xff]
    %v3974 = vld [vmem:[%s3 + $0xe10] sm:$0xff]
    %v3975 = vld [vmem:[%s3 + $0xe18] sm:$0xff]
    %v3976 = vld [vmem:[%s3 + $0xe20] sm:$0xff]
    %v3977 = vld [vmem:[%s3 + $0xe28] sm:$0xff]
    %v3978 = vld [vmem:[%s3 + $0xe30] sm:$0xff]
    %v3979 = vld [vmem:[%s3 + $0xe38] sm:$0xff]
    %v3980 = vld [vmem:[%s3 + $0xe40] sm:$0xff]
    %v3981 = vld [vmem:[%s3 + $0xe48] sm:$0xff]
    %v3982 = vld [vmem:[%s3 + $0xe50] sm:$0xff]
    %v3983 = vld [vmem:[%s3 + $0xe58] sm:$0xff]
    %v3984 = vld [vmem:[%s3 + $0xe60] sm:$0xff]
    %v3985 = vld [vmem:[%s3 + $0xe68] sm:$0xff]
    %v3986 = vld [vmem:[%s3 + $0xe70] sm:$0xff]
    %v3987 = vld [vmem:[%s3 + $0xe78] sm:$0xff]
    %v3988 = vld [vmem:[%s3 + $0xe80] sm:$0xff]
    %v3989 = vld [vmem:[%s3 + $0xe88] sm:$0xff]
    %v3990 = vld [vmem:[%s3 + $0xe90] sm:$0xff]
    %v3991 = vld [vmem:[%s3 + $0xe98] sm:$0xff]
    %v3992 = vld [vmem:[%s3 + $0xea0] sm:$0xff]
    %v3993 = vld [vmem:[%s3 + $0xea8] sm:$0xff]
    %v3994 = vld [vmem:[%s3 + $0xeb0] sm:$0xff]
    %v3995 = vld [vmem:[%s3 + $0xeb8] sm:$0xff]
    %v3996 = vld [vmem:[%s3 + $0xec0] sm:$0xff]
    %v3997 = vld [vmem:[%s3 + $0xec8] sm:$0xff]
    %v3998 = vld [vmem:[%s3 + $0xed0] sm:$0xff]
    %v3999 = vld [vmem:[%s3 + $0xed8] sm:$0xff]
    %v4000 = vld [vmem:[%s3 + $0xee0] sm:$0xff]
    %v4001 = vld [vmem:[%s3 + $0xee8] sm:$0xff]
    %v4002 = vld [vmem:[%s3 + $0xef0] sm:$0xff]
    %v4003 = vld [vmem:[%s3 + $0xef8] sm:$0xff]
    %v4004 = vld [vmem:[%s3 + $0xf00] sm:$0xff]
    %v4005 = vld [vmem:[%s3 + $0xf08] sm:$0xff]
    %v4006 = vld [vmem:[%s3 + $0xf10] sm:$0xff]
    %v4007 = vld [vmem:[%s3 + $0xf18] sm:$0xff]
    %v4008 = vld [vmem:[%s3 + $0xf20] sm:$0xff]
    %v4009 = vld [vmem:[%s3 + $0xf28] sm:$0xff]
    %v4010 = vld [vmem:[%s3 + $0xf30] sm:$0xff]
    %v4011 = vld [vmem:[%s3 + $0xf38] sm:$0xff]
    %v4012 = vld [vmem:[%s3 + $0xf40] sm:$0xff]
    %v4013 = vld [vmem:[%s3 + $0xf48] sm:$0xff]
    %v4014 = vld [vmem:[%s3 + $0xf50] sm:$0xff]
    %v4015 = vld [vmem:[%s3 + $0xf58] sm:$0xff]
    %v4016 = vld [vmem:[%s3 + $0xf60] sm:$0xff]
    %v4017 = vld [vmem:[%s3 + $0xf68] sm:$0xff]
    %v4018 = vld [vmem:[%s3 + $0xf70] sm:$0xff]
    %v4019 = vld [vmem:[%s3 + $0xf78] sm:$0xff]
    %v4020 = vld [vmem:[%s3 + $0xf80] sm:$0xff]
    %v4021 = vld [vmem:[%s3 + $0xf88] sm:$0xff]
    %v4022 = vld [vmem:[%s3 + $0xf90] sm:$0xff]
    %v4023 = vld [vmem:[%s3 + $0xf98] sm:$0xff]
    %v4024 = vld [vmem:[%s3 + $0xfa0] sm:$0xff]
    %v4025 = vld [vmem:[%s3 + $0xfa8] sm:$0xff]
    %v4026 = vld [vmem:[%s3 + $0xfb0] sm:$0xff]
    %v4027 = vld [vmem:[%s3 + $0xfb8] sm:$0xff]
    %v4028 = vld [vmem:[%s3 + $0xfc0] sm:$0xff]
    %v4029 = vld [vmem:[%s3 + $0xfc8] sm:$0xff]
    %v4030 = vld [vmem:[%s3 + $0xfd0] sm:$0xff]
    %v4031 = vld [vmem:[%s3 + $0xfd8] sm:$0xff]
    %v4032 = vld [vmem:[%s3 + $0xfe0] sm:$0xff]
    %v4033 = vld [vmem:[%s3 + $0xfe8] sm:$0xff]
    %v4034 = vld [vmem:[%s3 + $0xff0] sm:$0xff]
    %v4035 = vld [vmem:[%s3 + $0xff8] sm:$0xff]
    %v4036 = vld [vmem:[%s4] sm:$0xff]
    %v4038 = vperm.slane %v4036, 0
    %v4039 = vperm.slane %v4036, 1
    %v4040 = vperm.slane %v4036, 2
    %v4041 = vperm.slane %v4036, 3
    %v4042 = vperm.slane %v4036, 4
    %v4043 = vperm.slane %v4036, 5
    %v4044 = vperm.slane %v4036, 6
    %v4045 = vperm.slane %v4036, 7
    %v4566 = vunpack.c.l.b16 %v3524
    %v4567 = vunpack.c.h.b16 %v3524
    %v4568 = vunpack.c.l.b16 %v3525
    %v4569 = vunpack.c.h.b16 %v3525
    %v4570 = vunpack.c.l.b16 %v3526
    %v4571 = vunpack.c.h.b16 %v3526
    %v4572 = vunpack.c.l.b16 %v3527
    %v4573 = vunpack.c.h.b16 %v3527
    %v4574 = vunpack.c.l.b16 %v3528
    %v4575 = vunpack.c.h.b16 %v3528
    %v4576 = vunpack.c.l.b16 %v3529
    %v4577 = vunpack.c.h.b16 %v3529
    %v4578 = vunpack.c.l.b16 %v3530
    %v4579 = vunpack.c.h.b16 %v3530
    %v4580 = vunpack.c.l.b16 %v3531
    %v4581 = vunpack.c.h.b16 %v3531
    %v4582 = vunpack.c.l.b16 %v3532
    %v4583 = vunpack.c.h.b16 %v3532
    %v4584 = vunpack.c.l.b16 %v3533
    %v4585 = vunpack.c.h.b16 %v3533
    %v4586 = vunpack.c.l.b16 %v3534
    %v4587 = vunpack.c.h.b16 %v3534
    %v4588 = vunpack.c.l.b16 %v3535
    %v4589 = vunpack.c.h.b16 %v3535
    %v4590 = vunpack.c.l.b16 %v3536
    %v4591 = vunpack.c.h.b16 %v3536
    %v4592 = vunpack.c.l.b16 %v3537
    %v4593 = vunpack.c.h.b16 %v3537
    %v4594 = vunpack.c.l.b16 %v3538
    %v4595 = vunpack.c.h.b16 %v3538
    %v4596 = vunpack.c.l.b16 %v3539
    %v4597 = vunpack.c.h.b16 %v3539
    %v4598 = vunpack.c.l.b16 %v3540
    %v4599 = vunpack.c.h.b16 %v3540
    %v4600 = vunpack.c.l.b16 %v3541
    %v4601 = vunpack.c.h.b16 %v3541
    %v4602 = vunpack.c.l.b16 %v3542
    %v4603 = vunpack.c.h.b16 %v3542
    %v4604 = vunpack.c.l.b16 %v3543
    %v4605 = vunpack.c.h.b16 %v3543
    %v4606 = vunpack.c.l.b16 %v3544
    %v4607 = vunpack.c.h.b16 %v3544
    %v4608 = vunpack.c.l.b16 %v3545
    %v4609 = vunpack.c.h.b16 %v3545
    %v4610 = vunpack.c.l.b16 %v3546
    %v4611 = vunpack.c.h.b16 %v3546
    %v4612 = vunpack.c.l.b16 %v3547
    %v4613 = vunpack.c.h.b16 %v3547
    %v4614 = vunpack.c.l.b16 %v3548
    %v4615 = vunpack.c.h.b16 %v3548
    %v4616 = vunpack.c.l.b16 %v3549
    %v4617 = vunpack.c.h.b16 %v3549
    %v4618 = vunpack.c.l.b16 %v3550
    %v4619 = vunpack.c.h.b16 %v3550
    %v4620 = vunpack.c.l.b16 %v3551
    %v4621 = vunpack.c.h.b16 %v3551
    %v4622 = vunpack.c.l.b16 %v3552
    %v4623 = vunpack.c.h.b16 %v3552
    %v4624 = vunpack.c.l.b16 %v3553
    %v4625 = vunpack.c.h.b16 %v3553
    %v4626 = vunpack.c.l.b16 %v3554
    %v4627 = vunpack.c.h.b16 %v3554
    %v4628 = vunpack.c.l.b16 %v3555
    %v4629 = vunpack.c.h.b16 %v3555
    %v4630 = vunpack.c.l.b16 %v3556
    %v4631 = vunpack.c.h.b16 %v3556
    %v4632 = vunpack.c.l.b16 %v3557
    %v4633 = vunpack.c.h.b16 %v3557
    %v4634 = vunpack.c.l.b16 %v3558
    %v4635 = vunpack.c.h.b16 %v3558
    %v4636 = vunpack.c.l.b16 %v3559
    %v4637 = vunpack.c.h.b16 %v3559
    %v4638 = vunpack.c.l.b16 %v3560
    %v4639 = vunpack.c.h.b16 %v3560
    %v4640 = vunpack.c.l.b16 %v3561
    %v4641 = vunpack.c.h.b16 %v3561
    %v4642 = vunpack.c.l.b16 %v3562
    %v4643 = vunpack.c.h.b16 %v3562
    %v4644 = vunpack.c.l.b16 %v3563
    %v4645 = vunpack.c.h.b16 %v3563
    %v4646 = vunpack.c.l.b16 %v3564
    %v4647 = vunpack.c.h.b16 %v3564
    %v4648 = vunpack.c.l.b16 %v3565
    %v4649 = vunpack.c.h.b16 %v3565
    %v4650 = vunpack.c.l.b16 %v3566
    %v4651 = vunpack.c.h.b16 %v3566
    %v4652 = vunpack.c.l.b16 %v3567
    %v4653 = vunpack.c.h.b16 %v3567
    %v4654 = vunpack.c.l.b16 %v3568
    %v4655 = vunpack.c.h.b16 %v3568
    %v4656 = vunpack.c.l.b16 %v3569
    %v4657 = vunpack.c.h.b16 %v3569
    %v4658 = vunpack.c.l.b16 %v3570
    %v4659 = vunpack.c.h.b16 %v3570
    %v4660 = vunpack.c.l.b16 %v3571
    %v4661 = vunpack.c.h.b16 %v3571
    %v4662 = vunpack.c.l.b16 %v3572
    %v4663 = vunpack.c.h.b16 %v3572
    %v4664 = vunpack.c.l.b16 %v3573
    %v4665 = vunpack.c.h.b16 %v3573
    %v4666 = vunpack.c.l.b16 %v3574
    %v4667 = vunpack.c.h.b16 %v3574
    %v4668 = vunpack.c.l.b16 %v3575
    %v4669 = vunpack.c.h.b16 %v3575
    %v4670 = vunpack.c.l.b16 %v3576
    %v4671 = vunpack.c.h.b16 %v3576
    %v4672 = vunpack.c.l.b16 %v3577
    %v4673 = vunpack.c.h.b16 %v3577
    %v4674 = vunpack.c.l.b16 %v3578
    %v4675 = vunpack.c.h.b16 %v3578
    %v4676 = vunpack.c.l.b16 %v3579
    %v4677 = vunpack.c.h.b16 %v3579
    %v4678 = vunpack.c.l.b16 %v3580
    %v4679 = vunpack.c.h.b16 %v3580
    %v4680 = vunpack.c.l.b16 %v3581
    %v4681 = vunpack.c.h.b16 %v3581
    %v4682 = vunpack.c.l.b16 %v3582
    %v4683 = vunpack.c.h.b16 %v3582
    %v4684 = vunpack.c.l.b16 %v3583
    %v4685 = vunpack.c.h.b16 %v3583
    %v4686 = vunpack.c.l.b16 %v3584
    %v4687 = vunpack.c.h.b16 %v3584
    %v4688 = vunpack.c.l.b16 %v3585
    %v4689 = vunpack.c.h.b16 %v3585
    %v4690 = vunpack.c.l.b16 %v3586
    %v4691 = vunpack.c.h.b16 %v3586
    %v4692 = vunpack.c.l.b16 %v3587
    %v4693 = vunpack.c.h.b16 %v3587
    %v4694 = vunpack.c.l.b16 %v3588
    %v4695 = vunpack.c.h.b16 %v3588
    %v4696 = vunpack.c.l.b16 %v3589
    %v4697 = vunpack.c.h.b16 %v3589
    %v4698 = vunpack.c.l.b16 %v3590
    %v4699 = vunpack.c.h.b16 %v3590
    %v4700 = vunpack.c.l.b16 %v3591
    %v4701 = vunpack.c.h.b16 %v3591
    %v4702 = vunpack.c.l.b16 %v3592
    %v4703 = vunpack.c.h.b16 %v3592
    %v4704 = vunpack.c.l.b16 %v3593
    %v4705 = vunpack.c.h.b16 %v3593
    %v4706 = vunpack.c.l.b16 %v3594
    %v4707 = vunpack.c.h.b16 %v3594
    %v4708 = vunpack.c.l.b16 %v3595
    %v4709 = vunpack.c.h.b16 %v3595
    %v4710 = vunpack.c.l.b16 %v3596
    %v4711 = vunpack.c.h.b16 %v3596
    %v4712 = vunpack.c.l.b16 %v3597
    %v4713 = vunpack.c.h.b16 %v3597
    %v4714 = vunpack.c.l.b16 %v3598
    %v4715 = vunpack.c.h.b16 %v3598
    %v4716 = vunpack.c.l.b16 %v3599
    %v4717 = vunpack.c.h.b16 %v3599
    %v4718 = vunpack.c.l.b16 %v3600
    %v4719 = vunpack.c.h.b16 %v3600
    %v4720 = vunpack.c.l.b16 %v3601
    %v4721 = vunpack.c.h.b16 %v3601
    %v4722 = vunpack.c.l.b16 %v3602
    %v4723 = vunpack.c.h.b16 %v3602
    %v4724 = vunpack.c.l.b16 %v3603
    %v4725 = vunpack.c.h.b16 %v3603
    %v4726 = vunpack.c.l.b16 %v3604
    %v4727 = vunpack.c.h.b16 %v3604
    %v4728 = vunpack.c.l.b16 %v3605
    %v4729 = vunpack.c.h.b16 %v3605
    %v4730 = vunpack.c.l.b16 %v3606
    %v4731 = vunpack.c.h.b16 %v3606
    %v4732 = vunpack.c.l.b16 %v3607
    %v4733 = vunpack.c.h.b16 %v3607
    %v4734 = vunpack.c.l.b16 %v3608
    %v4735 = vunpack.c.h.b16 %v3608
    %v4736 = vunpack.c.l.b16 %v3609
    %v4737 = vunpack.c.h.b16 %v3609
    %v4738 = vunpack.c.l.b16 %v3610
    %v4739 = vunpack.c.h.b16 %v3610
    %v4740 = vunpack.c.l.b16 %v3611
    %v4741 = vunpack.c.h.b16 %v3611
    %v4742 = vunpack.c.l.b16 %v3612
    %v4743 = vunpack.c.h.b16 %v3612
    %v4744 = vunpack.c.l.b16 %v3613
    %v4745 = vunpack.c.h.b16 %v3613
    %v4746 = vunpack.c.l.b16 %v3614
    %v4747 = vunpack.c.h.b16 %v3614
    %v4748 = vunpack.c.l.b16 %v3615
    %v4749 = vunpack.c.h.b16 %v3615
    %v4750 = vunpack.c.l.b16 %v3616
    %v4751 = vunpack.c.h.b16 %v3616
    %v4752 = vunpack.c.l.b16 %v3617
    %v4753 = vunpack.c.h.b16 %v3617
    %v4754 = vunpack.c.l.b16 %v3618
    %v4755 = vunpack.c.h.b16 %v3618
    %v4756 = vunpack.c.l.b16 %v3619
    %v4757 = vunpack.c.h.b16 %v3619
    %v4758 = vunpack.c.l.b16 %v3620
    %v4759 = vunpack.c.h.b16 %v3620
    %v4760 = vunpack.c.l.b16 %v3621
    %v4761 = vunpack.c.h.b16 %v3621
    %v4762 = vunpack.c.l.b16 %v3622
    %v4763 = vunpack.c.h.b16 %v3622
    %v4764 = vunpack.c.l.b16 %v3623
    %v4765 = vunpack.c.h.b16 %v3623
    %v4766 = vunpack.c.l.b16 %v3624
    %v4767 = vunpack.c.h.b16 %v3624
    %v4768 = vunpack.c.l.b16 %v3625
    %v4769 = vunpack.c.h.b16 %v3625
    %v4770 = vunpack.c.l.b16 %v3626
    %v4771 = vunpack.c.h.b16 %v3626
    %v4772 = vunpack.c.l.b16 %v3627
    %v4773 = vunpack.c.h.b16 %v3627
    %v4774 = vunpack.c.l.b16 %v3628
    %v4775 = vunpack.c.h.b16 %v3628
    %v4776 = vunpack.c.l.b16 %v3629
    %v4777 = vunpack.c.h.b16 %v3629
    %v4778 = vunpack.c.l.b16 %v3630
    %v4779 = vunpack.c.h.b16 %v3630
    %v4780 = vunpack.c.l.b16 %v3631
    %v4781 = vunpack.c.h.b16 %v3631
    %v4782 = vunpack.c.l.b16 %v3632
    %v4783 = vunpack.c.h.b16 %v3632
    %v4784 = vunpack.c.l.b16 %v3633
    %v4785 = vunpack.c.h.b16 %v3633
    %v4786 = vunpack.c.l.b16 %v3634
    %v4787 = vunpack.c.h.b16 %v3634
    %v4788 = vunpack.c.l.b16 %v3635
    %v4789 = vunpack.c.h.b16 %v3635
    %v4790 = vunpack.c.l.b16 %v3636
    %v4791 = vunpack.c.h.b16 %v3636
    %v4792 = vunpack.c.l.b16 %v3637
    %v4793 = vunpack.c.h.b16 %v3637
    %v4794 = vunpack.c.l.b16 %v3638
    %v4795 = vunpack.c.h.b16 %v3638
    %v4796 = vunpack.c.l.b16 %v3639
    %v4797 = vunpack.c.h.b16 %v3639
    %v4798 = vunpack.c.l.b16 %v3640
    %v4799 = vunpack.c.h.b16 %v3640
    %v4800 = vunpack.c.l.b16 %v3641
    %v4801 = vunpack.c.h.b16 %v3641
    %v4802 = vunpack.c.l.b16 %v3642
    %v4803 = vunpack.c.h.b16 %v3642
    %v4804 = vunpack.c.l.b16 %v3643
    %v4805 = vunpack.c.h.b16 %v3643
    %v4806 = vunpack.c.l.b16 %v3644
    %v4807 = vunpack.c.h.b16 %v3644
    %v4808 = vunpack.c.l.b16 %v3645
    %v4809 = vunpack.c.h.b16 %v3645
    %v4810 = vunpack.c.l.b16 %v3646
    %v4811 = vunpack.c.h.b16 %v3646
    %v4812 = vunpack.c.l.b16 %v3647
    %v4813 = vunpack.c.h.b16 %v3647
    %v4814 = vunpack.c.l.b16 %v3648
    %v4815 = vunpack.c.h.b16 %v3648
    %v4816 = vunpack.c.l.b16 %v3649
    %v4817 = vunpack.c.h.b16 %v3649
    %v4818 = vunpack.c.l.b16 %v3650
    %v4819 = vunpack.c.h.b16 %v3650
    %v4820 = vunpack.c.l.b16 %v3651
    %v4821 = vunpack.c.h.b16 %v3651
    %v4822 = vunpack.c.l.b16 %v3652
    %v4823 = vunpack.c.h.b16 %v3652
    %v4824 = vunpack.c.l.b16 %v3653
    %v4825 = vunpack.c.h.b16 %v3653
    %v4826 = vunpack.c.l.b16 %v3654
    %v4827 = vunpack.c.h.b16 %v3654
    %v4828 = vunpack.c.l.b16 %v3655
    %v4829 = vunpack.c.h.b16 %v3655
    %v4830 = vunpack.c.l.b16 %v3656
    %v4831 = vunpack.c.h.b16 %v3656
    %v4832 = vunpack.c.l.b16 %v3657
    %v4833 = vunpack.c.h.b16 %v3657
    %v4834 = vunpack.c.l.b16 %v3658
    %v4835 = vunpack.c.h.b16 %v3658
    %v4836 = vunpack.c.l.b16 %v3659
    %v4837 = vunpack.c.h.b16 %v3659
    %v4838 = vunpack.c.l.b16 %v3660
    %v4839 = vunpack.c.h.b16 %v3660
    %v4840 = vunpack.c.l.b16 %v3661
    %v4841 = vunpack.c.h.b16 %v3661
    %v4842 = vunpack.c.l.b16 %v3662
    %v4843 = vunpack.c.h.b16 %v3662
    %v4844 = vunpack.c.l.b16 %v3663
    %v4845 = vunpack.c.h.b16 %v3663
    %v4846 = vunpack.c.l.b16 %v3664
    %v4847 = vunpack.c.h.b16 %v3664
    %v4848 = vunpack.c.l.b16 %v3665
    %v4849 = vunpack.c.h.b16 %v3665
    %v4850 = vunpack.c.l.b16 %v3666
    %v4851 = vunpack.c.h.b16 %v3666
    %v4852 = vunpack.c.l.b16 %v3667
    %v4853 = vunpack.c.h.b16 %v3667
    %v4854 = vunpack.c.l.b16 %v3668
    %v4855 = vunpack.c.h.b16 %v3668
    %v4856 = vunpack.c.l.b16 %v3669
    %v4857 = vunpack.c.h.b16 %v3669
    %v4858 = vunpack.c.l.b16 %v3670
    %v4859 = vunpack.c.h.b16 %v3670
    %v4860 = vunpack.c.l.b16 %v3671
    %v4861 = vunpack.c.h.b16 %v3671
    %v4862 = vunpack.c.l.b16 %v3672
    %v4863 = vunpack.c.h.b16 %v3672
    %v4864 = vunpack.c.l.b16 %v3673
    %v4865 = vunpack.c.h.b16 %v3673
    %v4866 = vunpack.c.l.b16 %v3674
    %v4867 = vunpack.c.h.b16 %v3674
    %v4868 = vunpack.c.l.b16 %v3675
    %v4869 = vunpack.c.h.b16 %v3675
    %v4870 = vunpack.c.l.b16 %v3676
    %v4871 = vunpack.c.h.b16 %v3676
    %v4872 = vunpack.c.l.b16 %v3677
    %v4873 = vunpack.c.h.b16 %v3677
    %v4874 = vunpack.c.l.b16 %v3678
    %v4875 = vunpack.c.h.b16 %v3678
    %v4876 = vunpack.c.l.b16 %v3679
    %v4877 = vunpack.c.h.b16 %v3679
    %v4878 = vunpack.c.l.b16 %v3680
    %v4879 = vunpack.c.h.b16 %v3680
    %v4880 = vunpack.c.l.b16 %v3681
    %v4881 = vunpack.c.h.b16 %v3681
    %v4882 = vunpack.c.l.b16 %v3682
    %v4883 = vunpack.c.h.b16 %v3682
    %v4884 = vunpack.c.l.b16 %v3683
    %v4885 = vunpack.c.h.b16 %v3683
    %v4886 = vunpack.c.l.b16 %v3684
    %v4887 = vunpack.c.h.b16 %v3684
    %v4888 = vunpack.c.l.b16 %v3685
    %v4889 = vunpack.c.h.b16 %v3685
    %v4890 = vunpack.c.l.b16 %v3686
    %v4891 = vunpack.c.h.b16 %v3686
    %v4892 = vunpack.c.l.b16 %v3687
    %v4893 = vunpack.c.h.b16 %v3687
    %v4894 = vunpack.c.l.b16 %v3688
    %v4895 = vunpack.c.h.b16 %v3688
    %v4896 = vunpack.c.l.b16 %v3689
    %v4897 = vunpack.c.h.b16 %v3689
    %v4898 = vunpack.c.l.b16 %v3690
    %v4899 = vunpack.c.h.b16 %v3690
    %v4900 = vunpack.c.l.b16 %v3691
    %v4901 = vunpack.c.h.b16 %v3691
    %v4902 = vunpack.c.l.b16 %v3692
    %v4903 = vunpack.c.h.b16 %v3692
    %v4904 = vunpack.c.l.b16 %v3693
    %v4905 = vunpack.c.h.b16 %v3693
    %v4906 = vunpack.c.l.b16 %v3694
    %v4907 = vunpack.c.h.b16 %v3694
    %v4908 = vunpack.c.l.b16 %v3695
    %v4909 = vunpack.c.h.b16 %v3695
    %v4910 = vunpack.c.l.b16 %v3696
    %v4911 = vunpack.c.h.b16 %v3696
    %v4912 = vunpack.c.l.b16 %v3697
    %v4913 = vunpack.c.h.b16 %v3697
    %v4914 = vunpack.c.l.b16 %v3698
    %v4915 = vunpack.c.h.b16 %v3698
    %v4916 = vunpack.c.l.b16 %v3699
    %v4917 = vunpack.c.h.b16 %v3699
    %v4918 = vunpack.c.l.b16 %v3700
    %v4919 = vunpack.c.h.b16 %v3700
    %v4920 = vunpack.c.l.b16 %v3701
    %v4921 = vunpack.c.h.b16 %v3701
    %v4922 = vunpack.c.l.b16 %v3702
    %v4923 = vunpack.c.h.b16 %v3702
    %v4924 = vunpack.c.l.b16 %v3703
    %v4925 = vunpack.c.h.b16 %v3703
    %v4926 = vunpack.c.l.b16 %v3704
    %v4927 = vunpack.c.h.b16 %v3704
    %v4928 = vunpack.c.l.b16 %v3705
    %v4929 = vunpack.c.h.b16 %v3705
    %v4930 = vunpack.c.l.b16 %v3706
    %v4931 = vunpack.c.h.b16 %v3706
    %v4932 = vunpack.c.l.b16 %v3707
    %v4933 = vunpack.c.h.b16 %v3707
    %v4934 = vunpack.c.l.b16 %v3708
    %v4935 = vunpack.c.h.b16 %v3708
    %v4936 = vunpack.c.l.b16 %v3709
    %v4937 = vunpack.c.h.b16 %v3709
    %v4938 = vunpack.c.l.b16 %v3710
    %v4939 = vunpack.c.h.b16 %v3710
    %v4940 = vunpack.c.l.b16 %v3711
    %v4941 = vunpack.c.h.b16 %v3711
    %v4942 = vunpack.c.l.b16 %v3712
    %v4943 = vunpack.c.h.b16 %v3712
    %v4944 = vunpack.c.l.b16 %v3713
    %v4945 = vunpack.c.h.b16 %v3713
    %v4946 = vunpack.c.l.b16 %v3714
    %v4947 = vunpack.c.h.b16 %v3714
    %v4948 = vunpack.c.l.b16 %v3715
    %v4949 = vunpack.c.h.b16 %v3715
    %v4950 = vunpack.c.l.b16 %v3716
    %v4951 = vunpack.c.h.b16 %v3716
    %v4952 = vunpack.c.l.b16 %v3717
    %v4953 = vunpack.c.h.b16 %v3717
    %v4954 = vunpack.c.l.b16 %v3718
    %v4955 = vunpack.c.h.b16 %v3718
    %v4956 = vunpack.c.l.b16 %v3719
    %v4957 = vunpack.c.h.b16 %v3719
    %v4958 = vunpack.c.l.b16 %v3720
    %v4959 = vunpack.c.h.b16 %v3720
    %v4960 = vunpack.c.l.b16 %v3721
    %v4961 = vunpack.c.h.b16 %v3721
    %v4962 = vunpack.c.l.b16 %v3722
    %v4963 = vunpack.c.h.b16 %v3722
    %v4964 = vunpack.c.l.b16 %v3723
    %v4965 = vunpack.c.h.b16 %v3723
    %v4966 = vunpack.c.l.b16 %v3724
    %v4967 = vunpack.c.h.b16 %v3724
    %v4968 = vunpack.c.l.b16 %v3725
    %v4969 = vunpack.c.h.b16 %v3725
    %v4970 = vunpack.c.l.b16 %v3726
    %v4971 = vunpack.c.h.b16 %v3726
    %v4972 = vunpack.c.l.b16 %v3727
    %v4973 = vunpack.c.h.b16 %v3727
    %v4974 = vunpack.c.l.b16 %v3728
    %v4975 = vunpack.c.h.b16 %v3728
    %v4976 = vunpack.c.l.b16 %v3729
    %v4977 = vunpack.c.h.b16 %v3729
    %v4978 = vunpack.c.l.b16 %v3730
    %v4979 = vunpack.c.h.b16 %v3730
    %v4980 = vunpack.c.l.b16 %v3731
    %v4981 = vunpack.c.h.b16 %v3731
    %v4982 = vunpack.c.l.b16 %v3732
    %v4983 = vunpack.c.h.b16 %v3732
    %v4984 = vunpack.c.l.b16 %v3733
    %v4985 = vunpack.c.h.b16 %v3733
    %v4986 = vunpack.c.l.b16 %v3734
    %v4987 = vunpack.c.h.b16 %v3734
    %v4988 = vunpack.c.l.b16 %v3735
    %v4989 = vunpack.c.h.b16 %v3735
    %v4990 = vunpack.c.l.b16 %v3736
    %v4991 = vunpack.c.h.b16 %v3736
    %v4992 = vunpack.c.l.b16 %v3737
    %v4993 = vunpack.c.h.b16 %v3737
    %v4994 = vunpack.c.l.b16 %v3738
    %v4995 = vunpack.c.h.b16 %v3738
    %v4996 = vunpack.c.l.b16 %v3739
    %v4997 = vunpack.c.h.b16 %v3739
    %v4998 = vunpack.c.l.b16 %v3740
    %v4999 = vunpack.c.h.b16 %v3740
    %v5000 = vunpack.c.l.b16 %v3741
    %v5001 = vunpack.c.h.b16 %v3741
    %v5002 = vunpack.c.l.b16 %v3742
    %v5003 = vunpack.c.h.b16 %v3742
    %v5004 = vunpack.c.l.b16 %v3743
    %v5005 = vunpack.c.h.b16 %v3743
    %v5006 = vunpack.c.l.b16 %v3744
    %v5007 = vunpack.c.h.b16 %v3744
    %v5008 = vunpack.c.l.b16 %v3745
    %v5009 = vunpack.c.h.b16 %v3745
    %v5010 = vunpack.c.l.b16 %v3746
    %v5011 = vunpack.c.h.b16 %v3746
    %v5012 = vunpack.c.l.b16 %v3747
    %v5013 = vunpack.c.h.b16 %v3747
    %v5014 = vunpack.c.l.b16 %v3748
    %v5015 = vunpack.c.h.b16 %v3748
    %v5016 = vunpack.c.l.b16 %v3749
    %v5017 = vunpack.c.h.b16 %v3749
    %v5018 = vunpack.c.l.b16 %v3750
    %v5019 = vunpack.c.h.b16 %v3750
    %v5020 = vunpack.c.l.b16 %v3751
    %v5021 = vunpack.c.h.b16 %v3751
    %v5022 = vunpack.c.l.b16 %v3752
    %v5023 = vunpack.c.h.b16 %v3752
    %v5024 = vunpack.c.l.b16 %v3753
    %v5025 = vunpack.c.h.b16 %v3753
    %v5026 = vunpack.c.l.b16 %v3754
    %v5027 = vunpack.c.h.b16 %v3754
    %v5028 = vunpack.c.l.b16 %v3755
    %v5029 = vunpack.c.h.b16 %v3755
    %v5030 = vunpack.c.l.b16 %v3756
    %v5031 = vunpack.c.h.b16 %v3756
    %v5032 = vunpack.c.l.b16 %v3757
    %v5033 = vunpack.c.h.b16 %v3757
    %v5034 = vunpack.c.l.b16 %v3758
    %v5035 = vunpack.c.h.b16 %v3758
    %v5036 = vunpack.c.l.b16 %v3759
    %v5037 = vunpack.c.h.b16 %v3759
    %v5038 = vunpack.c.l.b16 %v3760
    %v5039 = vunpack.c.h.b16 %v3760
    %v5040 = vunpack.c.l.b16 %v3761
    %v5041 = vunpack.c.h.b16 %v3761
    %v5042 = vunpack.c.l.b16 %v3762
    %v5043 = vunpack.c.h.b16 %v3762
    %v5044 = vunpack.c.l.b16 %v3763
    %v5045 = vunpack.c.h.b16 %v3763
    %v5046 = vunpack.c.l.b16 %v3764
    %v5047 = vunpack.c.h.b16 %v3764
    %v5048 = vunpack.c.l.b16 %v3765
    %v5049 = vunpack.c.h.b16 %v3765
    %v5050 = vunpack.c.l.b16 %v3766
    %v5051 = vunpack.c.h.b16 %v3766
    %v5052 = vunpack.c.l.b16 %v3767
    %v5053 = vunpack.c.h.b16 %v3767
    %v5054 = vunpack.c.l.b16 %v3768
    %v5055 = vunpack.c.h.b16 %v3768
    %v5056 = vunpack.c.l.b16 %v3769
    %v5057 = vunpack.c.h.b16 %v3769
    %v5058 = vunpack.c.l.b16 %v3770
    %v5059 = vunpack.c.h.b16 %v3770
    %v5060 = vunpack.c.l.b16 %v3771
    %v5061 = vunpack.c.h.b16 %v3771
    %v5062 = vunpack.c.l.b16 %v3772
    %v5063 = vunpack.c.h.b16 %v3772
    %v5064 = vunpack.c.l.b16 %v3773
    %v5065 = vunpack.c.h.b16 %v3773
    %v5066 = vunpack.c.l.b16 %v3774
    %v5067 = vunpack.c.h.b16 %v3774
    %v5068 = vunpack.c.l.b16 %v3775
    %v5069 = vunpack.c.h.b16 %v3775
    %v5070 = vunpack.c.l.b16 %v3776
    %v5071 = vunpack.c.h.b16 %v3776
    %v5072 = vunpack.c.l.b16 %v3777
    %v5073 = vunpack.c.h.b16 %v3777
    %v5074 = vunpack.c.l.b16 %v3778
    %v5075 = vunpack.c.h.b16 %v3778
    %v5076 = vunpack.c.l.b16 %v3779
    %v5077 = vunpack.c.h.b16 %v3779
    %v5078 = vunpack.c.l.b16 %v3780
    %v5079 = vunpack.c.h.b16 %v3780
    %v5080 = vunpack.c.l.b16 %v3781
    %v5081 = vunpack.c.h.b16 %v3781
    %v5082 = vunpack.c.l.b16 %v3782
    %v5083 = vunpack.c.h.b16 %v3782
    %v5084 = vunpack.c.l.b16 %v3783
    %v5085 = vunpack.c.h.b16 %v3783
    %v5086 = vunpack.c.l.b16 %v3784
    %v5087 = vunpack.c.h.b16 %v3784
    %v5088 = vunpack.c.l.b16 %v3785
    %v5089 = vunpack.c.h.b16 %v3785
    %v5090 = vunpack.c.l.b16 %v3786
    %v5091 = vunpack.c.h.b16 %v3786
    %v5092 = vunpack.c.l.b16 %v3787
    %v5093 = vunpack.c.h.b16 %v3787
    %v5094 = vunpack.c.l.b16 %v3788
    %v5095 = vunpack.c.h.b16 %v3788
    %v5096 = vunpack.c.l.b16 %v3789
    %v5097 = vunpack.c.h.b16 %v3789
    %v5098 = vunpack.c.l.b16 %v3790
    %v5099 = vunpack.c.h.b16 %v3790
    %v5100 = vunpack.c.l.b16 %v3791
    %v5101 = vunpack.c.h.b16 %v3791
    %v5102 = vunpack.c.l.b16 %v3792
    %v5103 = vunpack.c.h.b16 %v3792
    %v5104 = vunpack.c.l.b16 %v3793
    %v5105 = vunpack.c.h.b16 %v3793
    %v5106 = vunpack.c.l.b16 %v3794
    %v5107 = vunpack.c.h.b16 %v3794
    %v5108 = vunpack.c.l.b16 %v3795
    %v5109 = vunpack.c.h.b16 %v3795
    %v5110 = vunpack.c.l.b16 %v3796
    %v5111 = vunpack.c.h.b16 %v3796
    %v5112 = vunpack.c.l.b16 %v3797
    %v5113 = vunpack.c.h.b16 %v3797
    %v5114 = vunpack.c.l.b16 %v3798
    %v5115 = vunpack.c.h.b16 %v3798
    %v5116 = vunpack.c.l.b16 %v3799
    %v5117 = vunpack.c.h.b16 %v3799
    %v5118 = vunpack.c.l.b16 %v3800
    %v5119 = vunpack.c.h.b16 %v3800
    %v5120 = vunpack.c.l.b16 %v3801
    %v5121 = vunpack.c.h.b16 %v3801
    %v5122 = vunpack.c.l.b16 %v3802
    %v5123 = vunpack.c.h.b16 %v3802
    %v5124 = vunpack.c.l.b16 %v3803
    %v5125 = vunpack.c.h.b16 %v3803
    %v5126 = vunpack.c.l.b16 %v3804
    %v5127 = vunpack.c.h.b16 %v3804
    %v5128 = vunpack.c.l.b16 %v3805
    %v5129 = vunpack.c.h.b16 %v3805
    %v5130 = vunpack.c.l.b16 %v3806
    %v5131 = vunpack.c.h.b16 %v3806
    %v5132 = vunpack.c.l.b16 %v3807
    %v5133 = vunpack.c.h.b16 %v3807
    %v5134 = vunpack.c.l.b16 %v3808
    %v5135 = vunpack.c.h.b16 %v3808
    %v5136 = vunpack.c.l.b16 %v3809
    %v5137 = vunpack.c.h.b16 %v3809
    %v5138 = vunpack.c.l.b16 %v3810
    %v5139 = vunpack.c.h.b16 %v3810
    %v5140 = vunpack.c.l.b16 %v3811
    %v5141 = vunpack.c.h.b16 %v3811
    %v5142 = vunpack.c.l.b16 %v3812
    %v5143 = vunpack.c.h.b16 %v3812
    %v5144 = vunpack.c.l.b16 %v3813
    %v5145 = vunpack.c.h.b16 %v3813
    %v5146 = vunpack.c.l.b16 %v3814
    %v5147 = vunpack.c.h.b16 %v3814
    %v5148 = vunpack.c.l.b16 %v3815
    %v5149 = vunpack.c.h.b16 %v3815
    %v5150 = vunpack.c.l.b16 %v3816
    %v5151 = vunpack.c.h.b16 %v3816
    %v5152 = vunpack.c.l.b16 %v3817
    %v5153 = vunpack.c.h.b16 %v3817
    %v5154 = vunpack.c.l.b16 %v3818
    %v5155 = vunpack.c.h.b16 %v3818
    %v5156 = vunpack.c.l.b16 %v3819
    %v5157 = vunpack.c.h.b16 %v3819
    %v5158 = vunpack.c.l.b16 %v3820
    %v5159 = vunpack.c.h.b16 %v3820
    %v5160 = vunpack.c.l.b16 %v3821
    %v5161 = vunpack.c.h.b16 %v3821
    %v5162 = vunpack.c.l.b16 %v3822
    %v5163 = vunpack.c.h.b16 %v3822
    %v5164 = vunpack.c.l.b16 %v3823
    %v5165 = vunpack.c.h.b16 %v3823
    %v5166 = vunpack.c.l.b16 %v3824
    %v5167 = vunpack.c.h.b16 %v3824
    %v5168 = vunpack.c.l.b16 %v3825
    %v5169 = vunpack.c.h.b16 %v3825
    %v5170 = vunpack.c.l.b16 %v3826
    %v5171 = vunpack.c.h.b16 %v3826
    %v5172 = vunpack.c.l.b16 %v3827
    %v5173 = vunpack.c.h.b16 %v3827
    %v5174 = vunpack.c.l.b16 %v3828
    %v5175 = vunpack.c.h.b16 %v3828
    %v5176 = vunpack.c.l.b16 %v3829
    %v5177 = vunpack.c.h.b16 %v3829
    %v5178 = vunpack.c.l.b16 %v3830
    %v5179 = vunpack.c.h.b16 %v3830
    %v5180 = vunpack.c.l.b16 %v3831
    %v5181 = vunpack.c.h.b16 %v3831
    %v5182 = vunpack.c.l.b16 %v3832
    %v5183 = vunpack.c.h.b16 %v3832
    %v5184 = vunpack.c.l.b16 %v3833
    %v5185 = vunpack.c.h.b16 %v3833
    %v5186 = vunpack.c.l.b16 %v3834
    %v5187 = vunpack.c.h.b16 %v3834
    %v5188 = vunpack.c.l.b16 %v3835
    %v5189 = vunpack.c.h.b16 %v3835
    %v5190 = vunpack.c.l.b16 %v3836
    %v5191 = vunpack.c.h.b16 %v3836
    %v5192 = vunpack.c.l.b16 %v3837
    %v5193 = vunpack.c.h.b16 %v3837
    %v5194 = vunpack.c.l.b16 %v3838
    %v5195 = vunpack.c.h.b16 %v3838
    %v5196 = vunpack.c.l.b16 %v3839
    %v5197 = vunpack.c.h.b16 %v3839
    %v5198 = vunpack.c.l.b16 %v3840
    %v5199 = vunpack.c.h.b16 %v3840
    %v5200 = vunpack.c.l.b16 %v3841
    %v5201 = vunpack.c.h.b16 %v3841
    %v5202 = vunpack.c.l.b16 %v3842
    %v5203 = vunpack.c.h.b16 %v3842
    %v5204 = vunpack.c.l.b16 %v3843
    %v5205 = vunpack.c.h.b16 %v3843
    %v5206 = vunpack.c.l.b16 %v3844
    %v5207 = vunpack.c.h.b16 %v3844
    %v5208 = vunpack.c.l.b16 %v3845
    %v5209 = vunpack.c.h.b16 %v3845
    %v5210 = vunpack.c.l.b16 %v3846
    %v5211 = vunpack.c.h.b16 %v3846
    %v5212 = vunpack.c.l.b16 %v3847
    %v5213 = vunpack.c.h.b16 %v3847
    %v5214 = vunpack.c.l.b16 %v3848
    %v5215 = vunpack.c.h.b16 %v3848
    %v5216 = vunpack.c.l.b16 %v3849
    %v5217 = vunpack.c.h.b16 %v3849
    %v5218 = vunpack.c.l.b16 %v3850
    %v5219 = vunpack.c.h.b16 %v3850
    %v5220 = vunpack.c.l.b16 %v3851
    %v5221 = vunpack.c.h.b16 %v3851
    %v5222 = vunpack.c.l.b16 %v3852
    %v5223 = vunpack.c.h.b16 %v3852
    %v5224 = vunpack.c.l.b16 %v3853
    %v5225 = vunpack.c.h.b16 %v3853
    %v5226 = vunpack.c.l.b16 %v3854
    %v5227 = vunpack.c.h.b16 %v3854
    %v5228 = vunpack.c.l.b16 %v3855
    %v5229 = vunpack.c.h.b16 %v3855
    %v5230 = vunpack.c.l.b16 %v3856
    %v5231 = vunpack.c.h.b16 %v3856
    %v5232 = vunpack.c.l.b16 %v3857
    %v5233 = vunpack.c.h.b16 %v3857
    %v5234 = vunpack.c.l.b16 %v3858
    %v5235 = vunpack.c.h.b16 %v3858
    %v5236 = vunpack.c.l.b16 %v3859
    %v5237 = vunpack.c.h.b16 %v3859
    %v5238 = vunpack.c.l.b16 %v3860
    %v5239 = vunpack.c.h.b16 %v3860
    %v5240 = vunpack.c.l.b16 %v3861
    %v5241 = vunpack.c.h.b16 %v3861
    %v5242 = vunpack.c.l.b16 %v3862
    %v5243 = vunpack.c.h.b16 %v3862
    %v5244 = vunpack.c.l.b16 %v3863
    %v5245 = vunpack.c.h.b16 %v3863
    %v5246 = vunpack.c.l.b16 %v3864
    %v5247 = vunpack.c.h.b16 %v3864
    %v5248 = vunpack.c.l.b16 %v3865
    %v5249 = vunpack.c.h.b16 %v3865
    %v5250 = vunpack.c.l.b16 %v3866
    %v5251 = vunpack.c.h.b16 %v3866
    %v5252 = vunpack.c.l.b16 %v3867
    %v5253 = vunpack.c.h.b16 %v3867
    %v5254 = vunpack.c.l.b16 %v3868
    %v5255 = vunpack.c.h.b16 %v3868
    %v5256 = vunpack.c.l.b16 %v3869
    %v5257 = vunpack.c.h.b16 %v3869
    %v5258 = vunpack.c.l.b16 %v3870
    %v5259 = vunpack.c.h.b16 %v3870
    %v5260 = vunpack.c.l.b16 %v3871
    %v5261 = vunpack.c.h.b16 %v3871
    %v5262 = vunpack.c.l.b16 %v3872
    %v5263 = vunpack.c.h.b16 %v3872
    %v5264 = vunpack.c.l.b16 %v3873
    %v5265 = vunpack.c.h.b16 %v3873
    %v5266 = vunpack.c.l.b16 %v3874
    %v5267 = vunpack.c.h.b16 %v3874
    %v5268 = vunpack.c.l.b16 %v3875
    %v5269 = vunpack.c.h.b16 %v3875
    %v5270 = vunpack.c.l.b16 %v3876
    %v5271 = vunpack.c.h.b16 %v3876
    %v5272 = vunpack.c.l.b16 %v3877
    %v5273 = vunpack.c.h.b16 %v3877
    %v5274 = vunpack.c.l.b16 %v3878
    %v5275 = vunpack.c.h.b16 %v3878
    %v5276 = vunpack.c.l.b16 %v3879
    %v5277 = vunpack.c.h.b16 %v3879
    %v5278 = vunpack.c.l.b16 %v3880
    %v5279 = vunpack.c.h.b16 %v3880
    %v5280 = vunpack.c.l.b16 %v3881
    %v5281 = vunpack.c.h.b16 %v3881
    %v5282 = vunpack.c.l.b16 %v3882
    %v5283 = vunpack.c.h.b16 %v3882
    %v5284 = vunpack.c.l.b16 %v3883
    %v5285 = vunpack.c.h.b16 %v3883
    %v5286 = vunpack.c.l.b16 %v3884
    %v5287 = vunpack.c.h.b16 %v3884
    %v5288 = vunpack.c.l.b16 %v3885
    %v5289 = vunpack.c.h.b16 %v3885
    %v5290 = vunpack.c.l.b16 %v3886
    %v5291 = vunpack.c.h.b16 %v3886
    %v5292 = vunpack.c.l.b16 %v3887
    %v5293 = vunpack.c.h.b16 %v3887
    %v5294 = vunpack.c.l.b16 %v3888
    %v5295 = vunpack.c.h.b16 %v3888
    %v5296 = vunpack.c.l.b16 %v3889
    %v5297 = vunpack.c.h.b16 %v3889
    %v5298 = vunpack.c.l.b16 %v3890
    %v5299 = vunpack.c.h.b16 %v3890
    %v5300 = vunpack.c.l.b16 %v3891
    %v5301 = vunpack.c.h.b16 %v3891
    %v5302 = vunpack.c.l.b16 %v3892
    %v5303 = vunpack.c.h.b16 %v3892
    %v5304 = vunpack.c.l.b16 %v3893
    %v5305 = vunpack.c.h.b16 %v3893
    %v5306 = vunpack.c.l.b16 %v3894
    %v5307 = vunpack.c.h.b16 %v3894
    %v5308 = vunpack.c.l.b16 %v3895
    %v5309 = vunpack.c.h.b16 %v3895
    %v5310 = vunpack.c.l.b16 %v3896
    %v5311 = vunpack.c.h.b16 %v3896
    %v5312 = vunpack.c.l.b16 %v3897
    %v5313 = vunpack.c.h.b16 %v3897
    %v5314 = vunpack.c.l.b16 %v3898
    %v5315 = vunpack.c.h.b16 %v3898
    %v5316 = vunpack.c.l.b16 %v3899
    %v5317 = vunpack.c.h.b16 %v3899
    %v5318 = vunpack.c.l.b16 %v3900
    %v5319 = vunpack.c.h.b16 %v3900
    %v5320 = vunpack.c.l.b16 %v3901
    %v5321 = vunpack.c.h.b16 %v3901
    %v5322 = vunpack.c.l.b16 %v3902
    %v5323 = vunpack.c.h.b16 %v3902
    %v5324 = vunpack.c.l.b16 %v3903
    %v5325 = vunpack.c.h.b16 %v3903
    %v5326 = vunpack.c.l.b16 %v3904
    %v5327 = vunpack.c.h.b16 %v3904
    %v5328 = vunpack.c.l.b16 %v3905
    %v5329 = vunpack.c.h.b16 %v3905
    %v5330 = vunpack.c.l.b16 %v3906
    %v5331 = vunpack.c.h.b16 %v3906
    %v5332 = vunpack.c.l.b16 %v3907
    %v5333 = vunpack.c.h.b16 %v3907
    %v5334 = vunpack.c.l.b16 %v3908
    %v5335 = vunpack.c.h.b16 %v3908
    %v5336 = vunpack.c.l.b16 %v3909
    %v5337 = vunpack.c.h.b16 %v3909
    %v5338 = vunpack.c.l.b16 %v3910
    %v5339 = vunpack.c.h.b16 %v3910
    %v5340 = vunpack.c.l.b16 %v3911
    %v5341 = vunpack.c.h.b16 %v3911
    %v5342 = vunpack.c.l.b16 %v3912
    %v5343 = vunpack.c.h.b16 %v3912
    %v5344 = vunpack.c.l.b16 %v3913
    %v5345 = vunpack.c.h.b16 %v3913
    %v5346 = vunpack.c.l.b16 %v3914
    %v5347 = vunpack.c.h.b16 %v3914
    %v5348 = vunpack.c.l.b16 %v3915
    %v5349 = vunpack.c.h.b16 %v3915
    %v5350 = vunpack.c.l.b16 %v3916
    %v5351 = vunpack.c.h.b16 %v3916
    %v5352 = vunpack.c.l.b16 %v3917
    %v5353 = vunpack.c.h.b16 %v3917
    %v5354 = vunpack.c.l.b16 %v3918
    %v5355 = vunpack.c.h.b16 %v3918
    %v5356 = vunpack.c.l.b16 %v3919
    %v5357 = vunpack.c.h.b16 %v3919
    %v5358 = vunpack.c.l.b16 %v3920
    %v5359 = vunpack.c.h.b16 %v3920
    %v5360 = vunpack.c.l.b16 %v3921
    %v5361 = vunpack.c.h.b16 %v3921
    %v5362 = vunpack.c.l.b16 %v3922
    %v5363 = vunpack.c.h.b16 %v3922
    %v5364 = vunpack.c.l.b16 %v3923
    %v5365 = vunpack.c.h.b16 %v3923
    %v5366 = vunpack.c.l.b16 %v3924
    %v5367 = vunpack.c.h.b16 %v3924
    %v5368 = vunpack.c.l.b16 %v3925
    %v5369 = vunpack.c.h.b16 %v3925
    %v5370 = vunpack.c.l.b16 %v3926
    %v5371 = vunpack.c.h.b16 %v3926
    %v5372 = vunpack.c.l.b16 %v3927
    %v5373 = vunpack.c.h.b16 %v3927
    %v5374 = vunpack.c.l.b16 %v3928
    %v5375 = vunpack.c.h.b16 %v3928
    %v5376 = vunpack.c.l.b16 %v3929
    %v5377 = vunpack.c.h.b16 %v3929
    %v5378 = vunpack.c.l.b16 %v3930
    %v5379 = vunpack.c.h.b16 %v3930
    %v5380 = vunpack.c.l.b16 %v3931
    %v5381 = vunpack.c.h.b16 %v3931
    %v5382 = vunpack.c.l.b16 %v3932
    %v5383 = vunpack.c.h.b16 %v3932
    %v5384 = vunpack.c.l.b16 %v3933
    %v5385 = vunpack.c.h.b16 %v3933
    %v5386 = vunpack.c.l.b16 %v3934
    %v5387 = vunpack.c.h.b16 %v3934
    %v5388 = vunpack.c.l.b16 %v3935
    %v5389 = vunpack.c.h.b16 %v3935
    %v5390 = vunpack.c.l.b16 %v3936
    %v5391 = vunpack.c.h.b16 %v3936
    %v5392 = vunpack.c.l.b16 %v3937
    %v5393 = vunpack.c.h.b16 %v3937
    %v5394 = vunpack.c.l.b16 %v3938
    %v5395 = vunpack.c.h.b16 %v3938
    %v5396 = vunpack.c.l.b16 %v3939
    %v5397 = vunpack.c.h.b16 %v3939
    %v5398 = vunpack.c.l.b16 %v3940
    %v5399 = vunpack.c.h.b16 %v3940
    %v5400 = vunpack.c.l.b16 %v3941
    %v5401 = vunpack.c.h.b16 %v3941
    %v5402 = vunpack.c.l.b16 %v3942
    %v5403 = vunpack.c.h.b16 %v3942
    %v5404 = vunpack.c.l.b16 %v3943
    %v5405 = vunpack.c.h.b16 %v3943
    %v5406 = vunpack.c.l.b16 %v3944
    %v5407 = vunpack.c.h.b16 %v3944
    %v5408 = vunpack.c.l.b16 %v3945
    %v5409 = vunpack.c.h.b16 %v3945
    %v5410 = vunpack.c.l.b16 %v3946
    %v5411 = vunpack.c.h.b16 %v3946
    %v5412 = vunpack.c.l.b16 %v3947
    %v5413 = vunpack.c.h.b16 %v3947
    %v5414 = vunpack.c.l.b16 %v3948
    %v5415 = vunpack.c.h.b16 %v3948
    %v5416 = vunpack.c.l.b16 %v3949
    %v5417 = vunpack.c.h.b16 %v3949
    %v5418 = vunpack.c.l.b16 %v3950
    %v5419 = vunpack.c.h.b16 %v3950
    %v5420 = vunpack.c.l.b16 %v3951
    %v5421 = vunpack.c.h.b16 %v3951
    %v5422 = vunpack.c.l.b16 %v3952
    %v5423 = vunpack.c.h.b16 %v3952
    %v5424 = vunpack.c.l.b16 %v3953
    %v5425 = vunpack.c.h.b16 %v3953
    %v5426 = vunpack.c.l.b16 %v3954
    %v5427 = vunpack.c.h.b16 %v3954
    %v5428 = vunpack.c.l.b16 %v3955
    %v5429 = vunpack.c.h.b16 %v3955
    %v5430 = vunpack.c.l.b16 %v3956
    %v5431 = vunpack.c.h.b16 %v3956
    %v5432 = vunpack.c.l.b16 %v3957
    %v5433 = vunpack.c.h.b16 %v3957
    %v5434 = vunpack.c.l.b16 %v3958
    %v5435 = vunpack.c.h.b16 %v3958
    %v5436 = vunpack.c.l.b16 %v3959
    %v5437 = vunpack.c.h.b16 %v3959
    %v5438 = vunpack.c.l.b16 %v3960
    %v5439 = vunpack.c.h.b16 %v3960
    %v5440 = vunpack.c.l.b16 %v3961
    %v5441 = vunpack.c.h.b16 %v3961
    %v5442 = vunpack.c.l.b16 %v3962
    %v5443 = vunpack.c.h.b16 %v3962
    %v5444 = vunpack.c.l.b16 %v3963
    %v5445 = vunpack.c.h.b16 %v3963
    %v5446 = vunpack.c.l.b16 %v3964
    %v5447 = vunpack.c.h.b16 %v3964
    %v5448 = vunpack.c.l.b16 %v3965
    %v5449 = vunpack.c.h.b16 %v3965
    %v5450 = vunpack.c.l.b16 %v3966
    %v5451 = vunpack.c.h.b16 %v3966
    %v5452 = vunpack.c.l.b16 %v3967
    %v5453 = vunpack.c.h.b16 %v3967
    %v5454 = vunpack.c.l.b16 %v3968
    %v5455 = vunpack.c.h.b16 %v3968
    %v5456 = vunpack.c.l.b16 %v3969
    %v5457 = vunpack.c.h.b16 %v3969
    %v5458 = vunpack.c.l.b16 %v3970
    %v5459 = vunpack.c.h.b16 %v3970
    %v5460 = vunpack.c.l.b16 %v3971
    %v5461 = vunpack.c.h.b16 %v3971
    %v5462 = vunpack.c.l.b16 %v3972
    %v5463 = vunpack.c.h.b16 %v3972
    %v5464 = vunpack.c.l.b16 %v3973
    %v5465 = vunpack.c.h.b16 %v3973
    %v5466 = vunpack.c.l.b16 %v3974
    %v5467 = vunpack.c.h.b16 %v3974
    %v5468 = vunpack.c.l.b16 %v3975
    %v5469 = vunpack.c.h.b16 %v3975
    %v5470 = vunpack.c.l.b16 %v3976
    %v5471 = vunpack.c.h.b16 %v3976
    %v5472 = vunpack.c.l.b16 %v3977
    %v5473 = vunpack.c.h.b16 %v3977
    %v5474 = vunpack.c.l.b16 %v3978
    %v5475 = vunpack.c.h.b16 %v3978
    %v5476 = vunpack.c.l.b16 %v3979
    %v5477 = vunpack.c.h.b16 %v3979
    %v5478 = vunpack.c.l.b16 %v3980
    %v5479 = vunpack.c.h.b16 %v3980
    %v5480 = vunpack.c.l.b16 %v3981
    %v5481 = vunpack.c.h.b16 %v3981
    %v5482 = vunpack.c.l.b16 %v3982
    %v5483 = vunpack.c.h.b16 %v3982
    %v5484 = vunpack.c.l.b16 %v3983
    %v5485 = vunpack.c.h.b16 %v3983
    %v5486 = vunpack.c.l.b16 %v3984
    %v5487 = vunpack.c.h.b16 %v3984
    %v5488 = vunpack.c.l.b16 %v3985
    %v5489 = vunpack.c.h.b16 %v3985
    %v5490 = vunpack.c.l.b16 %v3986
    %v5491 = vunpack.c.h.b16 %v3986
    %v5492 = vunpack.c.l.b16 %v3987
    %v5493 = vunpack.c.h.b16 %v3987
    %v5494 = vunpack.c.l.b16 %v3988
    %v5495 = vunpack.c.h.b16 %v3988
    %v5496 = vunpack.c.l.b16 %v3989
    %v5497 = vunpack.c.h.b16 %v3989
    %v5498 = vunpack.c.l.b16 %v3990
    %v5499 = vunpack.c.h.b16 %v3990
    %v5500 = vunpack.c.l.b16 %v3991
    %v5501 = vunpack.c.h.b16 %v3991
    %v5502 = vunpack.c.l.b16 %v3992
    %v5503 = vunpack.c.h.b16 %v3992
    %v5504 = vunpack.c.l.b16 %v3993
    %v5505 = vunpack.c.h.b16 %v3993
    %v5506 = vunpack.c.l.b16 %v3994
    %v5507 = vunpack.c.h.b16 %v3994
    %v5508 = vunpack.c.l.b16 %v3995
    %v5509 = vunpack.c.h.b16 %v3995
    %v5510 = vunpack.c.l.b16 %v3996
    %v5511 = vunpack.c.h.b16 %v3996
    %v5512 = vunpack.c.l.b16 %v3997
    %v5513 = vunpack.c.h.b16 %v3997
    %v5514 = vunpack.c.l.b16 %v3998
    %v5515 = vunpack.c.h.b16 %v3998
    %v5516 = vunpack.c.l.b16 %v3999
    %v5517 = vunpack.c.h.b16 %v3999
    %v5518 = vunpack.c.l.b16 %v4000
    %v5519 = vunpack.c.h.b16 %v4000
    %v5520 = vunpack.c.l.b16 %v4001
    %v5521 = vunpack.c.h.b16 %v4001
    %v5522 = vunpack.c.l.b16 %v4002
    %v5523 = vunpack.c.h.b16 %v4002
    %v5524 = vunpack.c.l.b16 %v4003
    %v5525 = vunpack.c.h.b16 %v4003
    %v5526 = vunpack.c.l.b16 %v4004
    %v5527 = vunpack.c.h.b16 %v4004
    %v5528 = vunpack.c.l.b16 %v4005
    %v5529 = vunpack.c.h.b16 %v4005
    %v5530 = vunpack.c.l.b16 %v4006
    %v5531 = vunpack.c.h.b16 %v4006
    %v5532 = vunpack.c.l.b16 %v4007
    %v5533 = vunpack.c.h.b16 %v4007
    %v5534 = vunpack.c.l.b16 %v4008
    %v5535 = vunpack.c.h.b16 %v4008
    %v5536 = vunpack.c.l.b16 %v4009
    %v5537 = vunpack.c.h.b16 %v4009
    %v5538 = vunpack.c.l.b16 %v4010
    %v5539 = vunpack.c.h.b16 %v4010
    %v5540 = vunpack.c.l.b16 %v4011
    %v5541 = vunpack.c.h.b16 %v4011
    %v5542 = vunpack.c.l.b16 %v4012
    %v5543 = vunpack.c.h.b16 %v4012
    %v5544 = vunpack.c.l.b16 %v4013
    %v5545 = vunpack.c.h.b16 %v4013
    %v5546 = vunpack.c.l.b16 %v4014
    %v5547 = vunpack.c.h.b16 %v4014
    %v5548 = vunpack.c.l.b16 %v4015
    %v5549 = vunpack.c.h.b16 %v4015
    %v5550 = vunpack.c.l.b16 %v4016
    %v5551 = vunpack.c.h.b16 %v4016
    %v5552 = vunpack.c.l.b16 %v4017
    %v5553 = vunpack.c.h.b16 %v4017
    %v5554 = vunpack.c.l.b16 %v4018
    %v5555 = vunpack.c.h.b16 %v4018
    %v5556 = vunpack.c.l.b16 %v4019
    %v5557 = vunpack.c.h.b16 %v4019
    %v5558 = vunpack.c.l.b16 %v4020
    %v5559 = vunpack.c.h.b16 %v4020
    %v5560 = vunpack.c.l.b16 %v4021
    %v5561 = vunpack.c.h.b16 %v4021
    %v5562 = vunpack.c.l.b16 %v4022
    %v5563 = vunpack.c.h.b16 %v4022
    %v5564 = vunpack.c.l.b16 %v4023
    %v5565 = vunpack.c.h.b16 %v4023
    %v5566 = vunpack.c.l.b16 %v4024
    %v5567 = vunpack.c.h.b16 %v4024
    %v5568 = vunpack.c.l.b16 %v4025
    %v5569 = vunpack.c.h.b16 %v4025
    %v5570 = vunpack.c.l.b16 %v4026
    %v5571 = vunpack.c.h.b16 %v4026
    %v5572 = vunpack.c.l.b16 %v4027
    %v5573 = vunpack.c.h.b16 %v4027
    %v5574 = vunpack.c.l.b16 %v4028
    %v5575 = vunpack.c.h.b16 %v4028
    %v5576 = vunpack.c.l.b16 %v4029
    %v5577 = vunpack.c.h.b16 %v4029
    %v5578 = vunpack.c.l.b16 %v4030
    %v5579 = vunpack.c.h.b16 %v4030
    %v5580 = vunpack.c.l.b16 %v4031
    %v5581 = vunpack.c.h.b16 %v4031
    %v5582 = vunpack.c.l.b16 %v4032
    %v5583 = vunpack.c.h.b16 %v4032
    %v5584 = vunpack.c.l.b16 %v4033
    %v5585 = vunpack.c.h.b16 %v4033
    %v5586 = vunpack.c.l.b16 %v4034
    %v5587 = vunpack.c.h.b16 %v4034
    %v5588 = vunpack.c.l.b16 %v4035
    %v5589 = vunpack.c.h.b16 %v4035
    %v5590 = vpack.c.b16 %v4574, %v4566
    %v5591 = vpack.c.b16 %v4575, %v4567
    %v5592 = vpack.c.b16 %v4576, %v4568
    %v5593 = vpack.c.b16 %v4577, %v4569
    %v5594 = vpack.c.b16 %v4578, %v4570
    %v5595 = vpack.c.b16 %v4579, %v4571
    %v5596 = vpack.c.b16 %v4580, %v4572
    %v5597 = vpack.c.b16 %v4581, %v4573
    %v5598 = vpack.c.b16 %v4590, %v4582
    %v5599 = vpack.c.b16 %v4591, %v4583
    %v5600 = vpack.c.b16 %v4592, %v4584
    %v5601 = vpack.c.b16 %v4593, %v4585
    %v5602 = vpack.c.b16 %v4594, %v4586
    %v5603 = vpack.c.b16 %v4595, %v4587
    %v5604 = vpack.c.b16 %v4596, %v4588
    %v5605 = vpack.c.b16 %v4597, %v4589
    %v5606 = vpack.c.b16 %v4606, %v4598
    %v5607 = vpack.c.b16 %v4607, %v4599
    %v5608 = vpack.c.b16 %v4608, %v4600
    %v5609 = vpack.c.b16 %v4609, %v4601
    %v5610 = vpack.c.b16 %v4610, %v4602
    %v5611 = vpack.c.b16 %v4611, %v4603
    %v5612 = vpack.c.b16 %v4612, %v4604
    %v5613 = vpack.c.b16 %v4613, %v4605
    %v5614 = vpack.c.b16 %v4622, %v4614
    %v5615 = vpack.c.b16 %v4623, %v4615
    %v5616 = vpack.c.b16 %v4624, %v4616
    %v5617 = vpack.c.b16 %v4625, %v4617
    %v5618 = vpack.c.b16 %v4626, %v4618
    %v5619 = vpack.c.b16 %v4627, %v4619
    %v5620 = vpack.c.b16 %v4628, %v4620
    %v5621 = vpack.c.b16 %v4629, %v4621
    %v5622 = vpack.c.b16 %v4638, %v4630
    %v5623 = vpack.c.b16 %v4639, %v4631
    %v5624 = vpack.c.b16 %v4640, %v4632
    %v5625 = vpack.c.b16 %v4641, %v4633
    %v5626 = vpack.c.b16 %v4642, %v4634
    %v5627 = vpack.c.b16 %v4643, %v4635
    %v5628 = vpack.c.b16 %v4644, %v4636
    %v5629 = vpack.c.b16 %v4645, %v4637
    %v5630 = vpack.c.b16 %v4654, %v4646
    %v5631 = vpack.c.b16 %v4655, %v4647
    %v5632 = vpack.c.b16 %v4656, %v4648
    %v5633 = vpack.c.b16 %v4657, %v4649
    %v5634 = vpack.c.b16 %v4658, %v4650
    %v5635 = vpack.c.b16 %v4659, %v4651
    %v5636 = vpack.c.b16 %v4660, %v4652
    %v5637 = vpack.c.b16 %v4661, %v4653
    %v5638 = vpack.c.b16 %v4670, %v4662
    %v5639 = vpack.c.b16 %v4671, %v4663
    %v5640 = vpack.c.b16 %v4672, %v4664
    %v5641 = vpack.c.b16 %v4673, %v4665
    %v5642 = vpack.c.b16 %v4674, %v4666
    %v5643 = vpack.c.b16 %v4675, %v4667
    %v5644 = vpack.c.b16 %v4676, %v4668
    %v5645 = vpack.c.b16 %v4677, %v4669
    %v5646 = vpack.c.b16 %v4686, %v4678
    %v5647 = vpack.c.b16 %v4687, %v4679
    %v5648 = vpack.c.b16 %v4688, %v4680
    %v5649 = vpack.c.b16 %v4689, %v4681
    %v5650 = vpack.c.b16 %v4690, %v4682
    %v5651 = vpack.c.b16 %v4691, %v4683
    %v5652 = vpack.c.b16 %v4692, %v4684
    %v5653 = vpack.c.b16 %v4693, %v4685
    %v5654 = vpack.c.b16 %v4702, %v4694
    %v5655 = vpack.c.b16 %v4703, %v4695
    %v5656 = vpack.c.b16 %v4704, %v4696
    %v5657 = vpack.c.b16 %v4705, %v4697
    %v5658 = vpack.c.b16 %v4706, %v4698
    %v5659 = vpack.c.b16 %v4707, %v4699
    %v5660 = vpack.c.b16 %v4708, %v4700
    %v5661 = vpack.c.b16 %v4709, %v4701
    %v5662 = vpack.c.b16 %v4718, %v4710
    %v5663 = vpack.c.b16 %v4719, %v4711
    %v5664 = vpack.c.b16 %v4720, %v4712
    %v5665 = vpack.c.b16 %v4721, %v4713
    %v5666 = vpack.c.b16 %v4722, %v4714
    %v5667 = vpack.c.b16 %v4723, %v4715
    %v5668 = vpack.c.b16 %v4724, %v4716
    %v5669 = vpack.c.b16 %v4725, %v4717
    %v5670 = vpack.c.b16 %v4734, %v4726
    %v5671 = vpack.c.b16 %v4735, %v4727
    %v5672 = vpack.c.b16 %v4736, %v4728
    %v5673 = vpack.c.b16 %v4737, %v4729
    %v5674 = vpack.c.b16 %v4738, %v4730
    %v5675 = vpack.c.b16 %v4739, %v4731
    %v5676 = vpack.c.b16 %v4740, %v4732
    %v5677 = vpack.c.b16 %v4741, %v4733
    %v5678 = vpack.c.b16 %v4750, %v4742
    %v5679 = vpack.c.b16 %v4751, %v4743
    %v5680 = vpack.c.b16 %v4752, %v4744
    %v5681 = vpack.c.b16 %v4753, %v4745
    %v5682 = vpack.c.b16 %v4754, %v4746
    %v5683 = vpack.c.b16 %v4755, %v4747
    %v5684 = vpack.c.b16 %v4756, %v4748
    %v5685 = vpack.c.b16 %v4757, %v4749
    %v5686 = vpack.c.b16 %v4766, %v4758
    %v5687 = vpack.c.b16 %v4767, %v4759
    %v5688 = vpack.c.b16 %v4768, %v4760
    %v5689 = vpack.c.b16 %v4769, %v4761
    %v5690 = vpack.c.b16 %v4770, %v4762
    %v5691 = vpack.c.b16 %v4771, %v4763
    %v5692 = vpack.c.b16 %v4772, %v4764
    %v5693 = vpack.c.b16 %v4773, %v4765
    %v5694 = vpack.c.b16 %v4782, %v4774
    %v5695 = vpack.c.b16 %v4783, %v4775
    %v5696 = vpack.c.b16 %v4784, %v4776
    %v5697 = vpack.c.b16 %v4785, %v4777
    %v5698 = vpack.c.b16 %v4786, %v4778
    %v5699 = vpack.c.b16 %v4787, %v4779
    %v5700 = vpack.c.b16 %v4788, %v4780
    %v5701 = vpack.c.b16 %v4789, %v4781
    %v5702 = vpack.c.b16 %v4798, %v4790
    %v5703 = vpack.c.b16 %v4799, %v4791
    %v5704 = vpack.c.b16 %v4800, %v4792
    %v5705 = vpack.c.b16 %v4801, %v4793
    %v5706 = vpack.c.b16 %v4802, %v4794
    %v5707 = vpack.c.b16 %v4803, %v4795
    %v5708 = vpack.c.b16 %v4804, %v4796
    %v5709 = vpack.c.b16 %v4805, %v4797
    %v5710 = vpack.c.b16 %v4814, %v4806
    %v5711 = vpack.c.b16 %v4815, %v4807
    %v5712 = vpack.c.b16 %v4816, %v4808
    %v5713 = vpack.c.b16 %v4817, %v4809
    %v5714 = vpack.c.b16 %v4818, %v4810
    %v5715 = vpack.c.b16 %v4819, %v4811
    %v5716 = vpack.c.b16 %v4820, %v4812
    %v5717 = vpack.c.b16 %v4821, %v4813
    %v5718 = vpack.c.b16 %v4830, %v4822
    %v5719 = vpack.c.b16 %v4831, %v4823
    %v5720 = vpack.c.b16 %v4832, %v4824
    %v5721 = vpack.c.b16 %v4833, %v4825
    %v5722 = vpack.c.b16 %v4834, %v4826
    %v5723 = vpack.c.b16 %v4835, %v4827
    %v5724 = vpack.c.b16 %v4836, %v4828
    %v5725 = vpack.c.b16 %v4837, %v4829
    %v5726 = vpack.c.b16 %v4846, %v4838
    %v5727 = vpack.c.b16 %v4847, %v4839
    %v5728 = vpack.c.b16 %v4848, %v4840
    %v5729 = vpack.c.b16 %v4849, %v4841
    %v5730 = vpack.c.b16 %v4850, %v4842
    %v5731 = vpack.c.b16 %v4851, %v4843
    %v5732 = vpack.c.b16 %v4852, %v4844
    %v5733 = vpack.c.b16 %v4853, %v4845
    %v5734 = vpack.c.b16 %v4862, %v4854
    %v5735 = vpack.c.b16 %v4863, %v4855
    %v5736 = vpack.c.b16 %v4864, %v4856
    %v5737 = vpack.c.b16 %v4865, %v4857
    %v5738 = vpack.c.b16 %v4866, %v4858
    %v5739 = vpack.c.b16 %v4867, %v4859
    %v5740 = vpack.c.b16 %v4868, %v4860
    %v5741 = vpack.c.b16 %v4869, %v4861
    %v5742 = vpack.c.b16 %v4878, %v4870
    %v5743 = vpack.c.b16 %v4879, %v4871
    %v5744 = vpack.c.b16 %v4880, %v4872
    %v5745 = vpack.c.b16 %v4881, %v4873
    %v5746 = vpack.c.b16 %v4882, %v4874
    %v5747 = vpack.c.b16 %v4883, %v4875
    %v5748 = vpack.c.b16 %v4884, %v4876
    %v5749 = vpack.c.b16 %v4885, %v4877
    %v5750 = vpack.c.b16 %v4894, %v4886
    %v5751 = vpack.c.b16 %v4895, %v4887
    %v5752 = vpack.c.b16 %v4896, %v4888
    %v5753 = vpack.c.b16 %v4897, %v4889
    %v5754 = vpack.c.b16 %v4898, %v4890
    %v5755 = vpack.c.b16 %v4899, %v4891
    %v5756 = vpack.c.b16 %v4900, %v4892
    %v5757 = vpack.c.b16 %v4901, %v4893
    %v5758 = vpack.c.b16 %v4910, %v4902
    %v5759 = vpack.c.b16 %v4911, %v4903
    %v5760 = vpack.c.b16 %v4912, %v4904
    %v5761 = vpack.c.b16 %v4913, %v4905
    %v5762 = vpack.c.b16 %v4914, %v4906
    %v5763 = vpack.c.b16 %v4915, %v4907
    %v5764 = vpack.c.b16 %v4916, %v4908
    %v5765 = vpack.c.b16 %v4917, %v4909
    %v5766 = vpack.c.b16 %v4926, %v4918
    %v5767 = vpack.c.b16 %v4927, %v4919
    %v5768 = vpack.c.b16 %v4928, %v4920
    %v5769 = vpack.c.b16 %v4929, %v4921
    %v5770 = vpack.c.b16 %v4930, %v4922
    %v5771 = vpack.c.b16 %v4931, %v4923
    %v5772 = vpack.c.b16 %v4932, %v4924
    %v5773 = vpack.c.b16 %v4933, %v4925
    %v5774 = vpack.c.b16 %v4942, %v4934
    %v5775 = vpack.c.b16 %v4943, %v4935
    %v5776 = vpack.c.b16 %v4944, %v4936
    %v5777 = vpack.c.b16 %v4945, %v4937
    %v5778 = vpack.c.b16 %v4946, %v4938
    %v5779 = vpack.c.b16 %v4947, %v4939
    %v5780 = vpack.c.b16 %v4948, %v4940
    %v5781 = vpack.c.b16 %v4949, %v4941
    %v5782 = vpack.c.b16 %v4958, %v4950
    %v5783 = vpack.c.b16 %v4959, %v4951
    %v5784 = vpack.c.b16 %v4960, %v4952
    %v5785 = vpack.c.b16 %v4961, %v4953
    %v5786 = vpack.c.b16 %v4962, %v4954
    %v5787 = vpack.c.b16 %v4963, %v4955
    %v5788 = vpack.c.b16 %v4964, %v4956
    %v5789 = vpack.c.b16 %v4965, %v4957
    %v5790 = vpack.c.b16 %v4974, %v4966
    %v5791 = vpack.c.b16 %v4975, %v4967
    %v5792 = vpack.c.b16 %v4976, %v4968
    %v5793 = vpack.c.b16 %v4977, %v4969
    %v5794 = vpack.c.b16 %v4978, %v4970
    %v5795 = vpack.c.b16 %v4979, %v4971
    %v5796 = vpack.c.b16 %v4980, %v4972
    %v5797 = vpack.c.b16 %v4981, %v4973
    %v5798 = vpack.c.b16 %v4990, %v4982
    %v5799 = vpack.c.b16 %v4991, %v4983
    %v5800 = vpack.c.b16 %v4992, %v4984
    %v5801 = vpack.c.b16 %v4993, %v4985
    %v5802 = vpack.c.b16 %v4994, %v4986
    %v5803 = vpack.c.b16 %v4995, %v4987
    %v5804 = vpack.c.b16 %v4996, %v4988
    %v5805 = vpack.c.b16 %v4997, %v4989
    %v5806 = vpack.c.b16 %v5006, %v4998
    %v5807 = vpack.c.b16 %v5007, %v4999
    %v5808 = vpack.c.b16 %v5008, %v5000
    %v5809 = vpack.c.b16 %v5009, %v5001
    %v5810 = vpack.c.b16 %v5010, %v5002
    %v5811 = vpack.c.b16 %v5011, %v5003
    %v5812 = vpack.c.b16 %v5012, %v5004
    %v5813 = vpack.c.b16 %v5013, %v5005
    %v5814 = vpack.c.b16 %v5022, %v5014
    %v5815 = vpack.c.b16 %v5023, %v5015
    %v5816 = vpack.c.b16 %v5024, %v5016
    %v5817 = vpack.c.b16 %v5025, %v5017
    %v5818 = vpack.c.b16 %v5026, %v5018
    %v5819 = vpack.c.b16 %v5027, %v5019
    %v5820 = vpack.c.b16 %v5028, %v5020
    %v5821 = vpack.c.b16 %v5029, %v5021
    %v5822 = vpack.c.b16 %v5038, %v5030
    %v5823 = vpack.c.b16 %v5039, %v5031
    %v5824 = vpack.c.b16 %v5040, %v5032
    %v5825 = vpack.c.b16 %v5041, %v5033
    %v5826 = vpack.c.b16 %v5042, %v5034
    %v5827 = vpack.c.b16 %v5043, %v5035
    %v5828 = vpack.c.b16 %v5044, %v5036
    %v5829 = vpack.c.b16 %v5045, %v5037
    %v5830 = vpack.c.b16 %v5054, %v5046
    %v5831 = vpack.c.b16 %v5055, %v5047
    %v5832 = vpack.c.b16 %v5056, %v5048
    %v5833 = vpack.c.b16 %v5057, %v5049
    %v5834 = vpack.c.b16 %v5058, %v5050
    %v5835 = vpack.c.b16 %v5059, %v5051
    %v5836 = vpack.c.b16 %v5060, %v5052
    %v5837 = vpack.c.b16 %v5061, %v5053
    %v5838 = vpack.c.b16 %v5070, %v5062
    %v5839 = vpack.c.b16 %v5071, %v5063
    %v5840 = vpack.c.b16 %v5072, %v5064
    %v5841 = vpack.c.b16 %v5073, %v5065
    %v5842 = vpack.c.b16 %v5074, %v5066
    %v5843 = vpack.c.b16 %v5075, %v5067
    %v5844 = vpack.c.b16 %v5076, %v5068
    %v5845 = vpack.c.b16 %v5077, %v5069
    %v5846 = vpack.c.b16 %v5086, %v5078
    %v5847 = vpack.c.b16 %v5087, %v5079
    %v5848 = vpack.c.b16 %v5088, %v5080
    %v5849 = vpack.c.b16 %v5089, %v5081
    %v5850 = vpack.c.b16 %v5090, %v5082
    %v5851 = vpack.c.b16 %v5091, %v5083
    %v5852 = vpack.c.b16 %v5092, %v5084
    %v5853 = vpack.c.b16 %v5093, %v5085
    %v5854 = vpack.c.b16 %v5102, %v5094
    %v5855 = vpack.c.b16 %v5103, %v5095
    %v5856 = vpack.c.b16 %v5104, %v5096
    %v5857 = vpack.c.b16 %v5105, %v5097
    %v5858 = vpack.c.b16 %v5106, %v5098
    %v5859 = vpack.c.b16 %v5107, %v5099
    %v5860 = vpack.c.b16 %v5108, %v5100
    %v5861 = vpack.c.b16 %v5109, %v5101
    %v5862 = vpack.c.b16 %v5118, %v5110
    %v5863 = vpack.c.b16 %v5119, %v5111
    %v5864 = vpack.c.b16 %v5120, %v5112
    %v5865 = vpack.c.b16 %v5121, %v5113
    %v5866 = vpack.c.b16 %v5122, %v5114
    %v5867 = vpack.c.b16 %v5123, %v5115
    %v5868 = vpack.c.b16 %v5124, %v5116
    %v5869 = vpack.c.b16 %v5125, %v5117
    %v5870 = vpack.c.b16 %v5134, %v5126
    %v5871 = vpack.c.b16 %v5135, %v5127
    %v5872 = vpack.c.b16 %v5136, %v5128
    %v5873 = vpack.c.b16 %v5137, %v5129
    %v5874 = vpack.c.b16 %v5138, %v5130
    %v5875 = vpack.c.b16 %v5139, %v5131
    %v5876 = vpack.c.b16 %v5140, %v5132
    %v5877 = vpack.c.b16 %v5141, %v5133
    %v5878 = vpack.c.b16 %v5150, %v5142
    %v5879 = vpack.c.b16 %v5151, %v5143
    %v5880 = vpack.c.b16 %v5152, %v5144
    %v5881 = vpack.c.b16 %v5153, %v5145
    %v5882 = vpack.c.b16 %v5154, %v5146
    %v5883 = vpack.c.b16 %v5155, %v5147
    %v5884 = vpack.c.b16 %v5156, %v5148
    %v5885 = vpack.c.b16 %v5157, %v5149
    %v5886 = vpack.c.b16 %v5166, %v5158
    %v5887 = vpack.c.b16 %v5167, %v5159
    %v5888 = vpack.c.b16 %v5168, %v5160
    %v5889 = vpack.c.b16 %v5169, %v5161
    %v5890 = vpack.c.b16 %v5170, %v5162
    %v5891 = vpack.c.b16 %v5171, %v5163
    %v5892 = vpack.c.b16 %v5172, %v5164
    %v5893 = vpack.c.b16 %v5173, %v5165
    %v5894 = vpack.c.b16 %v5182, %v5174
    %v5895 = vpack.c.b16 %v5183, %v5175
    %v5896 = vpack.c.b16 %v5184, %v5176
    %v5897 = vpack.c.b16 %v5185, %v5177
    %v5898 = vpack.c.b16 %v5186, %v5178
    %v5899 = vpack.c.b16 %v5187, %v5179
    %v5900 = vpack.c.b16 %v5188, %v5180
    %v5901 = vpack.c.b16 %v5189, %v5181
    %v5902 = vpack.c.b16 %v5198, %v5190
    %v5903 = vpack.c.b16 %v5199, %v5191
    %v5904 = vpack.c.b16 %v5200, %v5192
    %v5905 = vpack.c.b16 %v5201, %v5193
    %v5906 = vpack.c.b16 %v5202, %v5194
    %v5907 = vpack.c.b16 %v5203, %v5195
    %v5908 = vpack.c.b16 %v5204, %v5196
    %v5909 = vpack.c.b16 %v5205, %v5197
    %v5910 = vpack.c.b16 %v5214, %v5206
    %v5911 = vpack.c.b16 %v5215, %v5207
    %v5912 = vpack.c.b16 %v5216, %v5208
    %v5913 = vpack.c.b16 %v5217, %v5209
    %v5914 = vpack.c.b16 %v5218, %v5210
    %v5915 = vpack.c.b16 %v5219, %v5211
    %v5916 = vpack.c.b16 %v5220, %v5212
    %v5917 = vpack.c.b16 %v5221, %v5213
    %v5918 = vpack.c.b16 %v5230, %v5222
    %v5919 = vpack.c.b16 %v5231, %v5223
    %v5920 = vpack.c.b16 %v5232, %v5224
    %v5921 = vpack.c.b16 %v5233, %v5225
    %v5922 = vpack.c.b16 %v5234, %v5226
    %v5923 = vpack.c.b16 %v5235, %v5227
    %v5924 = vpack.c.b16 %v5236, %v5228
    %v5925 = vpack.c.b16 %v5237, %v5229
    %v5926 = vpack.c.b16 %v5246, %v5238
    %v5927 = vpack.c.b16 %v5247, %v5239
    %v5928 = vpack.c.b16 %v5248, %v5240
    %v5929 = vpack.c.b16 %v5249, %v5241
    %v5930 = vpack.c.b16 %v5250, %v5242
    %v5931 = vpack.c.b16 %v5251, %v5243
    %v5932 = vpack.c.b16 %v5252, %v5244
    %v5933 = vpack.c.b16 %v5253, %v5245
    %v5934 = vpack.c.b16 %v5262, %v5254
    %v5935 = vpack.c.b16 %v5263, %v5255
    %v5936 = vpack.c.b16 %v5264, %v5256
    %v5937 = vpack.c.b16 %v5265, %v5257
    %v5938 = vpack.c.b16 %v5266, %v5258
    %v5939 = vpack.c.b16 %v5267, %v5259
    %v5940 = vpack.c.b16 %v5268, %v5260
    %v5941 = vpack.c.b16 %v5269, %v5261
    %v5942 = vpack.c.b16 %v5278, %v5270
    %v5943 = vpack.c.b16 %v5279, %v5271
    %v5944 = vpack.c.b16 %v5280, %v5272
    %v5945 = vpack.c.b16 %v5281, %v5273
    %v5946 = vpack.c.b16 %v5282, %v5274
    %v5947 = vpack.c.b16 %v5283, %v5275
    %v5948 = vpack.c.b16 %v5284, %v5276
    %v5949 = vpack.c.b16 %v5285, %v5277
    %v5950 = vpack.c.b16 %v5294, %v5286
    %v5951 = vpack.c.b16 %v5295, %v5287
    %v5952 = vpack.c.b16 %v5296, %v5288
    %v5953 = vpack.c.b16 %v5297, %v5289
    %v5954 = vpack.c.b16 %v5298, %v5290
    %v5955 = vpack.c.b16 %v5299, %v5291
    %v5956 = vpack.c.b16 %v5300, %v5292
    %v5957 = vpack.c.b16 %v5301, %v5293
    %v5958 = vpack.c.b16 %v5310, %v5302
    %v5959 = vpack.c.b16 %v5311, %v5303
    %v5960 = vpack.c.b16 %v5312, %v5304
    %v5961 = vpack.c.b16 %v5313, %v5305
    %v5962 = vpack.c.b16 %v5314, %v5306
    %v5963 = vpack.c.b16 %v5315, %v5307
    %v5964 = vpack.c.b16 %v5316, %v5308
    %v5965 = vpack.c.b16 %v5317, %v5309
    %v5966 = vpack.c.b16 %v5326, %v5318
    %v5967 = vpack.c.b16 %v5327, %v5319
    %v5968 = vpack.c.b16 %v5328, %v5320
    %v5969 = vpack.c.b16 %v5329, %v5321
    %v5970 = vpack.c.b16 %v5330, %v5322
    %v5971 = vpack.c.b16 %v5331, %v5323
    %v5972 = vpack.c.b16 %v5332, %v5324
    %v5973 = vpack.c.b16 %v5333, %v5325
    %v5974 = vpack.c.b16 %v5342, %v5334
    %v5975 = vpack.c.b16 %v5343, %v5335
    %v5976 = vpack.c.b16 %v5344, %v5336
    %v5977 = vpack.c.b16 %v5345, %v5337
    %v5978 = vpack.c.b16 %v5346, %v5338
    %v5979 = vpack.c.b16 %v5347, %v5339
    %v5980 = vpack.c.b16 %v5348, %v5340
    %v5981 = vpack.c.b16 %v5349, %v5341
    %v5982 = vpack.c.b16 %v5358, %v5350
    %v5983 = vpack.c.b16 %v5359, %v5351
    %v5984 = vpack.c.b16 %v5360, %v5352
    %v5985 = vpack.c.b16 %v5361, %v5353
    %v5986 = vpack.c.b16 %v5362, %v5354
    %v5987 = vpack.c.b16 %v5363, %v5355
    %v5988 = vpack.c.b16 %v5364, %v5356
    %v5989 = vpack.c.b16 %v5365, %v5357
    %v5990 = vpack.c.b16 %v5374, %v5366
    %v5991 = vpack.c.b16 %v5375, %v5367
    %v5992 = vpack.c.b16 %v5376, %v5368
    %v5993 = vpack.c.b16 %v5377, %v5369
    %v5994 = vpack.c.b16 %v5378, %v5370
    %v5995 = vpack.c.b16 %v5379, %v5371
    %v5996 = vpack.c.b16 %v5380, %v5372
    %v5997 = vpack.c.b16 %v5381, %v5373
    %v5998 = vpack.c.b16 %v5390, %v5382
    %v5999 = vpack.c.b16 %v5391, %v5383
    %v6000 = vpack.c.b16 %v5392, %v5384
    %v6001 = vpack.c.b16 %v5393, %v5385
    %v6002 = vpack.c.b16 %v5394, %v5386
    %v6003 = vpack.c.b16 %v5395, %v5387
    %v6004 = vpack.c.b16 %v5396, %v5388
    %v6005 = vpack.c.b16 %v5397, %v5389
    %v6006 = vpack.c.b16 %v5406, %v5398
    %v6007 = vpack.c.b16 %v5407, %v5399
    %v6008 = vpack.c.b16 %v5408, %v5400
    %v6009 = vpack.c.b16 %v5409, %v5401
    %v6010 = vpack.c.b16 %v5410, %v5402
    %v6011 = vpack.c.b16 %v5411, %v5403
    %v6012 = vpack.c.b16 %v5412, %v5404
    %v6013 = vpack.c.b16 %v5413, %v5405
    %v6014 = vpack.c.b16 %v5422, %v5414
    %v6015 = vpack.c.b16 %v5423, %v5415
    %v6016 = vpack.c.b16 %v5424, %v5416
    %v6017 = vpack.c.b16 %v5425, %v5417
    %v6018 = vpack.c.b16 %v5426, %v5418
    %v6019 = vpack.c.b16 %v5427, %v5419
    %v6020 = vpack.c.b16 %v5428, %v5420
    %v6021 = vpack.c.b16 %v5429, %v5421
    %v6022 = vpack.c.b16 %v5438, %v5430
    %v6023 = vpack.c.b16 %v5439, %v5431
    %v6024 = vpack.c.b16 %v5440, %v5432
    %v6025 = vpack.c.b16 %v5441, %v5433
    %v6026 = vpack.c.b16 %v5442, %v5434
    %v6027 = vpack.c.b16 %v5443, %v5435
    %v6028 = vpack.c.b16 %v5444, %v5436
    %v6029 = vpack.c.b16 %v5445, %v5437
    %v6030 = vpack.c.b16 %v5454, %v5446
    %v6031 = vpack.c.b16 %v5455, %v5447
    %v6032 = vpack.c.b16 %v5456, %v5448
    %v6033 = vpack.c.b16 %v5457, %v5449
    %v6034 = vpack.c.b16 %v5458, %v5450
    %v6035 = vpack.c.b16 %v5459, %v5451
    %v6036 = vpack.c.b16 %v5460, %v5452
    %v6037 = vpack.c.b16 %v5461, %v5453
    %v6038 = vpack.c.b16 %v5470, %v5462
    %v6039 = vpack.c.b16 %v5471, %v5463
    %v6040 = vpack.c.b16 %v5472, %v5464
    %v6041 = vpack.c.b16 %v5473, %v5465
    %v6042 = vpack.c.b16 %v5474, %v5466
    %v6043 = vpack.c.b16 %v5475, %v5467
    %v6044 = vpack.c.b16 %v5476, %v5468
    %v6045 = vpack.c.b16 %v5477, %v5469
    %v6046 = vpack.c.b16 %v5486, %v5478
    %v6047 = vpack.c.b16 %v5487, %v5479
    %v6048 = vpack.c.b16 %v5488, %v5480
    %v6049 = vpack.c.b16 %v5489, %v5481
    %v6050 = vpack.c.b16 %v5490, %v5482
    %v6051 = vpack.c.b16 %v5491, %v5483
    %v6052 = vpack.c.b16 %v5492, %v5484
    %v6053 = vpack.c.b16 %v5493, %v5485
    %v6054 = vpack.c.b16 %v5502, %v5494
    %v6055 = vpack.c.b16 %v5503, %v5495
    %v6056 = vpack.c.b16 %v5504, %v5496
    %v6057 = vpack.c.b16 %v5505, %v5497
    %v6058 = vpack.c.b16 %v5506, %v5498
    %v6059 = vpack.c.b16 %v5507, %v5499
    %v6060 = vpack.c.b16 %v5508, %v5500
    %v6061 = vpack.c.b16 %v5509, %v5501
    %v6062 = vpack.c.b16 %v5518, %v5510
    %v6063 = vpack.c.b16 %v5519, %v5511
    %v6064 = vpack.c.b16 %v5520, %v5512
    %v6065 = vpack.c.b16 %v5521, %v5513
    %v6066 = vpack.c.b16 %v5522, %v5514
    %v6067 = vpack.c.b16 %v5523, %v5515
    %v6068 = vpack.c.b16 %v5524, %v5516
    %v6069 = vpack.c.b16 %v5525, %v5517
    %v6070 = vpack.c.b16 %v5534, %v5526
    %v6071 = vpack.c.b16 %v5535, %v5527
    %v6072 = vpack.c.b16 %v5536, %v5528
    %v6073 = vpack.c.b16 %v5537, %v5529
    %v6074 = vpack.c.b16 %v5538, %v5530
    %v6075 = vpack.c.b16 %v5539, %v5531
    %v6076 = vpack.c.b16 %v5540, %v5532
    %v6077 = vpack.c.b16 %v5541, %v5533
    %v6078 = vpack.c.b16 %v5550, %v5542
    %v6079 = vpack.c.b16 %v5551, %v5543
    %v6080 = vpack.c.b16 %v5552, %v5544
    %v6081 = vpack.c.b16 %v5553, %v5545
    %v6082 = vpack.c.b16 %v5554, %v5546
    %v6083 = vpack.c.b16 %v5555, %v5547
    %v6084 = vpack.c.b16 %v5556, %v5548
    %v6085 = vpack.c.b16 %v5557, %v5549
    %v6086 = vpack.c.b16 %v5566, %v5558
    %v6087 = vpack.c.b16 %v5567, %v5559
    %v6088 = vpack.c.b16 %v5568, %v5560
    %v6089 = vpack.c.b16 %v5569, %v5561
    %v6090 = vpack.c.b16 %v5570, %v5562
    %v6091 = vpack.c.b16 %v5571, %v5563
    %v6092 = vpack.c.b16 %v5572, %v5564
    %v6093 = vpack.c.b16 %v5573, %v5565
    %v6094 = vpack.c.b16 %v5582, %v5574
    %v6095 = vpack.c.b16 %v5583, %v5575
    %v6096 = vpack.c.b16 %v5584, %v5576
    %v6097 = vpack.c.b16 %v5585, %v5577
    %v6098 = vpack.c.b16 %v5586, %v5578
    %v6099 = vpack.c.b16 %v5587, %v5579
    %v6100 = vpack.c.b16 %v5588, %v5580
    %v6101 = vpack.c.b16 %v5589, %v5581
    %6614 = vmatpush.bf16.msra.mxu0 %v5646
    %6615 = vmatpush.bf16.msra.mxu0 %v5638
    %6616 = vmatpush.bf16.msra.mxu0 %v5630
    %6617 = vmatpush.bf16.msra.mxu0 %v5622
    %6618 = vmatpush.bf16.msra.mxu0 %v5614
    %6619 = vmatpush.bf16.msra.mxu0 %v5606
    %6620 = vmatpush.bf16.msra.mxu0 %v5598
    %6621 = vmatpush.bf16.msra.mxu0 %v5590
    %6622 = vmatmul.bf16.gmra.mxu0 %v3516
    %v6623 = vpop.f32.mrf.mxu0
    %v6624 = vadd.f32 %v4038, %v6623
    %v6625 = vpop.f32.mrf.mxu0
    %6626 = vdwg.mxu0
    %6627 = vmatpush.bf16.msra.mxu0 %v5710
    %6628 = vmatpush.bf16.msra.mxu0 %v5702
    %6629 = vmatpush.bf16.msra.mxu0 %v5694
    %6630 = vmatpush.bf16.msra.mxu0 %v5686
    %6631 = vmatpush.bf16.msra.mxu0 %v5678
    %6632 = vmatpush.bf16.msra.mxu0 %v5670
    %6633 = vmatpush.bf16.msra.mxu0 %v5662
    %6634 = vmatpush.bf16.msra.mxu0 %v5654
    %6635 = vmatmul.bf16.gmra.mxu0 %v3517
    %v6636 = vpop.f32.mrf.mxu0
    %v6637 = vadd.f32 %v6624, %v6636
    %v6638 = vpop.f32.mrf.mxu0
    %6639 = vdwg.mxu0
    %6640 = vmatpush.bf16.msra.mxu0 %v5774
    %6641 = vmatpush.bf16.msra.mxu0 %v5766
    %6642 = vmatpush.bf16.msra.mxu0 %v5758
    %6643 = vmatpush.bf16.msra.mxu0 %v5750
    %6644 = vmatpush.bf16.msra.mxu0 %v5742
    %6645 = vmatpush.bf16.msra.mxu0 %v5734
    %6646 = vmatpush.bf16.msra.mxu0 %v5726
    %6647 = vmatpush.bf16.msra.mxu0 %v5718
    %6648 = vmatmul.bf16.gmra.mxu0 %v3518
    %v6649 = vpop.f32.mrf.mxu0
    %v6650 = vadd.f32 %v6637, %v6649
    %v6651 = vpop.f32.mrf.mxu0
    %6652 = vdwg.mxu0
    %6653 = vmatpush.bf16.msra.mxu0 %v5838
    %6654 = vmatpush.bf16.msra.mxu0 %v5830
    %6655 = vmatpush.bf16.msra.mxu0 %v5822
    %6656 = vmatpush.bf16.msra.mxu0 %v5814
    %6657 = vmatpush.bf16.msra.mxu0 %v5806
    %6658 = vmatpush.bf16.msra.mxu0 %v5798
    %6659 = vmatpush.bf16.msra.mxu0 %v5790
    %6660 = vmatpush.bf16.msra.mxu0 %v5782
    %6661 = vmatmul.bf16.gmra.mxu0 %v3519
    %v6662 = vpop.f32.mrf.mxu0
    %v6663 = vadd.f32 %v6650, %v6662
    %v6664 = vpop.f32.mrf.mxu0
    %6665 = vdwg.mxu0
    %6666 = vmatpush.bf16.msra.mxu0 %v5902
    %6667 = vmatpush.bf16.msra.mxu0 %v5894
    %6668 = vmatpush.bf16.msra.mxu0 %v5886
    %6669 = vmatpush.bf16.msra.mxu0 %v5878
    %6670 = vmatpush.bf16.msra.mxu0 %v5870
    %6671 = vmatpush.bf16.msra.mxu0 %v5862
    %6672 = vmatpush.bf16.msra.mxu0 %v5854
    %6673 = vmatpush.bf16.msra.mxu0 %v5846
    %6674 = vmatmul.bf16.gmra.mxu0 %v3520
    %v6675 = vpop.f32.mrf.mxu0
    %v6676 = vadd.f32 %v6663, %v6675
    %v6677 = vpop.f32.mrf.mxu0
    %6678 = vdwg.mxu0
    %6679 = vmatpush.bf16.msra.mxu0 %v5966
    %6680 = vmatpush.bf16.msra.mxu0 %v5958
    %6681 = vmatpush.bf16.msra.mxu0 %v5950
    %6682 = vmatpush.bf16.msra.mxu0 %v5942
    %6683 = vmatpush.bf16.msra.mxu0 %v5934
    %6684 = vmatpush.bf16.msra.mxu0 %v5926
    %6685 = vmatpush.bf16.msra.mxu0 %v5918
    %6686 = vmatpush.bf16.msra.mxu0 %v5910
    %6687 = vmatmul.bf16.gmra.mxu0 %v3521
    %v6688 = vpop.f32.mrf.mxu0
    %v6689 = vadd.f32 %v6676, %v6688
    %v6690 = vpop.f32.mrf.mxu0
    %6691 = vdwg.mxu0
    %6692 = vmatpush.bf16.msra.mxu0 %v6030
    %6693 = vmatpush.bf16.msra.mxu0 %v6022
    %6694 = vmatpush.bf16.msra.mxu0 %v6014
    %6695 = vmatpush.bf16.msra.mxu0 %v6006
    %6696 = vmatpush.bf16.msra.mxu0 %v5998
    %6697 = vmatpush.bf16.msra.mxu0 %v5990
    %6698 = vmatpush.bf16.msra.mxu0 %v5982
    %6699 = vmatpush.bf16.msra.mxu0 %v5974
    %6700 = vmatmul.bf16.gmra.mxu0 %v3522
    %v6701 = vpop.f32.mrf.mxu0
    %v6702 = vadd.f32 %v6689, %v6701
    %v6703 = vpop.f32.mrf.mxu0
    %6704 = vdwg.mxu0
    %6705 = vmatpush.bf16.msra.mxu0 %v6094
    %6706 = vmatpush.bf16.msra.mxu0 %v6086
    %6707 = vmatpush.bf16.msra.mxu0 %v6078
    %6708 = vmatpush.bf16.msra.mxu0 %v6070
    %6709 = vmatpush.bf16.msra.mxu0 %v6062
    %6710 = vmatpush.bf16.msra.mxu0 %v6054
    %6711 = vmatpush.bf16.msra.mxu0 %v6046
    %6712 = vmatpush.bf16.msra.mxu0 %v6038
    %6713 = vmatmul.bf16.gmra.mxu0 %v3523
    %v6714 = vpop.f32.mrf.mxu0
    %v6715 = vadd.f32 %v6702, %v6714
    %v6716 = vpop.f32.mrf.mxu0
    %6717 = vdwg.mxu0
    %6718 = vmatpush.bf16.msra.mxu0 %v5647
    %6719 = vmatpush.bf16.msra.mxu0 %v5639
    %6720 = vmatpush.bf16.msra.mxu0 %v5631
    %6721 = vmatpush.bf16.msra.mxu0 %v5623
    %6722 = vmatpush.bf16.msra.mxu0 %v5615
    %6723 = vmatpush.bf16.msra.mxu0 %v5607
    %6724 = vmatpush.bf16.msra.mxu0 %v5599
    %6725 = vmatpush.bf16.msra.mxu0 %v5591
    %6726 = vmatmul.bf16.gmra.mxu0 %v3516
    %v6727 = vpop.f32.mrf.mxu0
    %v6728 = vadd.f32 %v4039, %v6727
    %v6729 = vpop.f32.mrf.mxu0
    %6730 = vdwg.mxu0
    %6731 = vmatpush.bf16.msra.mxu0 %v5711
    %6732 = vmatpush.bf16.msra.mxu0 %v5703
    %6733 = vmatpush.bf16.msra.mxu0 %v5695
    %6734 = vmatpush.bf16.msra.mxu0 %v5687
    %6735 = vmatpush.bf16.msra.mxu0 %v5679
    %6736 = vmatpush.bf16.msra.mxu0 %v5671
    %6737 = vmatpush.bf16.msra.mxu0 %v5663
    %6738 = vmatpush.bf16.msra.mxu0 %v5655
    %6739 = vmatmul.bf16.gmra.mxu0 %v3517
    %v6740 = vpop.f32.mrf.mxu0
    %v6741 = vadd.f32 %v6728, %v6740
    %v6742 = vpop.f32.mrf.mxu0
    %6743 = vdwg.mxu0
    %6744 = vmatpush.bf16.msra.mxu0 %v5775
    %6745 = vmatpush.bf16.msra.mxu0 %v5767
    %6746 = vmatpush.bf16.msra.mxu0 %v5759
    %6747 = vmatpush.bf16.msra.mxu0 %v5751
    %6748 = vmatpush.bf16.msra.mxu0 %v5743
    %6749 = vmatpush.bf16.msra.mxu0 %v5735
    %6750 = vmatpush.bf16.msra.mxu0 %v5727
    %6751 = vmatpush.bf16.msra.mxu0 %v5719
    %6752 = vmatmul.bf16.gmra.mxu0 %v3518
    %v6753 = vpop.f32.mrf.mxu0
    %v6754 = vadd.f32 %v6741, %v6753
    %v6755 = vpop.f32.mrf.mxu0
    %6756 = vdwg.mxu0
    %6757 = vmatpush.bf16.msra.mxu0 %v5839
    %6758 = vmatpush.bf16.msra.mxu0 %v5831
    %6759 = vmatpush.bf16.msra.mxu0 %v5823
    %6760 = vmatpush.bf16.msra.mxu0 %v5815
    %6761 = vmatpush.bf16.msra.mxu0 %v5807
    %6762 = vmatpush.bf16.msra.mxu0 %v5799
    %6763 = vmatpush.bf16.msra.mxu0 %v5791
    %6764 = vmatpush.bf16.msra.mxu0 %v5783
    %6765 = vmatmul.bf16.gmra.mxu0 %v3519
    %v6766 = vpop.f32.mrf.mxu0
    %v6767 = vadd.f32 %v6754, %v6766
    %v6768 = vpop.f32.mrf.mxu0
    %6769 = vdwg.mxu0
    %6770 = vmatpush.bf16.msra.mxu0 %v5903
    %6771 = vmatpush.bf16.msra.mxu0 %v5895
    %6772 = vmatpush.bf16.msra.mxu0 %v5887
    %6773 = vmatpush.bf16.msra.mxu0 %v5879
    %6774 = vmatpush.bf16.msra.mxu0 %v5871
    %6775 = vmatpush.bf16.msra.mxu0 %v5863
    %6776 = vmatpush.bf16.msra.mxu0 %v5855
    %6777 = vmatpush.bf16.msra.mxu0 %v5847
    %6778 = vmatmul.bf16.gmra.mxu0 %v3520
    %v6779 = vpop.f32.mrf.mxu0
    %v6780 = vadd.f32 %v6767, %v6779
    %v6781 = vpop.f32.mrf.mxu0
    %6782 = vdwg.mxu0
    %6783 = vmatpush.bf16.msra.mxu0 %v5967
    %6784 = vmatpush.bf16.msra.mxu0 %v5959
    %6785 = vmatpush.bf16.msra.mxu0 %v5951
    %6786 = vmatpush.bf16.msra.mxu0 %v5943
    %6787 = vmatpush.bf16.msra.mxu0 %v5935
    %6788 = vmatpush.bf16.msra.mxu0 %v5927
    %6789 = vmatpush.bf16.msra.mxu0 %v5919
    %6790 = vmatpush.bf16.msra.mxu0 %v5911
    %6791 = vmatmul.bf16.gmra.mxu0 %v3521
    %v6792 = vpop.f32.mrf.mxu0
    %v6793 = vadd.f32 %v6780, %v6792
    %v6794 = vpop.f32.mrf.mxu0
    %6795 = vdwg.mxu0
    %6796 = vmatpush.bf16.msra.mxu0 %v6031
    %6797 = vmatpush.bf16.msra.mxu0 %v6023
    %6798 = vmatpush.bf16.msra.mxu0 %v6015
    %6799 = vmatpush.bf16.msra.mxu0 %v6007
    %6800 = vmatpush.bf16.msra.mxu0 %v5999
    %6801 = vmatpush.bf16.msra.mxu0 %v5991
    %6802 = vmatpush.bf16.msra.mxu0 %v5983
    %6803 = vmatpush.bf16.msra.mxu0 %v5975
    %6804 = vmatmul.bf16.gmra.mxu0 %v3522
    %v6805 = vpop.f32.mrf.mxu0
    %v6806 = vadd.f32 %v6793, %v6805
    %v6807 = vpop.f32.mrf.mxu0
    %6808 = vdwg.mxu0
    %6809 = vmatpush.bf16.msra.mxu0 %v6095
    %6810 = vmatpush.bf16.msra.mxu0 %v6087
    %6811 = vmatpush.bf16.msra.mxu0 %v6079
    %6812 = vmatpush.bf16.msra.mxu0 %v6071
    %6813 = vmatpush.bf16.msra.mxu0 %v6063
    %6814 = vmatpush.bf16.msra.mxu0 %v6055
    %6815 = vmatpush.bf16.msra.mxu0 %v6047
    %6816 = vmatpush.bf16.msra.mxu0 %v6039
    %6817 = vmatmul.bf16.gmra.mxu0 %v3523
    %v6818 = vpop.f32.mrf.mxu0
    %v6819 = vadd.f32 %v6806, %v6818
    %v6820 = vpop.f32.mrf.mxu0
    %6821 = vdwg.mxu0
    %6822 = vmatpush.bf16.msra.mxu0 %v5648
    %6823 = vmatpush.bf16.msra.mxu0 %v5640
    %6824 = vmatpush.bf16.msra.mxu0 %v5632
    %6825 = vmatpush.bf16.msra.mxu0 %v5624
    %6826 = vmatpush.bf16.msra.mxu0 %v5616
    %6827 = vmatpush.bf16.msra.mxu0 %v5608
    %6828 = vmatpush.bf16.msra.mxu0 %v5600
    %6829 = vmatpush.bf16.msra.mxu0 %v5592
    %6830 = vmatmul.bf16.gmra.mxu0 %v3516
    %v6831 = vpop.f32.mrf.mxu0
    %v6832 = vadd.f32 %v4040, %v6831
    %v6833 = vpop.f32.mrf.mxu0
    %6834 = vdwg.mxu0
    %6835 = vmatpush.bf16.msra.mxu0 %v5712
    %6836 = vmatpush.bf16.msra.mxu0 %v5704
    %6837 = vmatpush.bf16.msra.mxu0 %v5696
    %6838 = vmatpush.bf16.msra.mxu0 %v5688
    %6839 = vmatpush.bf16.msra.mxu0 %v5680
    %6840 = vmatpush.bf16.msra.mxu0 %v5672
    %6841 = vmatpush.bf16.msra.mxu0 %v5664
    %6842 = vmatpush.bf16.msra.mxu0 %v5656
    %6843 = vmatmul.bf16.gmra.mxu0 %v3517
    %v6844 = vpop.f32.mrf.mxu0
    %v6845 = vadd.f32 %v6832, %v6844
    %v6846 = vpop.f32.mrf.mxu0
    %6847 = vdwg.mxu0
    %6848 = vmatpush.bf16.msra.mxu0 %v5776
    %6849 = vmatpush.bf16.msra.mxu0 %v5768
    %6850 = vmatpush.bf16.msra.mxu0 %v5760
    %6851 = vmatpush.bf16.msra.mxu0 %v5752
    %6852 = vmatpush.bf16.msra.mxu0 %v5744
    %6853 = vmatpush.bf16.msra.mxu0 %v5736
    %6854 = vmatpush.bf16.msra.mxu0 %v5728
    %6855 = vmatpush.bf16.msra.mxu0 %v5720
    %6856 = vmatmul.bf16.gmra.mxu0 %v3518
    %v6857 = vpop.f32.mrf.mxu0
    %v6858 = vadd.f32 %v6845, %v6857
    %v6859 = vpop.f32.mrf.mxu0
    %6860 = vdwg.mxu0
    %6861 = vmatpush.bf16.msra.mxu0 %v5840
    %6862 = vmatpush.bf16.msra.mxu0 %v5832
    %6863 = vmatpush.bf16.msra.mxu0 %v5824
    %6864 = vmatpush.bf16.msra.mxu0 %v5816
    %6865 = vmatpush.bf16.msra.mxu0 %v5808
    %6866 = vmatpush.bf16.msra.mxu0 %v5800
    %6867 = vmatpush.bf16.msra.mxu0 %v5792
    %6868 = vmatpush.bf16.msra.mxu0 %v5784
    %6869 = vmatmul.bf16.gmra.mxu0 %v3519
    %v6870 = vpop.f32.mrf.mxu0
    %v6871 = vadd.f32 %v6858, %v6870
    %v6872 = vpop.f32.mrf.mxu0
    %6873 = vdwg.mxu0
    %6874 = vmatpush.bf16.msra.mxu0 %v5904
    %6875 = vmatpush.bf16.msra.mxu0 %v5896
    %6876 = vmatpush.bf16.msra.mxu0 %v5888
    %6877 = vmatpush.bf16.msra.mxu0 %v5880
    %6878 = vmatpush.bf16.msra.mxu0 %v5872
    %6879 = vmatpush.bf16.msra.mxu0 %v5864
    %6880 = vmatpush.bf16.msra.mxu0 %v5856
    %6881 = vmatpush.bf16.msra.mxu0 %v5848
    %6882 = vmatmul.bf16.gmra.mxu0 %v3520
    %v6883 = vpop.f32.mrf.mxu0
    %v6884 = vadd.f32 %v6871, %v6883
    %v6885 = vpop.f32.mrf.mxu0
    %6886 = vdwg.mxu0
    %6887 = vmatpush.bf16.msra.mxu0 %v5968
    %6888 = vmatpush.bf16.msra.mxu0 %v5960
    %6889 = vmatpush.bf16.msra.mxu0 %v5952
    %6890 = vmatpush.bf16.msra.mxu0 %v5944
    %6891 = vmatpush.bf16.msra.mxu0 %v5936
    %6892 = vmatpush.bf16.msra.mxu0 %v5928
    %6893 = vmatpush.bf16.msra.mxu0 %v5920
    %6894 = vmatpush.bf16.msra.mxu0 %v5912
    %6895 = vmatmul.bf16.gmra.mxu0 %v3521
    %v6896 = vpop.f32.mrf.mxu0
    %v6897 = vadd.f32 %v6884, %v6896
    %v6898 = vpop.f32.mrf.mxu0
    %6899 = vdwg.mxu0
    %6900 = vmatpush.bf16.msra.mxu0 %v6032
    %6901 = vmatpush.bf16.msra.mxu0 %v6024
    %6902 = vmatpush.bf16.msra.mxu0 %v6016
    %6903 = vmatpush.bf16.msra.mxu0 %v6008
    %6904 = vmatpush.bf16.msra.mxu0 %v6000
    %6905 = vmatpush.bf16.msra.mxu0 %v5992
    %6906 = vmatpush.bf16.msra.mxu0 %v5984
    %6907 = vmatpush.bf16.msra.mxu0 %v5976
    %6908 = vmatmul.bf16.gmra.mxu0 %v3522
    %v6909 = vpop.f32.mrf.mxu0
    %v6910 = vadd.f32 %v6897, %v6909
    %v6911 = vpop.f32.mrf.mxu0
    %6912 = vdwg.mxu0
    %6913 = vmatpush.bf16.msra.mxu0 %v6096
    %6914 = vmatpush.bf16.msra.mxu0 %v6088
    %6915 = vmatpush.bf16.msra.mxu0 %v6080
    %6916 = vmatpush.bf16.msra.mxu0 %v6072
    %6917 = vmatpush.bf16.msra.mxu0 %v6064
    %6918 = vmatpush.bf16.msra.mxu0 %v6056
    %6919 = vmatpush.bf16.msra.mxu0 %v6048
    %6920 = vmatpush.bf16.msra.mxu0 %v6040
    %6921 = vmatmul.bf16.gmra.mxu0 %v3523
    %v6922 = vpop.f32.mrf.mxu0
    %v6923 = vadd.f32 %v6910, %v6922
    %v6924 = vpop.f32.mrf.mxu0
    %6925 = vdwg.mxu0
    %6926 = vmatpush.bf16.msra.mxu0 %v5649
    %6927 = vmatpush.bf16.msra.mxu0 %v5641
    %6928 = vmatpush.bf16.msra.mxu0 %v5633
    %6929 = vmatpush.bf16.msra.mxu0 %v5625
    %6930 = vmatpush.bf16.msra.mxu0 %v5617
    %6931 = vmatpush.bf16.msra.mxu0 %v5609
    %6932 = vmatpush.bf16.msra.mxu0 %v5601
    %6933 = vmatpush.bf16.msra.mxu0 %v5593
    %6934 = vmatmul.bf16.gmra.mxu0 %v3516
    %v6935 = vpop.f32.mrf.mxu0
    %v6936 = vadd.f32 %v4041, %v6935
    %v6937 = vpop.f32.mrf.mxu0
    %6938 = vdwg.mxu0
    %6939 = vmatpush.bf16.msra.mxu0 %v5713
    %6940 = vmatpush.bf16.msra.mxu0 %v5705
    %6941 = vmatpush.bf16.msra.mxu0 %v5697
    %6942 = vmatpush.bf16.msra.mxu0 %v5689
    %6943 = vmatpush.bf16.msra.mxu0 %v5681
    %6944 = vmatpush.bf16.msra.mxu0 %v5673
    %6945 = vmatpush.bf16.msra.mxu0 %v5665
    %6946 = vmatpush.bf16.msra.mxu0 %v5657
    %6947 = vmatmul.bf16.gmra.mxu0 %v3517
    %v6948 = vpop.f32.mrf.mxu0
    %v6949 = vadd.f32 %v6936, %v6948
    %v6950 = vpop.f32.mrf.mxu0
    %6951 = vdwg.mxu0
    %6952 = vmatpush.bf16.msra.mxu0 %v5777
    %6953 = vmatpush.bf16.msra.mxu0 %v5769
    %6954 = vmatpush.bf16.msra.mxu0 %v5761
    %6955 = vmatpush.bf16.msra.mxu0 %v5753
    %6956 = vmatpush.bf16.msra.mxu0 %v5745
    %6957 = vmatpush.bf16.msra.mxu0 %v5737
    %6958 = vmatpush.bf16.msra.mxu0 %v5729
    %6959 = vmatpush.bf16.msra.mxu0 %v5721
    %6960 = vmatmul.bf16.gmra.mxu0 %v3518
    %v6961 = vpop.f32.mrf.mxu0
    %v6962 = vadd.f32 %v6949, %v6961
    %v6963 = vpop.f32.mrf.mxu0
    %6964 = vdwg.mxu0
    %6965 = vmatpush.bf16.msra.mxu0 %v5841
    %6966 = vmatpush.bf16.msra.mxu0 %v5833
    %6967 = vmatpush.bf16.msra.mxu0 %v5825
    %6968 = vmatpush.bf16.msra.mxu0 %v5817
    %6969 = vmatpush.bf16.msra.mxu0 %v5809
    %6970 = vmatpush.bf16.msra.mxu0 %v5801
    %6971 = vmatpush.bf16.msra.mxu0 %v5793
    %6972 = vmatpush.bf16.msra.mxu0 %v5785
    %6973 = vmatmul.bf16.gmra.mxu0 %v3519
    %v6974 = vpop.f32.mrf.mxu0
    %v6975 = vadd.f32 %v6962, %v6974
    %v6976 = vpop.f32.mrf.mxu0
    %6977 = vdwg.mxu0
    %6978 = vmatpush.bf16.msra.mxu0 %v5905
    %6979 = vmatpush.bf16.msra.mxu0 %v5897
    %6980 = vmatpush.bf16.msra.mxu0 %v5889
    %6981 = vmatpush.bf16.msra.mxu0 %v5881
    %6982 = vmatpush.bf16.msra.mxu0 %v5873
    %6983 = vmatpush.bf16.msra.mxu0 %v5865
    %6984 = vmatpush.bf16.msra.mxu0 %v5857
    %6985 = vmatpush.bf16.msra.mxu0 %v5849
    %6986 = vmatmul.bf16.gmra.mxu0 %v3520
    %v6987 = vpop.f32.mrf.mxu0
    %v6988 = vadd.f32 %v6975, %v6987
    %v6989 = vpop.f32.mrf.mxu0
    %6990 = vdwg.mxu0
    %6991 = vmatpush.bf16.msra.mxu0 %v5969
    %6992 = vmatpush.bf16.msra.mxu0 %v5961
    %6993 = vmatpush.bf16.msra.mxu0 %v5953
    %6994 = vmatpush.bf16.msra.mxu0 %v5945
    %6995 = vmatpush.bf16.msra.mxu0 %v5937
    %6996 = vmatpush.bf16.msra.mxu0 %v5929
    %6997 = vmatpush.bf16.msra.mxu0 %v5921
    %6998 = vmatpush.bf16.msra.mxu0 %v5913
    %6999 = vmatmul.bf16.gmra.mxu0 %v3521
    %v7000 = vpop.f32.mrf.mxu0
    %v7001 = vadd.f32 %v6988, %v7000
    %v7002 = vpop.f32.mrf.mxu0
    %7003 = vdwg.mxu0
    %7004 = vmatpush.bf16.msra.mxu0 %v6033
    %7005 = vmatpush.bf16.msra.mxu0 %v6025
    %7006 = vmatpush.bf16.msra.mxu0 %v6017
    %7007 = vmatpush.bf16.msra.mxu0 %v6009
    %7008 = vmatpush.bf16.msra.mxu0 %v6001
    %7009 = vmatpush.bf16.msra.mxu0 %v5993
    %7010 = vmatpush.bf16.msra.mxu0 %v5985
    %7011 = vmatpush.bf16.msra.mxu0 %v5977
    %7012 = vmatmul.bf16.gmra.mxu0 %v3522
    %v7013 = vpop.f32.mrf.mxu0
    %v7014 = vadd.f32 %v7001, %v7013
    %v7015 = vpop.f32.mrf.mxu0
    %7016 = vdwg.mxu0
    %7017 = vmatpush.bf16.msra.mxu0 %v6097
    %7018 = vmatpush.bf16.msra.mxu0 %v6089
    %7019 = vmatpush.bf16.msra.mxu0 %v6081
    %7020 = vmatpush.bf16.msra.mxu0 %v6073
    %7021 = vmatpush.bf16.msra.mxu0 %v6065
    %7022 = vmatpush.bf16.msra.mxu0 %v6057
    %7023 = vmatpush.bf16.msra.mxu0 %v6049
    %7024 = vmatpush.bf16.msra.mxu0 %v6041
    %7025 = vmatmul.bf16.gmra.mxu0 %v3523
    %v7026 = vpop.f32.mrf.mxu0
    %v7027 = vadd.f32 %v7014, %v7026
    %v7028 = vpop.f32.mrf.mxu0
    %7029 = vdwg.mxu0
    %7030 = vmatpush.bf16.msra.mxu0 %v5650
    %7031 = vmatpush.bf16.msra.mxu0 %v5642
    %7032 = vmatpush.bf16.msra.mxu0 %v5634
    %7033 = vmatpush.bf16.msra.mxu0 %v5626
    %7034 = vmatpush.bf16.msra.mxu0 %v5618
    %7035 = vmatpush.bf16.msra.mxu0 %v5610
    %7036 = vmatpush.bf16.msra.mxu0 %v5602
    %7037 = vmatpush.bf16.msra.mxu0 %v5594
    %7038 = vmatmul.bf16.gmra.mxu0 %v3516
    %v7039 = vpop.f32.mrf.mxu0
    %v7040 = vadd.f32 %v4042, %v7039
    %v7041 = vpop.f32.mrf.mxu0
    %7042 = vdwg.mxu0
    %7043 = vmatpush.bf16.msra.mxu0 %v5714
    %7044 = vmatpush.bf16.msra.mxu0 %v5706
    %7045 = vmatpush.bf16.msra.mxu0 %v5698
    %7046 = vmatpush.bf16.msra.mxu0 %v5690
    %7047 = vmatpush.bf16.msra.mxu0 %v5682
    %7048 = vmatpush.bf16.msra.mxu0 %v5674
    %7049 = vmatpush.bf16.msra.mxu0 %v5666
    %7050 = vmatpush.bf16.msra.mxu0 %v5658
    %7051 = vmatmul.bf16.gmra.mxu0 %v3517
    %v7052 = vpop.f32.mrf.mxu0
    %v7053 = vadd.f32 %v7040, %v7052
    %v7054 = vpop.f32.mrf.mxu0
    %7055 = vdwg.mxu0
    %7056 = vmatpush.bf16.msra.mxu0 %v5778
    %7057 = vmatpush.bf16.msra.mxu0 %v5770
    %7058 = vmatpush.bf16.msra.mxu0 %v5762
    %7059 = vmatpush.bf16.msra.mxu0 %v5754
    %7060 = vmatpush.bf16.msra.mxu0 %v5746
    %7061 = vmatpush.bf16.msra.mxu0 %v5738
    %7062 = vmatpush.bf16.msra.mxu0 %v5730
    %7063 = vmatpush.bf16.msra.mxu0 %v5722
    %7064 = vmatmul.bf16.gmra.mxu0 %v3518
    %v7065 = vpop.f32.mrf.mxu0
    %v7066 = vadd.f32 %v7053, %v7065
    %v7067 = vpop.f32.mrf.mxu0
    %7068 = vdwg.mxu0
    %7069 = vmatpush.bf16.msra.mxu0 %v5842
    %7070 = vmatpush.bf16.msra.mxu0 %v5834
    %7071 = vmatpush.bf16.msra.mxu0 %v5826
    %7072 = vmatpush.bf16.msra.mxu0 %v5818
    %7073 = vmatpush.bf16.msra.mxu0 %v5810
    %7074 = vmatpush.bf16.msra.mxu0 %v5802
    %7075 = vmatpush.bf16.msra.mxu0 %v5794
    %7076 = vmatpush.bf16.msra.mxu0 %v5786
    %7077 = vmatmul.bf16.gmra.mxu0 %v3519
    %v7078 = vpop.f32.mrf.mxu0
    %v7079 = vadd.f32 %v7066, %v7078
    %v7080 = vpop.f32.mrf.mxu0
    %7081 = vdwg.mxu0
    %7082 = vmatpush.bf16.msra.mxu0 %v5906
    %7083 = vmatpush.bf16.msra.mxu0 %v5898
    %7084 = vmatpush.bf16.msra.mxu0 %v5890
    %7085 = vmatpush.bf16.msra.mxu0 %v5882
    %7086 = vmatpush.bf16.msra.mxu0 %v5874
    %7087 = vmatpush.bf16.msra.mxu0 %v5866
    %7088 = vmatpush.bf16.msra.mxu0 %v5858
    %7089 = vmatpush.bf16.msra.mxu0 %v5850
    %7090 = vmatmul.bf16.gmra.mxu0 %v3520
    %v7091 = vpop.f32.mrf.mxu0
    %v7092 = vadd.f32 %v7079, %v7091
    %v7093 = vpop.f32.mrf.mxu0
    %7094 = vdwg.mxu0
    %7095 = vmatpush.bf16.msra.mxu0 %v5970
    %7096 = vmatpush.bf16.msra.mxu0 %v5962
    %7097 = vmatpush.bf16.msra.mxu0 %v5954
    %7098 = vmatpush.bf16.msra.mxu0 %v5946
    %7099 = vmatpush.bf16.msra.mxu0 %v5938
    %7100 = vmatpush.bf16.msra.mxu0 %v5930
    %7101 = vmatpush.bf16.msra.mxu0 %v5922
    %7102 = vmatpush.bf16.msra.mxu0 %v5914
    %7103 = vmatmul.bf16.gmra.mxu0 %v3521
    %v7104 = vpop.f32.mrf.mxu0
    %v7105 = vadd.f32 %v7092, %v7104
    %v7106 = vpop.f32.mrf.mxu0
    %7107 = vdwg.mxu0
    %7108 = vmatpush.bf16.msra.mxu0 %v6034
    %7109 = vmatpush.bf16.msra.mxu0 %v6026
    %7110 = vmatpush.bf16.msra.mxu0 %v6018
    %7111 = vmatpush.bf16.msra.mxu0 %v6010
    %7112 = vmatpush.bf16.msra.mxu0 %v6002
    %7113 = vmatpush.bf16.msra.mxu0 %v5994
    %7114 = vmatpush.bf16.msra.mxu0 %v5986
    %7115 = vmatpush.bf16.msra.mxu0 %v5978
    %7116 = vmatmul.bf16.gmra.mxu0 %v3522
    %v7117 = vpop.f32.mrf.mxu0
    %v7118 = vadd.f32 %v7105, %v7117
    %v7119 = vpop.f32.mrf.mxu0
    %7120 = vdwg.mxu0
    %7121 = vmatpush.bf16.msra.mxu0 %v6098
    %7122 = vmatpush.bf16.msra.mxu0 %v6090
    %7123 = vmatpush.bf16.msra.mxu0 %v6082
    %7124 = vmatpush.bf16.msra.mxu0 %v6074
    %7125 = vmatpush.bf16.msra.mxu0 %v6066
    %7126 = vmatpush.bf16.msra.mxu0 %v6058
    %7127 = vmatpush.bf16.msra.mxu0 %v6050
    %7128 = vmatpush.bf16.msra.mxu0 %v6042
    %7129 = vmatmul.bf16.gmra.mxu0 %v3523
    %v7130 = vpop.f32.mrf.mxu0
    %v7131 = vadd.f32 %v7118, %v7130
    %v7132 = vpop.f32.mrf.mxu0
    %7133 = vdwg.mxu0
    %7134 = vmatpush.bf16.msra.mxu0 %v5651
    %7135 = vmatpush.bf16.msra.mxu0 %v5643
    %7136 = vmatpush.bf16.msra.mxu0 %v5635
    %7137 = vmatpush.bf16.msra.mxu0 %v5627
    %7138 = vmatpush.bf16.msra.mxu0 %v5619
    %7139 = vmatpush.bf16.msra.mxu0 %v5611
    %7140 = vmatpush.bf16.msra.mxu0 %v5603
    %7141 = vmatpush.bf16.msra.mxu0 %v5595
    %7142 = vmatmul.bf16.gmra.mxu0 %v3516
    %v7143 = vpop.f32.mrf.mxu0
    %v7144 = vadd.f32 %v4043, %v7143
    %v7145 = vpop.f32.mrf.mxu0
    %7146 = vdwg.mxu0
    %7147 = vmatpush.bf16.msra.mxu0 %v5715
    %7148 = vmatpush.bf16.msra.mxu0 %v5707
    %7149 = vmatpush.bf16.msra.mxu0 %v5699
    %7150 = vmatpush.bf16.msra.mxu0 %v5691
    %7151 = vmatpush.bf16.msra.mxu0 %v5683
    %7152 = vmatpush.bf16.msra.mxu0 %v5675
    %7153 = vmatpush.bf16.msra.mxu0 %v5667
    %7154 = vmatpush.bf16.msra.mxu0 %v5659
    %7155 = vmatmul.bf16.gmra.mxu0 %v3517
    %v7156 = vpop.f32.mrf.mxu0
    %v7157 = vadd.f32 %v7144, %v7156
    %v7158 = vpop.f32.mrf.mxu0
    %7159 = vdwg.mxu0
    %7160 = vmatpush.bf16.msra.mxu0 %v5779
    %7161 = vmatpush.bf16.msra.mxu0 %v5771
    %7162 = vmatpush.bf16.msra.mxu0 %v5763
    %7163 = vmatpush.bf16.msra.mxu0 %v5755
    %7164 = vmatpush.bf16.msra.mxu0 %v5747
    %7165 = vmatpush.bf16.msra.mxu0 %v5739
    %7166 = vmatpush.bf16.msra.mxu0 %v5731
    %7167 = vmatpush.bf16.msra.mxu0 %v5723
    %7168 = vmatmul.bf16.gmra.mxu0 %v3518
    %v7169 = vpop.f32.mrf.mxu0
    %v7170 = vadd.f32 %v7157, %v7169
    %v7171 = vpop.f32.mrf.mxu0
    %7172 = vdwg.mxu0
    %7173 = vmatpush.bf16.msra.mxu0 %v5843
    %7174 = vmatpush.bf16.msra.mxu0 %v5835
    %7175 = vmatpush.bf16.msra.mxu0 %v5827
    %7176 = vmatpush.bf16.msra.mxu0 %v5819
    %7177 = vmatpush.bf16.msra.mxu0 %v5811
    %7178 = vmatpush.bf16.msra.mxu0 %v5803
    %7179 = vmatpush.bf16.msra.mxu0 %v5795
    %7180 = vmatpush.bf16.msra.mxu0 %v5787
    %7181 = vmatmul.bf16.gmra.mxu0 %v3519
    %v7182 = vpop.f32.mrf.mxu0
    %v7183 = vadd.f32 %v7170, %v7182
    %v7184 = vpop.f32.mrf.mxu0
    %7185 = vdwg.mxu0
    %7186 = vmatpush.bf16.msra.mxu0 %v5907
    %7187 = vmatpush.bf16.msra.mxu0 %v5899
    %7188 = vmatpush.bf16.msra.mxu0 %v5891
    %7189 = vmatpush.bf16.msra.mxu0 %v5883
    %7190 = vmatpush.bf16.msra.mxu0 %v5875
    %7191 = vmatpush.bf16.msra.mxu0 %v5867
    %7192 = vmatpush.bf16.msra.mxu0 %v5859
    %7193 = vmatpush.bf16.msra.mxu0 %v5851
    %7194 = vmatmul.bf16.gmra.mxu0 %v3520
    %v7195 = vpop.f32.mrf.mxu0
    %v7196 = vadd.f32 %v7183, %v7195
    %v7197 = vpop.f32.mrf.mxu0
    %7198 = vdwg.mxu0
    %7199 = vmatpush.bf16.msra.mxu0 %v5971
    %7200 = vmatpush.bf16.msra.mxu0 %v5963
    %7201 = vmatpush.bf16.msra.mxu0 %v5955
    %7202 = vmatpush.bf16.msra.mxu0 %v5947
    %7203 = vmatpush.bf16.msra.mxu0 %v5939
    %7204 = vmatpush.bf16.msra.mxu0 %v5931
    %7205 = vmatpush.bf16.msra.mxu0 %v5923
    %7206 = vmatpush.bf16.msra.mxu0 %v5915
    %7207 = vmatmul.bf16.gmra.mxu0 %v3521
    %v7208 = vpop.f32.mrf.mxu0
    %v7209 = vadd.f32 %v7196, %v7208
    %v7210 = vpop.f32.mrf.mxu0
    %7211 = vdwg.mxu0
    %7212 = vmatpush.bf16.msra.mxu0 %v6035
    %7213 = vmatpush.bf16.msra.mxu0 %v6027
    %7214 = vmatpush.bf16.msra.mxu0 %v6019
    %7215 = vmatpush.bf16.msra.mxu0 %v6011
    %7216 = vmatpush.bf16.msra.mxu0 %v6003
    %7217 = vmatpush.bf16.msra.mxu0 %v5995
    %7218 = vmatpush.bf16.msra.mxu0 %v5987
    %7219 = vmatpush.bf16.msra.mxu0 %v5979
    %7220 = vmatmul.bf16.gmra.mxu0 %v3522
    %v7221 = vpop.f32.mrf.mxu0
    %v7222 = vadd.f32 %v7209, %v7221
    %v7223 = vpop.f32.mrf.mxu0
    %7224 = vdwg.mxu0
    %7225 = vmatpush.bf16.msra.mxu0 %v6099
    %7226 = vmatpush.bf16.msra.mxu0 %v6091
    %7227 = vmatpush.bf16.msra.mxu0 %v6083
    %7228 = vmatpush.bf16.msra.mxu0 %v6075
    %7229 = vmatpush.bf16.msra.mxu0 %v6067
    %7230 = vmatpush.bf16.msra.mxu0 %v6059
    %7231 = vmatpush.bf16.msra.mxu0 %v6051
    %7232 = vmatpush.bf16.msra.mxu0 %v6043
    %7233 = vmatmul.bf16.gmra.mxu0 %v3523
    %v7234 = vpop.f32.mrf.mxu0
    %v7235 = vadd.f32 %v7222, %v7234
    %v7236 = vpop.f32.mrf.mxu0
    %7237 = vdwg.mxu0
    %7238 = vmatpush.bf16.msra.mxu0 %v5652
    %7239 = vmatpush.bf16.msra.mxu0 %v5644
    %7240 = vmatpush.bf16.msra.mxu0 %v5636
    %7241 = vmatpush.bf16.msra.mxu0 %v5628
    %7242 = vmatpush.bf16.msra.mxu0 %v5620
    %7243 = vmatpush.bf16.msra.mxu0 %v5612
    %7244 = vmatpush.bf16.msra.mxu0 %v5604
    %7245 = vmatpush.bf16.msra.mxu0 %v5596
    %7246 = vmatmul.bf16.gmra.mxu0 %v3516
    %v7247 = vpop.f32.mrf.mxu0
    %v7248 = vadd.f32 %v4044, %v7247
    %v7249 = vpop.f32.mrf.mxu0
    %7250 = vdwg.mxu0
    %7251 = vmatpush.bf16.msra.mxu0 %v5716
    %7252 = vmatpush.bf16.msra.mxu0 %v5708
    %7253 = vmatpush.bf16.msra.mxu0 %v5700
    %7254 = vmatpush.bf16.msra.mxu0 %v5692
    %7255 = vmatpush.bf16.msra.mxu0 %v5684
    %7256 = vmatpush.bf16.msra.mxu0 %v5676
    %7257 = vmatpush.bf16.msra.mxu0 %v5668
    %7258 = vmatpush.bf16.msra.mxu0 %v5660
    %7259 = vmatmul.bf16.gmra.mxu0 %v3517
    %v7260 = vpop.f32.mrf.mxu0
    %v7261 = vadd.f32 %v7248, %v7260
    %v7262 = vpop.f32.mrf.mxu0
    %7263 = vdwg.mxu0
    %7264 = vmatpush.bf16.msra.mxu0 %v5780
    %7265 = vmatpush.bf16.msra.mxu0 %v5772
    %7266 = vmatpush.bf16.msra.mxu0 %v5764
    %7267 = vmatpush.bf16.msra.mxu0 %v5756
    %7268 = vmatpush.bf16.msra.mxu0 %v5748
    %7269 = vmatpush.bf16.msra.mxu0 %v5740
    %7270 = vmatpush.bf16.msra.mxu0 %v5732
    %7271 = vmatpush.bf16.msra.mxu0 %v5724
    %7272 = vmatmul.bf16.gmra.mxu0 %v3518
    %v7273 = vpop.f32.mrf.mxu0
    %v7274 = vadd.f32 %v7261, %v7273
    %v7275 = vpop.f32.mrf.mxu0
    %7276 = vdwg.mxu0
    %7277 = vmatpush.bf16.msra.mxu0 %v5844
    %7278 = vmatpush.bf16.msra.mxu0 %v5836
    %7279 = vmatpush.bf16.msra.mxu0 %v5828
    %7280 = vmatpush.bf16.msra.mxu0 %v5820
    %7281 = vmatpush.bf16.msra.mxu0 %v5812
    %7282 = vmatpush.bf16.msra.mxu0 %v5804
    %7283 = vmatpush.bf16.msra.mxu0 %v5796
    %7284 = vmatpush.bf16.msra.mxu0 %v5788
    %7285 = vmatmul.bf16.gmra.mxu0 %v3519
    %v7286 = vpop.f32.mrf.mxu0
    %v7287 = vadd.f32 %v7274, %v7286
    %v7288 = vpop.f32.mrf.mxu0
    %7289 = vdwg.mxu0
    %7290 = vmatpush.bf16.msra.mxu0 %v5908
    %7291 = vmatpush.bf16.msra.mxu0 %v5900
    %7292 = vmatpush.bf16.msra.mxu0 %v5892
    %7293 = vmatpush.bf16.msra.mxu0 %v5884
    %7294 = vmatpush.bf16.msra.mxu0 %v5876
    %7295 = vmatpush.bf16.msra.mxu0 %v5868
    %7296 = vmatpush.bf16.msra.mxu0 %v5860
    %7297 = vmatpush.bf16.msra.mxu0 %v5852
    %7298 = vmatmul.bf16.gmra.mxu0 %v3520
    %v7299 = vpop.f32.mrf.mxu0
    %v7300 = vadd.f32 %v7287, %v7299
    %v7301 = vpop.f32.mrf.mxu0
    %7302 = vdwg.mxu0
    %7303 = vmatpush.bf16.msra.mxu0 %v5972
    %7304 = vmatpush.bf16.msra.mxu0 %v5964
    %7305 = vmatpush.bf16.msra.mxu0 %v5956
    %7306 = vmatpush.bf16.msra.mxu0 %v5948
    %7307 = vmatpush.bf16.msra.mxu0 %v5940
    %7308 = vmatpush.bf16.msra.mxu0 %v5932
    %7309 = vmatpush.bf16.msra.mxu0 %v5924
    %7310 = vmatpush.bf16.msra.mxu0 %v5916
    %7311 = vmatmul.bf16.gmra.mxu0 %v3521
    %v7312 = vpop.f32.mrf.mxu0
    %v7313 = vadd.f32 %v7300, %v7312
    %v7314 = vpop.f32.mrf.mxu0
    %7315 = vdwg.mxu0
    %7316 = vmatpush.bf16.msra.mxu0 %v6036
    %7317 = vmatpush.bf16.msra.mxu0 %v6028
    %7318 = vmatpush.bf16.msra.mxu0 %v6020
    %7319 = vmatpush.bf16.msra.mxu0 %v6012
    %7320 = vmatpush.bf16.msra.mxu0 %v6004
    %7321 = vmatpush.bf16.msra.mxu0 %v5996
    %7322 = vmatpush.bf16.msra.mxu0 %v5988
    %7323 = vmatpush.bf16.msra.mxu0 %v5980
    %7324 = vmatmul.bf16.gmra.mxu0 %v3522
    %v7325 = vpop.f32.mrf.mxu0
    %v7326 = vadd.f32 %v7313, %v7325
    %v7327 = vpop.f32.mrf.mxu0
    %7328 = vdwg.mxu0
    %7329 = vmatpush.bf16.msra.mxu0 %v6100
    %7330 = vmatpush.bf16.msra.mxu0 %v6092
    %7331 = vmatpush.bf16.msra.mxu0 %v6084
    %7332 = vmatpush.bf16.msra.mxu0 %v6076
    %7333 = vmatpush.bf16.msra.mxu0 %v6068
    %7334 = vmatpush.bf16.msra.mxu0 %v6060
    %7335 = vmatpush.bf16.msra.mxu0 %v6052
    %7336 = vmatpush.bf16.msra.mxu0 %v6044
    %7337 = vmatmul.bf16.gmra.mxu0 %v3523
    %v7338 = vpop.f32.mrf.mxu0
    %v7339 = vadd.f32 %v7326, %v7338
    %v7340 = vpop.f32.mrf.mxu0
    %7341 = vdwg.mxu0
    %7342 = vmatpush.bf16.msra.mxu0 %v5653
    %7343 = vmatpush.bf16.msra.mxu0 %v5645
    %7344 = vmatpush.bf16.msra.mxu0 %v5637
    %7345 = vmatpush.bf16.msra.mxu0 %v5629
    %7346 = vmatpush.bf16.msra.mxu0 %v5621
    %7347 = vmatpush.bf16.msra.mxu0 %v5613
    %7348 = vmatpush.bf16.msra.mxu0 %v5605
    %7349 = vmatpush.bf16.msra.mxu0 %v5597
    %7350 = vmatmul.bf16.gmra.mxu0 %v3516
    %v7351 = vpop.f32.mrf.mxu0
    %v7352 = vadd.f32 %v4045, %v7351
    %v7353 = vpop.f32.mrf.mxu0
    %7354 = vdwg.mxu0
    %7355 = vmatpush.bf16.msra.mxu0 %v5717
    %7356 = vmatpush.bf16.msra.mxu0 %v5709
    %7357 = vmatpush.bf16.msra.mxu0 %v5701
    %7358 = vmatpush.bf16.msra.mxu0 %v5693
    %7359 = vmatpush.bf16.msra.mxu0 %v5685
    %7360 = vmatpush.bf16.msra.mxu0 %v5677
    %7361 = vmatpush.bf16.msra.mxu0 %v5669
    %7362 = vmatpush.bf16.msra.mxu0 %v5661
    %7363 = vmatmul.bf16.gmra.mxu0 %v3517
    %v7364 = vpop.f32.mrf.mxu0
    %v7365 = vadd.f32 %v7352, %v7364
    %v7366 = vpop.f32.mrf.mxu0
    %7367 = vdwg.mxu0
    %7368 = vmatpush.bf16.msra.mxu0 %v5781
    %7369 = vmatpush.bf16.msra.mxu0 %v5773
    %7370 = vmatpush.bf16.msra.mxu0 %v5765
    %7371 = vmatpush.bf16.msra.mxu0 %v5757
    %7372 = vmatpush.bf16.msra.mxu0 %v5749
    %7373 = vmatpush.bf16.msra.mxu0 %v5741
    %7374 = vmatpush.bf16.msra.mxu0 %v5733
    %7375 = vmatpush.bf16.msra.mxu0 %v5725
    %7376 = vmatmul.bf16.gmra.mxu0 %v3518
    %v7377 = vpop.f32.mrf.mxu0
    %v7378 = vadd.f32 %v7365, %v7377
    %v7379 = vpop.f32.mrf.mxu0
    %7380 = vdwg.mxu0
    %7381 = vmatpush.bf16.msra.mxu0 %v5845
    %7382 = vmatpush.bf16.msra.mxu0 %v5837
    %7383 = vmatpush.bf16.msra.mxu0 %v5829
    %7384 = vmatpush.bf16.msra.mxu0 %v5821
    %7385 = vmatpush.bf16.msra.mxu0 %v5813
    %7386 = vmatpush.bf16.msra.mxu0 %v5805
    %7387 = vmatpush.bf16.msra.mxu0 %v5797
    %7388 = vmatpush.bf16.msra.mxu0 %v5789
    %7389 = vmatmul.bf16.gmra.mxu0 %v3519
    %v7390 = vpop.f32.mrf.mxu0
    %v7391 = vadd.f32 %v7378, %v7390
    %v7392 = vpop.f32.mrf.mxu0
    %7393 = vdwg.mxu0
    %7394 = vmatpush.bf16.msra.mxu0 %v5909
    %7395 = vmatpush.bf16.msra.mxu0 %v5901
    %7396 = vmatpush.bf16.msra.mxu0 %v5893
    %7397 = vmatpush.bf16.msra.mxu0 %v5885
    %7398 = vmatpush.bf16.msra.mxu0 %v5877
    %7399 = vmatpush.bf16.msra.mxu0 %v5869
    %7400 = vmatpush.bf16.msra.mxu0 %v5861
    %7401 = vmatpush.bf16.msra.mxu0 %v5853
    %7402 = vmatmul.bf16.gmra.mxu0 %v3520
    %v7403 = vpop.f32.mrf.mxu0
    %v7404 = vadd.f32 %v7391, %v7403
    %v7405 = vpop.f32.mrf.mxu0
    %7406 = vdwg.mxu0
    %7407 = vmatpush.bf16.msra.mxu0 %v5973
    %7408 = vmatpush.bf16.msra.mxu0 %v5965
    %7409 = vmatpush.bf16.msra.mxu0 %v5957
    %7410 = vmatpush.bf16.msra.mxu0 %v5949
    %7411 = vmatpush.bf16.msra.mxu0 %v5941
    %7412 = vmatpush.bf16.msra.mxu0 %v5933
    %7413 = vmatpush.bf16.msra.mxu0 %v5925
    %7414 = vmatpush.bf16.msra.mxu0 %v5917
    %7415 = vmatmul.bf16.gmra.mxu0 %v3521
    %v7416 = vpop.f32.mrf.mxu0
    %v7417 = vadd.f32 %v7404, %v7416
    %v7418 = vpop.f32.mrf.mxu0
    %7419 = vdwg.mxu0
    %7420 = vmatpush.bf16.msra.mxu0 %v6037
    %7421 = vmatpush.bf16.msra.mxu0 %v6029
    %7422 = vmatpush.bf16.msra.mxu0 %v6021
    %7423 = vmatpush.bf16.msra.mxu0 %v6013
    %7424 = vmatpush.bf16.msra.mxu0 %v6005
    %7425 = vmatpush.bf16.msra.mxu0 %v5997
    %7426 = vmatpush.bf16.msra.mxu0 %v5989
    %7427 = vmatpush.bf16.msra.mxu0 %v5981
    %7428 = vmatmul.bf16.gmra.mxu0 %v3522
    %v7429 = vpop.f32.mrf.mxu0
    %v7430 = vadd.f32 %v7417, %v7429
    %v7431 = vpop.f32.mrf.mxu0
    %7432 = vdwg.mxu0
    %7433 = vmatpush.bf16.msra.mxu0 %v6101
    %7434 = vmatpush.bf16.msra.mxu0 %v6093
    %7435 = vmatpush.bf16.msra.mxu0 %v6085
    %7436 = vmatpush.bf16.msra.mxu0 %v6077
    %7437 = vmatpush.bf16.msra.mxu0 %v6069
    %7438 = vmatpush.bf16.msra.mxu0 %v6061
    %7439 = vmatpush.bf16.msra.mxu0 %v6053
    %7440 = vmatpush.bf16.msra.mxu0 %v6045
    %7441 = vmatmul.bf16.gmra.mxu0 %v3523
    %v7442 = vpop.f32.mrf.mxu0
    %v7443 = vadd.f32 %v7430, %v7442
    %v7444 = vpop.f32.mrf.mxu0
    %7445 = vdwg.mxu0
    %v7446 = vmax.f32 %v6715, 0.0
    %v7447 = vmax.f32 %v6819, 0.0
    %v7448 = vmax.f32 %v6923, 0.0
    %v7449 = vmax.f32 %v7027, 0.0
    %v7450 = vmax.f32 %v7131, 0.0
    %v7451 = vmax.f32 %v7235, 0.0
    %v7452 = vmax.f32 %v7339, 0.0
    %v7453 = vmax.f32 %v7443, 0.0
    %v7454 = vpack.c.bf16 %v7446, %v7446
    %v7455 = vpack.c.bf16 %v7447, %v7447
    %v7456 = vpack.c.bf16 %v7448, %v7448
    %v7457 = vpack.c.bf16 %v7449, %v7449
    %v7458 = vpack.c.bf16 %v7450, %v7450
    %v7459 = vpack.c.bf16 %v7451, %v7451
    %v7460 = vpack.c.bf16 %v7452, %v7452
    %v7461 = vpack.c.bf16 %v7453, %v7453
    %v7462 = vld [vmem:[%s5] sm:$0xff]
    %v7463 = vld [vmem:[%s5 + $0x8] sm:$0xff]
    %v7464 = vld [vmem:[%s5 + $0x10] sm:$0xff]
    %v7465 = vld [vmem:[%s5 + $0x18] sm:$0xff]
    %v7466 = vld [vmem:[%s5 + $0x20] sm:$0xff]
    %v7467 = vld [vmem:[%s5 + $0x28] sm:$0xff]
    %v7468 = vld [vmem:[%s5 + $0x30] sm:$0xff]
    %v7469 = vld [vmem:[%s5 + $0x38] sm:$0xff]
    %v7470 = vld [vmem:[%s5 + $0x40] sm:$0xff]
    %v7471 = vld [vmem:[%s5 + $0x48] sm:$0xff]
    %v7472 = vld [vmem:[%s5 + $0x50] sm:$0xff]
    %v7473 = vld [vmem:[%s5 + $0x58] sm:$0xff]
    %v7474 = vld [vmem:[%s5 + $0x60] sm:$0xff]
    %v7475 = vld [vmem:[%s5 + $0x68] sm:$0xff]
    %v7476 = vld [vmem:[%s5 + $0x70] sm:$0xff]
    %v7477 = vld [vmem:[%s5 + $0x78] sm:$0xff]
    %v7478 = vld [vmem:[%s5 + $0x80] sm:$0xff]
    %v7479 = vld [vmem:[%s5 + $0x88] sm:$0xff]
    %v7480 = vld [vmem:[%s5 + $0x90] sm:$0xff]
    %v7481 = vld [vmem:[%s5 + $0x98] sm:$0xff]
    %v7482 = vld [vmem:[%s5 + $0xa0] sm:$0xff]
    %v7483 = vld [vmem:[%s5 + $0xa8] sm:$0xff]
    %v7484 = vld [vmem:[%s5 + $0xb0] sm:$0xff]
    %v7485 = vld [vmem:[%s5 + $0xb8] sm:$0xff]
    %v7486 = vld [vmem:[%s5 + $0xc0] sm:$0xff]
    %v7487 = vld [vmem:[%s5 + $0xc8] sm:$0xff]
    %v7488 = vld [vmem:[%s5 + $0xd0] sm:$0xff]
    %v7489 = vld [vmem:[%s5 + $0xd8] sm:$0xff]
    %v7490 = vld [vmem:[%s5 + $0xe0] sm:$0xff]
    %v7491 = vld [vmem:[%s5 + $0xe8] sm:$0xff]
    %v7492 = vld [vmem:[%s5 + $0xf0] sm:$0xff]
    %v7493 = vld [vmem:[%s5 + $0xf8] sm:$0xff]
    %v7494 = vld [vmem:[%s5 + $0x100] sm:$0xff]
    %v7495 = vld [vmem:[%s5 + $0x108] sm:$0xff]
    %v7496 = vld [vmem:[%s5 + $0x110] sm:$0xff]
    %v7497 = vld [vmem:[%s5 + $0x118] sm:$0xff]
    %v7498 = vld [vmem:[%s5 + $0x120] sm:$0xff]
    %v7499 = vld [vmem:[%s5 + $0x128] sm:$0xff]
    %v7500 = vld [vmem:[%s5 + $0x130] sm:$0xff]
    %v7501 = vld [vmem:[%s5 + $0x138] sm:$0xff]
    %v7502 = vld [vmem:[%s5 + $0x140] sm:$0xff]
    %v7503 = vld [vmem:[%s5 + $0x148] sm:$0xff]
    %v7504 = vld [vmem:[%s5 + $0x150] sm:$0xff]
    %v7505 = vld [vmem:[%s5 + $0x158] sm:$0xff]
    %v7506 = vld [vmem:[%s5 + $0x160] sm:$0xff]
    %v7507 = vld [vmem:[%s5 + $0x168] sm:$0xff]
    %v7508 = vld [vmem:[%s5 + $0x170] sm:$0xff]
    %v7509 = vld [vmem:[%s5 + $0x178] sm:$0xff]
    %v7510 = vld [vmem:[%s5 + $0x180] sm:$0xff]
    %v7511 = vld [vmem:[%s5 + $0x188] sm:$0xff]
    %v7512 = vld [vmem:[%s5 + $0x190] sm:$0xff]
    %v7513 = vld [vmem:[%s5 + $0x198] sm:$0xff]
    %v7514 = vld [vmem:[%s5 + $0x1a0] sm:$0xff]
    %v7515 = vld [vmem:[%s5 + $0x1a8] sm:$0xff]
    %v7516 = vld [vmem:[%s5 + $0x1b0] sm:$0xff]
    %v7517 = vld [vmem:[%s5 + $0x1b8] sm:$0xff]
    %v7518 = vld [vmem:[%s5 + $0x1c0] sm:$0xff]
    %v7519 = vld [vmem:[%s5 + $0x1c8] sm:$0xff]
    %v7520 = vld [vmem:[%s5 + $0x1d0] sm:$0xff]
    %v7521 = vld [vmem:[%s5 + $0x1d8] sm:$0xff]
    %v7522 = vld [vmem:[%s5 + $0x1e0] sm:$0xff]
    %v7523 = vld [vmem:[%s5 + $0x1e8] sm:$0xff]
    %v7524 = vld [vmem:[%s5 + $0x1f0] sm:$0xff]
    %v7525 = vld [vmem:[%s5 + $0x1f8] sm:$0xff]
    %v7526 = vld [vmem:[%s5 + $0x200] sm:$0xff]
    %v7527 = vld [vmem:[%s5 + $0x208] sm:$0xff]
    %v7528 = vld [vmem:[%s5 + $0x210] sm:$0xff]
    %v7529 = vld [vmem:[%s5 + $0x218] sm:$0xff]
    %v7530 = vld [vmem:[%s5 + $0x220] sm:$0xff]
    %v7531 = vld [vmem:[%s5 + $0x228] sm:$0xff]
    %v7532 = vld [vmem:[%s5 + $0x230] sm:$0xff]
    %v7533 = vld [vmem:[%s5 + $0x238] sm:$0xff]
    %v7534 = vld [vmem:[%s5 + $0x240] sm:$0xff]
    %v7535 = vld [vmem:[%s5 + $0x248] sm:$0xff]
    %v7536 = vld [vmem:[%s5 + $0x250] sm:$0xff]
    %v7537 = vld [vmem:[%s5 + $0x258] sm:$0xff]
    %v7538 = vld [vmem:[%s5 + $0x260] sm:$0xff]
    %v7539 = vld [vmem:[%s5 + $0x268] sm:$0xff]
    %v7540 = vld [vmem:[%s5 + $0x270] sm:$0xff]
    %v7541 = vld [vmem:[%s5 + $0x278] sm:$0xff]
    %v7542 = vld [vmem:[%s5 + $0x280] sm:$0xff]
    %v7543 = vld [vmem:[%s5 + $0x288] sm:$0xff]
    %v7544 = vld [vmem:[%s5 + $0x290] sm:$0xff]
    %v7545 = vld [vmem:[%s5 + $0x298] sm:$0xff]
    %v7546 = vld [vmem:[%s5 + $0x2a0] sm:$0xff]
    %v7547 = vld [vmem:[%s5 + $0x2a8] sm:$0xff]
    %v7548 = vld [vmem:[%s5 + $0x2b0] sm:$0xff]
    %v7549 = vld [vmem:[%s5 + $0x2b8] sm:$0xff]
    %v7550 = vld [vmem:[%s5 + $0x2c0] sm:$0xff]
    %v7551 = vld [vmem:[%s5 + $0x2c8] sm:$0xff]
    %v7552 = vld [vmem:[%s5 + $0x2d0] sm:$0xff]
    %v7553 = vld [vmem:[%s5 + $0x2d8] sm:$0xff]
    %v7554 = vld [vmem:[%s5 + $0x2e0] sm:$0xff]
    %v7555 = vld [vmem:[%s5 + $0x2e8] sm:$0xff]
    %v7556 = vld [vmem:[%s5 + $0x2f0] sm:$0xff]
    %v7557 = vld [vmem:[%s5 + $0x2f8] sm:$0xff]
    %v7558 = vld [vmem:[%s5 + $0x300] sm:$0xff]
    %v7559 = vld [vmem:[%s5 + $0x308] sm:$0xff]
    %v7560 = vld [vmem:[%s5 + $0x310] sm:$0xff]
    %v7561 = vld [vmem:[%s5 + $0x318] sm:$0xff]
    %v7562 = vld [vmem:[%s5 + $0x320] sm:$0xff]
    %v7563 = vld [vmem:[%s5 + $0x328] sm:$0xff]
    %v7564 = vld [vmem:[%s5 + $0x330] sm:$0xff]
    %v7565 = vld [vmem:[%s5 + $0x338] sm:$0xff]
    %v7566 = vld [vmem:[%s5 + $0x340] sm:$0xff]
    %v7567 = vld [vmem:[%s5 + $0x348] sm:$0xff]
    %v7568 = vld [vmem:[%s5 + $0x350] sm:$0xff]
    %v7569 = vld [vmem:[%s5 + $0x358] sm:$0xff]
    %v7570 = vld [vmem:[%s5 + $0x360] sm:$0xff]
    %v7571 = vld [vmem:[%s5 + $0x368] sm:$0xff]
    %v7572 = vld [vmem:[%s5 + $0x370] sm:$0xff]
    %v7573 = vld [vmem:[%s5 + $0x378] sm:$0xff]
    %v7574 = vld [vmem:[%s5 + $0x380] sm:$0xff]
    %v7575 = vld [vmem:[%s5 + $0x388] sm:$0xff]
    %v7576 = vld [vmem:[%s5 + $0x390] sm:$0xff]
    %v7577 = vld [vmem:[%s5 + $0x398] sm:$0xff]
    %v7578 = vld [vmem:[%s5 + $0x3a0] sm:$0xff]
    %v7579 = vld [vmem:[%s5 + $0x3a8] sm:$0xff]
    %v7580 = vld [vmem:[%s5 + $0x3b0] sm:$0xff]
    %v7581 = vld [vmem:[%s5 + $0x3b8] sm:$0xff]
    %v7582 = vld [vmem:[%s5 + $0x3c0] sm:$0xff]
    %v7583 = vld [vmem:[%s5 + $0x3c8] sm:$0xff]
    %v7584 = vld [vmem:[%s5 + $0x3d0] sm:$0xff]
    %v7585 = vld [vmem:[%s5 + $0x3d8] sm:$0xff]
    %v7586 = vld [vmem:[%s5 + $0x3e0] sm:$0xff]
    %v7587 = vld [vmem:[%s5 + $0x3e8] sm:$0xff]
    %v7588 = vld [vmem:[%s5 + $0x3f0] sm:$0xff]
    %v7589 = vld [vmem:[%s5 + $0x3f8] sm:$0xff]
    %v7590 = vld [vmem:[%s5 + $0x400] sm:$0xff]
    %v7591 = vld [vmem:[%s5 + $0x408] sm:$0xff]
    %v7592 = vld [vmem:[%s5 + $0x410] sm:$0xff]
    %v7593 = vld [vmem:[%s5 + $0x418] sm:$0xff]
    %v7594 = vld [vmem:[%s5 + $0x420] sm:$0xff]
    %v7595 = vld [vmem:[%s5 + $0x428] sm:$0xff]
    %v7596 = vld [vmem:[%s5 + $0x430] sm:$0xff]
    %v7597 = vld [vmem:[%s5 + $0x438] sm:$0xff]
    %v7598 = vld [vmem:[%s5 + $0x440] sm:$0xff]
    %v7599 = vld [vmem:[%s5 + $0x448] sm:$0xff]
    %v7600 = vld [vmem:[%s5 + $0x450] sm:$0xff]
    %v7601 = vld [vmem:[%s5 + $0x458] sm:$0xff]
    %v7602 = vld [vmem:[%s5 + $0x460] sm:$0xff]
    %v7603 = vld [vmem:[%s5 + $0x468] sm:$0xff]
    %v7604 = vld [vmem:[%s5 + $0x470] sm:$0xff]
    %v7605 = vld [vmem:[%s5 + $0x478] sm:$0xff]
    %v7606 = vld [vmem:[%s5 + $0x480] sm:$0xff]
    %v7607 = vld [vmem:[%s5 + $0x488] sm:$0xff]
    %v7608 = vld [vmem:[%s5 + $0x490] sm:$0xff]
    %v7609 = vld [vmem:[%s5 + $0x498] sm:$0xff]
    %v7610 = vld [vmem:[%s5 + $0x4a0] sm:$0xff]
    %v7611 = vld [vmem:[%s5 + $0x4a8] sm:$0xff]
    %v7612 = vld [vmem:[%s5 + $0x4b0] sm:$0xff]
    %v7613 = vld [vmem:[%s5 + $0x4b8] sm:$0xff]
    %v7614 = vld [vmem:[%s5 + $0x4c0] sm:$0xff]
    %v7615 = vld [vmem:[%s5 + $0x4c8] sm:$0xff]
    %v7616 = vld [vmem:[%s5 + $0x4d0] sm:$0xff]
    %v7617 = vld [vmem:[%s5 + $0x4d8] sm:$0xff]
    %v7618 = vld [vmem:[%s5 + $0x4e0] sm:$0xff]
    %v7619 = vld [vmem:[%s5 + $0x4e8] sm:$0xff]
    %v7620 = vld [vmem:[%s5 + $0x4f0] sm:$0xff]
    %v7621 = vld [vmem:[%s5 + $0x4f8] sm:$0xff]
    %v7622 = vld [vmem:[%s5 + $0x500] sm:$0xff]
    %v7623 = vld [vmem:[%s5 + $0x508] sm:$0xff]
    %v7624 = vld [vmem:[%s5 + $0x510] sm:$0xff]
    %v7625 = vld [vmem:[%s5 + $0x518] sm:$0xff]
    %v7626 = vld [vmem:[%s5 + $0x520] sm:$0xff]
    %v7627 = vld [vmem:[%s5 + $0x528] sm:$0xff]
    %v7628 = vld [vmem:[%s5 + $0x530] sm:$0xff]
    %v7629 = vld [vmem:[%s5 + $0x538] sm:$0xff]
    %v7630 = vld [vmem:[%s5 + $0x540] sm:$0xff]
    %v7631 = vld [vmem:[%s5 + $0x548] sm:$0xff]
    %v7632 = vld [vmem:[%s5 + $0x550] sm:$0xff]
    %v7633 = vld [vmem:[%s5 + $0x558] sm:$0xff]
    %v7634 = vld [vmem:[%s5 + $0x560] sm:$0xff]
    %v7635 = vld [vmem:[%s5 + $0x568] sm:$0xff]
    %v7636 = vld [vmem:[%s5 + $0x570] sm:$0xff]
    %v7637 = vld [vmem:[%s5 + $0x578] sm:$0xff]
    %v7638 = vld [vmem:[%s5 + $0x580] sm:$0xff]
    %v7639 = vld [vmem:[%s5 + $0x588] sm:$0xff]
    %v7640 = vld [vmem:[%s5 + $0x590] sm:$0xff]
    %v7641 = vld [vmem:[%s5 + $0x598] sm:$0xff]
    %v7642 = vld [vmem:[%s5 + $0x5a0] sm:$0xff]
    %v7643 = vld [vmem:[%s5 + $0x5a8] sm:$0xff]
    %v7644 = vld [vmem:[%s5 + $0x5b0] sm:$0xff]
    %v7645 = vld [vmem:[%s5 + $0x5b8] sm:$0xff]
    %v7646 = vld [vmem:[%s5 + $0x5c0] sm:$0xff]
    %v7647 = vld [vmem:[%s5 + $0x5c8] sm:$0xff]
    %v7648 = vld [vmem:[%s5 + $0x5d0] sm:$0xff]
    %v7649 = vld [vmem:[%s5 + $0x5d8] sm:$0xff]
    %v7650 = vld [vmem:[%s5 + $0x5e0] sm:$0xff]
    %v7651 = vld [vmem:[%s5 + $0x5e8] sm:$0xff]
    %v7652 = vld [vmem:[%s5 + $0x5f0] sm:$0xff]
    %v7653 = vld [vmem:[%s5 + $0x5f8] sm:$0xff]
    %v7654 = vld [vmem:[%s5 + $0x600] sm:$0xff]
    %v7655 = vld [vmem:[%s5 + $0x608] sm:$0xff]
    %v7656 = vld [vmem:[%s5 + $0x610] sm:$0xff]
    %v7657 = vld [vmem:[%s5 + $0x618] sm:$0xff]
    %v7658 = vld [vmem:[%s5 + $0x620] sm:$0xff]
    %v7659 = vld [vmem:[%s5 + $0x628] sm:$0xff]
    %v7660 = vld [vmem:[%s5 + $0x630] sm:$0xff]
    %v7661 = vld [vmem:[%s5 + $0x638] sm:$0xff]
    %v7662 = vld [vmem:[%s5 + $0x640] sm:$0xff]
    %v7663 = vld [vmem:[%s5 + $0x648] sm:$0xff]
    %v7664 = vld [vmem:[%s5 + $0x650] sm:$0xff]
    %v7665 = vld [vmem:[%s5 + $0x658] sm:$0xff]
    %v7666 = vld [vmem:[%s5 + $0x660] sm:$0xff]
    %v7667 = vld [vmem:[%s5 + $0x668] sm:$0xff]
    %v7668 = vld [vmem:[%s5 + $0x670] sm:$0xff]
    %v7669 = vld [vmem:[%s5 + $0x678] sm:$0xff]
    %v7670 = vld [vmem:[%s5 + $0x680] sm:$0xff]
    %v7671 = vld [vmem:[%s5 + $0x688] sm:$0xff]
    %v7672 = vld [vmem:[%s5 + $0x690] sm:$0xff]
    %v7673 = vld [vmem:[%s5 + $0x698] sm:$0xff]
    %v7674 = vld [vmem:[%s5 + $0x6a0] sm:$0xff]
    %v7675 = vld [vmem:[%s5 + $0x6a8] sm:$0xff]
    %v7676 = vld [vmem:[%s5 + $0x6b0] sm:$0xff]
    %v7677 = vld [vmem:[%s5 + $0x6b8] sm:$0xff]
    %v7678 = vld [vmem:[%s5 + $0x6c0] sm:$0xff]
    %v7679 = vld [vmem:[%s5 + $0x6c8] sm:$0xff]
    %v7680 = vld [vmem:[%s5 + $0x6d0] sm:$0xff]
    %v7681 = vld [vmem:[%s5 + $0x6d8] sm:$0xff]
    %v7682 = vld [vmem:[%s5 + $0x6e0] sm:$0xff]
    %v7683 = vld [vmem:[%s5 + $0x6e8] sm:$0xff]
    %v7684 = vld [vmem:[%s5 + $0x6f0] sm:$0xff]
    %v7685 = vld [vmem:[%s5 + $0x6f8] sm:$0xff]
    %v7686 = vld [vmem:[%s5 + $0x700] sm:$0xff]
    %v7687 = vld [vmem:[%s5 + $0x708] sm:$0xff]
    %v7688 = vld [vmem:[%s5 + $0x710] sm:$0xff]
    %v7689 = vld [vmem:[%s5 + $0x718] sm:$0xff]
    %v7690 = vld [vmem:[%s5 + $0x720] sm:$0xff]
    %v7691 = vld [vmem:[%s5 + $0x728] sm:$0xff]
    %v7692 = vld [vmem:[%s5 + $0x730] sm:$0xff]
    %v7693 = vld [vmem:[%s5 + $0x738] sm:$0xff]
    %v7694 = vld [vmem:[%s5 + $0x740] sm:$0xff]
    %v7695 = vld [vmem:[%s5 + $0x748] sm:$0xff]
    %v7696 = vld [vmem:[%s5 + $0x750] sm:$0xff]
    %v7697 = vld [vmem:[%s5 + $0x758] sm:$0xff]
    %v7698 = vld [vmem:[%s5 + $0x760] sm:$0xff]
    %v7699 = vld [vmem:[%s5 + $0x768] sm:$0xff]
    %v7700 = vld [vmem:[%s5 + $0x770] sm:$0xff]
    %v7701 = vld [vmem:[%s5 + $0x778] sm:$0xff]
    %v7702 = vld [vmem:[%s5 + $0x780] sm:$0xff]
    %v7703 = vld [vmem:[%s5 + $0x788] sm:$0xff]
    %v7704 = vld [vmem:[%s5 + $0x790] sm:$0xff]
    %v7705 = vld [vmem:[%s5 + $0x798] sm:$0xff]
    %v7706 = vld [vmem:[%s5 + $0x7a0] sm:$0xff]
    %v7707 = vld [vmem:[%s5 + $0x7a8] sm:$0xff]
    %v7708 = vld [vmem:[%s5 + $0x7b0] sm:$0xff]
    %v7709 = vld [vmem:[%s5 + $0x7b8] sm:$0xff]
    %v7710 = vld [vmem:[%s5 + $0x7c0] sm:$0xff]
    %v7711 = vld [vmem:[%s5 + $0x7c8] sm:$0xff]
    %v7712 = vld [vmem:[%s5 + $0x7d0] sm:$0xff]
    %v7713 = vld [vmem:[%s5 + $0x7d8] sm:$0xff]
    %v7714 = vld [vmem:[%s5 + $0x7e0] sm:$0xff]
    %v7715 = vld [vmem:[%s5 + $0x7e8] sm:$0xff]
    %v7716 = vld [vmem:[%s5 + $0x7f0] sm:$0xff]
    %v7717 = vld [vmem:[%s5 + $0x7f8] sm:$0xff]
    %v7718 = vld [vmem:[%s6] sm:$0xf]
    %v7720 = vperm.slane %v7718, 0
    %v7721 = vperm.slane %v7718, 1
    %v7722 = vperm.slane %v7718, 2
    %v7723 = vperm.slane %v7718, 3
    %v7984 = vunpack.c.l.b16 %v7462
    %v7985 = vunpack.c.h.b16 %v7462
    %v7986 = vunpack.c.l.b16 %v7463
    %v7987 = vunpack.c.h.b16 %v7463
    %v7988 = vunpack.c.l.b16 %v7464
    %v7989 = vunpack.c.h.b16 %v7464
    %v7990 = vunpack.c.l.b16 %v7465
    %v7991 = vunpack.c.h.b16 %v7465
    %v7992 = vunpack.c.l.b16 %v7466
    %v7993 = vunpack.c.h.b16 %v7466
    %v7994 = vunpack.c.l.b16 %v7467
    %v7995 = vunpack.c.h.b16 %v7467
    %v7996 = vunpack.c.l.b16 %v7468
    %v7997 = vunpack.c.h.b16 %v7468
    %v7998 = vunpack.c.l.b16 %v7469
    %v7999 = vunpack.c.h.b16 %v7469
    %v8000 = vunpack.c.l.b16 %v7470
    %v8001 = vunpack.c.h.b16 %v7470
    %v8002 = vunpack.c.l.b16 %v7471
    %v8003 = vunpack.c.h.b16 %v7471
    %v8004 = vunpack.c.l.b16 %v7472
    %v8005 = vunpack.c.h.b16 %v7472
    %v8006 = vunpack.c.l.b16 %v7473
    %v8007 = vunpack.c.h.b16 %v7473
    %v8008 = vunpack.c.l.b16 %v7474
    %v8009 = vunpack.c.h.b16 %v7474
    %v8010 = vunpack.c.l.b16 %v7475
    %v8011 = vunpack.c.h.b16 %v7475
    %v8012 = vunpack.c.l.b16 %v7476
    %v8013 = vunpack.c.h.b16 %v7476
    %v8014 = vunpack.c.l.b16 %v7477
    %v8015 = vunpack.c.h.b16 %v7477
    %v8016 = vunpack.c.l.b16 %v7478
    %v8017 = vunpack.c.h.b16 %v7478
    %v8018 = vunpack.c.l.b16 %v7479
    %v8019 = vunpack.c.h.b16 %v7479
    %v8020 = vunpack.c.l.b16 %v7480
    %v8021 = vunpack.c.h.b16 %v7480
    %v8022 = vunpack.c.l.b16 %v7481
    %v8023 = vunpack.c.h.b16 %v7481
    %v8024 = vunpack.c.l.b16 %v7482
    %v8025 = vunpack.c.h.b16 %v7482
    %v8026 = vunpack.c.l.b16 %v7483
    %v8027 = vunpack.c.h.b16 %v7483
    %v8028 = vunpack.c.l.b16 %v7484
    %v8029 = vunpack.c.h.b16 %v7484
    %v8030 = vunpack.c.l.b16 %v7485
    %v8031 = vunpack.c.h.b16 %v7485
    %v8032 = vunpack.c.l.b16 %v7486
    %v8033 = vunpack.c.h.b16 %v7486
    %v8034 = vunpack.c.l.b16 %v7487
    %v8035 = vunpack.c.h.b16 %v7487
    %v8036 = vunpack.c.l.b16 %v7488
    %v8037 = vunpack.c.h.b16 %v7488
    %v8038 = vunpack.c.l.b16 %v7489
    %v8039 = vunpack.c.h.b16 %v7489
    %v8040 = vunpack.c.l.b16 %v7490
    %v8041 = vunpack.c.h.b16 %v7490
    %v8042 = vunpack.c.l.b16 %v7491
    %v8043 = vunpack.c.h.b16 %v7491
    %v8044 = vunpack.c.l.b16 %v7492
    %v8045 = vunpack.c.h.b16 %v7492
    %v8046 = vunpack.c.l.b16 %v7493
    %v8047 = vunpack.c.h.b16 %v7493
    %v8048 = vunpack.c.l.b16 %v7494
    %v8049 = vunpack.c.h.b16 %v7494
    %v8050 = vunpack.c.l.b16 %v7495
    %v8051 = vunpack.c.h.b16 %v7495
    %v8052 = vunpack.c.l.b16 %v7496
    %v8053 = vunpack.c.h.b16 %v7496
    %v8054 = vunpack.c.l.b16 %v7497
    %v8055 = vunpack.c.h.b16 %v7497
    %v8056 = vunpack.c.l.b16 %v7498
    %v8057 = vunpack.c.h.b16 %v7498
    %v8058 = vunpack.c.l.b16 %v7499
    %v8059 = vunpack.c.h.b16 %v7499
    %v8060 = vunpack.c.l.b16 %v7500
    %v8061 = vunpack.c.h.b16 %v7500
    %v8062 = vunpack.c.l.b16 %v7501
    %v8063 = vunpack.c.h.b16 %v7501
    %v8064 = vunpack.c.l.b16 %v7502
    %v8065 = vunpack.c.h.b16 %v7502
    %v8066 = vunpack.c.l.b16 %v7503
    %v8067 = vunpack.c.h.b16 %v7503
    %v8068 = vunpack.c.l.b16 %v7504
    %v8069 = vunpack.c.h.b16 %v7504
    %v8070 = vunpack.c.l.b16 %v7505
    %v8071 = vunpack.c.h.b16 %v7505
    %v8072 = vunpack.c.l.b16 %v7506
    %v8073 = vunpack.c.h.b16 %v7506
    %v8074 = vunpack.c.l.b16 %v7507
    %v8075 = vunpack.c.h.b16 %v7507
    %v8076 = vunpack.c.l.b16 %v7508
    %v8077 = vunpack.c.h.b16 %v7508
    %v8078 = vunpack.c.l.b16 %v7509
    %v8079 = vunpack.c.h.b16 %v7509
    %v8080 = vunpack.c.l.b16 %v7510
    %v8081 = vunpack.c.h.b16 %v7510
    %v8082 = vunpack.c.l.b16 %v7511
    %v8083 = vunpack.c.h.b16 %v7511
    %v8084 = vunpack.c.l.b16 %v7512
    %v8085 = vunpack.c.h.b16 %v7512
    %v8086 = vunpack.c.l.b16 %v7513
    %v8087 = vunpack.c.h.b16 %v7513
    %v8088 = vunpack.c.l.b16 %v7514
    %v8089 = vunpack.c.h.b16 %v7514
    %v8090 = vunpack.c.l.b16 %v7515
    %v8091 = vunpack.c.h.b16 %v7515
    %v8092 = vunpack.c.l.b16 %v7516
    %v8093 = vunpack.c.h.b16 %v7516
    %v8094 = vunpack.c.l.b16 %v7517
    %v8095 = vunpack.c.h.b16 %v7517
    %v8096 = vunpack.c.l.b16 %v7518
    %v8097 = vunpack.c.h.b16 %v7518
    %v8098 = vunpack.c.l.b16 %v7519
    %v8099 = vunpack.c.h.b16 %v7519
    %v8100 = vunpack.c.l.b16 %v7520
    %v8101 = vunpack.c.h.b16 %v7520
    %v8102 = vunpack.c.l.b16 %v7521
    %v8103 = vunpack.c.h.b16 %v7521
    %v8104 = vunpack.c.l.b16 %v7522
    %v8105 = vunpack.c.h.b16 %v7522
    %v8106 = vunpack.c.l.b16 %v7523
    %v8107 = vunpack.c.h.b16 %v7523
    %v8108 = vunpack.c.l.b16 %v7524
    %v8109 = vunpack.c.h.b16 %v7524
    %v8110 = vunpack.c.l.b16 %v7525
    %v8111 = vunpack.c.h.b16 %v7525
    %v8112 = vunpack.c.l.b16 %v7526
    %v8113 = vunpack.c.h.b16 %v7526
    %v8114 = vunpack.c.l.b16 %v7527
    %v8115 = vunpack.c.h.b16 %v7527
    %v8116 = vunpack.c.l.b16 %v7528
    %v8117 = vunpack.c.h.b16 %v7528
    %v8118 = vunpack.c.l.b16 %v7529
    %v8119 = vunpack.c.h.b16 %v7529
    %v8120 = vunpack.c.l.b16 %v7530
    %v8121 = vunpack.c.h.b16 %v7530
    %v8122 = vunpack.c.l.b16 %v7531
    %v8123 = vunpack.c.h.b16 %v7531
    %v8124 = vunpack.c.l.b16 %v7532
    %v8125 = vunpack.c.h.b16 %v7532
    %v8126 = vunpack.c.l.b16 %v7533
    %v8127 = vunpack.c.h.b16 %v7533
    %v8128 = vunpack.c.l.b16 %v7534
    %v8129 = vunpack.c.h.b16 %v7534
    %v8130 = vunpack.c.l.b16 %v7535
    %v8131 = vunpack.c.h.b16 %v7535
    %v8132 = vunpack.c.l.b16 %v7536
    %v8133 = vunpack.c.h.b16 %v7536
    %v8134 = vunpack.c.l.b16 %v7537
    %v8135 = vunpack.c.h.b16 %v7537
    %v8136 = vunpack.c.l.b16 %v7538
    %v8137 = vunpack.c.h.b16 %v7538
    %v8138 = vunpack.c.l.b16 %v7539
    %v8139 = vunpack.c.h.b16 %v7539
    %v8140 = vunpack.c.l.b16 %v7540
    %v8141 = vunpack.c.h.b16 %v7540
    %v8142 = vunpack.c.l.b16 %v7541
    %v8143 = vunpack.c.h.b16 %v7541
    %v8144 = vunpack.c.l.b16 %v7542
    %v8145 = vunpack.c.h.b16 %v7542
    %v8146 = vunpack.c.l.b16 %v7543
    %v8147 = vunpack.c.h.b16 %v7543
    %v8148 = vunpack.c.l.b16 %v7544
    %v8149 = vunpack.c.h.b16 %v7544
    %v8150 = vunpack.c.l.b16 %v7545
    %v8151 = vunpack.c.h.b16 %v7545
    %v8152 = vunpack.c.l.b16 %v7546
    %v8153 = vunpack.c.h.b16 %v7546
    %v8154 = vunpack.c.l.b16 %v7547
    %v8155 = vunpack.c.h.b16 %v7547
    %v8156 = vunpack.c.l.b16 %v7548
    %v8157 = vunpack.c.h.b16 %v7548
    %v8158 = vunpack.c.l.b16 %v7549
    %v8159 = vunpack.c.h.b16 %v7549
    %v8160 = vunpack.c.l.b16 %v7550
    %v8161 = vunpack.c.h.b16 %v7550
    %v8162 = vunpack.c.l.b16 %v7551
    %v8163 = vunpack.c.h.b16 %v7551
    %v8164 = vunpack.c.l.b16 %v7552
    %v8165 = vunpack.c.h.b16 %v7552
    %v8166 = vunpack.c.l.b16 %v7553
    %v8167 = vunpack.c.h.b16 %v7553
    %v8168 = vunpack.c.l.b16 %v7554
    %v8169 = vunpack.c.h.b16 %v7554
    %v8170 = vunpack.c.l.b16 %v7555
    %v8171 = vunpack.c.h.b16 %v7555
    %v8172 = vunpack.c.l.b16 %v7556
    %v8173 = vunpack.c.h.b16 %v7556
    %v8174 = vunpack.c.l.b16 %v7557
    %v8175 = vunpack.c.h.b16 %v7557
    %v8176 = vunpack.c.l.b16 %v7558
    %v8177 = vunpack.c.h.b16 %v7558
    %v8178 = vunpack.c.l.b16 %v7559
    %v8179 = vunpack.c.h.b16 %v7559
    %v8180 = vunpack.c.l.b16 %v7560
    %v8181 = vunpack.c.h.b16 %v7560
    %v8182 = vunpack.c.l.b16 %v7561
    %v8183 = vunpack.c.h.b16 %v7561
    %v8184 = vunpack.c.l.b16 %v7562
    %v8185 = vunpack.c.h.b16 %v7562
    %v8186 = vunpack.c.l.b16 %v7563
    %v8187 = vunpack.c.h.b16 %v7563
    %v8188 = vunpack.c.l.b16 %v7564
    %v8189 = vunpack.c.h.b16 %v7564
    %v8190 = vunpack.c.l.b16 %v7565
    %v8191 = vunpack.c.h.b16 %v7565
    %v8192 = vunpack.c.l.b16 %v7566
    %v8193 = vunpack.c.h.b16 %v7566
    %v8194 = vunpack.c.l.b16 %v7567
    %v8195 = vunpack.c.h.b16 %v7567
    %v8196 = vunpack.c.l.b16 %v7568
    %v8197 = vunpack.c.h.b16 %v7568
    %v8198 = vunpack.c.l.b16 %v7569
    %v8199 = vunpack.c.h.b16 %v7569
    %v8200 = vunpack.c.l.b16 %v7570
    %v8201 = vunpack.c.h.b16 %v7570
    %v8202 = vunpack.c.l.b16 %v7571
    %v8203 = vunpack.c.h.b16 %v7571
    %v8204 = vunpack.c.l.b16 %v7572
    %v8205 = vunpack.c.h.b16 %v7572
    %v8206 = vunpack.c.l.b16 %v7573
    %v8207 = vunpack.c.h.b16 %v7573
    %v8208 = vunpack.c.l.b16 %v7574
    %v8209 = vunpack.c.h.b16 %v7574
    %v8210 = vunpack.c.l.b16 %v7575
    %v8211 = vunpack.c.h.b16 %v7575
    %v8212 = vunpack.c.l.b16 %v7576
    %v8213 = vunpack.c.h.b16 %v7576
    %v8214 = vunpack.c.l.b16 %v7577
    %v8215 = vunpack.c.h.b16 %v7577
    %v8216 = vunpack.c.l.b16 %v7578
    %v8217 = vunpack.c.h.b16 %v7578
    %v8218 = vunpack.c.l.b16 %v7579
    %v8219 = vunpack.c.h.b16 %v7579
    %v8220 = vunpack.c.l.b16 %v7580
    %v8221 = vunpack.c.h.b16 %v7580
    %v8222 = vunpack.c.l.b16 %v7581
    %v8223 = vunpack.c.h.b16 %v7581
    %v8224 = vunpack.c.l.b16 %v7582
    %v8225 = vunpack.c.h.b16 %v7582
    %v8226 = vunpack.c.l.b16 %v7583
    %v8227 = vunpack.c.h.b16 %v7583
    %v8228 = vunpack.c.l.b16 %v7584
    %v8229 = vunpack.c.h.b16 %v7584
    %v8230 = vunpack.c.l.b16 %v7585
    %v8231 = vunpack.c.h.b16 %v7585
    %v8232 = vunpack.c.l.b16 %v7586
    %v8233 = vunpack.c.h.b16 %v7586
    %v8234 = vunpack.c.l.b16 %v7587
    %v8235 = vunpack.c.h.b16 %v7587
    %v8236 = vunpack.c.l.b16 %v7588
    %v8237 = vunpack.c.h.b16 %v7588
    %v8238 = vunpack.c.l.b16 %v7589
    %v8239 = vunpack.c.h.b16 %v7589
    %v8240 = vunpack.c.l.b16 %v7590
    %v8241 = vunpack.c.h.b16 %v7590
    %v8242 = vunpack.c.l.b16 %v7591
    %v8243 = vunpack.c.h.b16 %v7591
    %v8244 = vunpack.c.l.b16 %v7592
    %v8245 = vunpack.c.h.b16 %v7592
    %v8246 = vunpack.c.l.b16 %v7593
    %v8247 = vunpack.c.h.b16 %v7593
    %v8248 = vunpack.c.l.b16 %v7594
    %v8249 = vunpack.c.h.b16 %v7594
    %v8250 = vunpack.c.l.b16 %v7595
    %v8251 = vunpack.c.h.b16 %v7595
    %v8252 = vunpack.c.l.b16 %v7596
    %v8253 = vunpack.c.h.b16 %v7596
    %v8254 = vunpack.c.l.b16 %v7597
    %v8255 = vunpack.c.h.b16 %v7597
    %v8256 = vunpack.c.l.b16 %v7598
    %v8257 = vunpack.c.h.b16 %v7598
    %v8258 = vunpack.c.l.b16 %v7599
    %v8259 = vunpack.c.h.b16 %v7599
    %v8260 = vunpack.c.l.b16 %v7600
    %v8261 = vunpack.c.h.b16 %v7600
    %v8262 = vunpack.c.l.b16 %v7601
    %v8263 = vunpack.c.h.b16 %v7601
    %v8264 = vunpack.c.l.b16 %v7602
    %v8265 = vunpack.c.h.b16 %v7602
    %v8266 = vunpack.c.l.b16 %v7603
    %v8267 = vunpack.c.h.b16 %v7603
    %v8268 = vunpack.c.l.b16 %v7604
    %v8269 = vunpack.c.h.b16 %v7604
    %v8270 = vunpack.c.l.b16 %v7605
    %v8271 = vunpack.c.h.b16 %v7605
    %v8272 = vunpack.c.l.b16 %v7606
    %v8273 = vunpack.c.h.b16 %v7606
    %v8274 = vunpack.c.l.b16 %v7607
    %v8275 = vunpack.c.h.b16 %v7607
    %v8276 = vunpack.c.l.b16 %v7608
    %v8277 = vunpack.c.h.b16 %v7608
    %v8278 = vunpack.c.l.b16 %v7609
    %v8279 = vunpack.c.h.b16 %v7609
    %v8280 = vunpack.c.l.b16 %v7610
    %v8281 = vunpack.c.h.b16 %v7610
    %v8282 = vunpack.c.l.b16 %v7611
    %v8283 = vunpack.c.h.b16 %v7611
    %v8284 = vunpack.c.l.b16 %v7612
    %v8285 = vunpack.c.h.b16 %v7612
    %v8286 = vunpack.c.l.b16 %v7613
    %v8287 = vunpack.c.h.b16 %v7613
    %v8288 = vunpack.c.l.b16 %v7614
    %v8289 = vunpack.c.h.b16 %v7614
    %v8290 = vunpack.c.l.b16 %v7615
    %v8291 = vunpack.c.h.b16 %v7615
    %v8292 = vunpack.c.l.b16 %v7616
    %v8293 = vunpack.c.h.b16 %v7616
    %v8294 = vunpack.c.l.b16 %v7617
    %v8295 = vunpack.c.h.b16 %v7617
    %v8296 = vunpack.c.l.b16 %v7618
    %v8297 = vunpack.c.h.b16 %v7618
    %v8298 = vunpack.c.l.b16 %v7619
    %v8299 = vunpack.c.h.b16 %v7619
    %v8300 = vunpack.c.l.b16 %v7620
    %v8301 = vunpack.c.h.b16 %v7620
    %v8302 = vunpack.c.l.b16 %v7621
    %v8303 = vunpack.c.h.b16 %v7621
    %v8304 = vunpack.c.l.b16 %v7622
    %v8305 = vunpack.c.h.b16 %v7622
    %v8306 = vunpack.c.l.b16 %v7623
    %v8307 = vunpack.c.h.b16 %v7623
    %v8308 = vunpack.c.l.b16 %v7624
    %v8309 = vunpack.c.h.b16 %v7624
    %v8310 = vunpack.c.l.b16 %v7625
    %v8311 = vunpack.c.h.b16 %v7625
    %v8312 = vunpack.c.l.b16 %v7626
    %v8313 = vunpack.c.h.b16 %v7626
    %v8314 = vunpack.c.l.b16 %v7627
    %v8315 = vunpack.c.h.b16 %v7627
    %v8316 = vunpack.c.l.b16 %v7628
    %v8317 = vunpack.c.h.b16 %v7628
    %v8318 = vunpack.c.l.b16 %v7629
    %v8319 = vunpack.c.h.b16 %v7629
    %v8320 = vunpack.c.l.b16 %v7630
    %v8321 = vunpack.c.h.b16 %v7630
    %v8322 = vunpack.c.l.b16 %v7631
    %v8323 = vunpack.c.h.b16 %v7631
    %v8324 = vunpack.c.l.b16 %v7632
    %v8325 = vunpack.c.h.b16 %v7632
    %v8326 = vunpack.c.l.b16 %v7633
    %v8327 = vunpack.c.h.b16 %v7633
    %v8328 = vunpack.c.l.b16 %v7634
    %v8329 = vunpack.c.h.b16 %v7634
    %v8330 = vunpack.c.l.b16 %v7635
    %v8331 = vunpack.c.h.b16 %v7635
    %v8332 = vunpack.c.l.b16 %v7636
    %v8333 = vunpack.c.h.b16 %v7636
    %v8334 = vunpack.c.l.b16 %v7637
    %v8335 = vunpack.c.h.b16 %v7637
    %v8336 = vunpack.c.l.b16 %v7638
    %v8337 = vunpack.c.h.b16 %v7638
    %v8338 = vunpack.c.l.b16 %v7639
    %v8339 = vunpack.c.h.b16 %v7639
    %v8340 = vunpack.c.l.b16 %v7640
    %v8341 = vunpack.c.h.b16 %v7640
    %v8342 = vunpack.c.l.b16 %v7641
    %v8343 = vunpack.c.h.b16 %v7641
    %v8344 = vunpack.c.l.b16 %v7642
    %v8345 = vunpack.c.h.b16 %v7642
    %v8346 = vunpack.c.l.b16 %v7643
    %v8347 = vunpack.c.h.b16 %v7643
    %v8348 = vunpack.c.l.b16 %v7644
    %v8349 = vunpack.c.h.b16 %v7644
    %v8350 = vunpack.c.l.b16 %v7645
    %v8351 = vunpack.c.h.b16 %v7645
    %v8352 = vunpack.c.l.b16 %v7646
    %v8353 = vunpack.c.h.b16 %v7646
    %v8354 = vunpack.c.l.b16 %v7647
    %v8355 = vunpack.c.h.b16 %v7647
    %v8356 = vunpack.c.l.b16 %v7648
    %v8357 = vunpack.c.h.b16 %v7648
    %v8358 = vunpack.c.l.b16 %v7649
    %v8359 = vunpack.c.h.b16 %v7649
    %v8360 = vunpack.c.l.b16 %v7650
    %v8361 = vunpack.c.h.b16 %v7650
    %v8362 = vunpack.c.l.b16 %v7651
    %v8363 = vunpack.c.h.b16 %v7651
    %v8364 = vunpack.c.l.b16 %v7652
    %v8365 = vunpack.c.h.b16 %v7652
    %v8366 = vunpack.c.l.b16 %v7653
    %v8367 = vunpack.c.h.b16 %v7653
    %v8368 = vunpack.c.l.b16 %v7654
    %v8369 = vunpack.c.h.b16 %v7654
    %v8370 = vunpack.c.l.b16 %v7655
    %v8371 = vunpack.c.h.b16 %v7655
    %v8372 = vunpack.c.l.b16 %v7656
    %v8373 = vunpack.c.h.b16 %v7656
    %v8374 = vunpack.c.l.b16 %v7657
    %v8375 = vunpack.c.h.b16 %v7657
    %v8376 = vunpack.c.l.b16 %v7658
    %v8377 = vunpack.c.h.b16 %v7658
    %v8378 = vunpack.c.l.b16 %v7659
    %v8379 = vunpack.c.h.b16 %v7659
    %v8380 = vunpack.c.l.b16 %v7660
    %v8381 = vunpack.c.h.b16 %v7660
    %v8382 = vunpack.c.l.b16 %v7661
    %v8383 = vunpack.c.h.b16 %v7661
    %v8384 = vunpack.c.l.b16 %v7662
    %v8385 = vunpack.c.h.b16 %v7662
    %v8386 = vunpack.c.l.b16 %v7663
    %v8387 = vunpack.c.h.b16 %v7663
    %v8388 = vunpack.c.l.b16 %v7664
    %v8389 = vunpack.c.h.b16 %v7664
    %v8390 = vunpack.c.l.b16 %v7665
    %v8391 = vunpack.c.h.b16 %v7665
    %v8392 = vunpack.c.l.b16 %v7666
    %v8393 = vunpack.c.h.b16 %v7666
    %v8394 = vunpack.c.l.b16 %v7667
    %v8395 = vunpack.c.h.b16 %v7667
    %v8396 = vunpack.c.l.b16 %v7668
    %v8397 = vunpack.c.h.b16 %v7668
    %v8398 = vunpack.c.l.b16 %v7669
    %v8399 = vunpack.c.h.b16 %v7669
    %v8400 = vunpack.c.l.b16 %v7670
    %v8401 = vunpack.c.h.b16 %v7670
    %v8402 = vunpack.c.l.b16 %v7671
    %v8403 = vunpack.c.h.b16 %v7671
    %v8404 = vunpack.c.l.b16 %v7672
    %v8405 = vunpack.c.h.b16 %v7672
    %v8406 = vunpack.c.l.b16 %v7673
    %v8407 = vunpack.c.h.b16 %v7673
    %v8408 = vunpack.c.l.b16 %v7674
    %v8409 = vunpack.c.h.b16 %v7674
    %v8410 = vunpack.c.l.b16 %v7675
    %v8411 = vunpack.c.h.b16 %v7675
    %v8412 = vunpack.c.l.b16 %v7676
    %v8413 = vunpack.c.h.b16 %v7676
    %v8414 = vunpack.c.l.b16 %v7677
    %v8415 = vunpack.c.h.b16 %v7677
    %v8416 = vunpack.c.l.b16 %v7678
    %v8417 = vunpack.c.h.b16 %v7678
    %v8418 = vunpack.c.l.b16 %v7679
    %v8419 = vunpack.c.h.b16 %v7679
    %v8420 = vunpack.c.l.b16 %v7680
    %v8421 = vunpack.c.h.b16 %v7680
    %v8422 = vunpack.c.l.b16 %v7681
    %v8423 = vunpack.c.h.b16 %v7681
    %v8424 = vunpack.c.l.b16 %v7682
    %v8425 = vunpack.c.h.b16 %v7682
    %v8426 = vunpack.c.l.b16 %v7683
    %v8427 = vunpack.c.h.b16 %v7683
    %v8428 = vunpack.c.l.b16 %v7684
    %v8429 = vunpack.c.h.b16 %v7684
    %v8430 = vunpack.c.l.b16 %v7685
    %v8431 = vunpack.c.h.b16 %v7685
    %v8432 = vunpack.c.l.b16 %v7686
    %v8433 = vunpack.c.h.b16 %v7686
    %v8434 = vunpack.c.l.b16 %v7687
    %v8435 = vunpack.c.h.b16 %v7687
    %v8436 = vunpack.c.l.b16 %v7688
    %v8437 = vunpack.c.h.b16 %v7688
    %v8438 = vunpack.c.l.b16 %v7689
    %v8439 = vunpack.c.h.b16 %v7689
    %v8440 = vunpack.c.l.b16 %v7690
    %v8441 = vunpack.c.h.b16 %v7690
    %v8442 = vunpack.c.l.b16 %v7691
    %v8443 = vunpack.c.h.b16 %v7691
    %v8444 = vunpack.c.l.b16 %v7692
    %v8445 = vunpack.c.h.b16 %v7692
    %v8446 = vunpack.c.l.b16 %v7693
    %v8447 = vunpack.c.h.b16 %v7693
    %v8448 = vunpack.c.l.b16 %v7694
    %v8449 = vunpack.c.h.b16 %v7694
    %v8450 = vunpack.c.l.b16 %v7695
    %v8451 = vunpack.c.h.b16 %v7695
    %v8452 = vunpack.c.l.b16 %v7696
    %v8453 = vunpack.c.h.b16 %v7696
    %v8454 = vunpack.c.l.b16 %v7697
    %v8455 = vunpack.c.h.b16 %v7697
    %v8456 = vunpack.c.l.b16 %v7698
    %v8457 = vunpack.c.h.b16 %v7698
    %v8458 = vunpack.c.l.b16 %v7699
    %v8459 = vunpack.c.h.b16 %v7699
    %v8460 = vunpack.c.l.b16 %v7700
    %v8461 = vunpack.c.h.b16 %v7700
    %v8462 = vunpack.c.l.b16 %v7701
    %v8463 = vunpack.c.h.b16 %v7701
    %v8464 = vunpack.c.l.b16 %v7702
    %v8465 = vunpack.c.h.b16 %v7702
    %v8466 = vunpack.c.l.b16 %v7703
    %v8467 = vunpack.c.h.b16 %v7703
    %v8468 = vunpack.c.l.b16 %v7704
    %v8469 = vunpack.c.h.b16 %v7704
    %v8470 = vunpack.c.l.b16 %v7705
    %v8471 = vunpack.c.h.b16 %v7705
    %v8472 = vunpack.c.l.b16 %v7706
    %v8473 = vunpack.c.h.b16 %v7706
    %v8474 = vunpack.c.l.b16 %v7707
    %v8475 = vunpack.c.h.b16 %v7707
    %v8476 = vunpack.c.l.b16 %v7708
    %v8477 = vunpack.c.h.b16 %v7708
    %v8478 = vunpack.c.l.b16 %v7709
    %v8479 = vunpack.c.h.b16 %v7709
    %v8480 = vunpack.c.l.b16 %v7710
    %v8481 = vunpack.c.h.b16 %v7710
    %v8482 = vunpack.c.l.b16 %v7711
    %v8483 = vunpack.c.h.b16 %v7711
    %v8484 = vunpack.c.l.b16 %v7712
    %v8485 = vunpack.c.h.b16 %v7712
    %v8486 = vunpack.c.l.b16 %v7713
    %v8487 = vunpack.c.h.b16 %v7713
    %v8488 = vunpack.c.l.b16 %v7714
    %v8489 = vunpack.c.h.b16 %v7714
    %v8490 = vunpack.c.l.b16 %v7715
    %v8491 = vunpack.c.h.b16 %v7715
    %v8492 = vunpack.c.l.b16 %v7716
    %v8493 = vunpack.c.h.b16 %v7716
    %v8494 = vunpack.c.l.b16 %v7717
    %v8495 = vunpack.c.h.b16 %v7717
    %v8496 = vpack.c.b16 %v7988, %v7984
    %v8497 = vpack.c.b16 %v7989, %v7985
    %v8498 = vpack.c.b16 %v7990, %v7986
    %v8499 = vpack.c.b16 %v7991, %v7987
    %v8500 = vpack.c.b16 %v7996, %v7992
    %v8501 = vpack.c.b16 %v7997, %v7993
    %v8502 = vpack.c.b16 %v7998, %v7994
    %v8503 = vpack.c.b16 %v7999, %v7995
    %v8504 = vpack.c.b16 %v8004, %v8000
    %v8505 = vpack.c.b16 %v8005, %v8001
    %v8506 = vpack.c.b16 %v8006, %v8002
    %v8507 = vpack.c.b16 %v8007, %v8003
    %v8508 = vpack.c.b16 %v8012, %v8008
    %v8509 = vpack.c.b16 %v8013, %v8009
    %v8510 = vpack.c.b16 %v8014, %v8010
    %v8511 = vpack.c.b16 %v8015, %v8011
    %v8512 = vpack.c.b16 %v8020, %v8016
    %v8513 = vpack.c.b16 %v8021, %v8017
    %v8514 = vpack.c.b16 %v8022, %v8018
    %v8515 = vpack.c.b16 %v8023, %v8019
    %v8516 = vpack.c.b16 %v8028, %v8024
    %v8517 = vpack.c.b16 %v8029, %v8025
    %v8518 = vpack.c.b16 %v8030, %v8026
    %v8519 = vpack.c.b16 %v8031, %v8027
    %v8520 = vpack.c.b16 %v8036, %v8032
    %v8521 = vpack.c.b16 %v8037, %v8033
    %v8522 = vpack.c.b16 %v8038, %v8034
    %v8523 = vpack.c.b16 %v8039, %v8035
    %v8524 = vpack.c.b16 %v8044, %v8040
    %v8525 = vpack.c.b16 %v8045, %v8041
    %v8526 = vpack.c.b16 %v8046, %v8042
    %v8527 = vpack.c.b16 %v8047, %v8043
    %v8528 = vpack.c.b16 %v8052, %v8048
    %v8529 = vpack.c.b16 %v8053, %v8049
    %v8530 = vpack.c.b16 %v8054, %v8050
    %v8531 = vpack.c.b16 %v8055, %v8051
    %v8532 = vpack.c.b16 %v8060, %v8056
    %v8533 = vpack.c.b16 %v8061, %v8057
    %v8534 = vpack.c.b16 %v8062, %v8058
    %v8535 = vpack.c.b16 %v8063, %v8059
    %v8536 = vpack.c.b16 %v8068, %v8064
    %v8537 = vpack.c.b16 %v8069, %v8065
    %v8538 = vpack.c.b16 %v8070, %v8066
    %v8539 = vpack.c.b16 %v8071, %v8067
    %v8540 = vpack.c.b16 %v8076, %v8072
    %v8541 = vpack.c.b16 %v8077, %v8073
    %v8542 = vpack.c.b16 %v8078, %v8074
    %v8543 = vpack.c.b16 %v8079, %v8075
    %v8544 = vpack.c.b16 %v8084, %v8080
    %v8545 = vpack.c.b16 %v8085, %v8081
    %v8546 = vpack.c.b16 %v8086, %v8082
    %v8547 = vpack.c.b16 %v8087, %v8083
    %v8548 = vpack.c.b16 %v8092, %v8088
    %v8549 = vpack.c.b16 %v8093, %v8089
    %v8550 = vpack.c.b16 %v8094, %v8090
    %v8551 = vpack.c.b16 %v8095, %v8091
    %v8552 = vpack.c.b16 %v8100, %v8096
    %v8553 = vpack.c.b16 %v8101, %v8097
    %v8554 = vpack.c.b16 %v8102, %v8098
    %v8555 = vpack.c.b16 %v8103, %v8099
    %v8556 = vpack.c.b16 %v8108, %v8104
    %v8557 = vpack.c.b16 %v8109, %v8105
    %v8558 = vpack.c.b16 %v8110, %v8106
    %v8559 = vpack.c.b16 %v8111, %v8107
    %v8560 = vpack.c.b16 %v8116, %v8112
    %v8561 = vpack.c.b16 %v8117, %v8113
    %v8562 = vpack.c.b16 %v8118, %v8114
    %v8563 = vpack.c.b16 %v8119, %v8115
    %v8564 = vpack.c.b16 %v8124, %v8120
    %v8565 = vpack.c.b16 %v8125, %v8121
    %v8566 = vpack.c.b16 %v8126, %v8122
    %v8567 = vpack.c.b16 %v8127, %v8123
    %v8568 = vpack.c.b16 %v8132, %v8128
    %v8569 = vpack.c.b16 %v8133, %v8129
    %v8570 = vpack.c.b16 %v8134, %v8130
    %v8571 = vpack.c.b16 %v8135, %v8131
    %v8572 = vpack.c.b16 %v8140, %v8136
    %v8573 = vpack.c.b16 %v8141, %v8137
    %v8574 = vpack.c.b16 %v8142, %v8138
    %v8575 = vpack.c.b16 %v8143, %v8139
    %v8576 = vpack.c.b16 %v8148, %v8144
    %v8577 = vpack.c.b16 %v8149, %v8145
    %v8578 = vpack.c.b16 %v8150, %v8146
    %v8579 = vpack.c.b16 %v8151, %v8147
    %v8580 = vpack.c.b16 %v8156, %v8152
    %v8581 = vpack.c.b16 %v8157, %v8153
    %v8582 = vpack.c.b16 %v8158, %v8154
    %v8583 = vpack.c.b16 %v8159, %v8155
    %v8584 = vpack.c.b16 %v8164, %v8160
    %v8585 = vpack.c.b16 %v8165, %v8161
    %v8586 = vpack.c.b16 %v8166, %v8162
    %v8587 = vpack.c.b16 %v8167, %v8163
    %v8588 = vpack.c.b16 %v8172, %v8168
    %v8589 = vpack.c.b16 %v8173, %v8169
    %v8590 = vpack.c.b16 %v8174, %v8170
    %v8591 = vpack.c.b16 %v8175, %v8171
    %v8592 = vpack.c.b16 %v8180, %v8176
    %v8593 = vpack.c.b16 %v8181, %v8177
    %v8594 = vpack.c.b16 %v8182, %v8178
    %v8595 = vpack.c.b16 %v8183, %v8179
    %v8596 = vpack.c.b16 %v8188, %v8184
    %v8597 = vpack.c.b16 %v8189, %v8185
    %v8598 = vpack.c.b16 %v8190, %v8186
    %v8599 = vpack.c.b16 %v8191, %v8187
    %v8600 = vpack.c.b16 %v8196, %v8192
    %v8601 = vpack.c.b16 %v8197, %v8193
    %v8602 = vpack.c.b16 %v8198, %v8194
    %v8603 = vpack.c.b16 %v8199, %v8195
    %v8604 = vpack.c.b16 %v8204, %v8200
    %v8605 = vpack.c.b16 %v8205, %v8201
    %v8606 = vpack.c.b16 %v8206, %v8202
    %v8607 = vpack.c.b16 %v8207, %v8203
    %v8608 = vpack.c.b16 %v8212, %v8208
    %v8609 = vpack.c.b16 %v8213, %v8209
    %v8610 = vpack.c.b16 %v8214, %v8210
    %v8611 = vpack.c.b16 %v8215, %v8211
    %v8612 = vpack.c.b16 %v8220, %v8216
    %v8613 = vpack.c.b16 %v8221, %v8217
    %v8614 = vpack.c.b16 %v8222, %v8218
    %v8615 = vpack.c.b16 %v8223, %v8219
    %v8616 = vpack.c.b16 %v8228, %v8224
    %v8617 = vpack.c.b16 %v8229, %v8225
    %v8618 = vpack.c.b16 %v8230, %v8226
    %v8619 = vpack.c.b16 %v8231, %v8227
    %v8620 = vpack.c.b16 %v8236, %v8232
    %v8621 = vpack.c.b16 %v8237, %v8233
    %v8622 = vpack.c.b16 %v8238, %v8234
    %v8623 = vpack.c.b16 %v8239, %v8235
    %v8624 = vpack.c.b16 %v8244, %v8240
    %v8625 = vpack.c.b16 %v8245, %v8241
    %v8626 = vpack.c.b16 %v8246, %v8242
    %v8627 = vpack.c.b16 %v8247, %v8243
    %v8628 = vpack.c.b16 %v8252, %v8248
    %v8629 = vpack.c.b16 %v8253, %v8249
    %v8630 = vpack.c.b16 %v8254, %v8250
    %v8631 = vpack.c.b16 %v8255, %v8251
    %v8632 = vpack.c.b16 %v8260, %v8256
    %v8633 = vpack.c.b16 %v8261, %v8257
    %v8634 = vpack.c.b16 %v8262, %v8258
    %v8635 = vpack.c.b16 %v8263, %v8259
    %v8636 = vpack.c.b16 %v8268, %v8264
    %v8637 = vpack.c.b16 %v8269, %v8265
    %v8638 = vpack.c.b16 %v8270, %v8266
    %v8639 = vpack.c.b16 %v8271, %v8267
    %v8640 = vpack.c.b16 %v8276, %v8272
    %v8641 = vpack.c.b16 %v8277, %v8273
    %v8642 = vpack.c.b16 %v8278, %v8274
    %v8643 = vpack.c.b16 %v8279, %v8275
    %v8644 = vpack.c.b16 %v8284, %v8280
    %v8645 = vpack.c.b16 %v8285, %v8281
    %v8646 = vpack.c.b16 %v8286, %v8282
    %v8647 = vpack.c.b16 %v8287, %v8283
    %v8648 = vpack.c.b16 %v8292, %v8288
    %v8649 = vpack.c.b16 %v8293, %v8289
    %v8650 = vpack.c.b16 %v8294, %v8290
    %v8651 = vpack.c.b16 %v8295, %v8291
    %v8652 = vpack.c.b16 %v8300, %v8296
    %v8653 = vpack.c.b16 %v8301, %v8297
    %v8654 = vpack.c.b16 %v8302, %v8298
    %v8655 = vpack.c.b16 %v8303, %v8299
    %v8656 = vpack.c.b16 %v8308, %v8304
    %v8657 = vpack.c.b16 %v8309, %v8305
    %v8658 = vpack.c.b16 %v8310, %v8306
    %v8659 = vpack.c.b16 %v8311, %v8307
    %v8660 = vpack.c.b16 %v8316, %v8312
    %v8661 = vpack.c.b16 %v8317, %v8313
    %v8662 = vpack.c.b16 %v8318, %v8314
    %v8663 = vpack.c.b16 %v8319, %v8315
    %v8664 = vpack.c.b16 %v8324, %v8320
    %v8665 = vpack.c.b16 %v8325, %v8321
    %v8666 = vpack.c.b16 %v8326, %v8322
    %v8667 = vpack.c.b16 %v8327, %v8323
    %v8668 = vpack.c.b16 %v8332, %v8328
    %v8669 = vpack.c.b16 %v8333, %v8329
    %v8670 = vpack.c.b16 %v8334, %v8330
    %v8671 = vpack.c.b16 %v8335, %v8331
    %v8672 = vpack.c.b16 %v8340, %v8336
    %v8673 = vpack.c.b16 %v8341, %v8337
    %v8674 = vpack.c.b16 %v8342, %v8338
    %v8675 = vpack.c.b16 %v8343, %v8339
    %v8676 = vpack.c.b16 %v8348, %v8344
    %v8677 = vpack.c.b16 %v8349, %v8345
    %v8678 = vpack.c.b16 %v8350, %v8346
    %v8679 = vpack.c.b16 %v8351, %v8347
    %v8680 = vpack.c.b16 %v8356, %v8352
    %v8681 = vpack.c.b16 %v8357, %v8353
    %v8682 = vpack.c.b16 %v8358, %v8354
    %v8683 = vpack.c.b16 %v8359, %v8355
    %v8684 = vpack.c.b16 %v8364, %v8360
    %v8685 = vpack.c.b16 %v8365, %v8361
    %v8686 = vpack.c.b16 %v8366, %v8362
    %v8687 = vpack.c.b16 %v8367, %v8363
    %v8688 = vpack.c.b16 %v8372, %v8368
    %v8689 = vpack.c.b16 %v8373, %v8369
    %v8690 = vpack.c.b16 %v8374, %v8370
    %v8691 = vpack.c.b16 %v8375, %v8371
    %v8692 = vpack.c.b16 %v8380, %v8376
    %v8693 = vpack.c.b16 %v8381, %v8377
    %v8694 = vpack.c.b16 %v8382, %v8378
    %v8695 = vpack.c.b16 %v8383, %v8379
    %v8696 = vpack.c.b16 %v8388, %v8384
    %v8697 = vpack.c.b16 %v8389, %v8385
    %v8698 = vpack.c.b16 %v8390, %v8386
    %v8699 = vpack.c.b16 %v8391, %v8387
    %v8700 = vpack.c.b16 %v8396, %v8392
    %v8701 = vpack.c.b16 %v8397, %v8393
    %v8702 = vpack.c.b16 %v8398, %v8394
    %v8703 = vpack.c.b16 %v8399, %v8395
    %v8704 = vpack.c.b16 %v8404, %v8400
    %v8705 = vpack.c.b16 %v8405, %v8401
    %v8706 = vpack.c.b16 %v8406, %v8402
    %v8707 = vpack.c.b16 %v8407, %v8403
    %v8708 = vpack.c.b16 %v8412, %v8408
    %v8709 = vpack.c.b16 %v8413, %v8409
    %v8710 = vpack.c.b16 %v8414, %v8410
    %v8711 = vpack.c.b16 %v8415, %v8411
    %v8712 = vpack.c.b16 %v8420, %v8416
    %v8713 = vpack.c.b16 %v8421, %v8417
    %v8714 = vpack.c.b16 %v8422, %v8418
    %v8715 = vpack.c.b16 %v8423, %v8419
    %v8716 = vpack.c.b16 %v8428, %v8424
    %v8717 = vpack.c.b16 %v8429, %v8425
    %v8718 = vpack.c.b16 %v8430, %v8426
    %v8719 = vpack.c.b16 %v8431, %v8427
    %v8720 = vpack.c.b16 %v8436, %v8432
    %v8721 = vpack.c.b16 %v8437, %v8433
    %v8722 = vpack.c.b16 %v8438, %v8434
    %v8723 = vpack.c.b16 %v8439, %v8435
    %v8724 = vpack.c.b16 %v8444, %v8440
    %v8725 = vpack.c.b16 %v8445, %v8441
    %v8726 = vpack.c.b16 %v8446, %v8442
    %v8727 = vpack.c.b16 %v8447, %v8443
    %v8728 = vpack.c.b16 %v8452, %v8448
    %v8729 = vpack.c.b16 %v8453, %v8449
    %v8730 = vpack.c.b16 %v8454, %v8450
    %v8731 = vpack.c.b16 %v8455, %v8451
    %v8732 = vpack.c.b16 %v8460, %v8456
    %v8733 = vpack.c.b16 %v8461, %v8457
    %v8734 = vpack.c.b16 %v8462, %v8458
    %v8735 = vpack.c.b16 %v8463, %v8459
    %v8736 = vpack.c.b16 %v8468, %v8464
    %v8737 = vpack.c.b16 %v8469, %v8465
    %v8738 = vpack.c.b16 %v8470, %v8466
    %v8739 = vpack.c.b16 %v8471, %v8467
    %v8740 = vpack.c.b16 %v8476, %v8472
    %v8741 = vpack.c.b16 %v8477, %v8473
    %v8742 = vpack.c.b16 %v8478, %v8474
    %v8743 = vpack.c.b16 %v8479, %v8475
    %v8744 = vpack.c.b16 %v8484, %v8480
    %v8745 = vpack.c.b16 %v8485, %v8481
    %v8746 = vpack.c.b16 %v8486, %v8482
    %v8747 = vpack.c.b16 %v8487, %v8483
    %v8748 = vpack.c.b16 %v8492, %v8488
    %v8749 = vpack.c.b16 %v8493, %v8489
    %v8750 = vpack.c.b16 %v8494, %v8490
    %v8751 = vpack.c.b16 %v8495, %v8491
    %9008 = vmatpush.bf16.msra.mxu0 %v8524
    %9009 = vmatpush.bf16.msra.mxu0 %v8520
    %9010 = vmatpush.bf16.msra.mxu0 %v8516
    %9011 = vmatpush.bf16.msra.mxu0 %v8512
    %9012 = vmatpush.bf16.msra.mxu0 %v8508
    %9013 = vmatpush.bf16.msra.mxu0 %v8504
    %9014 = vmatpush.bf16.msra.mxu0 %v8500
    %9015 = vmatpush.bf16.msra.mxu0 %v8496
    %9016 = vmatmul.bf16.gmra.mxu0 %v7454
    %v9017 = vpop.f32.mrf.mxu0
    %v9018 = vadd.f32 %v7720, %v9017
    %v9019 = vpop.f32.mrf.mxu0
    %9020 = vdwg.mxu0
    %9021 = vmatpush.bf16.msra.mxu0 %v8556
    %9022 = vmatpush.bf16.msra.mxu0 %v8552
    %9023 = vmatpush.bf16.msra.mxu0 %v8548
    %9024 = vmatpush.bf16.msra.mxu0 %v8544
    %9025 = vmatpush.bf16.msra.mxu0 %v8540
    %9026 = vmatpush.bf16.msra.mxu0 %v8536
    %9027 = vmatpush.bf16.msra.mxu0 %v8532
    %9028 = vmatpush.bf16.msra.mxu0 %v8528
    %9029 = vmatmul.bf16.gmra.mxu0 %v7455
    %v9030 = vpop.f32.mrf.mxu0
    %v9031 = vadd.f32 %v9018, %v9030
    %v9032 = vpop.f32.mrf.mxu0
    %9033 = vdwg.mxu0
    %9034 = vmatpush.bf16.msra.mxu0 %v8588
    %9035 = vmatpush.bf16.msra.mxu0 %v8584
    %9036 = vmatpush.bf16.msra.mxu0 %v8580
    %9037 = vmatpush.bf16.msra.mxu0 %v8576
    %9038 = vmatpush.bf16.msra.mxu0 %v8572
    %9039 = vmatpush.bf16.msra.mxu0 %v8568
    %9040 = vmatpush.bf16.msra.mxu0 %v8564
    %9041 = vmatpush.bf16.msra.mxu0 %v8560
    %9042 = vmatmul.bf16.gmra.mxu0 %v7456
    %v9043 = vpop.f32.mrf.mxu0
    %v9044 = vadd.f32 %v9031, %v9043
    %v9045 = vpop.f32.mrf.mxu0
    %9046 = vdwg.mxu0
    %9047 = vmatpush.bf16.msra.mxu0 %v8620
    %9048 = vmatpush.bf16.msra.mxu0 %v8616
    %9049 = vmatpush.bf16.msra.mxu0 %v8612
    %9050 = vmatpush.bf16.msra.mxu0 %v8608
    %9051 = vmatpush.bf16.msra.mxu0 %v8604
    %9052 = vmatpush.bf16.msra.mxu0 %v8600
    %9053 = vmatpush.bf16.msra.mxu0 %v8596
    %9054 = vmatpush.bf16.msra.mxu0 %v8592
    %9055 = vmatmul.bf16.gmra.mxu0 %v7457
    %v9056 = vpop.f32.mrf.mxu0
    %v9057 = vadd.f32 %v9044, %v9056
    %v9058 = vpop.f32.mrf.mxu0
    %9059 = vdwg.mxu0
    %9060 = vmatpush.bf16.msra.mxu0 %v8652
    %9061 = vmatpush.bf16.msra.mxu0 %v8648
    %9062 = vmatpush.bf16.msra.mxu0 %v8644
    %9063 = vmatpush.bf16.msra.mxu0 %v8640
    %9064 = vmatpush.bf16.msra.mxu0 %v8636
    %9065 = vmatpush.bf16.msra.mxu0 %v8632
    %9066 = vmatpush.bf16.msra.mxu0 %v8628
    %9067 = vmatpush.bf16.msra.mxu0 %v8624
    %9068 = vmatmul.bf16.gmra.mxu0 %v7458
    %v9069 = vpop.f32.mrf.mxu0
    %v9070 = vadd.f32 %v9057, %v9069
    %v9071 = vpop.f32.mrf.mxu0
    %9072 = vdwg.mxu0
    %9073 = vmatpush.bf16.msra.mxu0 %v8684
    %9074 = vmatpush.bf16.msra.mxu0 %v8680
    %9075 = vmatpush.bf16.msra.mxu0 %v8676
    %9076 = vmatpush.bf16.msra.mxu0 %v8672
    %9077 = vmatpush.bf16.msra.mxu0 %v8668
    %9078 = vmatpush.bf16.msra.mxu0 %v8664
    %9079 = vmatpush.bf16.msra.mxu0 %v8660
    %9080 = vmatpush.bf16.msra.mxu0 %v8656
    %9081 = vmatmul.bf16.gmra.mxu0 %v7459
    %v9082 = vpop.f32.mrf.mxu0
    %v9083 = vadd.f32 %v9070, %v9082
    %v9084 = vpop.f32.mrf.mxu0
    %9085 = vdwg.mxu0
    %9086 = vmatpush.bf16.msra.mxu0 %v8716
    %9087 = vmatpush.bf16.msra.mxu0 %v8712
    %9088 = vmatpush.bf16.msra.mxu0 %v8708
    %9089 = vmatpush.bf16.msra.mxu0 %v8704
    %9090 = vmatpush.bf16.msra.mxu0 %v8700
    %9091 = vmatpush.bf16.msra.mxu0 %v8696
    %9092 = vmatpush.bf16.msra.mxu0 %v8692
    %9093 = vmatpush.bf16.msra.mxu0 %v8688
    %9094 = vmatmul.bf16.gmra.mxu0 %v7460
    %v9095 = vpop.f32.mrf.mxu0
    %v9096 = vadd.f32 %v9083, %v9095
    %v9097 = vpop.f32.mrf.mxu0
    %9098 = vdwg.mxu0
    %9099 = vmatpush.bf16.msra.mxu0 %v8748
    %9100 = vmatpush.bf16.msra.mxu0 %v8744
    %9101 = vmatpush.bf16.msra.mxu0 %v8740
    %9102 = vmatpush.bf16.msra.mxu0 %v8736
    %9103 = vmatpush.bf16.msra.mxu0 %v8732
    %9104 = vmatpush.bf16.msra.mxu0 %v8728
    %9105 = vmatpush.bf16.msra.mxu0 %v8724
    %9106 = vmatpush.bf16.msra.mxu0 %v8720
    %9107 = vmatmul.bf16.gmra.mxu0 %v7461
    %v9108 = vpop.f32.mrf.mxu0
    %v9109 = vadd.f32 %v9096, %v9108
    %v9110 = vpop.f32.mrf.mxu0
    %9111 = vdwg.mxu0
    %9112 = vmatpush.bf16.msra.mxu0 %v8525
    %9113 = vmatpush.bf16.msra.mxu0 %v8521
    %9114 = vmatpush.bf16.msra.mxu0 %v8517
    %9115 = vmatpush.bf16.msra.mxu0 %v8513
    %9116 = vmatpush.bf16.msra.mxu0 %v8509
    %9117 = vmatpush.bf16.msra.mxu0 %v8505
    %9118 = vmatpush.bf16.msra.mxu0 %v8501
    %9119 = vmatpush.bf16.msra.mxu0 %v8497
    %9120 = vmatmul.bf16.gmra.mxu0 %v7454
    %v9121 = vpop.f32.mrf.mxu0
    %v9122 = vadd.f32 %v7721, %v9121
    %v9123 = vpop.f32.mrf.mxu0
    %9124 = vdwg.mxu0
    %9125 = vmatpush.bf16.msra.mxu0 %v8557
    %9126 = vmatpush.bf16.msra.mxu0 %v8553
    %9127 = vmatpush.bf16.msra.mxu0 %v8549
    %9128 = vmatpush.bf16.msra.mxu0 %v8545
    %9129 = vmatpush.bf16.msra.mxu0 %v8541
    %9130 = vmatpush.bf16.msra.mxu0 %v8537
    %9131 = vmatpush.bf16.msra.mxu0 %v8533
    %9132 = vmatpush.bf16.msra.mxu0 %v8529
    %9133 = vmatmul.bf16.gmra.mxu0 %v7455
    %v9134 = vpop.f32.mrf.mxu0
    %v9135 = vadd.f32 %v9122, %v9134
    %v9136 = vpop.f32.mrf.mxu0
    %9137 = vdwg.mxu0
    %9138 = vmatpush.bf16.msra.mxu0 %v8589
    %9139 = vmatpush.bf16.msra.mxu0 %v8585
    %9140 = vmatpush.bf16.msra.mxu0 %v8581
    %9141 = vmatpush.bf16.msra.mxu0 %v8577
    %9142 = vmatpush.bf16.msra.mxu0 %v8573
    %9143 = vmatpush.bf16.msra.mxu0 %v8569
    %9144 = vmatpush.bf16.msra.mxu0 %v8565
    %9145 = vmatpush.bf16.msra.mxu0 %v8561
    %9146 = vmatmul.bf16.gmra.mxu0 %v7456
    %v9147 = vpop.f32.mrf.mxu0
    %v9148 = vadd.f32 %v9135, %v9147
    %v9149 = vpop.f32.mrf.mxu0
    %9150 = vdwg.mxu0
    %9151 = vmatpush.bf16.msra.mxu0 %v8621
    %9152 = vmatpush.bf16.msra.mxu0 %v8617
    %9153 = vmatpush.bf16.msra.mxu0 %v8613
    %9154 = vmatpush.bf16.msra.mxu0 %v8609
    %9155 = vmatpush.bf16.msra.mxu0 %v8605
    %9156 = vmatpush.bf16.msra.mxu0 %v8601
    %9157 = vmatpush.bf16.msra.mxu0 %v8597
    %9158 = vmatpush.bf16.msra.mxu0 %v8593
    %9159 = vmatmul.bf16.gmra.mxu0 %v7457
    %v9160 = vpop.f32.mrf.mxu0
    %v9161 = vadd.f32 %v9148, %v9160
    %v9162 = vpop.f32.mrf.mxu0
    %9163 = vdwg.mxu0
    %9164 = vmatpush.bf16.msra.mxu0 %v8653
    %9165 = vmatpush.bf16.msra.mxu0 %v8649
    %9166 = vmatpush.bf16.msra.mxu0 %v8645
    %9167 = vmatpush.bf16.msra.mxu0 %v8641
    %9168 = vmatpush.bf16.msra.mxu0 %v8637
    %9169 = vmatpush.bf16.msra.mxu0 %v8633
    %9170 = vmatpush.bf16.msra.mxu0 %v8629
    %9171 = vmatpush.bf16.msra.mxu0 %v8625
    %9172 = vmatmul.bf16.gmra.mxu0 %v7458
    %v9173 = vpop.f32.mrf.mxu0
    %v9174 = vadd.f32 %v9161, %v9173
    %v9175 = vpop.f32.mrf.mxu0
    %9176 = vdwg.mxu0
    %9177 = vmatpush.bf16.msra.mxu0 %v8685
    %9178 = vmatpush.bf16.msra.mxu0 %v8681
    %9179 = vmatpush.bf16.msra.mxu0 %v8677
    %9180 = vmatpush.bf16.msra.mxu0 %v8673
    %9181 = vmatpush.bf16.msra.mxu0 %v8669
    %9182 = vmatpush.bf16.msra.mxu0 %v8665
    %9183 = vmatpush.bf16.msra.mxu0 %v8661
    %9184 = vmatpush.bf16.msra.mxu0 %v8657
    %9185 = vmatmul.bf16.gmra.mxu0 %v7459
    %v9186 = vpop.f32.mrf.mxu0
    %v9187 = vadd.f32 %v9174, %v9186
    %v9188 = vpop.f32.mrf.mxu0
    %9189 = vdwg.mxu0
    %9190 = vmatpush.bf16.msra.mxu0 %v8717
    %9191 = vmatpush.bf16.msra.mxu0 %v8713
    %9192 = vmatpush.bf16.msra.mxu0 %v8709
    %9193 = vmatpush.bf16.msra.mxu0 %v8705
    %9194 = vmatpush.bf16.msra.mxu0 %v8701
    %9195 = vmatpush.bf16.msra.mxu0 %v8697
    %9196 = vmatpush.bf16.msra.mxu0 %v8693
    %9197 = vmatpush.bf16.msra.mxu0 %v8689
    %9198 = vmatmul.bf16.gmra.mxu0 %v7460
    %v9199 = vpop.f32.mrf.mxu0
    %v9200 = vadd.f32 %v9187, %v9199
    %v9201 = vpop.f32.mrf.mxu0
    %9202 = vdwg.mxu0
    %9203 = vmatpush.bf16.msra.mxu0 %v8749
    %9204 = vmatpush.bf16.msra.mxu0 %v8745
    %9205 = vmatpush.bf16.msra.mxu0 %v8741
    %9206 = vmatpush.bf16.msra.mxu0 %v8737
    %9207 = vmatpush.bf16.msra.mxu0 %v8733
    %9208 = vmatpush.bf16.msra.mxu0 %v8729
    %9209 = vmatpush.bf16.msra.mxu0 %v8725
    %9210 = vmatpush.bf16.msra.mxu0 %v8721
    %9211 = vmatmul.bf16.gmra.mxu0 %v7461
    %v9212 = vpop.f32.mrf.mxu0
    %v9213 = vadd.f32 %v9200, %v9212
    %v9214 = vpop.f32.mrf.mxu0
    %9215 = vdwg.mxu0
    %9216 = vmatpush.bf16.msra.mxu0 %v8526
    %9217 = vmatpush.bf16.msra.mxu0 %v8522
    %9218 = vmatpush.bf16.msra.mxu0 %v8518
    %9219 = vmatpush.bf16.msra.mxu0 %v8514
    %9220 = vmatpush.bf16.msra.mxu0 %v8510
    %9221 = vmatpush.bf16.msra.mxu0 %v8506
    %9222 = vmatpush.bf16.msra.mxu0 %v8502
    %9223 = vmatpush.bf16.msra.mxu0 %v8498
    %9224 = vmatmul.bf16.gmra.mxu0 %v7454
    %v9225 = vpop.f32.mrf.mxu0
    %v9226 = vadd.f32 %v7722, %v9225
    %v9227 = vpop.f32.mrf.mxu0
    %9228 = vdwg.mxu0
    %9229 = vmatpush.bf16.msra.mxu0 %v8558
    %9230 = vmatpush.bf16.msra.mxu0 %v8554
    %9231 = vmatpush.bf16.msra.mxu0 %v8550
    %9232 = vmatpush.bf16.msra.mxu0 %v8546
    %9233 = vmatpush.bf16.msra.mxu0 %v8542
    %9234 = vmatpush.bf16.msra.mxu0 %v8538
    %9235 = vmatpush.bf16.msra.mxu0 %v8534
    %9236 = vmatpush.bf16.msra.mxu0 %v8530
    %9237 = vmatmul.bf16.gmra.mxu0 %v7455
    %v9238 = vpop.f32.mrf.mxu0
    %v9239 = vadd.f32 %v9226, %v9238
    %v9240 = vpop.f32.mrf.mxu0
    %9241 = vdwg.mxu0
    %9242 = vmatpush.bf16.msra.mxu0 %v8590
    %9243 = vmatpush.bf16.msra.mxu0 %v8586
    %9244 = vmatpush.bf16.msra.mxu0 %v8582
    %9245 = vmatpush.bf16.msra.mxu0 %v8578
    %9246 = vmatpush.bf16.msra.mxu0 %v8574
    %9247 = vmatpush.bf16.msra.mxu0 %v8570
    %9248 = vmatpush.bf16.msra.mxu0 %v8566
    %9249 = vmatpush.bf16.msra.mxu0 %v8562
    %9250 = vmatmul.bf16.gmra.mxu0 %v7456
    %v9251 = vpop.f32.mrf.mxu0
    %v9252 = vadd.f32 %v9239, %v9251
    %v9253 = vpop.f32.mrf.mxu0
    %9254 = vdwg.mxu0
    %9255 = vmatpush.bf16.msra.mxu0 %v8622
    %9256 = vmatpush.bf16.msra.mxu0 %v8618
    %9257 = vmatpush.bf16.msra.mxu0 %v8614
    %9258 = vmatpush.bf16.msra.mxu0 %v8610
    %9259 = vmatpush.bf16.msra.mxu0 %v8606
    %9260 = vmatpush.bf16.msra.mxu0 %v8602
    %9261 = vmatpush.bf16.msra.mxu0 %v8598
    %9262 = vmatpush.bf16.msra.mxu0 %v8594
    %9263 = vmatmul.bf16.gmra.mxu0 %v7457
    %v9264 = vpop.f32.mrf.mxu0
    %v9265 = vadd.f32 %v9252, %v9264
    %v9266 = vpop.f32.mrf.mxu0
    %9267 = vdwg.mxu0
    %9268 = vmatpush.bf16.msra.mxu0 %v8654
    %9269 = vmatpush.bf16.msra.mxu0 %v8650
    %9270 = vmatpush.bf16.msra.mxu0 %v8646
    %9271 = vmatpush.bf16.msra.mxu0 %v8642
    %9272 = vmatpush.bf16.msra.mxu0 %v8638
    %9273 = vmatpush.bf16.msra.mxu0 %v8634
    %9274 = vmatpush.bf16.msra.mxu0 %v8630
    %9275 = vmatpush.bf16.msra.mxu0 %v8626
    %9276 = vmatmul.bf16.gmra.mxu0 %v7458
    %v9277 = vpop.f32.mrf.mxu0
    %v9278 = vadd.f32 %v9265, %v9277
    %v9279 = vpop.f32.mrf.mxu0
    %9280 = vdwg.mxu0
    %9281 = vmatpush.bf16.msra.mxu0 %v8686
    %9282 = vmatpush.bf16.msra.mxu0 %v8682
    %9283 = vmatpush.bf16.msra.mxu0 %v8678
    %9284 = vmatpush.bf16.msra.mxu0 %v8674
    %9285 = vmatpush.bf16.msra.mxu0 %v8670
    %9286 = vmatpush.bf16.msra.mxu0 %v8666
    %9287 = vmatpush.bf16.msra.mxu0 %v8662
    %9288 = vmatpush.bf16.msra.mxu0 %v8658
    %9289 = vmatmul.bf16.gmra.mxu0 %v7459
    %v9290 = vpop.f32.mrf.mxu0
    %v9291 = vadd.f32 %v9278, %v9290
    %v9292 = vpop.f32.mrf.mxu0
    %9293 = vdwg.mxu0
    %9294 = vmatpush.bf16.msra.mxu0 %v8718
    %9295 = vmatpush.bf16.msra.mxu0 %v8714
    %9296 = vmatpush.bf16.msra.mxu0 %v8710
    %9297 = vmatpush.bf16.msra.mxu0 %v8706
    %9298 = vmatpush.bf16.msra.mxu0 %v8702
    %9299 = vmatpush.bf16.msra.mxu0 %v8698
    %9300 = vmatpush.bf16.msra.mxu0 %v8694
    %9301 = vmatpush.bf16.msra.mxu0 %v8690
    %9302 = vmatmul.bf16.gmra.mxu0 %v7460
    %v9303 = vpop.f32.mrf.mxu0
    %v9304 = vadd.f32 %v9291, %v9303
    %v9305 = vpop.f32.mrf.mxu0
    %9306 = vdwg.mxu0
    %9307 = vmatpush.bf16.msra.mxu0 %v8750
    %9308 = vmatpush.bf16.msra.mxu0 %v8746
    %9309 = vmatpush.bf16.msra.mxu0 %v8742
    %9310 = vmatpush.bf16.msra.mxu0 %v8738
    %9311 = vmatpush.bf16.msra.mxu0 %v8734
    %9312 = vmatpush.bf16.msra.mxu0 %v8730
    %9313 = vmatpush.bf16.msra.mxu0 %v8726
    %9314 = vmatpush.bf16.msra.mxu0 %v8722
    %9315 = vmatmul.bf16.gmra.mxu0 %v7461
    %v9316 = vpop.f32.mrf.mxu0
    %v9317 = vadd.f32 %v9304, %v9316
    %v9318 = vpop.f32.mrf.mxu0
    %9319 = vdwg.mxu0
    %9320 = vmatpush.bf16.msra.mxu0 %v8527
    %9321 = vmatpush.bf16.msra.mxu0 %v8523
    %9322 = vmatpush.bf16.msra.mxu0 %v8519
    %9323 = vmatpush.bf16.msra.mxu0 %v8515
    %9324 = vmatpush.bf16.msra.mxu0 %v8511
    %9325 = vmatpush.bf16.msra.mxu0 %v8507
    %9326 = vmatpush.bf16.msra.mxu0 %v8503
    %9327 = vmatpush.bf16.msra.mxu0 %v8499
    %9328 = vmatmul.bf16.gmra.mxu0 %v7454
    %v9329 = vpop.f32.mrf.mxu0
    %v9330 = vadd.f32 %v7723, %v9329
    %v9331 = vpop.f32.mrf.mxu0
    %9332 = vdwg.mxu0
    %9333 = vmatpush.bf16.msra.mxu0 %v8559
    %9334 = vmatpush.bf16.msra.mxu0 %v8555
    %9335 = vmatpush.bf16.msra.mxu0 %v8551
    %9336 = vmatpush.bf16.msra.mxu0 %v8547
    %9337 = vmatpush.bf16.msra.mxu0 %v8543
    %9338 = vmatpush.bf16.msra.mxu0 %v8539
    %9339 = vmatpush.bf16.msra.mxu0 %v8535
    %9340 = vmatpush.bf16.msra.mxu0 %v8531
    %9341 = vmatmul.bf16.gmra.mxu0 %v7455
    %v9342 = vpop.f32.mrf.mxu0
    %v9343 = vadd.f32 %v9330, %v9342
    %v9344 = vpop.f32.mrf.mxu0
    %9345 = vdwg.mxu0
    %9346 = vmatpush.bf16.msra.mxu0 %v8591
    %9347 = vmatpush.bf16.msra.mxu0 %v8587
    %9348 = vmatpush.bf16.msra.mxu0 %v8583
    %9349 = vmatpush.bf16.msra.mxu0 %v8579
    %9350 = vmatpush.bf16.msra.mxu0 %v8575
    %9351 = vmatpush.bf16.msra.mxu0 %v8571
    %9352 = vmatpush.bf16.msra.mxu0 %v8567
    %9353 = vmatpush.bf16.msra.mxu0 %v8563
    %9354 = vmatmul.bf16.gmra.mxu0 %v7456
    %v9355 = vpop.f32.mrf.mxu0
    %v9356 = vadd.f32 %v9343, %v9355
    %v9357 = vpop.f32.mrf.mxu0
    %9358 = vdwg.mxu0
    %9359 = vmatpush.bf16.msra.mxu0 %v8623
    %9360 = vmatpush.bf16.msra.mxu0 %v8619
    %9361 = vmatpush.bf16.msra.mxu0 %v8615
    %9362 = vmatpush.bf16.msra.mxu0 %v8611
    %9363 = vmatpush.bf16.msra.mxu0 %v8607
    %9364 = vmatpush.bf16.msra.mxu0 %v8603
    %9365 = vmatpush.bf16.msra.mxu0 %v8599
    %9366 = vmatpush.bf16.msra.mxu0 %v8595
    %9367 = vmatmul.bf16.gmra.mxu0 %v7457
    %v9368 = vpop.f32.mrf.mxu0
    %v9369 = vadd.f32 %v9356, %v9368
    %v9370 = vpop.f32.mrf.mxu0
    %9371 = vdwg.mxu0
    %9372 = vmatpush.bf16.msra.mxu0 %v8655
    %9373 = vmatpush.bf16.msra.mxu0 %v8651
    %9374 = vmatpush.bf16.msra.mxu0 %v8647
    %9375 = vmatpush.bf16.msra.mxu0 %v8643
    %9376 = vmatpush.bf16.msra.mxu0 %v8639
    %9377 = vmatpush.bf16.msra.mxu0 %v8635
    %9378 = vmatpush.bf16.msra.mxu0 %v8631
    %9379 = vmatpush.bf16.msra.mxu0 %v8627
    %9380 = vmatmul.bf16.gmra.mxu0 %v7458
    %v9381 = vpop.f32.mrf.mxu0
    %v9382 = vadd.f32 %v9369, %v9381
    %v9383 = vpop.f32.mrf.mxu0
    %9384 = vdwg.mxu0
    %9385 = vmatpush.bf16.msra.mxu0 %v8687
    %9386 = vmatpush.bf16.msra.mxu0 %v8683
    %9387 = vmatpush.bf16.msra.mxu0 %v8679
    %9388 = vmatpush.bf16.msra.mxu0 %v8675
    %9389 = vmatpush.bf16.msra.mxu0 %v8671
    %9390 = vmatpush.bf16.msra.mxu0 %v8667
    %9391 = vmatpush.bf16.msra.mxu0 %v8663
    %9392 = vmatpush.bf16.msra.mxu0 %v8659
    %9393 = vmatmul.bf16.gmra.mxu0 %v7459
    %v9394 = vpop.f32.mrf.mxu0
    %v9395 = vadd.f32 %v9382, %v9394
    %v9396 = vpop.f32.mrf.mxu0
    %9397 = vdwg.mxu0
    %9398 = vmatpush.bf16.msra.mxu0 %v8719
    %9399 = vmatpush.bf16.msra.mxu0 %v8715
    %9400 = vmatpush.bf16.msra.mxu0 %v8711
    %9401 = vmatpush.bf16.msra.mxu0 %v8707
    %9402 = vmatpush.bf16.msra.mxu0 %v8703
    %9403 = vmatpush.bf16.msra.mxu0 %v8699
    %9404 = vmatpush.bf16.msra.mxu0 %v8695
    %9405 = vmatpush.bf16.msra.mxu0 %v8691
    %9406 = vmatmul.bf16.gmra.mxu0 %v7460
    %v9407 = vpop.f32.mrf.mxu0
    %v9408 = vadd.f32 %v9395, %v9407
    %v9409 = vpop.f32.mrf.mxu0
    %9410 = vdwg.mxu0
    %9411 = vmatpush.bf16.msra.mxu0 %v8751
    %9412 = vmatpush.bf16.msra.mxu0 %v8747
    %9413 = vmatpush.bf16.msra.mxu0 %v8743
    %9414 = vmatpush.bf16.msra.mxu0 %v8739
    %9415 = vmatpush.bf16.msra.mxu0 %v8735
    %9416 = vmatpush.bf16.msra.mxu0 %v8731
    %9417 = vmatpush.bf16.msra.mxu0 %v8727
    %9418 = vmatpush.bf16.msra.mxu0 %v8723
    %9419 = vmatmul.bf16.gmra.mxu0 %v7461
    %v9420 = vpop.f32.mrf.mxu0
    %v9421 = vadd.f32 %v9408, %v9420
    %v9422 = vpop.f32.mrf.mxu0
    %9423 = vdwg.mxu0
    %v9424 = vmax.f32 %v9109, 0.0
    %v9425 = vmax.f32 %v9213, 0.0
    %v9426 = vmax.f32 %v9317, 0.0
    %v9427 = vmax.f32 %v9421, 0.0
    %v9428 = vpack.c.bf16 %v9424, %v9424
    %v9429 = vpack.c.bf16 %v9425, %v9425
    %v9430 = vpack.c.bf16 %v9426, %v9426
    %v9431 = vpack.c.bf16 %v9427, %v9427
    %v9432 = vld [vmem:[%s7] sm:$0xff]
    %v9433 = vld [vmem:[%s7 + $0x8] sm:$0xff]
    %v9434 = vld [vmem:[%s7 + $0x10] sm:$0xff]
    %v9435 = vld [vmem:[%s7 + $0x18] sm:$0xff]
    %v9436 = vld [vmem:[%s7 + $0x20] sm:$0xff]
    %v9437 = vld [vmem:[%s7 + $0x28] sm:$0xff]
    %v9438 = vld [vmem:[%s7 + $0x30] sm:$0xff]
    %v9439 = vld [vmem:[%s7 + $0x38] sm:$0xff]
    %v9440 = vld [vmem:[%s7 + $0x40] sm:$0xff]
    %v9441 = vld [vmem:[%s7 + $0x48] sm:$0xff]
    %v9442 = vld [vmem:[%s7 + $0x50] sm:$0xff]
    %v9443 = vld [vmem:[%s7 + $0x58] sm:$0xff]
    %v9444 = vld [vmem:[%s7 + $0x60] sm:$0xff]
    %v9445 = vld [vmem:[%s7 + $0x68] sm:$0xff]
    %v9446 = vld [vmem:[%s7 + $0x70] sm:$0xff]
    %v9447 = vld [vmem:[%s7 + $0x78] sm:$0xff]
    %v9448 = vld [vmem:[%s7 + $0x80] sm:$0xff]
    %v9449 = vld [vmem:[%s7 + $0x88] sm:$0xff]
    %v9450 = vld [vmem:[%s7 + $0x90] sm:$0xff]
    %v9451 = vld [vmem:[%s7 + $0x98] sm:$0xff]
    %v9452 = vld [vmem:[%s7 + $0xa0] sm:$0xff]
    %v9453 = vld [vmem:[%s7 + $0xa8] sm:$0xff]
    %v9454 = vld [vmem:[%s7 + $0xb0] sm:$0xff]
    %v9455 = vld [vmem:[%s7 + $0xb8] sm:$0xff]
    %v9456 = vld [vmem:[%s7 + $0xc0] sm:$0xff]
    %v9457 = vld [vmem:[%s7 + $0xc8] sm:$0xff]
    %v9458 = vld [vmem:[%s7 + $0xd0] sm:$0xff]
    %v9459 = vld [vmem:[%s7 + $0xd8] sm:$0xff]
    %v9460 = vld [vmem:[%s7 + $0xe0] sm:$0xff]
    %v9461 = vld [vmem:[%s7 + $0xe8] sm:$0xff]
    %v9462 = vld [vmem:[%s7 + $0xf0] sm:$0xff]
    %v9463 = vld [vmem:[%s7 + $0xf8] sm:$0xff]
    %v9464 = vld [vmem:[%s7 + $0x100] sm:$0xff]
    %v9465 = vld [vmem:[%s7 + $0x108] sm:$0xff]
    %v9466 = vld [vmem:[%s7 + $0x110] sm:$0xff]
    %v9467 = vld [vmem:[%s7 + $0x118] sm:$0xff]
    %v9468 = vld [vmem:[%s7 + $0x120] sm:$0xff]
    %v9469 = vld [vmem:[%s7 + $0x128] sm:$0xff]
    %v9470 = vld [vmem:[%s7 + $0x130] sm:$0xff]
    %v9471 = vld [vmem:[%s7 + $0x138] sm:$0xff]
    %v9472 = vld [vmem:[%s7 + $0x140] sm:$0xff]
    %v9473 = vld [vmem:[%s7 + $0x148] sm:$0xff]
    %v9474 = vld [vmem:[%s7 + $0x150] sm:$0xff]
    %v9475 = vld [vmem:[%s7 + $0x158] sm:$0xff]
    %v9476 = vld [vmem:[%s7 + $0x160] sm:$0xff]
    %v9477 = vld [vmem:[%s7 + $0x168] sm:$0xff]
    %v9478 = vld [vmem:[%s7 + $0x170] sm:$0xff]
    %v9479 = vld [vmem:[%s7 + $0x178] sm:$0xff]
    %v9480 = vld [vmem:[%s7 + $0x180] sm:$0xff]
    %v9481 = vld [vmem:[%s7 + $0x188] sm:$0xff]
    %v9482 = vld [vmem:[%s7 + $0x190] sm:$0xff]
    %v9483 = vld [vmem:[%s7 + $0x198] sm:$0xff]
    %v9484 = vld [vmem:[%s7 + $0x1a0] sm:$0xff]
    %v9485 = vld [vmem:[%s7 + $0x1a8] sm:$0xff]
    %v9486 = vld [vmem:[%s7 + $0x1b0] sm:$0xff]
    %v9487 = vld [vmem:[%s7 + $0x1b8] sm:$0xff]
    %v9488 = vld [vmem:[%s7 + $0x1c0] sm:$0xff]
    %v9489 = vld [vmem:[%s7 + $0x1c8] sm:$0xff]
    %v9490 = vld [vmem:[%s7 + $0x1d0] sm:$0xff]
    %v9491 = vld [vmem:[%s7 + $0x1d8] sm:$0xff]
    %v9492 = vld [vmem:[%s7 + $0x1e0] sm:$0xff]
    %v9493 = vld [vmem:[%s7 + $0x1e8] sm:$0xff]
    %v9494 = vld [vmem:[%s7 + $0x1f0] sm:$0xff]
    %v9495 = vld [vmem:[%s7 + $0x1f8] sm:$0xff]
    %v9496 = vld [vmem:[%s8] sm:$0x3]
    %v9498 = vperm.slane %v9496, 0
    %v9499 = vperm.slane %v9496, 1
    %v9566 = vunpack.c.l.b16 %v9432
    %v9567 = vunpack.c.h.b16 %v9432
    %v9568 = vunpack.c.l.b16 %v9433
    %v9569 = vunpack.c.h.b16 %v9433
    %v9570 = vunpack.c.l.b16 %v9434
    %v9571 = vunpack.c.h.b16 %v9434
    %v9572 = vunpack.c.l.b16 %v9435
    %v9573 = vunpack.c.h.b16 %v9435
    %v9574 = vunpack.c.l.b16 %v9436
    %v9575 = vunpack.c.h.b16 %v9436
    %v9576 = vunpack.c.l.b16 %v9437
    %v9577 = vunpack.c.h.b16 %v9437
    %v9578 = vunpack.c.l.b16 %v9438
    %v9579 = vunpack.c.h.b16 %v9438
    %v9580 = vunpack.c.l.b16 %v9439
    %v9581 = vunpack.c.h.b16 %v9439
    %v9582 = vunpack.c.l.b16 %v9440
    %v9583 = vunpack.c.h.b16 %v9440
    %v9584 = vunpack.c.l.b16 %v9441
    %v9585 = vunpack.c.h.b16 %v9441
    %v9586 = vunpack.c.l.b16 %v9442
    %v9587 = vunpack.c.h.b16 %v9442
    %v9588 = vunpack.c.l.b16 %v9443
    %v9589 = vunpack.c.h.b16 %v9443
    %v9590 = vunpack.c.l.b16 %v9444
    %v9591 = vunpack.c.h.b16 %v9444
    %v9592 = vunpack.c.l.b16 %v9445
    %v9593 = vunpack.c.h.b16 %v9445
    %v9594 = vunpack.c.l.b16 %v9446
    %v9595 = vunpack.c.h.b16 %v9446
    %v9596 = vunpack.c.l.b16 %v9447
    %v9597 = vunpack.c.h.b16 %v9447
    %v9598 = vunpack.c.l.b16 %v9448
    %v9599 = vunpack.c.h.b16 %v9448
    %v9600 = vunpack.c.l.b16 %v9449
    %v9601 = vunpack.c.h.b16 %v9449
    %v9602 = vunpack.c.l.b16 %v9450
    %v9603 = vunpack.c.h.b16 %v9450
    %v9604 = vunpack.c.l.b16 %v9451
    %v9605 = vunpack.c.h.b16 %v9451
    %v9606 = vunpack.c.l.b16 %v9452
    %v9607 = vunpack.c.h.b16 %v9452
    %v9608 = vunpack.c.l.b16 %v9453
    %v9609 = vunpack.c.h.b16 %v9453
    %v9610 = vunpack.c.l.b16 %v9454
    %v9611 = vunpack.c.h.b16 %v9454
    %v9612 = vunpack.c.l.b16 %v9455
    %v9613 = vunpack.c.h.b16 %v9455
    %v9614 = vunpack.c.l.b16 %v9456
    %v9615 = vunpack.c.h.b16 %v9456
    %v9616 = vunpack.c.l.b16 %v9457
    %v9617 = vunpack.c.h.b16 %v9457
    %v9618 = vunpack.c.l.b16 %v9458
    %v9619 = vunpack.c.h.b16 %v9458
    %v9620 = vunpack.c.l.b16 %v9459
    %v9621 = vunpack.c.h.b16 %v9459
    %v9622 = vunpack.c.l.b16 %v9460
    %v9623 = vunpack.c.h.b16 %v9460
    %v9624 = vunpack.c.l.b16 %v9461
    %v9625 = vunpack.c.h.b16 %v9461
    %v9626 = vunpack.c.l.b16 %v9462
    %v9627 = vunpack.c.h.b16 %v9462
    %v9628 = vunpack.c.l.b16 %v9463
    %v9629 = vunpack.c.h.b16 %v9463
    %v9630 = vunpack.c.l.b16 %v9464
    %v9631 = vunpack.c.h.b16 %v9464
    %v9632 = vunpack.c.l.b16 %v9465
    %v9633 = vunpack.c.h.b16 %v9465
    %v9634 = vunpack.c.l.b16 %v9466
    %v9635 = vunpack.c.h.b16 %v9466
    %v9636 = vunpack.c.l.b16 %v9467
    %v9637 = vunpack.c.h.b16 %v9467
    %v9638 = vunpack.c.l.b16 %v9468
    %v9639 = vunpack.c.h.b16 %v9468
    %v9640 = vunpack.c.l.b16 %v9469
    %v9641 = vunpack.c.h.b16 %v9469
    %v9642 = vunpack.c.l.b16 %v9470
    %v9643 = vunpack.c.h.b16 %v9470
    %v9644 = vunpack.c.l.b16 %v9471
    %v9645 = vunpack.c.h.b16 %v9471
    %v9646 = vunpack.c.l.b16 %v9472
    %v9647 = vunpack.c.h.b16 %v9472
    %v9648 = vunpack.c.l.b16 %v9473
    %v9649 = vunpack.c.h.b16 %v9473
    %v9650 = vunpack.c.l.b16 %v9474
    %v9651 = vunpack.c.h.b16 %v9474
    %v9652 = vunpack.c.l.b16 %v9475
    %v9653 = vunpack.c.h.b16 %v9475
    %v9654 = vunpack.c.l.b16 %v9476
    %v9655 = vunpack.c.h.b16 %v9476
    %v9656 = vunpack.c.l.b16 %v9477
    %v9657 = vunpack.c.h.b16 %v9477
    %v9658 = vunpack.c.l.b16 %v9478
    %v9659 = vunpack.c.h.b16 %v9478
    %v9660 = vunpack.c.l.b16 %v9479
    %v9661 = vunpack.c.h.b16 %v9479
    %v9662 = vunpack.c.l.b16 %v9480
    %v9663 = vunpack.c.h.b16 %v9480
    %v9664 = vunpack.c.l.b16 %v9481
    %v9665 = vunpack.c.h.b16 %v9481
    %v9666 = vunpack.c.l.b16 %v9482
    %v9667 = vunpack.c.h.b16 %v9482
    %v9668 = vunpack.c.l.b16 %v9483
    %v9669 = vunpack.c.h.b16 %v9483
    %v9670 = vunpack.c.l.b16 %v9484
    %v9671 = vunpack.c.h.b16 %v9484
    %v9672 = vunpack.c.l.b16 %v9485
    %v9673 = vunpack.c.h.b16 %v9485
    %v9674 = vunpack.c.l.b16 %v9486
    %v9675 = vunpack.c.h.b16 %v9486
    %v9676 = vunpack.c.l.b16 %v9487
    %v9677 = vunpack.c.h.b16 %v9487
    %v9678 = vunpack.c.l.b16 %v9488
    %v9679 = vunpack.c.h.b16 %v9488
    %v9680 = vunpack.c.l.b16 %v9489
    %v9681 = vunpack.c.h.b16 %v9489
    %v9682 = vunpack.c.l.b16 %v9490
    %v9683 = vunpack.c.h.b16 %v9490
    %v9684 = vunpack.c.l.b16 %v9491
    %v9685 = vunpack.c.h.b16 %v9491
    %v9686 = vunpack.c.l.b16 %v9492
    %v9687 = vunpack.c.h.b16 %v9492
    %v9688 = vunpack.c.l.b16 %v9493
    %v9689 = vunpack.c.h.b16 %v9493
    %v9690 = vunpack.c.l.b16 %v9494
    %v9691 = vunpack.c.h.b16 %v9494
    %v9692 = vunpack.c.l.b16 %v9495
    %v9693 = vunpack.c.h.b16 %v9495
    %v9694 = vpack.c.b16 %v9568, %v9566
    %v9695 = vpack.c.b16 %v9569, %v9567
    %v9696 = vpack.c.b16 %v9572, %v9570
    %v9697 = vpack.c.b16 %v9573, %v9571
    %v9698 = vpack.c.b16 %v9576, %v9574
    %v9699 = vpack.c.b16 %v9577, %v9575
    %v9700 = vpack.c.b16 %v9580, %v9578
    %v9701 = vpack.c.b16 %v9581, %v9579
    %v9702 = vpack.c.b16 %v9584, %v9582
    %v9703 = vpack.c.b16 %v9585, %v9583
    %v9704 = vpack.c.b16 %v9588, %v9586
    %v9705 = vpack.c.b16 %v9589, %v9587
    %v9706 = vpack.c.b16 %v9592, %v9590
    %v9707 = vpack.c.b16 %v9593, %v9591
    %v9708 = vpack.c.b16 %v9596, %v9594
    %v9709 = vpack.c.b16 %v9597, %v9595
    %v9710 = vpack.c.b16 %v9600, %v9598
    %v9711 = vpack.c.b16 %v9601, %v9599
    %v9712 = vpack.c.b16 %v9604, %v9602
    %v9713 = vpack.c.b16 %v9605, %v9603
    %v9714 = vpack.c.b16 %v9608, %v9606
    %v9715 = vpack.c.b16 %v9609, %v9607
    %v9716 = vpack.c.b16 %v9612, %v9610
    %v9717 = vpack.c.b16 %v9613, %v9611
    %v9718 = vpack.c.b16 %v9616, %v9614
    %v9719 = vpack.c.b16 %v9617, %v9615
    %v9720 = vpack.c.b16 %v9620, %v9618
    %v9721 = vpack.c.b16 %v9621, %v9619
    %v9722 = vpack.c.b16 %v9624, %v9622
    %v9723 = vpack.c.b16 %v9625, %v9623
    %v9724 = vpack.c.b16 %v9628, %v9626
    %v9725 = vpack.c.b16 %v9629, %v9627
    %v9726 = vpack.c.b16 %v9632, %v9630
    %v9727 = vpack.c.b16 %v9633, %v9631
    %v9728 = vpack.c.b16 %v9636, %v9634
    %v9729 = vpack.c.b16 %v9637, %v9635
    %v9730 = vpack.c.b16 %v9640, %v9638
    %v9731 = vpack.c.b16 %v9641, %v9639
    %v9732 = vpack.c.b16 %v9644, %v9642
    %v9733 = vpack.c.b16 %v9645, %v9643
    %v9734 = vpack.c.b16 %v9648, %v9646
    %v9735 = vpack.c.b16 %v9649, %v9647
    %v9736 = vpack.c.b16 %v9652, %v9650
    %v9737 = vpack.c.b16 %v9653, %v9651
    %v9738 = vpack.c.b16 %v9656, %v9654
    %v9739 = vpack.c.b16 %v9657, %v9655
    %v9740 = vpack.c.b16 %v9660, %v9658
    %v9741 = vpack.c.b16 %v9661, %v9659
    %v9742 = vpack.c.b16 %v9664, %v9662
    %v9743 = vpack.c.b16 %v9665, %v9663
    %v9744 = vpack.c.b16 %v9668, %v9666
    %v9745 = vpack.c.b16 %v9669, %v9667
    %v9746 = vpack.c.b16 %v9672, %v9670
    %v9747 = vpack.c.b16 %v9673, %v9671
    %v9748 = vpack.c.b16 %v9676, %v9674
    %v9749 = vpack.c.b16 %v9677, %v9675
    %v9750 = vpack.c.b16 %v9680, %v9678
    %v9751 = vpack.c.b16 %v9681, %v9679
    %v9752 = vpack.c.b16 %v9684, %v9682
    %v9753 = vpack.c.b16 %v9685, %v9683
    %v9754 = vpack.c.b16 %v9688, %v9686
    %v9755 = vpack.c.b16 %v9689, %v9687
    %v9756 = vpack.c.b16 %v9692, %v9690
    %v9757 = vpack.c.b16 %v9693, %v9691
    %9822 = vmatpush.bf16.msra.mxu0 %v9708
    %9823 = vmatpush.bf16.msra.mxu0 %v9706
    %9824 = vmatpush.bf16.msra.mxu0 %v9704
    %9825 = vmatpush.bf16.msra.mxu0 %v9702
    %9826 = vmatpush.bf16.msra.mxu0 %v9700
    %9827 = vmatpush.bf16.msra.mxu0 %v9698
    %9828 = vmatpush.bf16.msra.mxu0 %v9696
    %9829 = vmatpush.bf16.msra.mxu0 %v9694
    %9830 = vmatmul.bf16.gmra.mxu0 %v9428
    %v9831 = vpop.f32.mrf.mxu0
    %v9832 = vadd.f32 %v9498, %v9831
    %v9833 = vpop.f32.mrf.mxu0
    %9834 = vdwg.mxu0
    %9835 = vmatpush.bf16.msra.mxu0 %v9724
    %9836 = vmatpush.bf16.msra.mxu0 %v9722
    %9837 = vmatpush.bf16.msra.mxu0 %v9720
    %9838 = vmatpush.bf16.msra.mxu0 %v9718
    %9839 = vmatpush.bf16.msra.mxu0 %v9716
    %9840 = vmatpush.bf16.msra.mxu0 %v9714
    %9841 = vmatpush.bf16.msra.mxu0 %v9712
    %9842 = vmatpush.bf16.msra.mxu0 %v9710
    %9843 = vmatmul.bf16.gmra.mxu0 %v9429
    %v9844 = vpop.f32.mrf.mxu0
    %v9845 = vadd.f32 %v9832, %v9844
    %v9846 = vpop.f32.mrf.mxu0
    %9847 = vdwg.mxu0
    %9848 = vmatpush.bf16.msra.mxu0 %v9740
    %9849 = vmatpush.bf16.msra.mxu0 %v9738
    %9850 = vmatpush.bf16.msra.mxu0 %v9736
    %9851 = vmatpush.bf16.msra.mxu0 %v9734
    %9852 = vmatpush.bf16.msra.mxu0 %v9732
    %9853 = vmatpush.bf16.msra.mxu0 %v9730
    %9854 = vmatpush.bf16.msra.mxu0 %v9728
    %9855 = vmatpush.bf16.msra.mxu0 %v9726
    %9856 = vmatmul.bf16.gmra.mxu0 %v9430
    %v9857 = vpop.f32.mrf.mxu0
    %v9858 = vadd.f32 %v9845, %v9857
    %v9859 = vpop.f32.mrf.mxu0
    %9860 = vdwg.mxu0
    %9861 = vmatpush.bf16.msra.mxu0 %v9756
    %9862 = vmatpush.bf16.msra.mxu0 %v9754
    %9863 = vmatpush.bf16.msra.mxu0 %v9752
    %9864 = vmatpush.bf16.msra.mxu0 %v9750
    %9865 = vmatpush.bf16.msra.mxu0 %v9748
    %9866 = vmatpush.bf16.msra.mxu0 %v9746
    %9867 = vmatpush.bf16.msra.mxu0 %v9744
    %9868 = vmatpush.bf16.msra.mxu0 %v9742
    %9869 = vmatmul.bf16.gmra.mxu0 %v9431
    %v9870 = vpop.f32.mrf.mxu0
    %v9871 = vadd.f32 %v9858, %v9870
    %v9872 = vpop.f32.mrf.mxu0
    %9873 = vdwg.mxu0
    %9874 = vmatpush.bf16.msra.mxu0 %v9709
    %9875 = vmatpush.bf16.msra.mxu0 %v9707
    %9876 = vmatpush.bf16.msra.mxu0 %v9705
    %9877 = vmatpush.bf16.msra.mxu0 %v9703
    %9878 = vmatpush.bf16.msra.mxu0 %v9701
    %9879 = vmatpush.bf16.msra.mxu0 %v9699
    %9880 = vmatpush.bf16.msra.mxu0 %v9697
    %9881 = vmatpush.bf16.msra.mxu0 %v9695
    %9882 = vmatmul.bf16.gmra.mxu0 %v9428
    %v9883 = vpop.f32.mrf.mxu0
    %v9884 = vadd.f32 %v9499, %v9883
    %v9885 = vpop.f32.mrf.mxu0
    %9886 = vdwg.mxu0
    %9887 = vmatpush.bf16.msra.mxu0 %v9725
    %9888 = vmatpush.bf16.msra.mxu0 %v9723
    %9889 = vmatpush.bf16.msra.mxu0 %v9721
    %9890 = vmatpush.bf16.msra.mxu0 %v9719
    %9891 = vmatpush.bf16.msra.mxu0 %v9717
    %9892 = vmatpush.bf16.msra.mxu0 %v9715
    %9893 = vmatpush.bf16.msra.mxu0 %v9713
    %9894 = vmatpush.bf16.msra.mxu0 %v9711
    %9895 = vmatmul.bf16.gmra.mxu0 %v9429
    %v9896 = vpop.f32.mrf.mxu0
    %v9897 = vadd.f32 %v9884, %v9896
    %v9898 = vpop.f32.mrf.mxu0
    %9899 = vdwg.mxu0
    %9900 = vmatpush.bf16.msra.mxu0 %v9741
    %9901 = vmatpush.bf16.msra.mxu0 %v9739
    %9902 = vmatpush.bf16.msra.mxu0 %v9737
    %9903 = vmatpush.bf16.msra.mxu0 %v9735
    %9904 = vmatpush.bf16.msra.mxu0 %v9733
    %9905 = vmatpush.bf16.msra.mxu0 %v9731
    %9906 = vmatpush.bf16.msra.mxu0 %v9729
    %9907 = vmatpush.bf16.msra.mxu0 %v9727
    %9908 = vmatmul.bf16.gmra.mxu0 %v9430
    %v9909 = vpop.f32.mrf.mxu0
    %v9910 = vadd.f32 %v9897, %v9909
    %v9911 = vpop.f32.mrf.mxu0
    %9912 = vdwg.mxu0
    %9913 = vmatpush.bf16.msra.mxu0 %v9757
    %9914 = vmatpush.bf16.msra.mxu0 %v9755
    %9915 = vmatpush.bf16.msra.mxu0 %v9753
    %9916 = vmatpush.bf16.msra.mxu0 %v9751
    %9917 = vmatpush.bf16.msra.mxu0 %v9749
    %9918 = vmatpush.bf16.msra.mxu0 %v9747
    %9919 = vmatpush.bf16.msra.mxu0 %v9745
    %9920 = vmatpush.bf16.msra.mxu0 %v9743
    %9921 = vmatmul.bf16.gmra.mxu0 %v9431
    %v9922 = vpop.f32.mrf.mxu0
    %v9923 = vadd.f32 %v9910, %v9922
    %v9924 = vpop.f32.mrf.mxu0
    %9925 = vdwg.mxu0
    %v9926 = vmax.f32 %v9871, 0.0
    %v9927 = vmax.f32 %v9923, 0.0
    %v9928 = vpack.c.bf16 %v9926, %v9926
    %v9929 = vpack.c.bf16 %v9927, %v9927
    %v9930 = vld [vmem:[%s9] sm:$0xf]
    %v9931 = vld [vmem:[%s9 + $0x4] sm:$0xf]
    %v9932 = vld [vmem:[%s9 + $0x8] sm:$0xf]
    %v9933 = vld [vmem:[%s9 + $0xc] sm:$0xf]
    %v9934 = vld [vmem:[%s9 + $0x10] sm:$0xf]
    %v9935 = vld [vmem:[%s9 + $0x14] sm:$0xf]
    %v9936 = vld [vmem:[%s9 + $0x18] sm:$0xf]
    %v9937 = vld [vmem:[%s9 + $0x1c] sm:$0xf]
    %v9938 = vld [vmem:[%s9 + $0x20] sm:$0xf]
    %v9939 = vld [vmem:[%s9 + $0x24] sm:$0xf]
    %v9940 = vld [vmem:[%s9 + $0x28] sm:$0xf]
    %v9941 = vld [vmem:[%s9 + $0x2c] sm:$0xf]
    %v9942 = vld [vmem:[%s9 + $0x30] sm:$0xf]
    %v9943 = vld [vmem:[%s9 + $0x34] sm:$0xf]
    %v9944 = vld [vmem:[%s9 + $0x38] sm:$0xf]
    %v9945 = vld [vmem:[%s9 + $0x3c] sm:$0xf]
    %v9946 = vld [vmem:[%s9 + $0x40] sm:$0xf]
    %v9947 = vld [vmem:[%s9 + $0x44] sm:$0xf]
    %v9948 = vld [vmem:[%s9 + $0x48] sm:$0xf]
    %v9949 = vld [vmem:[%s9 + $0x4c] sm:$0xf]
    %v9950 = vld [vmem:[%s9 + $0x50] sm:$0xf]
    %v9951 = vld [vmem:[%s9 + $0x54] sm:$0xf]
    %v9952 = vld [vmem:[%s9 + $0x58] sm:$0xf]
    %v9953 = vld [vmem:[%s9 + $0x5c] sm:$0xf]
    %v9954 = vld [vmem:[%s9 + $0x60] sm:$0xf]
    %v9955 = vld [vmem:[%s9 + $0x64] sm:$0xf]
    %v9956 = vld [vmem:[%s9 + $0x68] sm:$0xf]
    %v9957 = vld [vmem:[%s9 + $0x6c] sm:$0xf]
    %v9958 = vld [vmem:[%s9 + $0x70] sm:$0xf]
    %v9959 = vld [vmem:[%s9 + $0x74] sm:$0xf]
    %v9960 = vld [vmem:[%s9 + $0x78] sm:$0xf]
    %v9961 = vld [vmem:[%s9 + $0x7c] sm:$0xf]
    %v9962 = vld [vmem:[%s10] sm:$0x1]
    %v9964 = vperm.slane %v9962, 0
    %v9998 = vunpack.c.l.b16 %v9930
    %v9999 = vunpack.c.l.b16 %v9931
    %v10000 = vunpack.c.l.b16 %v9932
    %v10001 = vunpack.c.l.b16 %v9933
    %v10002 = vunpack.c.l.b16 %v9934
    %v10003 = vunpack.c.l.b16 %v9935
    %v10004 = vunpack.c.l.b16 %v9936
    %v10005 = vunpack.c.l.b16 %v9937
    %v10006 = vunpack.c.l.b16 %v9938
    %v10007 = vunpack.c.l.b16 %v9939
    %v10008 = vunpack.c.l.b16 %v9940
    %v10009 = vunpack.c.l.b16 %v9941
    %v10010 = vunpack.c.l.b16 %v9942
    %v10011 = vunpack.c.l.b16 %v9943
    %v10012 = vunpack.c.l.b16 %v9944
    %v10013 = vunpack.c.l.b16 %v9945
    %v10014 = vunpack.c.l.b16 %v9946
    %v10015 = vunpack.c.l.b16 %v9947
    %v10016 = vunpack.c.l.b16 %v9948
    %v10017 = vunpack.c.l.b16 %v9949
    %v10018 = vunpack.c.l.b16 %v9950
    %v10019 = vunpack.c.l.b16 %v9951
    %v10020 = vunpack.c.l.b16 %v9952
    %v10021 = vunpack.c.l.b16 %v9953
    %v10022 = vunpack.c.l.b16 %v9954
    %v10023 = vunpack.c.l.b16 %v9955
    %v10024 = vunpack.c.l.b16 %v9956
    %v10025 = vunpack.c.l.b16 %v9957
    %v10026 = vunpack.c.l.b16 %v9958
    %v10027 = vunpack.c.l.b16 %v9959
    %v10028 = vunpack.c.l.b16 %v9960
    %v10029 = vunpack.c.l.b16 %v9961
    %v10030 = vpack.c.b16 %v9999, %v9998
    %v10031 = vpack.c.b16 %v10001, %v10000
    %v10032 = vpack.c.b16 %v10003, %v10002
    %v10033 = vpack.c.b16 %v10005, %v10004
    %v10034 = vpack.c.b16 %v10007, %v10006
    %v10035 = vpack.c.b16 %v10009, %v10008
    %v10036 = vpack.c.b16 %v10011, %v10010
    %v10037 = vpack.c.b16 %v10013, %v10012
    %v10038 = vpack.c.b16 %v10015, %v10014
    %v10039 = vpack.c.b16 %v10017, %v10016
    %v10040 = vpack.c.b16 %v10019, %v10018
    %v10041 = vpack.c.b16 %v10021, %v10020
    %v10042 = vpack.c.b16 %v10023, %v10022
    %v10043 = vpack.c.b16 %v10025, %v10024
    %v10044 = vpack.c.b16 %v10027, %v10026
    %v10045 = vpack.c.b16 %v10029, %v10028
    %10062 = vmatpush.bf16.msra.mxu0 %v10037
    %10063 = vmatpush.bf16.msra.mxu0 %v10036
    %10064 = vmatpush.bf16.msra.mxu0 %v10035
    %10065 = vmatpush.bf16.msra.mxu0 %v10034
    %10066 = vmatpush.bf16.msra.mxu0 %v10033
    %10067 = vmatpush.bf16.msra.mxu0 %v10032
    %10068 = vmatpush.bf16.msra.mxu0 %v10031
    %10069 = vmatpush.bf16.msra.mxu0 %v10030
    %10070 = vmatmul.bf16.gmra.mxu0 %v9928
    %v10071 = vpop.f32.mrf.mxu0
    %v10072 = vadd.f32 %v9964, %v10071
    %v10073 = vpop.f32.mrf.mxu0
    %10074 = vdwg.mxu0
    %10075 = vmatpush.bf16.msra.mxu0 %v10045
    %10076 = vmatpush.bf16.msra.mxu0 %v10044
    %10077 = vmatpush.bf16.msra.mxu0 %v10043
    %10078 = vmatpush.bf16.msra.mxu0 %v10042
    %10079 = vmatpush.bf16.msra.mxu0 %v10041
    %10080 = vmatpush.bf16.msra.mxu0 %v10040
    %10081 = vmatpush.bf16.msra.mxu0 %v10039
    %10082 = vmatpush.bf16.msra.mxu0 %v10038
    %10083 = vmatmul.bf16.gmra.mxu0 %v9929
    %v10084 = vpop.f32.mrf.mxu0
    %v10085 = vadd.f32 %v10072, %v10084
    %v10086 = vpop.f32.mrf.mxu0
    %10087 = vdwg.mxu0
    %v10088 = vmax.f32 %v10085, 0.0
    %v10089 = vpack.c.bf16 %v10088, %v10088
    %v10090 = vld [vmem:[%s11] sm:$0xf]
    %v10091 = vld [vmem:[%s11 + $0x4] sm:$0xf]
    %v10092 = vld [vmem:[%s11 + $0x8] sm:$0xf]
    %v10093 = vld [vmem:[%s11 + $0xc] sm:$0xf]
    %v10094 = vld [vmem:[%s11 + $0x10] sm:$0xf]
    %v10095 = vld [vmem:[%s11 + $0x14] sm:$0xf]
    %v10096 = vld [vmem:[%s11 + $0x18] sm:$0xf]
    %v10097 = vld [vmem:[%s11 + $0x1c] sm:$0xf]
    %v10098 = vld [vmem:[%s11 + $0x20] sm:$0xf]
    %v10099 = vld [vmem:[%s11 + $0x24] sm:$0xf]
    %v10100 = vld [vmem:[%s11 + $0x28] sm:$0xf]
    %v10101 = vld [vmem:[%s11 + $0x2c] sm:$0xf]
    %v10102 = vld [vmem:[%s11 + $0x30] sm:$0xf]
    %v10103 = vld [vmem:[%s11 + $0x34] sm:$0xf]
    %v10104 = vld [vmem:[%s11 + $0x38] sm:$0xf]
    %v10105 = vld [vmem:[%s11 + $0x3c] sm:$0xf]
    %v10106 = vld [vmem:[%s12] sm:$0x1]
    %v10108 = vperm.slane %v10106, 0
    %v10126 = vunpack.c.l.b16 %v10090
    %v10127 = vunpack.c.l.b16 %v10091
    %v10128 = vunpack.c.l.b16 %v10092
    %v10129 = vunpack.c.l.b16 %v10093
    %v10130 = vunpack.c.l.b16 %v10094
    %v10131 = vunpack.c.l.b16 %v10095
    %v10132 = vunpack.c.l.b16 %v10096
    %v10133 = vunpack.c.l.b16 %v10097
    %v10134 = vunpack.c.l.b16 %v10098
    %v10135 = vunpack.c.l.b16 %v10099
    %v10136 = vunpack.c.l.b16 %v10100
    %v10137 = vunpack.c.l.b16 %v10101
    %v10138 = vunpack.c.l.b16 %v10102
    %v10139 = vunpack.c.l.b16 %v10103
    %v10140 = vunpack.c.l.b16 %v10104
    %v10141 = vunpack.c.l.b16 %v10105
    %v10142 = vpack.c.b16 %v10127, %v10126
    %v10143 = vpack.c.b16 %v10129, %v10128
    %v10144 = vpack.c.b16 %v10131, %v10130
    %v10145 = vpack.c.b16 %v10133, %v10132
    %v10146 = vpack.c.b16 %v10135, %v10134
    %v10147 = vpack.c.b16 %v10137, %v10136
    %v10148 = vpack.c.b16 %v10139, %v10138
    %v10149 = vpack.c.b16 %v10141, %v10140
    %10158 = vmatpush.bf16.msra.mxu0 %v10149
    %10159 = vmatpush.bf16.msra.mxu0 %v10148
    %10160 = vmatpush.bf16.msra.mxu0 %v10147
    %10161 = vmatpush.bf16.msra.mxu0 %v10146
    %10162 = vmatpush.bf16.msra.mxu0 %v10145
    %10163 = vmatpush.bf16.msra.mxu0 %v10144
    %10164 = vmatpush.bf16.msra.mxu0 %v10143
    %10165 = vmatpush.bf16.msra.mxu0 %v10142
    %10166 = vmatmul.bf16.gmra.mxu0 %v10089
    %v10167 = vpop.f32.mrf.mxu0
    %v10168 = vadd.f32 %v10108, %v10167
    %v10169 = vpop.f32.mrf.mxu0
    %10170 = vdwg.mxu0
    %10171 = vst [vmem:[#allocation2] sm:$0xff] %v10168
    // Predicated region
    $region54: #{net_forward.1} parent=1 // pred_check
      _
    $region55: #{net_forward.1} parent=1 // pred_check_branch
      %10173 = sbr.rel (0) target = $region57
    $region56: #{net_forward.1} parent=1 // pred_region
      %10175 = vsyncadd [#allocation3], 0
      %s10177 = sshll.u32 [#allocation2], 4
      %s10178 = int_to_ptr.vmem [resolvable:$true] %s10177
      %s10179 = sshll.u32 %s13, 4
      %s10180 = int_to_ptr.hbm [resolvable:$true] %s10179
      %10182 = dma.vmem_to_hbm [thread:$0]  %s10178, 128, %s10180, [#allocation3]
    $region57: #{net_forward.1} parent=1 // pred_fallthru
      _
    // Predicated region
    $region58: #{net_forward.1} parent=1 // pred_check
      _
    $region59: #{net_forward.1} parent=1 // pred_check_branch
      %10184 = sbr.rel (0) target = $region61
    $region60: #{net_forward.1} parent=1 // pred_region
      %10186 = dma.done [#allocation3], 128
    $region61: #{net_forward.1} parent=1 // pred_fallthru
      _
    %10187 = vsyncpa [#allocation3], 1

</llo_original>
